<compile_context>
chip_gen: v7x
topology: tpu7x:2x2x1
jax: 0.10.0
libtpu: 0.0.40
codegen_flags: <defaults>
</compile_context>

<pallas_src>
import functools

import jax
import jax.numpy as jnp
from jax.experimental import pallas as pl
from jax.experimental.pallas import tpu as pltpu

BN_EPS = 1e-5        # torch.nn.BatchNorm1d default eps
NORM_EPS = 1e-12     # torch.nn.functional.normalize default eps


def _round_up(v, m):
    return ((v + m - 1) // m) * m


def _vmem_cap_bytes():
    """Physical VMEM of the current chip; conservative v7x default elsewhere."""
    try:
        return int(pltpu.get_tpu_info().vmem_capacity_bytes)
    except Exception:
        return 64 * 2 ** 20


def _buffered_spec(shape, index_map, depth=3):
    """BlockSpec with 3-deep buffering (covers the epilogue bubble) when the
    installed jax exposes pipeline_mode; plain double-buffered spec otherwise."""
    try:
        return pl.BlockSpec(shape, index_map, pipeline_mode=pl.Buffered(depth))
    except Exception:
        return pl.BlockSpec(shape, index_map)


# ---------------------------------------------------------------------------
# Tiled path: one pallas_call per GIN layer.
# grid = (dst row tiles ["parallel"], src/K reduction tiles ["arbitrary"]).
# ---------------------------------------------------------------------------
def _gin_layer_kernel(n_real, tile_dst,
                      adj_ref, x_ref, aff_ref, w1_ref, w2_ref, b_ref, pool_ref,
                      h_ref, sp_ref, acc_ref, deg_ref):
    # program ids are read ONLY at the top level (never inside pl.when bodies).
    i = pl.program_id(0)
    k = pl.program_id(1)
    row0 = i * tile_dst
    last_k = pl.num_programs(1) - 1

    @pl.when(k == 0)
    def _():
        acc_ref[...] = jnp.zeros_like(acc_ref)
        deg_ref[...] = jnp.zeros_like(deg_ref)

    # int8 adjacency block -> f32 (for the rowsum) -> bf16 (MXU operand).
    adj_f = adj_ref[...].astype(jnp.float32)
    acc_ref[...] += jnp.dot(adj_f.astype(jnp.bfloat16), x_ref[...],
                            preferred_element_type=jnp.float32)
    deg_ref[...] += jnp.sum(adj_f, axis=1, keepdims=True)

    @pl.when(k == last_k)
    def _():
        aff = aff_ref[...]
        a, c = aff[0:1, :], aff[1:2, :]
        # previous layer's BatchNorm affine folded into the aggregate:
        #   (adj+I) @ (x*a + c) == ((adj+I)@x)*a + rowsum(adj+I)*c
        aggr = acc_ref[...] * a + deg_ref[...] * c

        b = b_ref[...]
        m = jnp.maximum(jnp.dot(aggr, w1_ref[...],
                                preferred_element_type=jnp.float32) + b[0:1, :], 0.0)
        h = jnp.maximum(jnp.dot(m, w2_ref[...],
                                preferred_element_type=jnp.float32) + b[1:2, :], 0.0)

        # zero padded node rows (global row index >= n_real)
        row = row0 + jax.lax.broadcasted_iota(jnp.int32, h.shape, 0)
        h = jnp.where(row < n_real, h, 0.0)

        h_ref[...] = h.astype(h_ref.dtype)           # pre-BN activations, bf16
        s = jnp.sum(h, axis=0, keepdims=True)
        ss = jnp.sum(h * h, axis=0, keepdims=True)
        pp = jnp.dot(pool_ref[...], h, preferred_element_type=jnp.float32)
        # packed per-tile partials: [sum; sumsq; pool@h]
        sp_ref[...] = jnp.concatenate([s, ss, pp], axis=0)[None]


def _tiled_vmem_limit(tile_dst, tile_k, fin, dim, bp, cap):
    need = (3 * tile_dst * tile_k                    # adj blocks (int8, 3-deep)
            + tile_dst * tile_k * 4                  # in-kernel f32 cast of adj block
            + 3 * tile_k * fin * 2                   # x blocks (bf16, 3-deep)
            + 2 * tile_dst * dim * 2                 # h output blocks (bf16)
            + 2 * (2 + bp) * dim * 4                 # packed stats output blocks
            + 2 * bp * tile_dst * 4                  # pooling one-hot blocks
            + (fin * dim + dim * dim + 6 * dim + 2 * fin) * 4   # weights / affine
            + tile_dst * (fin + 1) * 4)              # acc + deg scratch
    return int(min(int(0.85 * cap), max(32 * 2 ** 20, 3 * need)))


def _gin_layer(adjI, x, aff, w1, w2, b12, pool, *, tile_dst, tile_k, n_real, cap):
    np_, fin = x.shape
    dim = w1.shape[1]
    bp = pool.shape[0]
    nd, nk = np_ // tile_dst, np_ // tile_k
    kernel = functools.partial(_gin_layer_kernel, n_real, tile_dst)
    return pl.pallas_call(
        kernel,
        grid=(nd, nk),
        in_specs=[
            _buffered_spec((tile_dst, tile_k), lambda i, k: (i, k)),   # adj+I (int8)
            _buffered_spec((tile_k, fin), lambda i, k: (k, 0)),        # x (bf16)
            pl.BlockSpec((2, fin), lambda i, k: (0, 0)),               # prev BN [a; c]
            pl.BlockSpec((fin, dim), lambda i, k: (0, 0)),             # W1
            pl.BlockSpec((dim, dim), lambda i, k: (0, 0)),             # W2
            pl.BlockSpec((2, dim), lambda i, k: (0, 0)),               # packed [b1; b2]
            pl.BlockSpec((bp, tile_dst), lambda i, k: (0, i)),         # pooling one-hot
        ],
        out_specs=(
            pl.BlockSpec((tile_dst, dim), lambda i, k: (i, 0)),        # h (bf16, pre-BN)
            pl.BlockSpec((1, 2 + bp, dim), lambda i, k: (i, 0, 0)),    # [sum; sumsq; pool@h]
        ),
        out_shape=(
            jax.ShapeDtypeStruct((np_, dim), jnp.bfloat16),
            jax.ShapeDtypeStruct((nd, 2 + bp, dim), jnp.float32),
        ),
        scratch_shapes=[pltpu.VMEM((tile_dst, fin), jnp.float32),
                        pltpu.VMEM((tile_dst, 1), jnp.float32)],
        compiler_params=pltpu.CompilerParams(
            dimension_semantics=("parallel", "arbitrary"),
            vmem_limit_bytes=_tiled_vmem_limit(tile_dst, tile_k, fin, dim, bp, cap)),
    )(adjI, x, aff, w1, w2, b12, pool)


# ---------------------------------------------------------------------------
# Tiled path epilogue: projection head + L2 normalize (lane-dense, 128 lanes).
# ---------------------------------------------------------------------------
def _proj_norm_kernel(xc_ref, wp1_ref, bp1_ref, wp2_ref, bp2_ref, y_ref, xo_ref):
    xc = xc_ref[...]
    y = jnp.maximum(jnp.dot(xc, wp1_ref[...],
                            preferred_element_type=jnp.float32) + bp1_ref[...], 0.0)
    y = jnp.dot(y, wp2_ref[...], preferred_element_type=jnp.float32) + bp2_ref[...]
    xo_ref[...] = xc * jax.lax.rsqrt(
        jnp.maximum(jnp.sum(xc * xc, axis=1, keepdims=True), NORM_EPS * NORM_EPS))
    y_ref[...] = y * jax.lax.rsqrt(
        jnp.maximum(jnp.sum(y * y, axis=1, keepdims=True), NORM_EPS * NORM_EPS))


def _proj_head(xc, wp1, bp1, wp2, bp2):
    bp, hp = xc.shape
    return pl.pallas_call(
        _proj_norm_kernel,
        out_shape=(jax.ShapeDtypeStruct((bp, hp), jnp.float32),
                   jax.ShapeDtypeStruct((bp, hp), jnp.float32)),
        compiler_params=pltpu.CompilerParams(vmem_limit_bytes=32 * 2 ** 20),
    )(xc, wp1, bp1, wp2, bp2)


# ---------------------------------------------------------------------------
# Fused path: whole forward in a single pallas_call (adjacency read from HBM
# once, no per-layer launches / grid-step overhead).  Used for small/medium
# graphs where everything fits a v7x-safe VMEM budget.
# ---------------------------------------------------------------------------
def _fused_kernel(n_real, L, hdim, *refs):
    adj_ref, x_ref, pool_ref = refs[0], refs[1], refs[2]
    layer_refs = refs[3:3 + 4 * L]
    wp1_ref, bp1_ref, wp2_ref, bp2_ref = refs[3 + 4 * L:7 + 4 * L]
    y_ref, xo_ref = refs[7 + 4 * L], refs[8 + 4 * L]

    adj_f = adj_ref[...].astype(jnp.float32)          # i8 -> f32 once
    adj = adj_f.astype(jnp.bfloat16)                  # MXU operand
    deg = jnp.sum(adj_f, axis=1, keepdims=True)       # rowsum(adj + I)
    pool = pool_ref[...]
    counts = jnp.sum(pool, axis=1, keepdims=True)
    x = x_ref[...]                                    # bf16 node features

    row = jax.lax.broadcasted_iota(jnp.int32, (adj.shape[0], 1), 0)
    valid = (row < n_real).astype(jnp.float32)
    inv_n = 1.0 / float(n_real)

    a = jnp.ones((1, x.shape[1]), jnp.float32)
    c = jnp.zeros((1, x.shape[1]), jnp.float32)
    pooled = []
    for l in range(L):                                # unrolled: L is small/static
        w1 = layer_refs[4 * l][...]
        w2 = layer_refs[4 * l + 1][...]
        b12 = layer_refs[4 * l + 2][...]
        gb = layer_refs[4 * l + 3][...]
        # (adj+I) @ BN(x_prev): previous layer's BN affine folded in.
        aggr = jnp.dot(adj, x, preferred_element_type=jnp.float32) * a + deg * c
        m = jnp.maximum(jnp.dot(aggr, w1,
                                preferred_element_type=jnp.float32) + b12[0:1, :], 0.0)
        h = jnp.maximum(jnp.dot(m, w2,
                                preferred_element_type=jnp.float32) + b12[1:2, :], 0.0)
        h = h * valid                                 # zero padded node rows
        mean = jnp.sum(h, axis=0, keepdims=True) * inv_n
        var = jnp.maximum(jnp.sum(h * h, axis=0, keepdims=True) * inv_n - mean * mean, 0.0)
        a = gb[0:1, :] * jax.lax.rsqrt(var + BN_EPS)
        c = gb[1:2, :] - mean * a
        # global_add_pool of BN(h):  pool @ (h*a + c) == (pool@h)*a + counts*c
        pooled.append(jnp.dot(pool, h, preferred_element_type=jnp.float32) * a
                      + counts * c)
        x = h.astype(jnp.bfloat16)

    hp = wp1_ref.shape[0]
    if hp > hdim:                                     # lane-pad to 128 (zeros)
        pooled.append(jnp.zeros((pool.shape[0], hp - hdim), jnp.float32))
    xc = jnp.concatenate(pooled, axis=1)              # (bp, hp)

    y = jnp.maximum(jnp.dot(xc, wp1_ref[...],
                            preferred_element_type=jnp.float32) + bp1_ref[...], 0.0)
    y = jnp.dot(y, wp2_ref[...], preferred_element_type=jnp.float32) + bp2_ref[...]
    xo_ref[...] = xc * jax.lax.rsqrt(
        jnp.maximum(jnp.sum(xc * xc, axis=1, keepdims=True), NORM_EPS * NORM_EPS))
    y_ref[...] = y * jax.lax.rsqrt(
        jnp.maximum(jnp.sum(y * y, axis=1, keepdims=True), NORM_EPS * NORM_EPS))


def _encoder_fused(adjI, x_bf16, pool, params, wp1, bp1, wp2, bp2, n_real, hdim, cap):
    L = params["num_gc_layers"]
    dim = params["dim"]
    bp = pool.shape[0]
    hp = wp1.shape[0]
    np_ = adjI.shape[0]

    args = [adjI, x_bf16, pool]
    for lp in params["layers"]:
        args += [lp["w1"], lp["w2"],
                 jnp.concatenate([lp["b1"], lp["b2"]], axis=0),
                 jnp.concatenate([lp["gamma"], lp["beta"]], axis=0)]
    args += [wp1, bp1, wp2, bp2]

    need = (7 * np_ * np_                              # adj: i8 + f32 + bf16 copies
            + 24 * np_ * max(dim, x_bf16.shape[1])     # activations / transients
            + 4 * (bp * np_ + 3 * hp * hp + 2 * bp * hp))
    vmem_limit = int(min(int(0.85 * cap), max(32 * 2 ** 20, 2 * need)))

    kernel = functools.partial(_fused_kernel, n_real, L, hdim)
    return pl.pallas_call(
        kernel,
        out_shape=(jax.ShapeDtypeStruct((bp, hp), jnp.float32),
                   jax.ShapeDtypeStruct((bp, hp), jnp.float32)),
        compiler_params=pltpu.CompilerParams(vmem_limit_bytes=vmem_limit),
    )(*args)


# ---------------------------------------------------------------------------
# Parameters (same shapes as Encoder_Core.__init__)
# ---------------------------------------------------------------------------
def init_params(key, num_features, dim, num_gc_layers):
    L = num_gc_layers
    ks = jax.random.split(key, 4 * L + 4)
    idx = 0
    layers = []
    in_dim = num_features
    for _ in range(L):
        w1 = 0.1 * jax.random.normal(ks[idx], (in_dim, dim), jnp.float32); idx += 1
        b1 = 0.1 * jax.random.normal(ks[idx], (1, dim), jnp.float32); idx += 1
        w2 = 0.1 * jax.random.normal(ks[idx], (dim, dim), jnp.float32); idx += 1
        b2 = 0.1 * jax.random.normal(ks[idx], (1, dim), jnp.float32); idx += 1
        gamma = jnp.ones((1, dim), jnp.float32)       # BN weight init
        beta = jnp.zeros((1, dim), jnp.float32)       # BN bias init
        layers.append(dict(w1=w1, b1=b1, w2=w2, b2=b2, gamma=gamma, beta=beta))
        in_dim = dim
    h = L * dim
    wp1 = 0.1 * jax.random.normal(ks[idx], (h, h), jnp.float32); idx += 1
    bp1 = 0.1 * jax.random.normal(ks[idx], (1, h), jnp.float32); idx += 1
    wp2 = 0.1 * jax.random.normal(ks[idx], (h, h), jnp.float32); idx += 1
    bp2 = 0.1 * jax.random.normal(ks[idx], (1, h), jnp.float32); idx += 1
    return dict(num_gc_layers=L, dim=dim, layers=layers,
                wp1=wp1, bp1=bp1, wp2=wp2, bp2=bp2)


# ---------------------------------------------------------------------------
# Forward pass
# ---------------------------------------------------------------------------
def encoder_core_forward(x, edge_index, batch, params, num_graphs,
                         path=None, tile_dst=128, tile_k=512):
    x = x.astype(jnp.float32)
    n, fin = x.shape
    L, dim = params["num_gc_layers"], params["dim"]
    nb = int(num_graphs)
    hdim = L * dim
    hp = _round_up(hdim, 128)
    bp = _round_up(max(nb, 1), 8)
    cap = _vmem_cap_bytes()

    if path is None:
        np128 = _round_up(n, 128)
        fused_need = 7 * np128 * np128 + 24 * np128 * max(fin, dim) \
            + 4 * (bp * np128 + 3 * hp * hp)
        path = "fused" if fused_need <= int(0.45 * cap) else "tiled"

    if path == "fused":
        np_ = _round_up(n, 128)
    else:
        # dst tile stays small (<=256); K/src tile is wide for big adjacency DMAs.
        np_ = _round_up(n, tile_dst)
        if np_ >= 2 * tile_dst:
            np_ = _round_up(np_, 2 * tile_dst)   # even dst-tile count: v7x 2-TC balance
        tile_k = min(tile_k, np_)
        while tile_k > tile_dst and _round_up(np_, tile_k) * 8 > np_ * 9:
            tile_k //= 2                          # avoid >12.5% padding blow-up
        np_ = _round_up(np_, tile_k)

    # -- adjacency with the GIN self-term folded in, built directly in int8 ---
    # (exact for integer edge multiplicities <= 127; typical molecular graphs: 1)
    src, dst = edge_index[0], edge_index[1]
    adjI = jnp.zeros((np_, np_), jnp.int8)
    adjI = adjI.at[dst, src].add(jnp.int8(1))
    adjI = adjI.at[jnp.arange(n), jnp.arange(n)].add(jnp.int8(1))

    pool = (batch[None, :] == jnp.arange(bp, dtype=batch.dtype)[:, None])
    pool = jnp.pad(pool.astype(jnp.float32), ((0, 0), (0, np_ - n)))   # [bp, np_]
    x_pad = jnp.pad(x, ((0, np_ - n), (0, 0))).astype(jnp.bfloat16)    # cast once

    pw = hp - hdim
    wp1 = jnp.pad(params["wp1"], ((0, pw), (0, pw)))
    bp1 = jnp.pad(params["bp1"], ((0, 0), (0, pw)))
    wp2 = jnp.pad(params["wp2"], ((0, pw), (0, pw)))
    bp2 = jnp.pad(params["bp2"], ((0, 0), (0, pw)))

    if path == "fused":
        y_p, x_p = _encoder_fused(adjI, x_pad, pool, params, wp1, bp1, wp2, bp2,
                                  n, hdim, cap)
        return y_p[:nb, :hdim], x_p[:nb, :hdim]

    # ------------------------------- tiled path ------------------------------
    counts = jnp.sum(pool, axis=1, keepdims=True)                      # nodes/graph
    aff = jnp.concatenate([jnp.ones((1, fin), jnp.float32),
                           jnp.zeros((1, fin), jnp.float32)], axis=0)  # identity affine
    x_cur = x_pad
    pooled_layers = []
    for lp in params["layers"]:
        b12 = jnp.concatenate([lp["b1"], lp["b2"]], axis=0)
        h, sp = _gin_layer(adjI, x_cur, aff, lp["w1"], lp["w2"], b12, pool,
                           tile_dst=tile_dst, tile_k=tile_k, n_real=n, cap=cap)
        sp = jnp.sum(sp, axis=0)                                       # [2+bp, dim]
        mean = sp[0] / float(n)
        var = jnp.maximum(sp[1] / float(n) - mean * mean, 0.0)
        a = lp["gamma"][0] * jax.lax.rsqrt(var + BN_EPS)
        c = lp["beta"][0] - mean * a
        pooled_layers.append(sp[2:] * a[None, :] + counts * c[None, :])
        x_cur = h                                                      # bf16 pre-BN h
        aff = jnp.stack([a, c], axis=0)

    xc = jnp.concatenate(pooled_layers, axis=1)                        # [bp, L*dim]
    xc_p = jnp.pad(xc, ((0, 0), (0, pw)))
    y_p, x_p = _proj_head(xc_p, wp1, bp1, wp2, bp2)
    return y_p[:nb, :hdim], x_p[:nb, :hdim]


# ---------------------------------------------------------------------------
# Pure-JAX f32 reference (same math, training-mode BatchNorm statistics).
# ---------------------------------------------------------------------------
def encoder_core_reference(x, edge_index, batch, params, num_graphs):
    n = x.shape[0]
    src, dst = edge_index[0], edge_index[1]
    A = jnp.zeros((n, n), jnp.float32).at[dst, src].add(1.0) + jnp.eye(n, dtype=jnp.float32)
    pool = (batch[None, :] == jnp.arange(num_graphs)[:, None]).astype(jnp.float32)
    h = x.astype(jnp.float32)
    pooled = []
    for lp in params["layers"]:
        agg = A @ h
        m = jax.nn.relu(agg @ lp["w1"] + lp["b1"])
        h = jax.nn.relu(m @ lp["w2"] + lp["b2"])
        mean = jnp.mean(h, axis=0)
        var = jnp.mean((h - mean) ** 2, axis=0)
        h = (h - mean) * jax.lax.rsqrt(var + BN_EPS) * lp["gamma"][0] + lp["beta"][0]
        pooled.append(pool @ h)
    xc = jnp.concatenate(pooled, axis=1)
    y = jax.nn.relu(xc @ params["wp1"] + params["bp1"]) @ params["wp2"] + params["bp2"]
    xn = xc / jnp.maximum(jnp.linalg.norm(xc, axis=1, keepdims=True), NORM_EPS)
    yn = y / jnp.maximum(jnp.linalg.norm(y, axis=1, keepdims=True), NORM_EPS)
    return yn, xn


if __name__ == "__main__":
    key = jax.random.PRNGKey(0)
    N_NODES, NUM_FEATURES, DIM, NUM_GC_LAYERS = 300, 8, 32, 3
    NUM_GRAPHS, NUM_EDGES = 2, 1200

    k_x, k_src, k_dst, k_params = jax.random.split(key, 4)
    x = jax.random.normal(k_x, (N_NODES, NUM_FEATURES), jnp.float32)
    src = jax.random.randint(k_src, (NUM_EDGES,), 0, N_NODES, dtype=jnp.int32)
    dst = jax.random.randint(k_dst, (NUM_EDGES,), 0, N_NODES, dtype=jnp.int32)
    edge_index = jnp.stack([src, dst], axis=0)                         # [2, E]
    batch = jnp.concatenate([jnp.zeros(N_NODES // 2, jnp.int32),
                             jnp.ones(N_NODES - N_NODES // 2, jnp.int32)])  # [N]
    params = init_params(k_params, NUM_FEATURES, DIM, NUM_GC_LAYERS)

    # Small-graph path: everything fused into a single pallas_call.
    y_f, x_f = encoder_core_forward(x, edge_index, batch, params, NUM_GRAPHS, path="fused")
    # Large-graph path: per-layer tiled kernels (exercised here for validation).
    y_t, x_t = encoder_core_forward(x, edge_index, batch, params, NUM_GRAPHS, path="tiled")
    jax.block_until_ready((y_f, x_f, y_t, x_t))

    y_r, x_r = encoder_core_reference(x, edge_index, batch, params, NUM_GRAPHS)

    for y_k, x_k in ((y_f, x_f), (y_t, x_t)):
        assert y_k.shape == (NUM_GRAPHS, NUM_GC_LAYERS * DIM)
        assert x_k.shape == (NUM_GRAPHS, NUM_GC_LAYERS * DIM)
        assert bool(jnp.all(jnp.isfinite(y_k))) and bool(jnp.all(jnp.isfinite(x_k)))
        # bf16 activations / adjacency path vs f32 reference
        assert float(jnp.max(jnp.abs(y_k - y_r))) < 5e-2
        assert float(jnp.max(jnp.abs(x_k - x_r))) < 5e-2
    print("KERNEL_OK")
</pallas_src>

<mosaic_0001>
module attributes {stable_mosaic.version = 11 : i64} {
  func.func @_fused_kernel(%arg0: memref<384x384xi8, #tpu.memory_space<vmem>>, %arg1: memref<384x8xbf16, #tpu.memory_space<vmem>>, %arg2: memref<8x384xf32, #tpu.memory_space<vmem>>, %arg3: memref<8x32xf32, #tpu.memory_space<vmem>>, %arg4: memref<32x32xf32, #tpu.memory_space<vmem>>, %arg5: memref<2x32xf32, #tpu.memory_space<vmem>>, %arg6: memref<2x32xf32, #tpu.memory_space<vmem>>, %arg7: memref<32x32xf32, #tpu.memory_space<vmem>>, %arg8: memref<32x32xf32, #tpu.memory_space<vmem>>, %arg9: memref<2x32xf32, #tpu.memory_space<vmem>>, %arg10: memref<2x32xf32, #tpu.memory_space<vmem>>, %arg11: memref<32x32xf32, #tpu.memory_space<vmem>>, %arg12: memref<32x32xf32, #tpu.memory_space<vmem>>, %arg13: memref<2x32xf32, #tpu.memory_space<vmem>>, %arg14: memref<2x32xf32, #tpu.memory_space<vmem>>, %arg15: memref<128x128xf32, #tpu.memory_space<vmem>>, %arg16: memref<1x128xf32, #tpu.memory_space<vmem>>, %arg17: memref<128x128xf32, #tpu.memory_space<vmem>>, %arg18: memref<1x128xf32, #tpu.memory_space<vmem>>, %arg19: memref<8x128xf32, #tpu.memory_space<vmem>>, %arg20: memref<8x128xf32, #tpu.memory_space<vmem>>) attributes {dimension_semantics = [], scalar_prefetch = 0 : i64, scratch_operands = 0 : i64, tpu.core_type = #tpu.core_type<tc>} {
    %c0 = arith.constant 0 : index
    %c0_0 = arith.constant 0 : index
    %0 = vector.load %arg0[%c0, %c0_0] : memref<384x384xi8, #tpu.memory_space<vmem>>, vector<384x384xi8>
    %1 = arith.sitofp %0 : vector<384x384xi8> to vector<384x384xf32>
    %2 = arith.truncf %1 : vector<384x384xf32> to vector<384x384xbf16>
    %cst = arith.constant dense<0.000000e+00> : vector<384xf32>
    %3 = vector.multi_reduction <add>, %1, %cst [1] : vector<384x384xf32> to vector<384xf32>
    %4 = vector.shape_cast %3 : vector<384xf32> to vector<384x1xf32>
    %c0_1 = arith.constant 0 : index
    %c0_2 = arith.constant 0 : index
    %5 = vector.load %arg2[%c0_1, %c0_2] : memref<8x384xf32, #tpu.memory_space<vmem>>, vector<8x384xf32>
    %cst_3 = arith.constant dense<0.000000e+00> : vector<8xf32>
    %6 = vector.multi_reduction <add>, %5, %cst_3 [1] : vector<8x384xf32> to vector<8xf32>
    %7 = vector.shape_cast %6 : vector<8xf32> to vector<8x1xf32>
    %c0_4 = arith.constant 0 : index
    %c0_5 = arith.constant 0 : index
    %8 = vector.load %arg1[%c0_4, %c0_5] : memref<384x8xbf16, #tpu.memory_space<vmem>>, vector<384x8xbf16>
    %9 = tpu.iota {dimensions = array<i32: 0>} : vector<384x1xi32>
    %c300_i32 = arith.constant 300 : i32
    %10 = vector.broadcast %c300_i32 : i32 to vector<384x1xi32>
    %11 = arith.cmpi slt, %9, %10 : vector<384x1xi32>
    %12 = arith.extui %11 : vector<384x1xi1> to vector<384x1xi32>
    %13 = arith.sitofp %12 : vector<384x1xi32> to vector<384x1xf32>
    %cst_6 = arith.constant 1.000000e+00 : f32
    %14 = vector.broadcast %cst_6 : f32 to vector<1x8xf32>
    %cst_7 = arith.constant 0.000000e+00 : f32
    %15 = vector.broadcast %cst_7 : f32 to vector<1x8xf32>
    %c0_8 = arith.constant 0 : index
    %c0_9 = arith.constant 0 : index
    %16 = vector.load %arg3[%c0_8, %c0_9] : memref<8x32xf32, #tpu.memory_space<vmem>>, vector<8x32xf32>
    %c0_10 = arith.constant 0 : index
    %c0_11 = arith.constant 0 : index
    %17 = vector.load %arg4[%c0_10, %c0_11] : memref<32x32xf32, #tpu.memory_space<vmem>>, vector<32x32xf32>
    %c0_12 = arith.constant 0 : index
    %c0_13 = arith.constant 0 : index
    %18 = vector.load %arg5[%c0_12, %c0_13] : memref<2x32xf32, #tpu.memory_space<vmem>>, vector<2x32xf32>
    %c0_14 = arith.constant 0 : index
    %c0_15 = arith.constant 0 : index
    %19 = vector.load %arg6[%c0_14, %c0_15] : memref<2x32xf32, #tpu.memory_space<vmem>>, vector<2x32xf32>
    %cst_16 = arith.constant dense<0.000000e+00> : vector<384x8xf32>
    %20 = tpu.matmul %2, %8, %cst_16 {dimension_numbers = #tpu.dot_dimension_numbers<[1], [0], [0], [1], [0, 0, 1, 1], [], []>} : vector<384x384xbf16>, vector<384x8xbf16>, vector<384x8xf32> -> vector<384x8xf32>
    %21 = vector.broadcast %14 : vector<1x8xf32> to vector<384x8xf32>
    %22 = arith.mulf %20, %21 : vector<384x8xf32>
    %23 = vector.broadcast %4 : vector<384x1xf32> to vector<384x8xf32>
    %24 = vector.broadcast %15 : vector<1x8xf32> to vector<384x8xf32>
    %25 = arith.mulf %23, %24 : vector<384x8xf32>
    %26 = arith.addf %22, %25 : vector<384x8xf32>
    %cst_17 = arith.constant dense<0.000000e+00> : vector<384x32xf32>
    %27 = tpu.matmul %26, %16, %cst_17 {dimension_numbers = #tpu.dot_dimension_numbers<[1], [0], [0], [1], [0, 0, 1, 1], [], []>} : vector<384x8xf32>, vector<8x32xf32>, vector<384x32xf32> -> vector<384x32xf32>
    %28 = vector.extract_strided_slice %18 {offsets = [0, 0], sizes = [1, 32], strides = [1, 1]} : vector<2x32xf32> to vector<1x32xf32>
    %29 = vector.broadcast %28 : vector<1x32xf32> to vector<384x32xf32>
    %30 = arith.addf %27, %29 : vector<384x32xf32>
    %cst_18 = arith.constant 0.000000e+00 : f32
    %31 = vector.broadcast %cst_18 : f32 to vector<384x32xf32>
    %32 = arith.maximumf %30, %31 : vector<384x32xf32>
    %cst_19 = arith.constant dense<0.000000e+00> : vector<384x32xf32>
    %33 = tpu.matmul %32, %17, %cst_19 {dimension_numbers = #tpu.dot_dimension_numbers<[1], [0], [0], [1], [0, 0, 1, 1], [], []>} : vector<384x32xf32>, vector<32x32xf32>, vector<384x32xf32> -> vector<384x32xf32>
    %34 = vector.extract_strided_slice %18 {offsets = [1, 0], sizes = [1, 32], strides = [1, 1]} : vector<2x32xf32> to vector<1x32xf32>
    %35 = vector.broadcast %34 : vector<1x32xf32> to vector<384x32xf32>
    %36 = arith.addf %33, %35 : vector<384x32xf32>
    %cst_20 = arith.constant 0.000000e+00 : f32
    %37 = vector.broadcast %cst_20 : f32 to vector<384x32xf32>
    %38 = arith.maximumf %36, %37 : vector<384x32xf32>
    %39 = vector.broadcast %13 : vector<384x1xf32> to vector<384x32xf32>
    %40 = arith.mulf %38, %39 : vector<384x32xf32>
    %cst_21 = arith.constant dense<0.000000e+00> : vector<32xf32>
    %41 = vector.multi_reduction <add>, %40, %cst_21 [0] : vector<384x32xf32> to vector<32xf32>
    %42 = vector.shape_cast %41 : vector<32xf32> to vector<1x32xf32>
    %cst_22 = arith.constant 0.00333333341 : f32
    %43 = vector.broadcast %cst_22 : f32 to vector<1x32xf32>
    %44 = arith.mulf %42, %43 : vector<1x32xf32>
    %45 = arith.mulf %40, %40 : vector<384x32xf32>
    %cst_23 = arith.constant dense<0.000000e+00> : vector<32xf32>
    %46 = vector.multi_reduction <add>, %45, %cst_23 [0] : vector<384x32xf32> to vector<32xf32>
    %47 = vector.shape_cast %46 : vector<32xf32> to vector<1x32xf32>
    %cst_24 = arith.constant 0.00333333341 : f32
    %48 = vector.broadcast %cst_24 : f32 to vector<1x32xf32>
    %49 = arith.mulf %47, %48 : vector<1x32xf32>
    %50 = arith.mulf %44, %44 : vector<1x32xf32>
    %51 = arith.subf %49, %50 : vector<1x32xf32>
    %cst_25 = arith.constant 0.000000e+00 : f32
    %52 = vector.broadcast %cst_25 : f32 to vector<1x32xf32>
    %53 = arith.maximumf %51, %52 : vector<1x32xf32>
    %54 = vector.extract_strided_slice %19 {offsets = [0, 0], sizes = [1, 32], strides = [1, 1]} : vector<2x32xf32> to vector<1x32xf32>
    %cst_26 = arith.constant 9.99999974E-6 : f32
    %55 = vector.broadcast %cst_26 : f32 to vector<1x32xf32>
    %56 = arith.addf %53, %55 : vector<1x32xf32>
    %57 = math.rsqrt %56 : vector<1x32xf32>
    %58 = arith.mulf %54, %57 : vector<1x32xf32>
    %59 = vector.extract_strided_slice %19 {offsets = [1, 0], sizes = [1, 32], strides = [1, 1]} : vector<2x32xf32> to vector<1x32xf32>
    %60 = arith.mulf %44, %58 : vector<1x32xf32>
    %61 = arith.subf %59, %60 : vector<1x32xf32>
    %cst_27 = arith.constant dense<0.000000e+00> : vector<8x32xf32>
    %62 = tpu.matmul %5, %40, %cst_27 {dimension_numbers = #tpu.dot_dimension_numbers<[1], [0], [0], [1], [0, 0, 1, 1], [], []>} : vector<8x384xf32>, vector<384x32xf32>, vector<8x32xf32> -> vector<8x32xf32>
    %63 = vector.broadcast %58 : vector<1x32xf32> to vector<8x32xf32>
    %64 = arith.mulf %62, %63 : vector<8x32xf32>
    %65 = vector.broadcast %7 : vector<8x1xf32> to vector<8x32xf32>
    %66 = vector.broadcast %61 : vector<1x32xf32> to vector<8x32xf32>
    %67 = arith.mulf %65, %66 : vector<8x32xf32>
    %68 = arith.addf %64, %67 : vector<8x32xf32>
    %69 = arith.truncf %40 : vector<384x32xf32> to vector<384x32xbf16>
    %c0_28 = arith.constant 0 : index
    %c0_29 = arith.constant 0 : index
    %70 = vector.load %arg7[%c0_28, %c0_29] : memref<32x32xf32, #tpu.memory_space<vmem>>, vector<32x32xf32>
    %c0_30 = arith.constant 0 : index
    %c0_31 = arith.constant 0 : index
    %71 = vector.load %arg8[%c0_30, %c0_31] : memref<32x32xf32, #tpu.memory_space<vmem>>, vector<32x32xf32>
    %c0_32 = arith.constant 0 : index
    %c0_33 = arith.constant 0 : index
    %72 = vector.load %arg9[%c0_32, %c0_33] : memref<2x32xf32, #tpu.memory_space<vmem>>, vector<2x32xf32>
    %c0_34 = arith.constant 0 : index
    %c0_35 = arith.constant 0 : index
    %73 = vector.load %arg10[%c0_34, %c0_35] : memref<2x32xf32, #tpu.memory_space<vmem>>, vector<2x32xf32>
    %cst_36 = arith.constant dense<0.000000e+00> : vector<384x32xf32>
    %74 = tpu.matmul %2, %69, %cst_36 {dimension_numbers = #tpu.dot_dimension_numbers<[1], [0], [0], [1], [0, 0, 1, 1], [], []>} : vector<384x384xbf16>, vector<384x32xbf16>, vector<384x32xf32> -> vector<384x32xf32>
    %75 = vector.broadcast %58 : vector<1x32xf32> to vector<384x32xf32>
    %76 = arith.mulf %74, %75 : vector<384x32xf32>
    %77 = vector.broadcast %4 : vector<384x1xf32> to vector<384x32xf32>
    %78 = vector.broadcast %61 : vector<1x32xf32> to vector<384x32xf32>
    %79 = arith.mulf %77, %78 : vector<384x32xf32>
    %80 = arith.addf %76, %79 : vector<384x32xf32>
    %cst_37 = arith.constant dense<0.000000e+00> : vector<384x32xf32>
    %81 = tpu.matmul %80, %70, %cst_37 {dimension_numbers = #tpu.dot_dimension_numbers<[1], [0], [0], [1], [0, 0, 1, 1], [], []>} : vector<384x32xf32>, vector<32x32xf32>, vector<384x32xf32> -> vector<384x32xf32>
    %82 = vector.extract_strided_slice %72 {offsets = [0, 0], sizes = [1, 32], strides = [1, 1]} : vector<2x32xf32> to vector<1x32xf32>
    %83 = vector.broadcast %82 : vector<1x32xf32> to vector<384x32xf32>
    %84 = arith.addf %81, %83 : vector<384x32xf32>
    %cst_38 = arith.constant 0.000000e+00 : f32
    %85 = vector.broadcast %cst_38 : f32 to vector<384x32xf32>
    %86 = arith.maximumf %84, %85 : vector<384x32xf32>
    %cst_39 = arith.constant dense<0.000000e+00> : vector<384x32xf32>
    %87 = tpu.matmul %86, %71, %cst_39 {dimension_numbers = #tpu.dot_dimension_numbers<[1], [0], [0], [1], [0, 0, 1, 1], [], []>} : vector<384x32xf32>, vector<32x32xf32>, vector<384x32xf32> -> vector<384x32xf32>
    %88 = vector.extract_strided_slice %72 {offsets = [1, 0], sizes = [1, 32], strides = [1, 1]} : vector<2x32xf32> to vector<1x32xf32>
    %89 = vector.broadcast %88 : vector<1x32xf32> to vector<384x32xf32>
    %90 = arith.addf %87, %89 : vector<384x32xf32>
    %cst_40 = arith.constant 0.000000e+00 : f32
    %91 = vector.broadcast %cst_40 : f32 to vector<384x32xf32>
    %92 = arith.maximumf %90, %91 : vector<384x32xf32>
    %93 = vector.broadcast %13 : vector<384x1xf32> to vector<384x32xf32>
    %94 = arith.mulf %92, %93 : vector<384x32xf32>
    %cst_41 = arith.constant dense<0.000000e+00> : vector<32xf32>
    %95 = vector.multi_reduction <add>, %94, %cst_41 [0] : vector<384x32xf32> to vector<32xf32>
    %96 = vector.shape_cast %95 : vector<32xf32> to vector<1x32xf32>
    %cst_42 = arith.constant 0.00333333341 : f32
    %97 = vector.broadcast %cst_42 : f32 to vector<1x32xf32>
    %98 = arith.mulf %96, %97 : vector<1x32xf32>
    %99 = arith.mulf %94, %94 : vector<384x32xf32>
    %cst_43 = arith.constant dense<0.000000e+00> : vector<32xf32>
    %100 = vector.multi_reduction <add>, %99, %cst_43 [0] : vector<384x32xf32> to vector<32xf32>
    %101 = vector.shape_cast %100 : vector<32xf32> to vector<1x32xf32>
    %cst_44 = arith.constant 0.00333333341 : f32
    %102 = vector.broadcast %cst_44 : f32 to vector<1x32xf32>
    %103 = arith.mulf %101, %102 : vector<1x32xf32>
    %104 = arith.mulf %98, %98 : vector<1x32xf32>
    %105 = arith.subf %103, %104 : vector<1x32xf32>
    %cst_45 = arith.constant 0.000000e+00 : f32
    %106 = vector.broadcast %cst_45 : f32 to vector<1x32xf32>
    %107 = arith.maximumf %105, %106 : vector<1x32xf32>
    %108 = vector.extract_strided_slice %73 {offsets = [0, 0], sizes = [1, 32], strides = [1, 1]} : vector<2x32xf32> to vector<1x32xf32>
    %cst_46 = arith.constant 9.99999974E-6 : f32
    %109 = vector.broadcast %cst_46 : f32 to vector<1x32xf32>
    %110 = arith.addf %107, %109 : vector<1x32xf32>
    %111 = math.rsqrt %110 : vector<1x32xf32>
    %112 = arith.mulf %108, %111 : vector<1x32xf32>
    %113 = vector.extract_strided_slice %73 {offsets = [1, 0], sizes = [1, 32], strides = [1, 1]} : vector<2x32xf32> to vector<1x32xf32>
    %114 = arith.mulf %98, %112 : vector<1x32xf32>
    %115 = arith.subf %113, %114 : vector<1x32xf32>
    %cst_47 = arith.constant dense<0.000000e+00> : vector<8x32xf32>
    %116 = tpu.matmul %5, %94, %cst_47 {dimension_numbers = #tpu.dot_dimension_numbers<[1], [0], [0], [1], [0, 0, 1, 1], [], []>} : vector<8x384xf32>, vector<384x32xf32>, vector<8x32xf32> -> vector<8x32xf32>
    %117 = vector.broadcast %112 : vector<1x32xf32> to vector<8x32xf32>
    %118 = arith.mulf %116, %117 : vector<8x32xf32>
    %119 = vector.broadcast %7 : vector<8x1xf32> to vector<8x32xf32>
    %120 = vector.broadcast %115 : vector<1x32xf32> to vector<8x32xf32>
    %121 = arith.mulf %119, %120 : vector<8x32xf32>
    %122 = arith.addf %118, %121 : vector<8x32xf32>
    %123 = arith.truncf %94 : vector<384x32xf32> to vector<384x32xbf16>
    %c0_48 = arith.constant 0 : index
    %c0_49 = arith.constant 0 : index
    %124 = vector.load %arg11[%c0_48, %c0_49] : memref<32x32xf32, #tpu.memory_space<vmem>>, vector<32x32xf32>
    %c0_50 = arith.constant 0 : index
    %c0_51 = arith.constant 0 : index
    %125 = vector.load %arg12[%c0_50, %c0_51] : memref<32x32xf32, #tpu.memory_space<vmem>>, vector<32x32xf32>
    %c0_52 = arith.constant 0 : index
    %c0_53 = arith.constant 0 : index
    %126 = vector.load %arg13[%c0_52, %c0_53] : memref<2x32xf32, #tpu.memory_space<vmem>>, vector<2x32xf32>
    %c0_54 = arith.constant 0 : index
    %c0_55 = arith.constant 0 : index
    %127 = vector.load %arg14[%c0_54, %c0_55] : memref<2x32xf32, #tpu.memory_space<vmem>>, vector<2x32xf32>
    %cst_56 = arith.constant dense<0.000000e+00> : vector<384x32xf32>
    %128 = tpu.matmul %2, %123, %cst_56 {dimension_numbers = #tpu.dot_dimension_numbers<[1], [0], [0], [1], [0, 0, 1, 1], [], []>} : vector<384x384xbf16>, vector<384x32xbf16>, vector<384x32xf32> -> vector<384x32xf32>
    %129 = vector.broadcast %112 : vector<1x32xf32> to vector<384x32xf32>
    %130 = arith.mulf %128, %129 : vector<384x32xf32>
    %131 = vector.broadcast %4 : vector<384x1xf32> to vector<384x32xf32>
    %132 = vector.broadcast %115 : vector<1x32xf32> to vector<384x32xf32>
    %133 = arith.mulf %131, %132 : vector<384x32xf32>
    %134 = arith.addf %130, %133 : vector<384x32xf32>
    %cst_57 = arith.constant dense<0.000000e+00> : vector<384x32xf32>
    %135 = tpu.matmul %134, %124, %cst_57 {dimension_numbers = #tpu.dot_dimension_numbers<[1], [0], [0], [1], [0, 0, 1, 1], [], []>} : vector<384x32xf32>, vector<32x32xf32>, vector<384x32xf32> -> vector<384x32xf32>
    %136 = vector.extract_strided_slice %126 {offsets = [0, 0], sizes = [1, 32], strides = [1, 1]} : vector<2x32xf32> to vector<1x32xf32>
    %137 = vector.broadcast %136 : vector<1x32xf32> to vector<384x32xf32>
    %138 = arith.addf %135, %137 : vector<384x32xf32>
    %cst_58 = arith.constant 0.000000e+00 : f32
    %139 = vector.broadcast %cst_58 : f32 to vector<384x32xf32>
    %140 = arith.maximumf %138, %139 : vector<384x32xf32>
    %cst_59 = arith.constant dense<0.000000e+00> : vector<384x32xf32>
    %141 = tpu.matmul %140, %125, %cst_59 {dimension_numbers = #tpu.dot_dimension_numbers<[1], [0], [0], [1], [0, 0, 1, 1], [], []>} : vector<384x32xf32>, vector<32x32xf32>, vector<384x32xf32> -> vector<384x32xf32>
    %142 = vector.extract_strided_slice %126 {offsets = [1, 0], sizes = [1, 32], strides = [1, 1]} : vector<2x32xf32> to vector<1x32xf32>
    %143 = vector.broadcast %142 : vector<1x32xf32> to vector<384x32xf32>
    %144 = arith.addf %141, %143 : vector<384x32xf32>
    %cst_60 = arith.constant 0.000000e+00 : f32
    %145 = vector.broadcast %cst_60 : f32 to vector<384x32xf32>
    %146 = arith.maximumf %144, %145 : vector<384x32xf32>
    %147 = vector.broadcast %13 : vector<384x1xf32> to vector<384x32xf32>
    %148 = arith.mulf %146, %147 : vector<384x32xf32>
    %cst_61 = arith.constant dense<0.000000e+00> : vector<32xf32>
    %149 = vector.multi_reduction <add>, %148, %cst_61 [0] : vector<384x32xf32> to vector<32xf32>
    %150 = vector.shape_cast %149 : vector<32xf32> to vector<1x32xf32>
    %cst_62 = arith.constant 0.00333333341 : f32
    %151 = vector.broadcast %cst_62 : f32 to vector<1x32xf32>
    %152 = arith.mulf %150, %151 : vector<1x32xf32>
    %153 = arith.mulf %148, %148 : vector<384x32xf32>
    %cst_63 = arith.constant dense<0.000000e+00> : vector<32xf32>
    %154 = vector.multi_reduction <add>, %153, %cst_63 [0] : vector<384x32xf32> to vector<32xf32>
    %155 = vector.shape_cast %154 : vector<32xf32> to vector<1x32xf32>
    %cst_64 = arith.constant 0.00333333341 : f32
    %156 = vector.broadcast %cst_64 : f32 to vector<1x32xf32>
    %157 = arith.mulf %155, %156 : vector<1x32xf32>
    %158 = arith.mulf %152, %152 : vector<1x32xf32>
    %159 = arith.subf %157, %158 : vector<1x32xf32>
    %cst_65 = arith.constant 0.000000e+00 : f32
    %160 = vector.broadcast %cst_65 : f32 to vector<1x32xf32>
    %161 = arith.maximumf %159, %160 : vector<1x32xf32>
    %162 = vector.extract_strided_slice %127 {offsets = [0, 0], sizes = [1, 32], strides = [1, 1]} : vector<2x32xf32> to vector<1x32xf32>
    %cst_66 = arith.constant 9.99999974E-6 : f32
    %163 = vector.broadcast %cst_66 : f32 to vector<1x32xf32>
    %164 = arith.addf %161, %163 : vector<1x32xf32>
    %165 = math.rsqrt %164 : vector<1x32xf32>
    %166 = arith.mulf %162, %165 : vector<1x32xf32>
    %167 = vector.extract_strided_slice %127 {offsets = [1, 0], sizes = [1, 32], strides = [1, 1]} : vector<2x32xf32> to vector<1x32xf32>
    %168 = arith.mulf %152, %166 : vector<1x32xf32>
    %169 = arith.subf %167, %168 : vector<1x32xf32>
    %cst_67 = arith.constant dense<0.000000e+00> : vector<8x32xf32>
    %170 = tpu.matmul %5, %148, %cst_67 {dimension_numbers = #tpu.dot_dimension_numbers<[1], [0], [0], [1], [0, 0, 1, 1], [], []>} : vector<8x384xf32>, vector<384x32xf32>, vector<8x32xf32> -> vector<8x32xf32>
    %171 = vector.broadcast %166 : vector<1x32xf32> to vector<8x32xf32>
    %172 = arith.mulf %170, %171 : vector<8x32xf32>
    %173 = vector.broadcast %7 : vector<8x1xf32> to vector<8x32xf32>
    %174 = vector.broadcast %169 : vector<1x32xf32> to vector<8x32xf32>
    %175 = arith.mulf %173, %174 : vector<8x32xf32>
    %176 = arith.addf %172, %175 : vector<8x32xf32>
    %cst_68 = arith.constant 0.000000e+00 : f32
    %177 = vector.broadcast %cst_68 : f32 to vector<8x32xf32>
    %178 = tpu.concatenate %68, %122, %176, %177 in 1 : vector<8x32xf32>, vector<8x32xf32>, vector<8x32xf32>, vector<8x32xf32> -> vector<8x128xf32>
    %c0_69 = arith.constant 0 : index
    %c0_70 = arith.constant 0 : index
    %179 = vector.load %arg15[%c0_69, %c0_70] : memref<128x128xf32, #tpu.memory_space<vmem>>, vector<128x128xf32>
    %cst_71 = arith.constant dense<0.000000e+00> : vector<8x128xf32>
    %180 = tpu.matmul %178, %179, %cst_71 {dimension_numbers = #tpu.dot_dimension_numbers<[1], [0], [0], [1], [0, 0, 1, 1], [], []>} : vector<8x128xf32>, vector<128x128xf32>, vector<8x128xf32> -> vector<8x128xf32>
    %c0_72 = arith.constant 0 : index
    %c0_73 = arith.constant 0 : index
    %181 = vector.load %arg16[%c0_72, %c0_73] : memref<1x128xf32, #tpu.memory_space<vmem>>, vector<1x128xf32>
    %182 = vector.broadcast %181 : vector<1x128xf32> to vector<8x128xf32>
    %183 = arith.addf %180, %182 : vector<8x128xf32>
    %cst_74 = arith.constant 0.000000e+00 : f32
    %184 = vector.broadcast %cst_74 : f32 to vector<8x128xf32>
    %185 = arith.maximumf %183, %184 : vector<8x128xf32>
    %c0_75 = arith.constant 0 : index
    %c0_76 = arith.constant 0 : index
    %186 = vector.load %arg17[%c0_75, %c0_76] : memref<128x128xf32, #tpu.memory_space<vmem>>, vector<128x128xf32>
    %cst_77 = arith.constant dense<0.000000e+00> : vector<8x128xf32>
    %187 = tpu.matmul %185, %186, %cst_77 {dimension_numbers = #tpu.dot_dimension_numbers<[1], [0], [0], [1], [0, 0, 1, 1], [], []>} : vector<8x128xf32>, vector<128x128xf32>, vector<8x128xf32> -> vector<8x128xf32>
    %c0_78 = arith.constant 0 : index
    %c0_79 = arith.constant 0 : index
    %188 = vector.load %arg18[%c0_78, %c0_79] : memref<1x128xf32, #tpu.memory_space<vmem>>, vector<1x128xf32>
    %189 = vector.broadcast %188 : vector<1x128xf32> to vector<8x128xf32>
    %190 = arith.addf %187, %189 : vector<8x128xf32>
    %191 = arith.mulf %178, %178 : vector<8x128xf32>
    %cst_80 = arith.constant dense<0.000000e+00> : vector<8xf32>
    %192 = vector.multi_reduction <add>, %191, %cst_80 [1] : vector<8x128xf32> to vector<8xf32>
    %193 = vector.shape_cast %192 : vector<8xf32> to vector<8x1xf32>
    %cst_81 = arith.constant 1.000000e-24 : f32
    %194 = vector.broadcast %cst_81 : f32 to vector<8x1xf32>
    %195 = arith.maximumf %193, %194 : vector<8x1xf32>
    %196 = math.rsqrt %195 : vector<8x1xf32>
    %197 = vector.broadcast %196 : vector<8x1xf32> to vector<8x128xf32>
    %198 = arith.mulf %178, %197 : vector<8x128xf32>
    %c0_82 = arith.constant 0 : index
    %c0_83 = arith.constant 0 : index
    %199 = vector.load %arg20[%c0_82, %c0_83] : memref<8x128xf32, #tpu.memory_space<vmem>>, vector<8x128xf32>
    tpu.vector_store %arg20[%c0_82, %c0_83], %198 {strides = array<i32>} : memref<8x128xf32, #tpu.memory_space<vmem>>, vector<8x128xf32>,
    %200 = arith.mulf %190, %190 : vector<8x128xf32>
    %cst_84 = arith.constant dense<0.000000e+00> : vector<8xf32>
    %201 = vector.multi_reduction <add>, %200, %cst_84 [1] : vector<8x128xf32> to vector<8xf32>
    %202 = vector.shape_cast %201 : vector<8xf32> to vector<8x1xf32>
    %cst_85 = arith.constant 1.000000e-24 : f32
    %203 = vector.broadcast %cst_85 : f32 to vector<8x1xf32>
    %204 = arith.maximumf %202, %203 : vector<8x1xf32>
    %205 = math.rsqrt %204 : vector<8x1xf32>
    %206 = vector.broadcast %205 : vector<8x1xf32> to vector<8x128xf32>
    %207 = arith.mulf %190, %206 : vector<8x128xf32>
    %c0_86 = arith.constant 0 : index
    %c0_87 = arith.constant 0 : index
    %208 = vector.load %arg19[%c0_86, %c0_87] : memref<8x128xf32, #tpu.memory_space<vmem>>, vector<8x128xf32>
    tpu.vector_store %arg19[%c0_86, %c0_87], %207 {strides = array<i32>} : memref<8x128xf32, #tpu.memory_space<vmem>>, vector<8x128xf32>,
    return
  }
}

</mosaic_0001>

<llo_original>
// kernel: tpu_custom_call.1
$region0: #{tpu_custom_call.1}
  #allocation0 [shape = 'u32[]', space=smem, size = 0x4, offset = 0x4, fixed_abs, tag = 'smem constant byte address 0x4 - core index']
  #allocation1 [shape = 'u32[144,128]{1,0:T(1,128)}', space=vmem, size = 0x12000, scoped, tag = 'internal scratch']
  %s0 = inlined_call_operand.hbm [shape: s8[384,384], index: 0, kind: input, shape index: {}]
  %s1 = inlined_call_operand.vmem [shape: bf16[384,8], index: 1, kind: input, shape index: {}]
  %s2 = inlined_call_operand.hbm [shape: f32[8,384], index: 2, kind: input, shape index: {}]
  %s3 = inlined_call_operand.hbm [shape: f32[8,32], index: 3, kind: input, shape index: {}]
  %s4 = inlined_call_operand.hbm [shape: f32[32,32], index: 4, kind: input, shape index: {}]
  %s5 = inlined_call_operand.hbm [shape: f32[2,32], index: 5, kind: input, shape index: {}]
  %s6 = inlined_call_operand.hbm [shape: f32[2,32], index: 6, kind: input, shape index: {}]
  %s7 = inlined_call_operand.hbm [shape: f32[32,32], index: 7, kind: input, shape index: {}]
  %s8 = inlined_call_operand.hbm [shape: f32[32,32], index: 8, kind: input, shape index: {}]
  %s9 = inlined_call_operand.hbm [shape: f32[2,32], index: 9, kind: input, shape index: {}]
  %s10 = inlined_call_operand.hbm [shape: f32[2,32], index: 10, kind: input, shape index: {}]
  %s11 = inlined_call_operand.hbm [shape: f32[32,32], index: 11, kind: input, shape index: {}]
  %s12 = inlined_call_operand.hbm [shape: f32[32,32], index: 12, kind: input, shape index: {}]
  %s13 = inlined_call_operand.hbm [shape: f32[2,32], index: 13, kind: input, shape index: {}]
  %s14 = inlined_call_operand.hbm [shape: f32[2,32], index: 14, kind: input, shape index: {}]
  %s15 = inlined_call_operand.vmem [shape: f32[128,128], index: 15, kind: input, shape index: {}]
  %s16 = inlined_call_operand.vmem [shape: f32[1,128], index: 16, kind: input, shape index: {}]
  %s17 = inlined_call_operand.vmem [shape: f32[128,128], index: 17, kind: input, shape index: {}]
  %s18 = inlined_call_operand.vmem [shape: f32[1,128], index: 18, kind: input, shape index: {}]
  %s19 = inlined_call_operand.hbm [shape: f32[8,128], index: 19, kind: output, shape index: {0}]
  %s20 = inlined_call_operand.hbm [shape: f32[8,128], index: 20, kind: output, shape index: {1}]
  %21 = xla_tuple %s19, %s20
  %s22 = sld [smem:[#allocation0]]
  $region150: #{tpu_custom_call.1} parent=0
    _
  %s24 = ssub.s32 1, %s22
  %s25 = scalar_select 0, %s24, %s22
  $region1: #{tpu_custom_call.1} parent=0
    #allocation2 [shape = 'u8[147456]{0}', space=vmem, size = 0x24000, scoped, tag = 'input window, operand 0, single buffered']
    #allocation3 [shape = 's32[1]{0}', space=sflag, size = 0x4, scoped, tag = 'scoped memory for tpu_custom_call.1']
    #allocation4 [shape = 's32[1]{0}', space=sflag, size = 0x4, scoped, tag = 'scoped memory for tpu_custom_call.1']
    #allocation5 [shape = 'u8[12288]{0}', space=vmem, size = 0x3000, scoped, tag = 'input window, operand 2, single buffered']
    #allocation6 [shape = 's32[1]{0}', space=sflag, size = 0x4, scoped, tag = 'scoped memory for tpu_custom_call.1']
    #allocation7 [shape = 'u8[4096]{0}', space=vmem, size = 0x1000, scoped, tag = 'input window, operand 3, single buffered']
    #allocation8 [shape = 'u8[16384]{0}', space=vmem, size = 0x4000, scoped, tag = 'input window, operand 4, single buffered']
    #allocation9 [shape = 's32[1]{0}', space=sflag, size = 0x4, scoped, tag = 'scoped memory for tpu_custom_call.1']
    #allocation10 [shape = 'u8[1024]{0}', space=vmem, size = 0x400, scoped, tag = 'input window, operand 5, single buffered']
    #allocation11 [shape = 'u8[1024]{0}', space=vmem, size = 0x400, scoped, tag = 'input window, operand 6, single buffered']
    #allocation12 [shape = 's32[1]{0}', space=sflag, size = 0x4, scoped, tag = 'scoped memory for tpu_custom_call.1']
    #allocation13 [shape = 'u8[16384]{0}', space=vmem, size = 0x4000, scoped, tag = 'input window, operand 7, single buffered']
    #allocation14 [shape = 'u8[16384]{0}', space=vmem, size = 0x4000, scoped, tag = 'input window, operand 8, single buffered']
    #allocation15 [shape = 's32[1]{0}', space=sflag, size = 0x4, scoped, tag = 'scoped memory for tpu_custom_call.1']
    #allocation16 [shape = 'u8[1024]{0}', space=vmem, size = 0x400, scoped, tag = 'input window, operand 9, single buffered']
    #allocation17 [shape = 'u8[1024]{0}', space=vmem, size = 0x400, scoped, tag = 'input window, operand 10, single buffered']
    #allocation18 [shape = 's32[1]{0}', space=sflag, size = 0x4, scoped, tag = 'scoped memory for tpu_custom_call.1']
    #allocation19 [shape = 'u8[16384]{0}', space=vmem, size = 0x4000, scoped, tag = 'input window, operand 11, single buffered']
    #allocation20 [shape = 'u8[16384]{0}', space=vmem, size = 0x4000, scoped, tag = 'input window, operand 12, single buffered']
    #allocation21 [shape = 's32[1]{0}', space=sflag, size = 0x4, scoped, tag = 'scoped memory for tpu_custom_call.1']
    #allocation22 [shape = 'u8[1024]{0}', space=vmem, size = 0x400, scoped, tag = 'input window, operand 13, single buffered']
    #allocation23 [shape = 'u8[1024]{0}', space=vmem, size = 0x400, scoped, tag = 'input window, operand 14, single buffered']
    #allocation24 [shape = 's32[1]{0}', space=sflag, size = 0x4, scoped, tag = 'scoped memory for tpu_custom_call.1']
    #allocation25 [shape = 'u8[4096]{0}', space=vmem, size = 0x1000, scoped, tag = 'output window, operand 0, single buffered']
    #allocation26 [shape = 'u8[4096]{0}', space=vmem, size = 0x1000, scoped, tag = 'output window, operand 1, single buffered']
    #allocation27 [shape = 's32[1]{0}', space=sflag, size = 0x4, scoped, tag = 'scoped memory for tpu_custom_call.1']
    %26 = vsyncpa [#allocation3], 0
    %27 = vsyncpa [#allocation6], 0
    %28 = vsyncpa [#allocation9], 0
    %29 = vsyncpa [#allocation12], 0
    %30 = vsyncpa [#allocation15], 0
    %31 = vsyncpa [#allocation18], 0
    %32 = vsyncpa [#allocation21], 0
    %33 = vsyncpa [#allocation24], 0
    %34 = vsyncpa [#allocation4], 0
    %35 = vsyncpa [#allocation27], 0
    // Predicated region
    $region2: #{tpu_custom_call.1} parent=1 // pred_check
      _
    $region3: #{tpu_custom_call.1} parent=1 // pred_check_branch
      %37 = sbr.rel (0) target = $region5
    $region4: #{tpu_custom_call.1} parent=1 // pred_region
      %s39 = ssub.s32 4608, 4608
      %40 = vsyncadd [#allocation3], %s39
      %s41 = sshll.u32 [#allocation2], 4
      %s42 = int_to_ptr.vmem [resolvable:$true] %s41
      %47 = dma.hbm_to_vmem [thread:$0]  %s0, 4608, %s42, [#allocation3], 384, 384, 24
    $region5: #{tpu_custom_call.1} parent=1 // pred_fallthru
      _
    // Predicated region
    $region6: #{tpu_custom_call.1} parent=1 // pred_check
      _
    $region7: #{tpu_custom_call.1} parent=1 // pred_check_branch
      %49 = sbr.rel (0) target = $region9
    $region8: #{tpu_custom_call.1} parent=1 // pred_region
      _
    $region9: #{tpu_custom_call.1} parent=1 // pred_fallthru
      _
    // Predicated region
    $region10: #{tpu_custom_call.1} parent=1 // pred_check
      _
    $region11: #{tpu_custom_call.1} parent=1 // pred_check_branch
      %51 = sbr.rel (0) target = $region13
    $region12: #{tpu_custom_call.1} parent=1 // pred_region
      %s53 = ssub.s32 384, 384
      %54 = vsyncadd [#allocation6], %s53
      %s56 = sshll.u32 [#allocation5], 4
      %s57 = int_to_ptr.vmem [resolvable:$true] %s56
      %59 = dma.hbm_to_vmem [thread:$0]  %s2, 384, %s57, [#allocation6]
    $region13: #{tpu_custom_call.1} parent=1 // pred_fallthru
      _
    // Predicated region
    $region14: #{tpu_custom_call.1} parent=1 // pred_check
      _
    $region15: #{tpu_custom_call.1} parent=1 // pred_check_branch
      %61 = sbr.rel (0) target = $region17
    $region16: #{tpu_custom_call.1} parent=1 // pred_region
      %s63 = ssub.s32 128, 128
      %64 = vsyncadd [#allocation6], %s63
      %s66 = sshll.u32 [#allocation7], 4
      %s67 = int_to_ptr.vmem [resolvable:$true] %s66
      %69 = dma.hbm_to_vmem [thread:$0]  %s3, 128, %s67, [#allocation6]
    $region17: #{tpu_custom_call.1} parent=1 // pred_fallthru
      _
    // Predicated region
    $region18: #{tpu_custom_call.1} parent=1 // pred_check
      _
    $region19: #{tpu_custom_call.1} parent=1 // pred_check_branch
      %71 = sbr.rel (0) target = $region21
    $region20: #{tpu_custom_call.1} parent=1 // pred_region
      %s73 = ssub.s32 512, 512
      %74 = vsyncadd [#allocation9], %s73
      %s75 = sshll.u32 [#allocation8], 4
      %s76 = int_to_ptr.vmem [resolvable:$true] %s75
      %81 = dma.hbm_to_vmem [thread:$0]  %s4, 512, %s76, [#allocation9], 128, 128, 8
    $region21: #{tpu_custom_call.1} parent=1 // pred_fallthru
      _
    // Predicated region
    $region22: #{tpu_custom_call.1} parent=1 // pred_check
      _
    $region23: #{tpu_custom_call.1} parent=1 // pred_check_branch
      %83 = sbr.rel (0) target = $region25
    $region24: #{tpu_custom_call.1} parent=1 // pred_region
      %s85 = ssub.s32 32, 32
      %86 = vsyncadd [#allocation9], %s85
      %s88 = sshll.u32 [#allocation10], 4
      %s89 = int_to_ptr.vmem [resolvable:$true] %s88
      %91 = dma.hbm_to_vmem [thread:$0]  %s5, 32, %s89, [#allocation9]
    $region25: #{tpu_custom_call.1} parent=1 // pred_fallthru
      _
    // Predicated region
    $region26: #{tpu_custom_call.1} parent=1 // pred_check
      _
    $region27: #{tpu_custom_call.1} parent=1 // pred_check_branch
      %93 = sbr.rel (0) target = $region29
    $region28: #{tpu_custom_call.1} parent=1 // pred_region
      %s95 = ssub.s32 32, 32
      %96 = vsyncadd [#allocation12], %s95
      %s98 = sshll.u32 [#allocation11], 4
      %s99 = int_to_ptr.vmem [resolvable:$true] %s98
      %101 = dma.hbm_to_vmem [thread:$0]  %s6, 32, %s99, [#allocation12]
    $region29: #{tpu_custom_call.1} parent=1 // pred_fallthru
      _
    // Predicated region
    $region30: #{tpu_custom_call.1} parent=1 // pred_check
      _
    $region31: #{tpu_custom_call.1} parent=1 // pred_check_branch
      %103 = sbr.rel (0) target = $region33
    $region32: #{tpu_custom_call.1} parent=1 // pred_region
      %s105 = ssub.s32 512, 512
      %106 = vsyncadd [#allocation12], %s105
      %s107 = sshll.u32 [#allocation13], 4
      %s108 = int_to_ptr.vmem [resolvable:$true] %s107
      %113 = dma.hbm_to_vmem [thread:$0]  %s7, 512, %s108, [#allocation12], 128, 128, 8
    $region33: #{tpu_custom_call.1} parent=1 // pred_fallthru
      _
    // Predicated region
    $region34: #{tpu_custom_call.1} parent=1 // pred_check
      _
    $region35: #{tpu_custom_call.1} parent=1 // pred_check_branch
      %115 = sbr.rel (0) target = $region37
    $region36: #{tpu_custom_call.1} parent=1 // pred_region
      %s117 = ssub.s32 512, 512
      %118 = vsyncadd [#allocation15], %s117
      %s119 = sshll.u32 [#allocation14], 4
      %s120 = int_to_ptr.vmem [resolvable:$true] %s119
      %125 = dma.hbm_to_vmem [thread:$0]  %s8, 512, %s120, [#allocation15], 128, 128, 8
    $region37: #{tpu_custom_call.1} parent=1 // pred_fallthru
      _
    // Predicated region
    $region38: #{tpu_custom_call.1} parent=1 // pred_check
      _
    $region39: #{tpu_custom_call.1} parent=1 // pred_check_branch
      %127 = sbr.rel (0) target = $region41
    $region40: #{tpu_custom_call.1} parent=1 // pred_region
      %s129 = ssub.s32 32, 32
      %130 = vsyncadd [#allocation15], %s129
      %s132 = sshll.u32 [#allocation16], 4
      %s133 = int_to_ptr.vmem [resolvable:$true] %s132
      %135 = dma.hbm_to_vmem [thread:$0]  %s9, 32, %s133, [#allocation15]
    $region41: #{tpu_custom_call.1} parent=1 // pred_fallthru
      _
    // Predicated region
    $region42: #{tpu_custom_call.1} parent=1 // pred_check
      _
    $region43: #{tpu_custom_call.1} parent=1 // pred_check_branch
      %137 = sbr.rel (0) target = $region45
    $region44: #{tpu_custom_call.1} parent=1 // pred_region
      %s139 = ssub.s32 32, 32
      %140 = vsyncadd [#allocation18], %s139
      %s142 = sshll.u32 [#allocation17], 4
      %s143 = int_to_ptr.vmem [resolvable:$true] %s142
      %145 = dma.hbm_to_vmem [thread:$0]  %s10, 32, %s143, [#allocation18]
    $region45: #{tpu_custom_call.1} parent=1 // pred_fallthru
      _
    // Predicated region
    $region46: #{tpu_custom_call.1} parent=1 // pred_check
      _
    $region47: #{tpu_custom_call.1} parent=1 // pred_check_branch
      %147 = sbr.rel (0) target = $region49
    $region48: #{tpu_custom_call.1} parent=1 // pred_region
      %s149 = ssub.s32 512, 512
      %150 = vsyncadd [#allocation18], %s149
      %s151 = sshll.u32 [#allocation19], 4
      %s152 = int_to_ptr.vmem [resolvable:$true] %s151
      %157 = dma.hbm_to_vmem [thread:$0]  %s11, 512, %s152, [#allocation18], 128, 128, 8
    $region49: #{tpu_custom_call.1} parent=1 // pred_fallthru
      _
    // Predicated region
    $region50: #{tpu_custom_call.1} parent=1 // pred_check
      _
    $region51: #{tpu_custom_call.1} parent=1 // pred_check_branch
      %159 = sbr.rel (0) target = $region53
    $region52: #{tpu_custom_call.1} parent=1 // pred_region
      %s161 = ssub.s32 512, 512
      %162 = vsyncadd [#allocation21], %s161
      %s163 = sshll.u32 [#allocation20], 4
      %s164 = int_to_ptr.vmem [resolvable:$true] %s163
      %169 = dma.hbm_to_vmem [thread:$0]  %s12, 512, %s164, [#allocation21], 128, 128, 8
    $region53: #{tpu_custom_call.1} parent=1 // pred_fallthru
      _
    // Predicated region
    $region54: #{tpu_custom_call.1} parent=1 // pred_check
      _
    $region55: #{tpu_custom_call.1} parent=1 // pred_check_branch
      %171 = sbr.rel (0) target = $region57
    $region56: #{tpu_custom_call.1} parent=1 // pred_region
      %s173 = ssub.s32 32, 32
      %174 = vsyncadd [#allocation21], %s173
      %s176 = sshll.u32 [#allocation22], 4
      %s177 = int_to_ptr.vmem [resolvable:$true] %s176
      %179 = dma.hbm_to_vmem [thread:$0]  %s13, 32, %s177, [#allocation21]
    $region57: #{tpu_custom_call.1} parent=1 // pred_fallthru
      _
    // Predicated region
    $region58: #{tpu_custom_call.1} parent=1 // pred_check
      _
    $region59: #{tpu_custom_call.1} parent=1 // pred_check_branch
      %181 = sbr.rel (0) target = $region61
    $region60: #{tpu_custom_call.1} parent=1 // pred_region
      %s183 = ssub.s32 32, 32
      %184 = vsyncadd [#allocation24], %s183
      %s186 = sshll.u32 [#allocation23], 4
      %s187 = int_to_ptr.vmem [resolvable:$true] %s186
      %189 = dma.hbm_to_vmem [thread:$0]  %s14, 32, %s187, [#allocation24]
    $region61: #{tpu_custom_call.1} parent=1 // pred_fallthru
      _
    // Predicated region
    $region62: #{tpu_custom_call.1} parent=1 // pred_check
      _
    $region63: #{tpu_custom_call.1} parent=1 // pred_check_branch
      %191 = sbr.rel (0) target = $region65
    $region64: #{tpu_custom_call.1} parent=1 // pred_region
      _
    $region65: #{tpu_custom_call.1} parent=1 // pred_fallthru
      _
    // Predicated region
    $region66: #{tpu_custom_call.1} parent=1 // pred_check
      _
    $region67: #{tpu_custom_call.1} parent=1 // pred_check_branch
      %193 = sbr.rel (0) target = $region69
    $region68: #{tpu_custom_call.1} parent=1 // pred_region
      _
    $region69: #{tpu_custom_call.1} parent=1 // pred_fallthru
      _
    // Predicated region
    $region70: #{tpu_custom_call.1} parent=1 // pred_check
      _
    $region71: #{tpu_custom_call.1} parent=1 // pred_check_branch
      %195 = sbr.rel (0) target = $region73
    $region72: #{tpu_custom_call.1} parent=1 // pred_region
      _
    $region73: #{tpu_custom_call.1} parent=1 // pred_fallthru
      _
    // Predicated region
    $region74: #{tpu_custom_call.1} parent=1 // pred_check
      _
    $region75: #{tpu_custom_call.1} parent=1 // pred_check_branch
      %197 = sbr.rel (0) target = $region77
    $region76: #{tpu_custom_call.1} parent=1 // pred_region
      _
    $region77: #{tpu_custom_call.1} parent=1 // pred_fallthru
      _
    // Predicated region
    $region78: #{tpu_custom_call.1} parent=1 // pred_check
      _
    $region79: #{tpu_custom_call.1} parent=1 // pred_check_branch
      %199 = sbr.rel (0) target = $region81
    $region80: #{tpu_custom_call.1} parent=1 // pred_region
      %200 = dma.done [#allocation3], 4608
    $region81: #{tpu_custom_call.1} parent=1 // pred_fallthru
      _
    // Predicated region
    $region82: #{tpu_custom_call.1} parent=1 // pred_check
      _
    $region83: #{tpu_custom_call.1} parent=1 // pred_check_branch
      %202 = sbr.rel (0) target = $region85
    $region84: #{tpu_custom_call.1} parent=1 // pred_region
      %203 = dma.done [#allocation6], 384
    $region85: #{tpu_custom_call.1} parent=1 // pred_fallthru
      _
    // Predicated region
    $region86: #{tpu_custom_call.1} parent=1 // pred_check
      _
    $region87: #{tpu_custom_call.1} parent=1 // pred_check_branch
      %205 = sbr.rel (0) target = $region89
    $region88: #{tpu_custom_call.1} parent=1 // pred_region
      %206 = dma.done [#allocation6], 128
    $region89: #{tpu_custom_call.1} parent=1 // pred_fallthru
      _
    // Predicated region
    $region90: #{tpu_custom_call.1} parent=1 // pred_check
      _
    $region91: #{tpu_custom_call.1} parent=1 // pred_check_branch
      %208 = sbr.rel (0) target = $region93
    $region92: #{tpu_custom_call.1} parent=1 // pred_region
      %209 = dma.done [#allocation9], 512
    $region93: #{tpu_custom_call.1} parent=1 // pred_fallthru
      _
    // Predicated region
    $region94: #{tpu_custom_call.1} parent=1 // pred_check
      _
    $region95: #{tpu_custom_call.1} parent=1 // pred_check_branch
      %211 = sbr.rel (0) target = $region97
    $region96: #{tpu_custom_call.1} parent=1 // pred_region
      %212 = dma.done [#allocation9], 32
    $region97: #{tpu_custom_call.1} parent=1 // pred_fallthru
      _
    // Predicated region
    $region98: #{tpu_custom_call.1} parent=1 // pred_check
      _
    $region99: #{tpu_custom_call.1} parent=1 // pred_check_branch
      %214 = sbr.rel (0) target = $region101
    $region100: #{tpu_custom_call.1} parent=1 // pred_region
      %215 = dma.done [#allocation12], 32
    $region101: #{tpu_custom_call.1} parent=1 // pred_fallthru
      _
    // Predicated region
    $region102: #{tpu_custom_call.1} parent=1 // pred_check
      _
    $region103: #{tpu_custom_call.1} parent=1 // pred_check_branch
      %217 = sbr.rel (0) target = $region105
    $region104: #{tpu_custom_call.1} parent=1 // pred_region
      %218 = dma.done [#allocation12], 512
    $region105: #{tpu_custom_call.1} parent=1 // pred_fallthru
      _
    // Predicated region
    $region106: #{tpu_custom_call.1} parent=1 // pred_check
      _
    $region107: #{tpu_custom_call.1} parent=1 // pred_check_branch
      %220 = sbr.rel (0) target = $region109
    $region108: #{tpu_custom_call.1} parent=1 // pred_region
      %221 = dma.done [#allocation15], 512
    $region109: #{tpu_custom_call.1} parent=1 // pred_fallthru
      _
    // Predicated region
    $region110: #{tpu_custom_call.1} parent=1 // pred_check
      _
    $region111: #{tpu_custom_call.1} parent=1 // pred_check_branch
      %223 = sbr.rel (0) target = $region113
    $region112: #{tpu_custom_call.1} parent=1 // pred_region
      %224 = dma.done [#allocation15], 32
    $region113: #{tpu_custom_call.1} parent=1 // pred_fallthru
      _
    // Predicated region
    $region114: #{tpu_custom_call.1} parent=1 // pred_check
      _
    $region115: #{tpu_custom_call.1} parent=1 // pred_check_branch
      %226 = sbr.rel (0) target = $region117
    $region116: #{tpu_custom_call.1} parent=1 // pred_region
      %227 = dma.done [#allocation18], 32
    $region117: #{tpu_custom_call.1} parent=1 // pred_fallthru
      _
    // Predicated region
    $region118: #{tpu_custom_call.1} parent=1 // pred_check
      _
    $region119: #{tpu_custom_call.1} parent=1 // pred_check_branch
      %229 = sbr.rel (0) target = $region121
    $region120: #{tpu_custom_call.1} parent=1 // pred_region
      %230 = dma.done [#allocation18], 512
    $region121: #{tpu_custom_call.1} parent=1 // pred_fallthru
      _
    // Predicated region
    $region122: #{tpu_custom_call.1} parent=1 // pred_check
      _
    $region123: #{tpu_custom_call.1} parent=1 // pred_check_branch
      %232 = sbr.rel (0) target = $region125
    $region124: #{tpu_custom_call.1} parent=1 // pred_region
      %233 = dma.done [#allocation21], 512
    $region125: #{tpu_custom_call.1} parent=1 // pred_fallthru
      _
    // Predicated region
    $region126: #{tpu_custom_call.1} parent=1 // pred_check
      _
    $region127: #{tpu_custom_call.1} parent=1 // pred_check_branch
      %235 = sbr.rel (0) target = $region129
    $region128: #{tpu_custom_call.1} parent=1 // pred_region
      %236 = dma.done [#allocation21], 32
    $region129: #{tpu_custom_call.1} parent=1 // pred_fallthru
      _
    // Predicated region
    $region130: #{tpu_custom_call.1} parent=1 // pred_check
      _
    $region131: #{tpu_custom_call.1} parent=1 // pred_check_branch
      %238 = sbr.rel (0) target = $region133
    $region132: #{tpu_custom_call.1} parent=1 // pred_region
      %239 = dma.done [#allocation24], 32
    $region133: #{tpu_custom_call.1} parent=1 // pred_fallthru
      _
    %v241 = vld [vmem:[#allocation2] sm:$0xff]
    %v242 = vld [vmem:[#allocation2 + $0x8] sm:$0xff]
    %v243 = vld [vmem:[#allocation2 + $0x10] sm:$0xff]
    %v244 = vld [vmem:[#allocation2 + $0x18] sm:$0xff]
    %v245 = vld [vmem:[#allocation2 + $0x20] sm:$0xff]
    %v246 = vld [vmem:[#allocation2 + $0x28] sm:$0xff]
    %v247 = vld [vmem:[#allocation2 + $0x30] sm:$0xff]
    %v248 = vld [vmem:[#allocation2 + $0x38] sm:$0xff]
    %v249 = vld [vmem:[#allocation2 + $0x40] sm:$0xff]
    %v250 = vld [vmem:[#allocation2 + $0x48] sm:$0xff]
    %v251 = vld [vmem:[#allocation2 + $0x50] sm:$0xff]
    %v252 = vld [vmem:[#allocation2 + $0x58] sm:$0xff]
    %v253 = vld [vmem:[#allocation2 + $0x60] sm:$0xff]
    %v254 = vld [vmem:[#allocation2 + $0x68] sm:$0xff]
    %v255 = vld [vmem:[#allocation2 + $0x70] sm:$0xff]
    %v256 = vld [vmem:[#allocation2 + $0x78] sm:$0xff]
    %v257 = vld [vmem:[#allocation2 + $0x80] sm:$0xff]
    %v258 = vld [vmem:[#allocation2 + $0x88] sm:$0xff]
    %v259 = vld [vmem:[#allocation2 + $0x90] sm:$0xff]
    %v260 = vld [vmem:[#allocation2 + $0x98] sm:$0xff]
    %v261 = vld [vmem:[#allocation2 + $0xa0] sm:$0xff]
    %v262 = vld [vmem:[#allocation2 + $0xa8] sm:$0xff]
    %v263 = vld [vmem:[#allocation2 + $0xb0] sm:$0xff]
    %v264 = vld [vmem:[#allocation2 + $0xb8] sm:$0xff]
    %v265 = vld [vmem:[#allocation2 + $0xc0] sm:$0xff]
    %v266 = vld [vmem:[#allocation2 + $0xc8] sm:$0xff]
    %v267 = vld [vmem:[#allocation2 + $0xd0] sm:$0xff]
    %v268 = vld [vmem:[#allocation2 + $0xd8] sm:$0xff]
    %v269 = vld [vmem:[#allocation2 + $0xe0] sm:$0xff]
    %v270 = vld [vmem:[#allocation2 + $0xe8] sm:$0xff]
    %v271 = vld [vmem:[#allocation2 + $0xf0] sm:$0xff]
    %v272 = vld [vmem:[#allocation2 + $0xf8] sm:$0xff]
    %v273 = vld [vmem:[#allocation2 + $0x100] sm:$0xff]
    %v274 = vld [vmem:[#allocation2 + $0x108] sm:$0xff]
    %v275 = vld [vmem:[#allocation2 + $0x110] sm:$0xff]
    %v276 = vld [vmem:[#allocation2 + $0x118] sm:$0xff]
    %v277 = vunpack.c.0.s8 %v241
    %v278 = vunpack.c.0.s8 %v242
    %v279 = vunpack.c.0.s8 %v243
    %v280 = vunpack.c.1.s8 %v241
    %v281 = vunpack.c.1.s8 %v242
    %v282 = vunpack.c.1.s8 %v243
    %v283 = vunpack.c.2.s8 %v241
    %v284 = vunpack.c.2.s8 %v242
    %v285 = vunpack.c.2.s8 %v243
    %v286 = vunpack.c.3.s8 %v241
    %v287 = vunpack.c.3.s8 %v242
    %v288 = vunpack.c.3.s8 %v243
    %v289 = vunpack.c.0.s8 %v244
    %v290 = vunpack.c.0.s8 %v245
    %v291 = vunpack.c.0.s8 %v246
    %v292 = vunpack.c.1.s8 %v244
    %v293 = vunpack.c.1.s8 %v245
    %v294 = vunpack.c.1.s8 %v246
    %v295 = vunpack.c.2.s8 %v244
    %v296 = vunpack.c.2.s8 %v245
    %v297 = vunpack.c.2.s8 %v246
    %v298 = vunpack.c.3.s8 %v244
    %v299 = vunpack.c.3.s8 %v245
    %v300 = vunpack.c.3.s8 %v246
    %v301 = vunpack.c.0.s8 %v247
    %v302 = vunpack.c.0.s8 %v248
    %v303 = vunpack.c.0.s8 %v249
    %v304 = vunpack.c.1.s8 %v247
    %v305 = vunpack.c.1.s8 %v248
    %v306 = vunpack.c.1.s8 %v249
    %v307 = vunpack.c.2.s8 %v247
    %v308 = vunpack.c.2.s8 %v248
    %v309 = vunpack.c.2.s8 %v249
    %v310 = vunpack.c.3.s8 %v247
    %v311 = vunpack.c.3.s8 %v248
    %v312 = vunpack.c.3.s8 %v249
    %v313 = vunpack.c.0.s8 %v250
    %v314 = vunpack.c.0.s8 %v251
    %v315 = vunpack.c.0.s8 %v252
    %v316 = vunpack.c.1.s8 %v250
    %v317 = vunpack.c.1.s8 %v251
    %v318 = vunpack.c.1.s8 %v252
    %v319 = vunpack.c.2.s8 %v250
    %v320 = vunpack.c.2.s8 %v251
    %v321 = vunpack.c.2.s8 %v252
    %v322 = vunpack.c.3.s8 %v250
    %v323 = vunpack.c.3.s8 %v251
    %v324 = vunpack.c.3.s8 %v252
    %v325 = vunpack.c.0.s8 %v253
    %v326 = vunpack.c.0.s8 %v254
    %v327 = vunpack.c.0.s8 %v255
    %v328 = vunpack.c.1.s8 %v253
    %v329 = vunpack.c.1.s8 %v254
    %v330 = vunpack.c.1.s8 %v255
    %v331 = vunpack.c.2.s8 %v253
    %v332 = vunpack.c.2.s8 %v254
    %v333 = vunpack.c.2.s8 %v255
    %v334 = vunpack.c.3.s8 %v253
    %v335 = vunpack.c.3.s8 %v254
    %v336 = vunpack.c.3.s8 %v255
    %v337 = vunpack.c.0.s8 %v256
    %v338 = vunpack.c.0.s8 %v257
    %v339 = vunpack.c.0.s8 %v258
    %v340 = vunpack.c.1.s8 %v256
    %v341 = vunpack.c.1.s8 %v257
    %v342 = vunpack.c.1.s8 %v258
    %v343 = vunpack.c.2.s8 %v256
    %v344 = vunpack.c.2.s8 %v257
    %v345 = vunpack.c.2.s8 %v258
    %v346 = vunpack.c.3.s8 %v256
    %v347 = vunpack.c.3.s8 %v257
    %v348 = vunpack.c.3.s8 %v258
    %v349 = vunpack.c.0.s8 %v259
    %v350 = vunpack.c.0.s8 %v260
    %v351 = vunpack.c.0.s8 %v261
    %v352 = vunpack.c.1.s8 %v259
    %v353 = vunpack.c.1.s8 %v260
    %v354 = vunpack.c.1.s8 %v261
    %v355 = vunpack.c.2.s8 %v259
    %v356 = vunpack.c.2.s8 %v260
    %v357 = vunpack.c.2.s8 %v261
    %v358 = vunpack.c.3.s8 %v259
    %v359 = vunpack.c.3.s8 %v260
    %v360 = vunpack.c.3.s8 %v261
    %v361 = vunpack.c.0.s8 %v262
    %v362 = vunpack.c.0.s8 %v263
    %v363 = vunpack.c.0.s8 %v264
    %v364 = vunpack.c.1.s8 %v262
    %v365 = vunpack.c.1.s8 %v263
    %v366 = vunpack.c.1.s8 %v264
    %v367 = vunpack.c.2.s8 %v262
    %v368 = vunpack.c.2.s8 %v263
    %v369 = vunpack.c.2.s8 %v264
    %v370 = vunpack.c.3.s8 %v262
    %v371 = vunpack.c.3.s8 %v263
    %v372 = vunpack.c.3.s8 %v264
    %v373 = vunpack.c.0.s8 %v265
    %v374 = vunpack.c.0.s8 %v266
    %v375 = vunpack.c.0.s8 %v267
    %v376 = vunpack.c.1.s8 %v265
    %v377 = vunpack.c.1.s8 %v266
    %v378 = vunpack.c.1.s8 %v267
    %v379 = vunpack.c.2.s8 %v265
    %v380 = vunpack.c.2.s8 %v266
    %v381 = vunpack.c.2.s8 %v267
    %v382 = vunpack.c.3.s8 %v265
    %v383 = vunpack.c.3.s8 %v266
    %v384 = vunpack.c.3.s8 %v267
    %v385 = vunpack.c.0.s8 %v268
    %v386 = vunpack.c.0.s8 %v269
    %v387 = vunpack.c.0.s8 %v270
    %v388 = vunpack.c.1.s8 %v268
    %v389 = vunpack.c.1.s8 %v269
    %v390 = vunpack.c.1.s8 %v270
    %v391 = vunpack.c.2.s8 %v268
    %v392 = vunpack.c.2.s8 %v269
    %v393 = vunpack.c.2.s8 %v270
    %v394 = vunpack.c.3.s8 %v268
    %v395 = vunpack.c.3.s8 %v269
    %v396 = vunpack.c.3.s8 %v270
    %v397 = vunpack.c.0.s8 %v271
    %v398 = vunpack.c.0.s8 %v272
    %v399 = vunpack.c.0.s8 %v273
    %v400 = vunpack.c.1.s8 %v271
    %v401 = vunpack.c.1.s8 %v272
    %v402 = vunpack.c.1.s8 %v273
    %v403 = vunpack.c.2.s8 %v271
    %v404 = vunpack.c.2.s8 %v272
    %v405 = vunpack.c.2.s8 %v273
    %v406 = vunpack.c.3.s8 %v271
    %v407 = vunpack.c.3.s8 %v272
    %v408 = vunpack.c.3.s8 %v273
    %v409 = vunpack.c.0.s8 %v274
    %v410 = vunpack.c.0.s8 %v275
    %v411 = vunpack.c.0.s8 %v276
    %v412 = vunpack.c.1.s8 %v274
    %v413 = vunpack.c.1.s8 %v275
    %v414 = vunpack.c.1.s8 %v276
    %v415 = vunpack.c.2.s8 %v274
    %v416 = vunpack.c.2.s8 %v275
    %v417 = vunpack.c.2.s8 %v276
    %v418 = vunpack.c.3.s8 %v274
    %v419 = vunpack.c.3.s8 %v275
    %v420 = vunpack.c.3.s8 %v276
    %v421 = vcvt.s32.f32 %v277
    %v422 = vcvt.s32.f32 %v278
    %v423 = vcvt.s32.f32 %v279
    %v424 = vcvt.s32.f32 %v280
    %v425 = vcvt.s32.f32 %v281
    %v426 = vcvt.s32.f32 %v282
    %v427 = vcvt.s32.f32 %v283
    %v428 = vcvt.s32.f32 %v284
    %v429 = vcvt.s32.f32 %v285
    %v430 = vcvt.s32.f32 %v286
    %v431 = vcvt.s32.f32 %v287
    %v432 = vcvt.s32.f32 %v288
    %v433 = vcvt.s32.f32 %v289
    %v434 = vcvt.s32.f32 %v290
    %v435 = vcvt.s32.f32 %v291
    %v436 = vcvt.s32.f32 %v292
    %v437 = vcvt.s32.f32 %v293
    %v438 = vcvt.s32.f32 %v294
    %v439 = vcvt.s32.f32 %v295
    %v440 = vcvt.s32.f32 %v296
    %v441 = vcvt.s32.f32 %v297
    %v442 = vcvt.s32.f32 %v298
    %v443 = vcvt.s32.f32 %v299
    %v444 = vcvt.s32.f32 %v300
    %v445 = vcvt.s32.f32 %v301
    %v446 = vcvt.s32.f32 %v302
    %v447 = vcvt.s32.f32 %v303
    %v448 = vcvt.s32.f32 %v304
    %v449 = vcvt.s32.f32 %v305
    %v450 = vcvt.s32.f32 %v306
    %v451 = vcvt.s32.f32 %v307
    %v452 = vcvt.s32.f32 %v308
    %v453 = vcvt.s32.f32 %v309
    %v454 = vcvt.s32.f32 %v310
    %v455 = vcvt.s32.f32 %v311
    %v456 = vcvt.s32.f32 %v312
    %v457 = vcvt.s32.f32 %v313
    %v458 = vcvt.s32.f32 %v314
    %v459 = vcvt.s32.f32 %v315
    %v460 = vcvt.s32.f32 %v316
    %v461 = vcvt.s32.f32 %v317
    %v462 = vcvt.s32.f32 %v318
    %v463 = vcvt.s32.f32 %v319
    %v464 = vcvt.s32.f32 %v320
    %v465 = vcvt.s32.f32 %v321
    %v466 = vcvt.s32.f32 %v322
    %v467 = vcvt.s32.f32 %v323
    %v468 = vcvt.s32.f32 %v324
    %v469 = vcvt.s32.f32 %v325
    %v470 = vcvt.s32.f32 %v326
    %v471 = vcvt.s32.f32 %v327
    %v472 = vcvt.s32.f32 %v328
    %v473 = vcvt.s32.f32 %v329
    %v474 = vcvt.s32.f32 %v330
    %v475 = vcvt.s32.f32 %v331
    %v476 = vcvt.s32.f32 %v332
    %v477 = vcvt.s32.f32 %v333
    %v478 = vcvt.s32.f32 %v334
    %v479 = vcvt.s32.f32 %v335
    %v480 = vcvt.s32.f32 %v336
    %v481 = vcvt.s32.f32 %v337
    %v482 = vcvt.s32.f32 %v338
    %v483 = vcvt.s32.f32 %v339
    %v484 = vcvt.s32.f32 %v340
    %v485 = vcvt.s32.f32 %v341
    %v486 = vcvt.s32.f32 %v342
    %v487 = vcvt.s32.f32 %v343
    %v488 = vcvt.s32.f32 %v344
    %v489 = vcvt.s32.f32 %v345
    %v490 = vcvt.s32.f32 %v346
    %v491 = vcvt.s32.f32 %v347
    %v492 = vcvt.s32.f32 %v348
    %v493 = vcvt.s32.f32 %v349
    %v494 = vcvt.s32.f32 %v350
    %v495 = vcvt.s32.f32 %v351
    %v496 = vcvt.s32.f32 %v352
    %v497 = vcvt.s32.f32 %v353
    %v498 = vcvt.s32.f32 %v354
    %v499 = vcvt.s32.f32 %v355
    %v500 = vcvt.s32.f32 %v356
    %v501 = vcvt.s32.f32 %v357
    %v502 = vcvt.s32.f32 %v358
    %v503 = vcvt.s32.f32 %v359
    %v504 = vcvt.s32.f32 %v360
    %v505 = vcvt.s32.f32 %v361
    %v506 = vcvt.s32.f32 %v362
    %v507 = vcvt.s32.f32 %v363
    %v508 = vcvt.s32.f32 %v364
    %v509 = vcvt.s32.f32 %v365
    %v510 = vcvt.s32.f32 %v366
    %v511 = vcvt.s32.f32 %v367
    %v512 = vcvt.s32.f32 %v368
    %v513 = vcvt.s32.f32 %v369
    %v514 = vcvt.s32.f32 %v370
    %v515 = vcvt.s32.f32 %v371
    %v516 = vcvt.s32.f32 %v372
    %v517 = vcvt.s32.f32 %v373
    %v518 = vcvt.s32.f32 %v374
    %v519 = vcvt.s32.f32 %v375
    %v520 = vcvt.s32.f32 %v376
    %v521 = vcvt.s32.f32 %v377
    %v522 = vcvt.s32.f32 %v378
    %v523 = vcvt.s32.f32 %v379
    %v524 = vcvt.s32.f32 %v380
    %v525 = vcvt.s32.f32 %v381
    %v526 = vcvt.s32.f32 %v382
    %v527 = vcvt.s32.f32 %v383
    %v528 = vcvt.s32.f32 %v384
    %v529 = vcvt.s32.f32 %v385
    %v530 = vcvt.s32.f32 %v386
    %v531 = vcvt.s32.f32 %v387
    %v532 = vcvt.s32.f32 %v388
    %v533 = vcvt.s32.f32 %v389
    %v534 = vcvt.s32.f32 %v390
    %v535 = vcvt.s32.f32 %v391
    %v536 = vcvt.s32.f32 %v392
    %v537 = vcvt.s32.f32 %v393
    %v538 = vcvt.s32.f32 %v394
    %v539 = vcvt.s32.f32 %v395
    %v540 = vcvt.s32.f32 %v396
    %v541 = vcvt.s32.f32 %v397
    %v542 = vcvt.s32.f32 %v398
    %v543 = vcvt.s32.f32 %v399
    %v544 = vcvt.s32.f32 %v400
    %v545 = vcvt.s32.f32 %v401
    %v546 = vcvt.s32.f32 %v402
    %v547 = vcvt.s32.f32 %v403
    %v548 = vcvt.s32.f32 %v404
    %v549 = vcvt.s32.f32 %v405
    %v550 = vcvt.s32.f32 %v406
    %v551 = vcvt.s32.f32 %v407
    %v552 = vcvt.s32.f32 %v408
    %v553 = vcvt.s32.f32 %v409
    %v554 = vcvt.s32.f32 %v410
    %v555 = vcvt.s32.f32 %v411
    %v556 = vcvt.s32.f32 %v412
    %v557 = vcvt.s32.f32 %v413
    %v558 = vcvt.s32.f32 %v414
    %v559 = vcvt.s32.f32 %v415
    %v560 = vcvt.s32.f32 %v416
    %v561 = vcvt.s32.f32 %v417
    %v562 = vcvt.s32.f32 %v418
    %v563 = vcvt.s32.f32 %v419
    %v564 = vcvt.s32.f32 %v420
    %v565 = vunpack.c.l.s8.bf16 %v241
    %v566 = vunpack.c.l.s8.bf16 %v242
    %v567 = vunpack.c.l.s8.bf16 %v243
    %v568 = vunpack.c.h.s8.bf16 %v241
    %v569 = vunpack.c.h.s8.bf16 %v242
    %v570 = vunpack.c.h.s8.bf16 %v243
    %v571 = vunpack.c.l.s8.bf16 %v244
    %v572 = vunpack.c.l.s8.bf16 %v245
    %v573 = vunpack.c.l.s8.bf16 %v246
    %v574 = vunpack.c.h.s8.bf16 %v244
    %v575 = vunpack.c.h.s8.bf16 %v245
    %v576 = vunpack.c.h.s8.bf16 %v246
    %v577 = vunpack.c.l.s8.bf16 %v247
    %v578 = vunpack.c.l.s8.bf16 %v248
    %v579 = vunpack.c.l.s8.bf16 %v249
    %v580 = vunpack.c.h.s8.bf16 %v247
    %v581 = vunpack.c.h.s8.bf16 %v248
    %v582 = vunpack.c.h.s8.bf16 %v249
    %v583 = vunpack.c.l.s8.bf16 %v250
    %v584 = vunpack.c.l.s8.bf16 %v251
    %v585 = vunpack.c.l.s8.bf16 %v252
    %v586 = vunpack.c.h.s8.bf16 %v250
    %v587 = vunpack.c.h.s8.bf16 %v251
    %v588 = vunpack.c.h.s8.bf16 %v252
    %v589 = vunpack.c.l.s8.bf16 %v253
    %v590 = vunpack.c.l.s8.bf16 %v254
    %v591 = vunpack.c.l.s8.bf16 %v255
    %v592 = vunpack.c.h.s8.bf16 %v253
    %v593 = vunpack.c.h.s8.bf16 %v254
    %v594 = vunpack.c.h.s8.bf16 %v255
    %v595 = vunpack.c.l.s8.bf16 %v256
    %v596 = vunpack.c.l.s8.bf16 %v257
    %v597 = vunpack.c.l.s8.bf16 %v258
    %v598 = vunpack.c.h.s8.bf16 %v256
    %v599 = vunpack.c.h.s8.bf16 %v257
    %v600 = vunpack.c.h.s8.bf16 %v258
    %v601 = vunpack.c.l.s8.bf16 %v259
    %v602 = vunpack.c.l.s8.bf16 %v260
    %v603 = vunpack.c.l.s8.bf16 %v261
    %v604 = vunpack.c.h.s8.bf16 %v259
    %v605 = vunpack.c.h.s8.bf16 %v260
    %v606 = vunpack.c.h.s8.bf16 %v261
    %v607 = vunpack.c.l.s8.bf16 %v262
    %v608 = vunpack.c.l.s8.bf16 %v263
    %v609 = vunpack.c.l.s8.bf16 %v264
    %v610 = vunpack.c.h.s8.bf16 %v262
    %v611 = vunpack.c.h.s8.bf16 %v263
    %v612 = vunpack.c.h.s8.bf16 %v264
    %v613 = vunpack.c.l.s8.bf16 %v265
    %v614 = vunpack.c.l.s8.bf16 %v266
    %v615 = vunpack.c.l.s8.bf16 %v267
    %v616 = vunpack.c.h.s8.bf16 %v265
    %v617 = vunpack.c.h.s8.bf16 %v266
    %v618 = vunpack.c.h.s8.bf16 %v267
    %v619 = vunpack.c.l.s8.bf16 %v268
    %v620 = vunpack.c.l.s8.bf16 %v269
    %v621 = vunpack.c.l.s8.bf16 %v270
    %v622 = vunpack.c.h.s8.bf16 %v268
    %v623 = vunpack.c.h.s8.bf16 %v269
    %v624 = vunpack.c.h.s8.bf16 %v270
    %v625 = vunpack.c.l.s8.bf16 %v271
    %v626 = vunpack.c.l.s8.bf16 %v272
    %v627 = vunpack.c.l.s8.bf16 %v273
    %v628 = vunpack.c.h.s8.bf16 %v271
    %v629 = vunpack.c.h.s8.bf16 %v272
    %v630 = vunpack.c.h.s8.bf16 %v273
    %v631 = vunpack.c.l.s8.bf16 %v274
    %v632 = vunpack.c.l.s8.bf16 %v275
    %v633 = vunpack.c.l.s8.bf16 %v276
    %v634 = vunpack.c.h.s8.bf16 %v274
    %v635 = vunpack.c.h.s8.bf16 %v275
    %v636 = vunpack.c.h.s8.bf16 %v276
    %v637 = vadd.f32 %v421, %v422
    %v638 = vadd.f32 %v637, %v423
    %639 = vadd.xlane.f32.xlu0 %v638
    %v640 = vpop.xlane.xlu0 %639
    %v641 = vadd.f32 %v424, %v425
    %v642 = vadd.f32 %v641, %v426
    %643 = vadd.xlane.f32.xlu0 %v642
    %v644 = vpop.xlane.xlu0 %643
    %v645 = vadd.f32 %v427, %v428
    %v646 = vadd.f32 %v645, %v429
    %647 = vadd.xlane.f32.xlu0 %v646
    %v648 = vpop.xlane.xlu0 %647
    %v649 = vadd.f32 %v430, %v431
    %v650 = vadd.f32 %v649, %v432
    %651 = vadd.xlane.f32.xlu0 %v650
    %v652 = vpop.xlane.xlu0 %651
    %v653 = vadd.f32 %v433, %v434
    %v654 = vadd.f32 %v653, %v435
    %655 = vadd.xlane.f32.xlu0 %v654
    %v656 = vpop.xlane.xlu0 %655
    %v657 = vadd.f32 %v436, %v437
    %v658 = vadd.f32 %v657, %v438
    %659 = vadd.xlane.f32.xlu0 %v658
    %v660 = vpop.xlane.xlu0 %659
    %v661 = vadd.f32 %v439, %v440
    %v662 = vadd.f32 %v661, %v441
    %663 = vadd.xlane.f32.xlu0 %v662
    %v664 = vpop.xlane.xlu0 %663
    %v665 = vadd.f32 %v442, %v443
    %v666 = vadd.f32 %v665, %v444
    %667 = vadd.xlane.f32.xlu0 %v666
    %v668 = vpop.xlane.xlu0 %667
    %v669 = vadd.f32 %v445, %v446
    %v670 = vadd.f32 %v669, %v447
    %671 = vadd.xlane.f32.xlu0 %v670
    %v672 = vpop.xlane.xlu0 %671
    %v673 = vadd.f32 %v448, %v449
    %v674 = vadd.f32 %v673, %v450
    %675 = vadd.xlane.f32.xlu0 %v674
    %v676 = vpop.xlane.xlu0 %675
    %v677 = vadd.f32 %v451, %v452
    %v678 = vadd.f32 %v677, %v453
    %679 = vadd.xlane.f32.xlu0 %v678
    %v680 = vpop.xlane.xlu0 %679
    %v681 = vadd.f32 %v454, %v455
    %v682 = vadd.f32 %v681, %v456
    %683 = vadd.xlane.f32.xlu0 %v682
    %v684 = vpop.xlane.xlu0 %683
    %v685 = vadd.f32 %v457, %v458
    %v686 = vadd.f32 %v685, %v459
    %687 = vadd.xlane.f32.xlu0 %v686
    %v688 = vpop.xlane.xlu0 %687
    %v689 = vadd.f32 %v460, %v461
    %v690 = vadd.f32 %v689, %v462
    %691 = vadd.xlane.f32.xlu0 %v690
    %v692 = vpop.xlane.xlu0 %691
    %v693 = vadd.f32 %v463, %v464
    %v694 = vadd.f32 %v693, %v465
    %695 = vadd.xlane.f32.xlu0 %v694
    %v696 = vpop.xlane.xlu0 %695
    %v697 = vadd.f32 %v466, %v467
    %v698 = vadd.f32 %v697, %v468
    %699 = vadd.xlane.f32.xlu0 %v698
    %v700 = vpop.xlane.xlu0 %699
    %v701 = vadd.f32 %v469, %v470
    %v702 = vadd.f32 %v701, %v471
    %703 = vadd.xlane.f32.xlu0 %v702
    %v704 = vpop.xlane.xlu0 %703
    %v705 = vadd.f32 %v472, %v473
    %v706 = vadd.f32 %v705, %v474
    %707 = vadd.xlane.f32.xlu0 %v706
    %v708 = vpop.xlane.xlu0 %707
    %v709 = vadd.f32 %v475, %v476
    %v710 = vadd.f32 %v709, %v477
    %711 = vadd.xlane.f32.xlu0 %v710
    %v712 = vpop.xlane.xlu0 %711
    %v713 = vadd.f32 %v478, %v479
    %v714 = vadd.f32 %v713, %v480
    %715 = vadd.xlane.f32.xlu0 %v714
    %v716 = vpop.xlane.xlu0 %715
    %v717 = vadd.f32 %v481, %v482
    %v718 = vadd.f32 %v717, %v483
    %719 = vadd.xlane.f32.xlu0 %v718
    %v720 = vpop.xlane.xlu0 %719
    %v721 = vadd.f32 %v484, %v485
    %v722 = vadd.f32 %v721, %v486
    %723 = vadd.xlane.f32.xlu0 %v722
    %v724 = vpop.xlane.xlu0 %723
    %v725 = vadd.f32 %v487, %v488
    %v726 = vadd.f32 %v725, %v489
    %727 = vadd.xlane.f32.xlu0 %v726
    %v728 = vpop.xlane.xlu0 %727
    %v729 = vadd.f32 %v490, %v491
    %v730 = vadd.f32 %v729, %v492
    %731 = vadd.xlane.f32.xlu0 %v730
    %v732 = vpop.xlane.xlu0 %731
    %v733 = vadd.f32 %v493, %v494
    %v734 = vadd.f32 %v733, %v495
    %735 = vadd.xlane.f32.xlu0 %v734
    %v736 = vpop.xlane.xlu0 %735
    %v737 = vadd.f32 %v496, %v497
    %v738 = vadd.f32 %v737, %v498
    %739 = vadd.xlane.f32.xlu0 %v738
    %v740 = vpop.xlane.xlu0 %739
    %v741 = vadd.f32 %v499, %v500
    %v742 = vadd.f32 %v741, %v501
    %743 = vadd.xlane.f32.xlu0 %v742
    %v744 = vpop.xlane.xlu0 %743
    %v745 = vadd.f32 %v502, %v503
    %v746 = vadd.f32 %v745, %v504
    %747 = vadd.xlane.f32.xlu0 %v746
    %v748 = vpop.xlane.xlu0 %747
    %v749 = vadd.f32 %v505, %v506
    %v750 = vadd.f32 %v749, %v507
    %751 = vadd.xlane.f32.xlu0 %v750
    %v752 = vpop.xlane.xlu0 %751
    %v753 = vadd.f32 %v508, %v509
    %v754 = vadd.f32 %v753, %v510
    %755 = vadd.xlane.f32.xlu0 %v754
    %v756 = vpop.xlane.xlu0 %755
    %v757 = vadd.f32 %v511, %v512
    %v758 = vadd.f32 %v757, %v513
    %759 = vadd.xlane.f32.xlu0 %v758
    %v760 = vpop.xlane.xlu0 %759
    %v761 = vadd.f32 %v514, %v515
    %v762 = vadd.f32 %v761, %v516
    %763 = vadd.xlane.f32.xlu0 %v762
    %v764 = vpop.xlane.xlu0 %763
    %v765 = vadd.f32 %v517, %v518
    %v766 = vadd.f32 %v765, %v519
    %767 = vadd.xlane.f32.xlu0 %v766
    %v768 = vpop.xlane.xlu0 %767
    %v769 = vadd.f32 %v520, %v521
    %v770 = vadd.f32 %v769, %v522
    %771 = vadd.xlane.f32.xlu0 %v770
    %v772 = vpop.xlane.xlu0 %771
    %v773 = vadd.f32 %v523, %v524
    %v774 = vadd.f32 %v773, %v525
    %775 = vadd.xlane.f32.xlu0 %v774
    %v776 = vpop.xlane.xlu0 %775
    %v777 = vadd.f32 %v526, %v527
    %v778 = vadd.f32 %v777, %v528
    %779 = vadd.xlane.f32.xlu0 %v778
    %v780 = vpop.xlane.xlu0 %779
    %v781 = vadd.f32 %v529, %v530
    %v782 = vadd.f32 %v781, %v531
    %783 = vadd.xlane.f32.xlu0 %v782
    %v784 = vpop.xlane.xlu0 %783
    %v785 = vadd.f32 %v532, %v533
    %v786 = vadd.f32 %v785, %v534
    %787 = vadd.xlane.f32.xlu0 %v786
    %v788 = vpop.xlane.xlu0 %787
    %v789 = vadd.f32 %v535, %v536
    %v790 = vadd.f32 %v789, %v537
    %791 = vadd.xlane.f32.xlu0 %v790
    %v792 = vpop.xlane.xlu0 %791
    %v793 = vadd.f32 %v538, %v539
    %v794 = vadd.f32 %v793, %v540
    %795 = vadd.xlane.f32.xlu0 %v794
    %v796 = vpop.xlane.xlu0 %795
    %v797 = vadd.f32 %v541, %v542
    %v798 = vadd.f32 %v797, %v543
    %799 = vadd.xlane.f32.xlu0 %v798
    %v800 = vpop.xlane.xlu0 %799
    %v801 = vadd.f32 %v544, %v545
    %v802 = vadd.f32 %v801, %v546
    %803 = vadd.xlane.f32.xlu0 %v802
    %v804 = vpop.xlane.xlu0 %803
    %v805 = vadd.f32 %v547, %v548
    %v806 = vadd.f32 %v805, %v549
    %807 = vadd.xlane.f32.xlu0 %v806
    %v808 = vpop.xlane.xlu0 %807
    %v809 = vadd.f32 %v550, %v551
    %v810 = vadd.f32 %v809, %v552
    %811 = vadd.xlane.f32.xlu0 %v810
    %v812 = vpop.xlane.xlu0 %811
    %v813 = vadd.f32 %v553, %v554
    %v814 = vadd.f32 %v813, %v555
    %815 = vadd.xlane.f32.xlu0 %v814
    %v816 = vpop.xlane.xlu0 %815
    %v817 = vadd.f32 %v556, %v557
    %v818 = vadd.f32 %v817, %v558
    %819 = vadd.xlane.f32.xlu0 %v818
    %v820 = vpop.xlane.xlu0 %819
    %v821 = vadd.f32 %v559, %v560
    %v822 = vadd.f32 %v821, %v561
    %823 = vadd.xlane.f32.xlu0 %v822
    %v824 = vpop.xlane.xlu0 %823
    %v825 = vadd.f32 %v562, %v563
    %v826 = vadd.f32 %v825, %v564
    %827 = vadd.xlane.f32.xlu0 %v826
    %v828 = vpop.xlane.xlu0 %827
    %v829 = vld [vmem:[#allocation5] sm:$0xff]
    %v830 = vld [vmem:[#allocation5 + $0x8] sm:$0xff]
    %v831 = vld [vmem:[#allocation5 + $0x10] sm:$0xff]
    %v832 = vadd.f32 %v829, %v830
    %v833 = vadd.f32 %v832, %v831
    %834 = vadd.xlane.f32.xlu0 %v833
    %v835 = vpop.xlane.xlu0 %834
    %v836 = vld [vmem:[%s1] sm:$0xf]
    %v837 = vld [vmem:[%s1 + $0x4] sm:$0xf]
    %v838 = vld [vmem:[%s1 + $0x8] sm:$0xf]
    %v839 = vld [vmem:[%s1 + $0xc] sm:$0xf]
    %v840 = vld [vmem:[%s1 + $0x10] sm:$0xf]
    %v841 = vld [vmem:[%s1 + $0x14] sm:$0xf]
    %v842 = vld [vmem:[%s1 + $0x18] sm:$0xf]
    %v843 = vld [vmem:[%s1 + $0x1c] sm:$0xf]
    %v844 = vld [vmem:[%s1 + $0x20] sm:$0xf]
    %v845 = vld [vmem:[%s1 + $0x24] sm:$0xf]
    %v846 = vld [vmem:[%s1 + $0x28] sm:$0xf]
    %v847 = vld [vmem:[%s1 + $0x2c] sm:$0xf]
    %v848 = vld [vmem:[%s1 + $0x30] sm:$0xf]
    %v849 = vld [vmem:[%s1 + $0x34] sm:$0xf]
    %v850 = vld [vmem:[%s1 + $0x38] sm:$0xf]
    %v851 = vld [vmem:[%s1 + $0x3c] sm:$0xf]
    %v852 = vld [vmem:[%s1 + $0x40] sm:$0xf]
    %v853 = vld [vmem:[%s1 + $0x44] sm:$0xf]
    %v854 = vld [vmem:[%s1 + $0x48] sm:$0xf]
    %v855 = vld [vmem:[%s1 + $0x4c] sm:$0xf]
    %v856 = vld [vmem:[%s1 + $0x50] sm:$0xf]
    %v857 = vld [vmem:[%s1 + $0x54] sm:$0xf]
    %v858 = vld [vmem:[%s1 + $0x58] sm:$0xf]
    %v859 = vld [vmem:[%s1 + $0x5c] sm:$0xf]
    %v860 = vld [vmem:[%s1 + $0x60] sm:$0xf]
    %v861 = vld [vmem:[%s1 + $0x64] sm:$0xf]
    %v862 = vld [vmem:[%s1 + $0x68] sm:$0xf]
    %v863 = vld [vmem:[%s1 + $0x6c] sm:$0xf]
    %v864 = vld [vmem:[%s1 + $0x70] sm:$0xf]
    %v865 = vld [vmem:[%s1 + $0x74] sm:$0xf]
    %v866 = vld [vmem:[%s1 + $0x78] sm:$0xf]
    %v867 = vld [vmem:[%s1 + $0x7c] sm:$0xf]
    %v868 = vld [vmem:[%s1 + $0x80] sm:$0xf]
    %v869 = vld [vmem:[%s1 + $0x84] sm:$0xf]
    %v870 = vld [vmem:[%s1 + $0x88] sm:$0xf]
    %v871 = vld [vmem:[%s1 + $0x8c] sm:$0xf]
    %v872 = vld [vmem:[%s1 + $0x90] sm:$0xf]
    %v873 = vld [vmem:[%s1 + $0x94] sm:$0xf]
    %v874 = vld [vmem:[%s1 + $0x98] sm:$0xf]
    %v875 = vld [vmem:[%s1 + $0x9c] sm:$0xf]
    %v876 = vld [vmem:[%s1 + $0xa0] sm:$0xf]
    %v877 = vld [vmem:[%s1 + $0xa4] sm:$0xf]
    %v878 = vld [vmem:[%s1 + $0xa8] sm:$0xf]
    %v879 = vld [vmem:[%s1 + $0xac] sm:$0xf]
    %v880 = vld [vmem:[%s1 + $0xb0] sm:$0xf]
    %v881 = vld [vmem:[%s1 + $0xb4] sm:$0xf]
    %v882 = vld [vmem:[%s1 + $0xb8] sm:$0xf]
    %v883 = vld [vmem:[%s1 + $0xbc] sm:$0xf]
    %v884 = vlaneseq
    %v885 = vshrl.u32 %v884, 7
    %v886 = vadd.s32 %v885, 8
    %v887 = vadd.s32 %v885, 16
    %v888 = vadd.s32 %v885, 24
    %v889 = vadd.s32 %v885, 32
    %v890 = vadd.s32 %v885, 40
    %v891 = vadd.s32 %v885, 48
    %v892 = vadd.s32 %v885, 56
    %v893 = vadd.s32 %v885, 64
    %v894 = vadd.s32 %v885, 72
    %v895 = vadd.s32 %v885, 80
    %v896 = vadd.s32 %v885, 88
    %v897 = vadd.s32 %v885, 96
    %v898 = vadd.s32 %v885, 104
    %v899 = vadd.s32 %v885, 112
    %v900 = vadd.s32 %v885, 120
    %v901 = vadd.s32 %v885, 128
    %v902 = vadd.s32 %v885, 136
    %v903 = vadd.s32 %v885, 144
    %v904 = vadd.s32 %v885, 152
    %v905 = vadd.s32 %v885, 160
    %v906 = vadd.s32 %v885, 168
    %v907 = vadd.s32 %v885, 176
    %v908 = vadd.s32 %v885, 184
    %v909 = vadd.s32 %v885, 192
    %v910 = vadd.s32 %v885, 200
    %v911 = vadd.s32 %v885, 208
    %v912 = vadd.s32 %v885, 216
    %v913 = vadd.s32 %v885, 224
    %v914 = vadd.s32 %v885, 232
    %v915 = vadd.s32 %v885, 240
    %v916 = vadd.s32 %v885, 248
    %v917 = vadd.s32 %v885, 256
    %v918 = vadd.s32 %v885, 264
    %v919 = vadd.s32 %v885, 272
    %v920 = vadd.s32 %v885, 280
    %v921 = vadd.s32 %v885, 288
    %v922 = vadd.s32 %v885, 296
    %v923 = vadd.s32 %v885, 304
    %v924 = vadd.s32 %v885, 312
    %v925 = vadd.s32 %v885, 320
    %v926 = vadd.s32 %v885, 328
    %v927 = vadd.s32 %v885, 336
    %v928 = vadd.s32 %v885, 344
    %v929 = vadd.s32 %v885, 352
    %v930 = vadd.s32 %v885, 360
    %v931 = vadd.s32 %v885, 368
    %v932 = vadd.s32 %v885, 376
    %vm933 = vcmp.lt.s32.totalorder %v885, 300
    %vm934 = vcmp.lt.s32.totalorder %v886, 300
    %vm935 = vcmp.lt.s32.totalorder %v887, 300
    %vm936 = vcmp.lt.s32.totalorder %v888, 300
    %vm937 = vcmp.lt.s32.totalorder %v889, 300
    %vm938 = vcmp.lt.s32.totalorder %v890, 300
    %vm939 = vcmp.lt.s32.totalorder %v891, 300
    %vm940 = vcmp.lt.s32.totalorder %v892, 300
    %vm941 = vcmp.lt.s32.totalorder %v893, 300
    %vm942 = vcmp.lt.s32.totalorder %v894, 300
    %vm943 = vcmp.lt.s32.totalorder %v895, 300
    %vm944 = vcmp.lt.s32.totalorder %v896, 300
    %vm945 = vcmp.lt.s32.totalorder %v897, 300
    %vm946 = vcmp.lt.s32.totalorder %v898, 300
    %vm947 = vcmp.lt.s32.totalorder %v899, 300
    %vm948 = vcmp.lt.s32.totalorder %v900, 300
    %vm949 = vcmp.lt.s32.totalorder %v901, 300
    %vm950 = vcmp.lt.s32.totalorder %v902, 300
    %vm951 = vcmp.lt.s32.totalorder %v903, 300
    %vm952 = vcmp.lt.s32.totalorder %v904, 300
    %vm953 = vcmp.lt.s32.totalorder %v905, 300
    %vm954 = vcmp.lt.s32.totalorder %v906, 300
    %vm955 = vcmp.lt.s32.totalorder %v907, 300
    %vm956 = vcmp.lt.s32.totalorder %v908, 300
    %vm957 = vcmp.lt.s32.totalorder %v909, 300
    %vm958 = vcmp.lt.s32.totalorder %v910, 300
    %vm959 = vcmp.lt.s32.totalorder %v911, 300
    %vm960 = vcmp.lt.s32.totalorder %v912, 300
    %vm961 = vcmp.lt.s32.totalorder %v913, 300
    %vm962 = vcmp.lt.s32.totalorder %v914, 300
    %vm963 = vcmp.lt.s32.totalorder %v915, 300
    %vm964 = vcmp.lt.s32.totalorder %v916, 300
    %vm965 = vcmp.lt.s32.totalorder %v917, 300
    %vm966 = vcmp.lt.s32.totalorder %v918, 300
    %vm967 = vcmp.lt.s32.totalorder %v919, 300
    %vm968 = vcmp.lt.s32.totalorder %v920, 300
    %vm969 = vcmp.lt.s32.totalorder %v921, 300
    %vm970 = vcmp.lt.s32.totalorder %v922, 300
    %vm971 = vcmp.lt.s32.totalorder %v923, 300
    %vm972 = vcmp.lt.s32.totalorder %v924, 300
    %vm973 = vcmp.lt.s32.totalorder %v925, 300
    %vm974 = vcmp.lt.s32.totalorder %v926, 300
    %vm975 = vcmp.lt.s32.totalorder %v927, 300
    %vm976 = vcmp.lt.s32.totalorder %v928, 300
    %vm977 = vcmp.lt.s32.totalorder %v929, 300
    %vm978 = vcmp.lt.s32.totalorder %v930, 300
    %vm979 = vcmp.lt.s32.totalorder %v931, 300
    %vm980 = vcmp.lt.s32.totalorder %v932, 300
    %v981 = vsel %vm933, 1, 0
    %v982 = vsel %vm934, 1, 0
    %v983 = vsel %vm935, 1, 0
    %v984 = vsel %vm936, 1, 0
    %v985 = vsel %vm937, 1, 0
    %v986 = vsel %vm938, 1, 0
    %v987 = vsel %vm939, 1, 0
    %v988 = vsel %vm940, 1, 0
    %v989 = vsel %vm941, 1, 0
    %v990 = vsel %vm942, 1, 0
    %v991 = vsel %vm943, 1, 0
    %v992 = vsel %vm944, 1, 0
    %v993 = vsel %vm945, 1, 0
    %v994 = vsel %vm946, 1, 0
    %v995 = vsel %vm947, 1, 0
    %v996 = vsel %vm948, 1, 0
    %v997 = vsel %vm949, 1, 0
    %v998 = vsel %vm950, 1, 0
    %v999 = vsel %vm951, 1, 0
    %v1000 = vsel %vm952, 1, 0
    %v1001 = vsel %vm953, 1, 0
    %v1002 = vsel %vm954, 1, 0
    %v1003 = vsel %vm955, 1, 0
    %v1004 = vsel %vm956, 1, 0
    %v1005 = vsel %vm957, 1, 0
    %v1006 = vsel %vm958, 1, 0
    %v1007 = vsel %vm959, 1, 0
    %v1008 = vsel %vm960, 1, 0
    %v1009 = vsel %vm961, 1, 0
    %v1010 = vsel %vm962, 1, 0
    %v1011 = vsel %vm963, 1, 0
    %v1012 = vsel %vm964, 1, 0
    %v1013 = vsel %vm965, 1, 0
    %v1014 = vsel %vm966, 1, 0
    %v1015 = vsel %vm967, 1, 0
    %v1016 = vsel %vm968, 1, 0
    %v1017 = vsel %vm969, 1, 0
    %v1018 = vsel %vm970, 1, 0
    %v1019 = vsel %vm971, 1, 0
    %v1020 = vsel %vm972, 1, 0
    %v1021 = vsel %vm973, 1, 0
    %v1022 = vsel %vm974, 1, 0
    %v1023 = vsel %vm975, 1, 0
    %v1024 = vsel %vm976, 1, 0
    %v1025 = vsel %vm977, 1, 0
    %v1026 = vsel %vm978, 1, 0
    %v1027 = vsel %vm979, 1, 0
    %v1028 = vsel %vm980, 1, 0
    %v1029 = vcvt.s32.f32 %v981
    %v1030 = vcvt.s32.f32 %v982
    %v1031 = vcvt.s32.f32 %v983
    %v1032 = vcvt.s32.f32 %v984
    %v1033 = vcvt.s32.f32 %v985
    %v1034 = vcvt.s32.f32 %v986
    %v1035 = vcvt.s32.f32 %v987
    %v1036 = vcvt.s32.f32 %v988
    %v1037 = vcvt.s32.f32 %v989
    %v1038 = vcvt.s32.f32 %v990
    %v1039 = vcvt.s32.f32 %v991
    %v1040 = vcvt.s32.f32 %v992
    %v1041 = vcvt.s32.f32 %v993
    %v1042 = vcvt.s32.f32 %v994
    %v1043 = vcvt.s32.f32 %v995
    %v1044 = vcvt.s32.f32 %v996
    %v1045 = vcvt.s32.f32 %v997
    %v1046 = vcvt.s32.f32 %v998
    %v1047 = vcvt.s32.f32 %v999
    %v1048 = vcvt.s32.f32 %v1000
    %v1049 = vcvt.s32.f32 %v1001
    %v1050 = vcvt.s32.f32 %v1002
    %v1051 = vcvt.s32.f32 %v1003
    %v1052 = vcvt.s32.f32 %v1004
    %v1053 = vcvt.s32.f32 %v1005
    %v1054 = vcvt.s32.f32 %v1006
    %v1055 = vcvt.s32.f32 %v1007
    %v1056 = vcvt.s32.f32 %v1008
    %v1057 = vcvt.s32.f32 %v1009
    %v1058 = vcvt.s32.f32 %v1010
    %v1059 = vcvt.s32.f32 %v1011
    %v1060 = vcvt.s32.f32 %v1012
    %v1061 = vcvt.s32.f32 %v1013
    %v1062 = vcvt.s32.f32 %v1014
    %v1063 = vcvt.s32.f32 %v1015
    %v1064 = vcvt.s32.f32 %v1016
    %v1065 = vcvt.s32.f32 %v1017
    %v1066 = vcvt.s32.f32 %v1018
    %v1067 = vcvt.s32.f32 %v1019
    %v1068 = vcvt.s32.f32 %v1020
    %v1069 = vcvt.s32.f32 %v1021
    %v1070 = vcvt.s32.f32 %v1022
    %v1071 = vcvt.s32.f32 %v1023
    %v1072 = vcvt.s32.f32 %v1024
    %v1073 = vcvt.s32.f32 %v1025
    %v1074 = vcvt.s32.f32 %v1026
    %v1075 = vcvt.s32.f32 %v1027
    %v1076 = vcvt.s32.f32 %v1028
    %v1077 = vld [vmem:[#allocation7] sm:$0xff]
    %v1078 = vld [vmem:[#allocation8] sm:$0xff]
    %v1079 = vld [vmem:[#allocation8 + $0x8] sm:$0xff]
    %v1080 = vld [vmem:[#allocation8 + $0x10] sm:$0xff]
    %v1081 = vld [vmem:[#allocation8 + $0x18] sm:$0xff]
    %v1082 = vld [vmem:[#allocation10] sm:$0x3]
    %v1083 = vld [vmem:[#allocation11] sm:$0x3]
    %v1084 = vmul.f32 %v640, 0.0
    %v1085 = vmul.f32 %v644, 0.0
    %v1086 = vmul.f32 %v648, 0.0
    %v1087 = vmul.f32 %v652, 0.0
    %v1088 = vmul.f32 %v656, 0.0
    %v1089 = vmul.f32 %v660, 0.0
    %v1090 = vmul.f32 %v664, 0.0
    %v1091 = vmul.f32 %v668, 0.0
    %v1092 = vmul.f32 %v672, 0.0
    %v1093 = vmul.f32 %v676, 0.0
    %v1094 = vmul.f32 %v680, 0.0
    %v1095 = vmul.f32 %v684, 0.0
    %v1096 = vmul.f32 %v688, 0.0
    %v1097 = vmul.f32 %v692, 0.0
    %v1098 = vmul.f32 %v696, 0.0
    %v1099 = vmul.f32 %v700, 0.0
    %v1100 = vmul.f32 %v704, 0.0
    %v1101 = vmul.f32 %v708, 0.0
    %v1102 = vmul.f32 %v712, 0.0
    %v1103 = vmul.f32 %v716, 0.0
    %v1104 = vmul.f32 %v720, 0.0
    %v1105 = vmul.f32 %v724, 0.0
    %v1106 = vmul.f32 %v728, 0.0
    %v1107 = vmul.f32 %v732, 0.0
    %v1108 = vmul.f32 %v736, 0.0
    %v1109 = vmul.f32 %v740, 0.0
    %v1110 = vmul.f32 %v744, 0.0
    %v1111 = vmul.f32 %v748, 0.0
    %v1112 = vmul.f32 %v752, 0.0
    %v1113 = vmul.f32 %v756, 0.0
    %v1114 = vmul.f32 %v760, 0.0
    %v1115 = vmul.f32 %v764, 0.0
    %v1116 = vmul.f32 %v768, 0.0
    %v1117 = vmul.f32 %v772, 0.0
    %v1118 = vmul.f32 %v776, 0.0
    %v1119 = vmul.f32 %v780, 0.0
    %v1120 = vmul.f32 %v784, 0.0
    %v1121 = vmul.f32 %v788, 0.0
    %v1122 = vmul.f32 %v792, 0.0
    %v1123 = vmul.f32 %v796, 0.0
    %v1124 = vmul.f32 %v800, 0.0
    %v1125 = vmul.f32 %v804, 0.0
    %v1126 = vmul.f32 %v808, 0.0
    %v1127 = vmul.f32 %v812, 0.0
    %v1128 = vmul.f32 %v816, 0.0
    %v1129 = vmul.f32 %v820, 0.0
    %v1130 = vmul.f32 %v824, 0.0
    %v1131 = vmul.f32 %v828, 0.0
    %v1180 = vunpack.c.l.b16 %v836
    %v1181 = vunpack.c.l.b16 %v837
    %v1182 = vunpack.c.l.b16 %v838
    %v1183 = vunpack.c.l.b16 %v839
    %v1184 = vunpack.c.l.b16 %v840
    %v1185 = vunpack.c.l.b16 %v841
    %v1186 = vunpack.c.l.b16 %v842
    %v1187 = vunpack.c.l.b16 %v843
    %v1188 = vunpack.c.l.b16 %v844
    %v1189 = vunpack.c.l.b16 %v845
    %v1190 = vunpack.c.l.b16 %v846
    %v1191 = vunpack.c.l.b16 %v847
    %v1192 = vunpack.c.l.b16 %v848
    %v1193 = vunpack.c.l.b16 %v849
    %v1194 = vunpack.c.l.b16 %v850
    %v1195 = vunpack.c.l.b16 %v851
    %v1196 = vunpack.c.l.b16 %v852
    %v1197 = vunpack.c.l.b16 %v853
    %v1198 = vunpack.c.l.b16 %v854
    %v1199 = vunpack.c.l.b16 %v855
    %v1200 = vunpack.c.l.b16 %v856
    %v1201 = vunpack.c.l.b16 %v857
    %v1202 = vunpack.c.l.b16 %v858
    %v1203 = vunpack.c.l.b16 %v859
    %v1204 = vunpack.c.l.b16 %v860
    %v1205 = vunpack.c.l.b16 %v861
    %v1206 = vunpack.c.l.b16 %v862
    %v1207 = vunpack.c.l.b16 %v863
    %v1208 = vunpack.c.l.b16 %v864
    %v1209 = vunpack.c.l.b16 %v865
    %v1210 = vunpack.c.l.b16 %v866
    %v1211 = vunpack.c.l.b16 %v867
    %v1212 = vunpack.c.l.b16 %v868
    %v1213 = vunpack.c.l.b16 %v869
    %v1214 = vunpack.c.l.b16 %v870
    %v1215 = vunpack.c.l.b16 %v871
    %v1216 = vunpack.c.l.b16 %v872
    %v1217 = vunpack.c.l.b16 %v873
    %v1218 = vunpack.c.l.b16 %v874
    %v1219 = vunpack.c.l.b16 %v875
    %v1220 = vunpack.c.l.b16 %v876
    %v1221 = vunpack.c.l.b16 %v877
    %v1222 = vunpack.c.l.b16 %v878
    %v1223 = vunpack.c.l.b16 %v879
    %v1224 = vunpack.c.l.b16 %v880
    %v1225 = vunpack.c.l.b16 %v881
    %v1226 = vunpack.c.l.b16 %v882
    %v1227 = vunpack.c.l.b16 %v883
    %v1228 = vpack.c.b16 %v1181, %v1180
    %v1229 = vpack.c.b16 %v1183, %v1182
    %v1230 = vpack.c.b16 %v1185, %v1184
    %v1231 = vpack.c.b16 %v1187, %v1186
    %v1232 = vpack.c.b16 %v1189, %v1188
    %v1233 = vpack.c.b16 %v1191, %v1190
    %v1234 = vpack.c.b16 %v1193, %v1192
    %v1235 = vpack.c.b16 %v1195, %v1194
    %v1236 = vpack.c.b16 %v1197, %v1196
    %v1237 = vpack.c.b16 %v1199, %v1198
    %v1238 = vpack.c.b16 %v1201, %v1200
    %v1239 = vpack.c.b16 %v1203, %v1202
    %v1240 = vpack.c.b16 %v1205, %v1204
    %v1241 = vpack.c.b16 %v1207, %v1206
    %v1242 = vpack.c.b16 %v1209, %v1208
    %v1243 = vpack.c.b16 %v1211, %v1210
    %v1244 = vpack.c.b16 %v1213, %v1212
    %v1245 = vpack.c.b16 %v1215, %v1214
    %v1246 = vpack.c.b16 %v1217, %v1216
    %v1247 = vpack.c.b16 %v1219, %v1218
    %v1248 = vpack.c.b16 %v1221, %v1220
    %v1249 = vpack.c.b16 %v1223, %v1222
    %v1250 = vpack.c.b16 %v1225, %v1224
    %v1251 = vpack.c.b16 %v1227, %v1226
    %1276 = vmatprep.subr.bf16.mxu0 0
    %1277 = vmatpush1.bf16.msra.mxu0 %v1228
    %1278 = vmatprep.subr.bf16.mxu0 0
    %1279 = vmatpush1.bf16.msra.mxu0 %v1229
    %1280 = vmatprep.subr.bf16.mxu0 0
    %1281 = vmatpush1.bf16.msra.mxu0 %v1230
    %1282 = vmatprep.subr.bf16.mxu0 0
    %1283 = vmatpush1.bf16.msra.mxu0 %v1231
    %1284 = vmatprep.subr.bf16.mxu0 0
    %1285 = vmatpush1.bf16.msra.mxu0 %v1232
    %1286 = vmatprep.subr.bf16.mxu0 0
    %1287 = vmatpush1.bf16.msra.mxu0 %v1233
    %1288 = vmatprep.subr.bf16.mxu0 0
    %1289 = vmatpush1.bf16.msra.mxu0 %v1234
    %1290 = vmatprep.subr.bf16.mxu0 0
    %1291 = vmatpush1.bf16.msra.mxu0 %v1235
    %1292 = vmatprep.subr.bf16.mxu0 0
    %1293 = vmatpush1.bf16.msra.mxu0 %v1236
    %1294 = vmatprep.subr.bf16.mxu0 0
    %1295 = vmatpush1.bf16.msra.mxu0 %v1237
    %1296 = vmatprep.subr.bf16.mxu0 0
    %1297 = vmatpush1.bf16.msra.mxu0 %v1238
    %1298 = vmatprep.subr.bf16.mxu0 0
    %1299 = vmatpush1.bf16.msra.mxu0 %v1239
    %1300 = vmatprep.subr.bf16.mxu0 0
    %1301 = vmatpush1.bf16.msra.mxu0 %v1240
    %1302 = vmatprep.subr.bf16.mxu0 0
    %1303 = vmatpush1.bf16.msra.mxu0 %v1241
    %1304 = vmatprep.subr.bf16.mxu0 0
    %1305 = vmatpush1.bf16.msra.mxu0 %v1242
    %1306 = vmatprep.subr.bf16.mxu0 0
    %1307 = vmatpush1.bf16.msra.mxu0 %v1243
    %1308 = vmatprep.mubr.bf16.mxu0 %v566
    %1309 = vmatmul.mubr.bf16.gmra.mrb[0].mxu0 %v565
    %v1310 = vpop.f32.mrb[0].mxu0
    %v1311 = vadd.f32 %v1084, %v1310
    %v1312 = vpop.f32.mrb[0].mxu0
    %v1313 = vpop.f32.mrb[0].mxu0
    %v1314 = vadd.f32 %v1085, %v1313
    %v1315 = vpop.f32.mrb[0].mxu0
    %1316 = vmatprep.mubr.bf16.mxu0 %v569
    %1317 = vmatmul.mubr.bf16.gmra.mrb[0].mxu0 %v568
    %v1318 = vpop.f32.mrb[0].mxu0
    %v1319 = vadd.f32 %v1086, %v1318
    %v1320 = vpop.f32.mrb[0].mxu0
    %v1321 = vpop.f32.mrb[0].mxu0
    %v1322 = vadd.f32 %v1087, %v1321
    %v1323 = vpop.f32.mrb[0].mxu0
    %1324 = vmatprep.mubr.bf16.mxu0 %v572
    %1325 = vmatmul.mubr.bf16.gmra.mrb[0].mxu0 %v571
    %v1326 = vpop.f32.mrb[0].mxu0
    %v1327 = vadd.f32 %v1088, %v1326
    %v1328 = vpop.f32.mrb[0].mxu0
    %v1329 = vpop.f32.mrb[0].mxu0
    %v1330 = vadd.f32 %v1089, %v1329
    %v1331 = vpop.f32.mrb[0].mxu0
    %1332 = vmatprep.mubr.bf16.mxu0 %v575
    %1333 = vmatmul.mubr.bf16.gmra.mrb[0].mxu0 %v574
    %v1334 = vpop.f32.mrb[0].mxu0
    %v1335 = vadd.f32 %v1090, %v1334
    %v1336 = vpop.f32.mrb[0].mxu0
    %v1337 = vpop.f32.mrb[0].mxu0
    %v1338 = vadd.f32 %v1091, %v1337
    %v1339 = vpop.f32.mrb[0].mxu0
    %1340 = vmatprep.mubr.bf16.mxu0 %v578
    %1341 = vmatmul.mubr.bf16.gmra.mrb[0].mxu0 %v577
    %v1342 = vpop.f32.mrb[0].mxu0
    %v1343 = vadd.f32 %v1092, %v1342
    %v1344 = vpop.f32.mrb[0].mxu0
    %v1345 = vpop.f32.mrb[0].mxu0
    %v1346 = vadd.f32 %v1093, %v1345
    %v1347 = vpop.f32.mrb[0].mxu0
    %1348 = vmatprep.mubr.bf16.mxu0 %v581
    %1349 = vmatmul.mubr.bf16.gmra.mrb[0].mxu0 %v580
    %v1350 = vpop.f32.mrb[0].mxu0
    %v1351 = vadd.f32 %v1094, %v1350
    %v1352 = vpop.f32.mrb[0].mxu0
    %v1353 = vpop.f32.mrb[0].mxu0
    %v1354 = vadd.f32 %v1095, %v1353
    %v1355 = vpop.f32.mrb[0].mxu0
    %1356 = vmatprep.mubr.bf16.mxu0 %v584
    %1357 = vmatmul.mubr.bf16.gmra.mrb[0].mxu0 %v583
    %v1358 = vpop.f32.mrb[0].mxu0
    %v1359 = vadd.f32 %v1096, %v1358
    %v1360 = vpop.f32.mrb[0].mxu0
    %v1361 = vpop.f32.mrb[0].mxu0
    %v1362 = vadd.f32 %v1097, %v1361
    %v1363 = vpop.f32.mrb[0].mxu0
    %1364 = vmatprep.mubr.bf16.mxu0 %v587
    %1365 = vmatmul.mubr.bf16.gmra.mrb[0].mxu0 %v586
    %v1366 = vpop.f32.mrb[0].mxu0
    %v1367 = vadd.f32 %v1098, %v1366
    %v1368 = vpop.f32.mrb[0].mxu0
    %v1369 = vpop.f32.mrb[0].mxu0
    %v1370 = vadd.f32 %v1099, %v1369
    %v1371 = vpop.f32.mrb[0].mxu0
    %1372 = vmatprep.mubr.bf16.mxu0 %v590
    %1373 = vmatmul.mubr.bf16.gmra.mrb[0].mxu0 %v589
    %v1374 = vpop.f32.mrb[0].mxu0
    %v1375 = vadd.f32 %v1100, %v1374
    %v1376 = vpop.f32.mrb[0].mxu0
    %v1377 = vpop.f32.mrb[0].mxu0
    %v1378 = vadd.f32 %v1101, %v1377
    %v1379 = vpop.f32.mrb[0].mxu0
    %1380 = vmatprep.mubr.bf16.mxu0 %v593
    %1381 = vmatmul.mubr.bf16.gmra.mrb[0].mxu0 %v592
    %v1382 = vpop.f32.mrb[0].mxu0
    %v1383 = vadd.f32 %v1102, %v1382
    %v1384 = vpop.f32.mrb[0].mxu0
    %v1385 = vpop.f32.mrb[0].mxu0
    %v1386 = vadd.f32 %v1103, %v1385
    %v1387 = vpop.f32.mrb[0].mxu0
    %1388 = vmatprep.mubr.bf16.mxu0 %v596
    %1389 = vmatmul.mubr.bf16.gmra.mrb[0].mxu0 %v595
    %v1390 = vpop.f32.mrb[0].mxu0
    %v1391 = vadd.f32 %v1104, %v1390
    %v1392 = vpop.f32.mrb[0].mxu0
    %v1393 = vpop.f32.mrb[0].mxu0
    %v1394 = vadd.f32 %v1105, %v1393
    %v1395 = vpop.f32.mrb[0].mxu0
    %1396 = vmatprep.mubr.bf16.mxu0 %v599
    %1397 = vmatmul.mubr.bf16.gmra.mrb[0].mxu0 %v598
    %v1398 = vpop.f32.mrb[0].mxu0
    %v1399 = vadd.f32 %v1106, %v1398
    %v1400 = vpop.f32.mrb[0].mxu0
    %v1401 = vpop.f32.mrb[0].mxu0
    %v1402 = vadd.f32 %v1107, %v1401
    %v1403 = vpop.f32.mrb[0].mxu0
    %1404 = vmatprep.mubr.bf16.mxu0 %v602
    %1405 = vmatmul.mubr.bf16.gmra.mrb[0].mxu0 %v601
    %v1406 = vpop.f32.mrb[0].mxu0
    %v1407 = vadd.f32 %v1108, %v1406
    %v1408 = vpop.f32.mrb[0].mxu0
    %v1409 = vpop.f32.mrb[0].mxu0
    %v1410 = vadd.f32 %v1109, %v1409
    %v1411 = vpop.f32.mrb[0].mxu0
    %1412 = vmatprep.mubr.bf16.mxu0 %v605
    %1413 = vmatmul.mubr.bf16.gmra.mrb[0].mxu0 %v604
    %v1414 = vpop.f32.mrb[0].mxu0
    %v1415 = vadd.f32 %v1110, %v1414
    %v1416 = vpop.f32.mrb[0].mxu0
    %v1417 = vpop.f32.mrb[0].mxu0
    %v1418 = vadd.f32 %v1111, %v1417
    %v1419 = vpop.f32.mrb[0].mxu0
    %1420 = vmatprep.mubr.bf16.mxu0 %v608
    %1421 = vmatmul.mubr.bf16.gmra.mrb[0].mxu0 %v607
    %v1422 = vpop.f32.mrb[0].mxu0
    %v1423 = vadd.f32 %v1112, %v1422
    %v1424 = vpop.f32.mrb[0].mxu0
    %v1425 = vpop.f32.mrb[0].mxu0
    %v1426 = vadd.f32 %v1113, %v1425
    %v1427 = vpop.f32.mrb[0].mxu0
    %1428 = vmatprep.mubr.bf16.mxu0 %v611
    %1429 = vmatmul.mubr.bf16.gmra.mrb[0].mxu0 %v610
    %v1430 = vpop.f32.mrb[0].mxu0
    %v1431 = vadd.f32 %v1114, %v1430
    %v1432 = vpop.f32.mrb[0].mxu0
    %v1433 = vpop.f32.mrb[0].mxu0
    %v1434 = vadd.f32 %v1115, %v1433
    %v1435 = vpop.f32.mrb[0].mxu0
    %1436 = vmatprep.mubr.bf16.mxu0 %v614
    %1437 = vmatmul.mubr.bf16.gmra.mrb[0].mxu0 %v613
    %v1438 = vpop.f32.mrb[0].mxu0
    %v1439 = vadd.f32 %v1116, %v1438
    %v1440 = vpop.f32.mrb[0].mxu0
    %v1441 = vpop.f32.mrb[0].mxu0
    %v1442 = vadd.f32 %v1117, %v1441
    %v1443 = vpop.f32.mrb[0].mxu0
    %1444 = vmatprep.mubr.bf16.mxu0 %v617
    %1445 = vmatmul.mubr.bf16.gmra.mrb[0].mxu0 %v616
    %v1446 = vpop.f32.mrb[0].mxu0
    %v1447 = vadd.f32 %v1118, %v1446
    %v1448 = vpop.f32.mrb[0].mxu0
    %v1449 = vpop.f32.mrb[0].mxu0
    %v1450 = vadd.f32 %v1119, %v1449
    %v1451 = vpop.f32.mrb[0].mxu0
    %1452 = vmatprep.mubr.bf16.mxu0 %v620
    %1453 = vmatmul.mubr.bf16.gmra.mrb[0].mxu0 %v619
    %v1454 = vpop.f32.mrb[0].mxu0
    %v1455 = vadd.f32 %v1120, %v1454
    %v1456 = vpop.f32.mrb[0].mxu0
    %v1457 = vpop.f32.mrb[0].mxu0
    %v1458 = vadd.f32 %v1121, %v1457
    %v1459 = vpop.f32.mrb[0].mxu0
    %1460 = vmatprep.mubr.bf16.mxu0 %v623
    %1461 = vmatmul.mubr.bf16.gmra.mrb[0].mxu0 %v622
    %v1462 = vpop.f32.mrb[0].mxu0
    %v1463 = vadd.f32 %v1122, %v1462
    %v1464 = vpop.f32.mrb[0].mxu0
    %v1465 = vpop.f32.mrb[0].mxu0
    %v1466 = vadd.f32 %v1123, %v1465
    %v1467 = vpop.f32.mrb[0].mxu0
    %1468 = vmatprep.mubr.bf16.mxu0 %v626
    %1469 = vmatmul.mubr.bf16.gmra.mrb[0].mxu0 %v625
    %v1470 = vpop.f32.mrb[0].mxu0
    %v1471 = vadd.f32 %v1124, %v1470
    %v1472 = vpop.f32.mrb[0].mxu0
    %v1473 = vpop.f32.mrb[0].mxu0
    %v1474 = vadd.f32 %v1125, %v1473
    %v1475 = vpop.f32.mrb[0].mxu0
    %1476 = vmatprep.mubr.bf16.mxu0 %v629
    %1477 = vmatmul.mubr.bf16.gmra.mrb[0].mxu0 %v628
    %v1478 = vpop.f32.mrb[0].mxu0
    %v1479 = vadd.f32 %v1126, %v1478
    %v1480 = vpop.f32.mrb[0].mxu0
    %v1481 = vpop.f32.mrb[0].mxu0
    %v1482 = vadd.f32 %v1127, %v1481
    %v1483 = vpop.f32.mrb[0].mxu0
    %1484 = vmatprep.mubr.bf16.mxu0 %v632
    %1485 = vmatmul.mubr.bf16.gmra.mrb[0].mxu0 %v631
    %v1486 = vpop.f32.mrb[0].mxu0
    %v1487 = vadd.f32 %v1128, %v1486
    %v1488 = vpop.f32.mrb[0].mxu0
    %v1489 = vpop.f32.mrb[0].mxu0
    %v1490 = vadd.f32 %v1129, %v1489
    %v1491 = vpop.f32.mrb[0].mxu0
    %1492 = vmatprep.mubr.bf16.mxu0 %v635
    %1493 = vmatmul.mubr.bf16.gmra.mrb[0].mxu0 %v634
    %v1494 = vpop.f32.mrb[0].mxu0
    %v1495 = vadd.f32 %v1130, %v1494
    %v1496 = vpop.f32.mrb[0].mxu0
    %v1497 = vpop.f32.mrb[0].mxu0
    %v1498 = vadd.f32 %v1131, %v1497
    %v1499 = vpop.f32.mrb[0].mxu0
    %1500 = vdwg.mxu0
    %1501 = vmatprep.subr.bf16.mxu0 0
    %1502 = vmatpush1.bf16.msra.mxu0 %v1244
    %1503 = vmatprep.subr.bf16.mxu0 0
    %1504 = vmatpush1.bf16.msra.mxu0 %v1245
    %1505 = vmatprep.subr.bf16.mxu0 0
    %1506 = vmatpush1.bf16.msra.mxu0 %v1246
    %1507 = vmatprep.subr.bf16.mxu0 0
    %1508 = vmatpush1.bf16.msra.mxu0 %v1247
    %1509 = vmatprep.subr.bf16.mxu0 0
    %1510 = vmatpush1.bf16.msra.mxu0 %v1248
    %1511 = vmatprep.subr.bf16.mxu0 0
    %1512 = vmatpush1.bf16.msra.mxu0 %v1249
    %1513 = vmatprep.subr.bf16.mxu0 0
    %1514 = vmatpush1.bf16.msra.mxu0 %v1250
    %1515 = vmatprep.subr.bf16.mxu0 0
    %1516 = vmatpush1.bf16.msra.mxu0 %v1251
    %1517 = vmatprep.subr.bf16.mxu0 0
    %1518 = vmatpush1.bf16.msra.mxu0 0
    %1519 = vmatprep.subr.bf16.mxu0 0
    %1520 = vmatpush1.bf16.msra.mxu0 0
    %1521 = vmatprep.subr.bf16.mxu0 0
    %1522 = vmatpush1.bf16.msra.mxu0 0
    %1523 = vmatprep.subr.bf16.mxu0 0
    %1524 = vmatpush1.bf16.msra.mxu0 0
    %1525 = vmatprep.subr.bf16.mxu0 0
    %1526 = vmatpush1.bf16.msra.mxu0 0
    %1527 = vmatprep.subr.bf16.mxu0 0
    %1528 = vmatpush1.bf16.msra.mxu0 0
    %1529 = vmatprep.subr.bf16.mxu0 0
    %1530 = vmatpush1.bf16.msra.mxu0 0
    %1531 = vmatprep.subr.bf16.mxu0 0
    %1532 = vmatpush1.bf16.msra.mxu0 0
    %1533 = vmatprep.mubr.bf16.mxu0 0
    %1534 = vmatmul.mubr.bf16.gmra.mrb[0].mxu0 %v567
    %v1535 = vpop.f32.mrb[0].mxu0
    %v1536 = vadd.f32 %v1311, %v1535
    %v1537 = vpop.f32.mrb[0].mxu0
    %v1538 = vpop.f32.mrb[0].mxu0
    %v1539 = vadd.f32 %v1314, %v1538
    %v1540 = vpop.f32.mrb[0].mxu0
    %1541 = vmatprep.mubr.bf16.mxu0 0
    %1542 = vmatmul.mubr.bf16.gmra.mrb[0].mxu0 %v570
    %v1543 = vpop.f32.mrb[0].mxu0
    %v1544 = vadd.f32 %v1319, %v1543
    %v1545 = vpop.f32.mrb[0].mxu0
    %v1546 = vpop.f32.mrb[0].mxu0
    %v1547 = vadd.f32 %v1322, %v1546
    %v1548 = vpop.f32.mrb[0].mxu0
    %1549 = vmatprep.mubr.bf16.mxu0 0
    %1550 = vmatmul.mubr.bf16.gmra.mrb[0].mxu0 %v573
    %v1551 = vpop.f32.mrb[0].mxu0
    %v1552 = vadd.f32 %v1327, %v1551
    %v1553 = vpop.f32.mrb[0].mxu0
    %v1554 = vpop.f32.mrb[0].mxu0
    %v1555 = vadd.f32 %v1330, %v1554
    %v1556 = vpop.f32.mrb[0].mxu0
    %1557 = vmatprep.mubr.bf16.mxu0 0
    %1558 = vmatmul.mubr.bf16.gmra.mrb[0].mxu0 %v576
    %v1559 = vpop.f32.mrb[0].mxu0
    %v1560 = vadd.f32 %v1335, %v1559
    %v1561 = vpop.f32.mrb[0].mxu0
    %v1562 = vpop.f32.mrb[0].mxu0
    %v1563 = vadd.f32 %v1338, %v1562
    %v1564 = vpop.f32.mrb[0].mxu0
    %1565 = vmatprep.mubr.bf16.mxu0 0
    %1566 = vmatmul.mubr.bf16.gmra.mrb[0].mxu0 %v579
    %v1567 = vpop.f32.mrb[0].mxu0
    %v1568 = vadd.f32 %v1343, %v1567
    %v1569 = vpop.f32.mrb[0].mxu0
    %v1570 = vpop.f32.mrb[0].mxu0
    %v1571 = vadd.f32 %v1346, %v1570
    %v1572 = vpop.f32.mrb[0].mxu0
    %1573 = vmatprep.mubr.bf16.mxu0 0
    %1574 = vmatmul.mubr.bf16.gmra.mrb[0].mxu0 %v582
    %v1575 = vpop.f32.mrb[0].mxu0
    %v1576 = vadd.f32 %v1351, %v1575
    %v1577 = vpop.f32.mrb[0].mxu0
    %v1578 = vpop.f32.mrb[0].mxu0
    %v1579 = vadd.f32 %v1354, %v1578
    %v1580 = vpop.f32.mrb[0].mxu0
    %1581 = vmatprep.mubr.bf16.mxu0 0
    %1582 = vmatmul.mubr.bf16.gmra.mrb[0].mxu0 %v585
    %v1583 = vpop.f32.mrb[0].mxu0
    %v1584 = vadd.f32 %v1359, %v1583
    %v1585 = vpop.f32.mrb[0].mxu0
    %v1586 = vpop.f32.mrb[0].mxu0
    %v1587 = vadd.f32 %v1362, %v1586
    %v1588 = vpop.f32.mrb[0].mxu0
    %1589 = vmatprep.mubr.bf16.mxu0 0
    %1590 = vmatmul.mubr.bf16.gmra.mrb[0].mxu0 %v588
    %v1591 = vpop.f32.mrb[0].mxu0
    %v1592 = vadd.f32 %v1367, %v1591
    %v1593 = vpop.f32.mrb[0].mxu0
    %v1594 = vpop.f32.mrb[0].mxu0
    %v1595 = vadd.f32 %v1370, %v1594
    %v1596 = vpop.f32.mrb[0].mxu0
    %1597 = vmatprep.mubr.bf16.mxu0 0
    %1598 = vmatmul.mubr.bf16.gmra.mrb[0].mxu0 %v591
    %v1599 = vpop.f32.mrb[0].mxu0
    %v1600 = vadd.f32 %v1375, %v1599
    %v1601 = vpop.f32.mrb[0].mxu0
    %v1602 = vpop.f32.mrb[0].mxu0
    %v1603 = vadd.f32 %v1378, %v1602
    %v1604 = vpop.f32.mrb[0].mxu0
    %1605 = vmatprep.mubr.bf16.mxu0 0
    %1606 = vmatmul.mubr.bf16.gmra.mrb[0].mxu0 %v594
    %v1607 = vpop.f32.mrb[0].mxu0
    %v1608 = vadd.f32 %v1383, %v1607
    %v1609 = vpop.f32.mrb[0].mxu0
    %v1610 = vpop.f32.mrb[0].mxu0
    %v1611 = vadd.f32 %v1386, %v1610
    %v1612 = vpop.f32.mrb[0].mxu0
    %1613 = vmatprep.mubr.bf16.mxu0 0
    %1614 = vmatmul.mubr.bf16.gmra.mrb[0].mxu0 %v597
    %v1615 = vpop.f32.mrb[0].mxu0
    %v1616 = vadd.f32 %v1391, %v1615
    %v1617 = vpop.f32.mrb[0].mxu0
    %v1618 = vpop.f32.mrb[0].mxu0
    %v1619 = vadd.f32 %v1394, %v1618
    %v1620 = vpop.f32.mrb[0].mxu0
    %1621 = vmatprep.mubr.bf16.mxu0 0
    %1622 = vmatmul.mubr.bf16.gmra.mrb[0].mxu0 %v600
    %v1623 = vpop.f32.mrb[0].mxu0
    %v1624 = vadd.f32 %v1399, %v1623
    %v1625 = vpop.f32.mrb[0].mxu0
    %v1626 = vpop.f32.mrb[0].mxu0
    %v1627 = vadd.f32 %v1402, %v1626
    %v1628 = vpop.f32.mrb[0].mxu0
    %1629 = vmatprep.mubr.bf16.mxu0 0
    %1630 = vmatmul.mubr.bf16.gmra.mrb[0].mxu0 %v603
    %v1631 = vpop.f32.mrb[0].mxu0
    %v1632 = vadd.f32 %v1407, %v1631
    %v1633 = vpop.f32.mrb[0].mxu0
    %v1634 = vpop.f32.mrb[0].mxu0
    %v1635 = vadd.f32 %v1410, %v1634
    %v1636 = vpop.f32.mrb[0].mxu0
    %1637 = vmatprep.mubr.bf16.mxu0 0
    %1638 = vmatmul.mubr.bf16.gmra.mrb[0].mxu0 %v606
    %v1639 = vpop.f32.mrb[0].mxu0
    %v1640 = vadd.f32 %v1415, %v1639
    %v1641 = vpop.f32.mrb[0].mxu0
    %v1642 = vpop.f32.mrb[0].mxu0
    %v1643 = vadd.f32 %v1418, %v1642
    %v1644 = vpop.f32.mrb[0].mxu0
    %1645 = vmatprep.mubr.bf16.mxu0 0
    %1646 = vmatmul.mubr.bf16.gmra.mrb[0].mxu0 %v609
    %v1647 = vpop.f32.mrb[0].mxu0
    %v1648 = vadd.f32 %v1423, %v1647
    %v1649 = vpop.f32.mrb[0].mxu0
    %v1650 = vpop.f32.mrb[0].mxu0
    %v1651 = vadd.f32 %v1426, %v1650
    %v1652 = vpop.f32.mrb[0].mxu0
    %1653 = vmatprep.mubr.bf16.mxu0 0
    %1654 = vmatmul.mubr.bf16.gmra.mrb[0].mxu0 %v612
    %v1655 = vpop.f32.mrb[0].mxu0
    %v1656 = vadd.f32 %v1431, %v1655
    %v1657 = vpop.f32.mrb[0].mxu0
    %v1658 = vpop.f32.mrb[0].mxu0
    %v1659 = vadd.f32 %v1434, %v1658
    %v1660 = vpop.f32.mrb[0].mxu0
    %1661 = vmatprep.mubr.bf16.mxu0 0
    %1662 = vmatmul.mubr.bf16.gmra.mrb[0].mxu0 %v615
    %v1663 = vpop.f32.mrb[0].mxu0
    %v1664 = vadd.f32 %v1439, %v1663
    %v1665 = vpop.f32.mrb[0].mxu0
    %v1666 = vpop.f32.mrb[0].mxu0
    %v1667 = vadd.f32 %v1442, %v1666
    %v1668 = vpop.f32.mrb[0].mxu0
    %1669 = vmatprep.mubr.bf16.mxu0 0
    %1670 = vmatmul.mubr.bf16.gmra.mrb[0].mxu0 %v618
    %v1671 = vpop.f32.mrb[0].mxu0
    %v1672 = vadd.f32 %v1447, %v1671
    %v1673 = vpop.f32.mrb[0].mxu0
    %v1674 = vpop.f32.mrb[0].mxu0
    %v1675 = vadd.f32 %v1450, %v1674
    %v1676 = vpop.f32.mrb[0].mxu0
    %1677 = vmatprep.mubr.bf16.mxu0 0
    %1678 = vmatmul.mubr.bf16.gmra.mrb[0].mxu0 %v621
    %v1679 = vpop.f32.mrb[0].mxu0
    %v1680 = vadd.f32 %v1455, %v1679
    %v1681 = vpop.f32.mrb[0].mxu0
    %v1682 = vpop.f32.mrb[0].mxu0
    %v1683 = vadd.f32 %v1458, %v1682
    %v1684 = vpop.f32.mrb[0].mxu0
    %1685 = vmatprep.mubr.bf16.mxu0 0
    %1686 = vmatmul.mubr.bf16.gmra.mrb[0].mxu0 %v624
    %v1687 = vpop.f32.mrb[0].mxu0
    %v1688 = vadd.f32 %v1463, %v1687
    %v1689 = vpop.f32.mrb[0].mxu0
    %v1690 = vpop.f32.mrb[0].mxu0
    %v1691 = vadd.f32 %v1466, %v1690
    %v1692 = vpop.f32.mrb[0].mxu0
    %1693 = vmatprep.mubr.bf16.mxu0 0
    %1694 = vmatmul.mubr.bf16.gmra.mrb[0].mxu0 %v627
    %v1695 = vpop.f32.mrb[0].mxu0
    %v1696 = vadd.f32 %v1471, %v1695
    %v1697 = vpop.f32.mrb[0].mxu0
    %v1698 = vpop.f32.mrb[0].mxu0
    %v1699 = vadd.f32 %v1474, %v1698
    %v1700 = vpop.f32.mrb[0].mxu0
    %1701 = vmatprep.mubr.bf16.mxu0 0
    %1702 = vmatmul.mubr.bf16.gmra.mrb[0].mxu0 %v630
    %v1703 = vpop.f32.mrb[0].mxu0
    %v1704 = vadd.f32 %v1479, %v1703
    %v1705 = vpop.f32.mrb[0].mxu0
    %v1706 = vpop.f32.mrb[0].mxu0
    %v1707 = vadd.f32 %v1482, %v1706
    %v1708 = vpop.f32.mrb[0].mxu0
    %1709 = vmatprep.mubr.bf16.mxu0 0
    %1710 = vmatmul.mubr.bf16.gmra.mrb[0].mxu0 %v633
    %v1711 = vpop.f32.mrb[0].mxu0
    %v1712 = vadd.f32 %v1487, %v1711
    %v1713 = vpop.f32.mrb[0].mxu0
    %v1714 = vpop.f32.mrb[0].mxu0
    %v1715 = vadd.f32 %v1490, %v1714
    %v1716 = vpop.f32.mrb[0].mxu0
    %1717 = vmatprep.mubr.bf16.mxu0 0
    %1718 = vmatmul.mubr.bf16.gmra.mrb[0].mxu0 %v636
    %v1719 = vpop.f32.mrb[0].mxu0
    %v1720 = vadd.f32 %v1495, %v1719
    %v1721 = vpop.f32.mrb[0].mxu0
    %v1722 = vpop.f32.mrb[0].mxu0
    %v1723 = vadd.f32 %v1498, %v1722
    %v1724 = vpop.f32.mrb[0].mxu0
    %1725 = vdwg.mxu0
    %v1726 = vlaneseq
    %v1727 = vshrl.u32 %v1726, 7
    %v1728 = vsub.s32 0, %v1727
    %v1729 = vrot.slane %v1082, %v1728
    %vm1730 = vcmask 64512
    %v1732 = vsel %vm1730, %v1536, 0
    %v1735 = vsel %vm1730, %v1539, 0
    %v1738 = vsel %vm1730, %v1544, 0
    %v1741 = vsel %vm1730, %v1547, 0
    %v1744 = vsel %vm1730, %v1552, 0
    %v1747 = vsel %vm1730, %v1555, 0
    %v1750 = vsel %vm1730, %v1560, 0
    %v1753 = vsel %vm1730, %v1563, 0
    %v1756 = vsel %vm1730, %v1568, 0
    %v1759 = vsel %vm1730, %v1571, 0
    %v1762 = vsel %vm1730, %v1576, 0
    %v1765 = vsel %vm1730, %v1579, 0
    %v1768 = vsel %vm1730, %v1584, 0
    %v1771 = vsel %vm1730, %v1587, 0
    %v1774 = vsel %vm1730, %v1592, 0
    %v1777 = vsel %vm1730, %v1595, 0
    %v1780 = vsel %vm1730, %v1600, 0
    %v1783 = vsel %vm1730, %v1603, 0
    %v1786 = vsel %vm1730, %v1608, 0
    %v1789 = vsel %vm1730, %v1611, 0
    %v1792 = vsel %vm1730, %v1616, 0
    %v1795 = vsel %vm1730, %v1619, 0
    %v1798 = vsel %vm1730, %v1624, 0
    %v1801 = vsel %vm1730, %v1627, 0
    %v1804 = vsel %vm1730, %v1632, 0
    %v1807 = vsel %vm1730, %v1635, 0
    %v1810 = vsel %vm1730, %v1640, 0
    %v1813 = vsel %vm1730, %v1643, 0
    %v1816 = vsel %vm1730, %v1648, 0
    %v1819 = vsel %vm1730, %v1651, 0
    %v1822 = vsel %vm1730, %v1656, 0
    %v1825 = vsel %vm1730, %v1659, 0
    %v1828 = vsel %vm1730, %v1664, 0
    %v1831 = vsel %vm1730, %v1667, 0
    %v1834 = vsel %vm1730, %v1672, 0
    %v1837 = vsel %vm1730, %v1675, 0
    %v1840 = vsel %vm1730, %v1680, 0
    %v1843 = vsel %vm1730, %v1683, 0
    %v1846 = vsel %vm1730, %v1688, 0
    %v1849 = vsel %vm1730, %v1691, 0
    %v1852 = vsel %vm1730, %v1696, 0
    %v1855 = vsel %vm1730, %v1699, 0
    %v1858 = vsel %vm1730, %v1704, 0
    %v1861 = vsel %vm1730, %v1707, 0
    %v1864 = vsel %vm1730, %v1712, 0
    %v1867 = vsel %vm1730, %v1715, 0
    %v1870 = vsel %vm1730, %v1720, 0
    %v1873 = vsel %vm1730, %v1723, 0
    %1875 = vmatprep.subr.mxu0 0.0
    %1876 = vmatpush1.msra.mxu0 %v1077
    %1877 = vmatprep.subr.mxu0 0.0
    %1878 = vmatpush1.msra.mxu0 0.0
    %1879 = vmatprep.subr.mxu0 0.0
    %1880 = vmatpush1.msra.mxu0 0.0
    %1881 = vmatprep.subr.mxu0 0.0
    %1882 = vmatpush1.msra.mxu0 0.0
    %1883 = vmatprep.subr.mxu0 0.0
    %1884 = vmatpush1.msra.mxu0 0.0
    %1885 = vmatprep.subr.mxu0 0.0
    %1886 = vmatpush1.msra.mxu0 0.0
    %1887 = vmatprep.subr.mxu0 0.0
    %1888 = vmatpush1.msra.mxu0 0.0
    %1889 = vmatprep.subr.mxu0 0.0
    %1890 = vmatpush1.msra.mxu0 0.0
    %1891 = vmatprep.subr.mxu0 0.0
    %1892 = vmatpush1.msra.mxu0 0.0
    %1893 = vmatprep.subr.mxu0 0.0
    %1894 = vmatpush1.msra.mxu0 0.0
    %1895 = vmatprep.subr.mxu0 0.0
    %1896 = vmatpush1.msra.mxu0 0.0
    %1897 = vmatprep.subr.mxu0 0.0
    %1898 = vmatpush1.msra.mxu0 0.0
    %1899 = vmatprep.subr.mxu0 0.0
    %1900 = vmatpush1.msra.mxu0 0.0
    %1901 = vmatprep.subr.mxu0 0.0
    %1902 = vmatpush1.msra.mxu0 0.0
    %1903 = vmatprep.subr.mxu0 0.0
    %1904 = vmatpush1.msra.mxu0 0.0
    %1905 = vmatprep.subr.mxu0 0.0
    %1906 = vmatpush1.msra.mxu0 0.0
    %1907 = vmatprep.subr.mxu0 0.0
    %1908 = vmatpush1.msra.mxu0 0.0
    %1909 = vmatprep.subr.mxu0 0.0
    %1910 = vmatpush1.msra.mxu0 0.0
    %1911 = vmatprep.subr.mxu0 0.0
    %1912 = vmatpush1.msra.mxu0 0.0
    %1913 = vmatprep.subr.mxu0 0.0
    %1914 = vmatpush1.msra.mxu0 0.0
    %1915 = vmatprep.subr.mxu0 0.0
    %1916 = vmatpush1.msra.mxu0 0.0
    %1917 = vmatprep.subr.mxu0 0.0
    %1918 = vmatpush1.msra.mxu0 0.0
    %1919 = vmatprep.subr.mxu0 0.0
    %1920 = vmatpush1.msra.mxu0 0.0
    %1921 = vmatprep.subr.mxu0 0.0
    %1922 = vmatpush1.msra.mxu0 0.0
    %1923 = vmatprep.subr.mxu0 0.0
    %1924 = vmatpush1.msra.mxu0 0.0
    %1925 = vmatprep.subr.mxu0 0.0
    %1926 = vmatpush1.msra.mxu0 0.0
    %1927 = vmatprep.subr.mxu0 0.0
    %1928 = vmatpush1.msra.mxu0 0.0
    %1929 = vmatprep.subr.mxu0 0.0
    %1930 = vmatpush1.msra.mxu0 0.0
    %1931 = vmatprep.subr.mxu0 0.0
    %1932 = vmatpush1.msra.mxu0 0.0
    %1933 = vmatprep.subr.mxu0 0.0
    %1934 = vmatpush1.msra.mxu0 0.0
    %1935 = vmatprep.subr.mxu0 0.0
    %1936 = vmatpush1.msra.mxu0 0.0
    %1937 = vmatprep.subr.mxu0 0.0
    %1938 = vmatpush1.msra.mxu0 0.0
    %1939 = vmatprep.mubr.f32.mxu0 0.0
    %1940 = vmatmul.mubr.f32.gmra.mrb[0].mxu0 %v1732
    %v1941 = vpop.f32.mrb[0].mxu0
    %v1942 = vadd.f32 %v1729, %v1941
    %v1943 = vpop.f32.mrb[0].mxu0
    %1944 = vmatprep.mubr.f32.mxu0 0.0
    %1945 = vmatmul.mubr.f32.gmra.mrb[0].mxu0 %v1735
    %v1946 = vpop.f32.mrb[0].mxu0
    %v1947 = vadd.f32 %v1729, %v1946
    %v1948 = vpop.f32.mrb[0].mxu0
    %1949 = vmatprep.mubr.f32.mxu0 0.0
    %1950 = vmatmul.mubr.f32.gmra.mrb[0].mxu0 %v1738
    %v1951 = vpop.f32.mrb[0].mxu0
    %v1952 = vadd.f32 %v1729, %v1951
    %v1953 = vpop.f32.mrb[0].mxu0
    %1954 = vmatprep.mubr.f32.mxu0 0.0
    %1955 = vmatmul.mubr.f32.gmra.mrb[0].mxu0 %v1741
    %v1956 = vpop.f32.mrb[0].mxu0
    %v1957 = vadd.f32 %v1729, %v1956
    %v1958 = vpop.f32.mrb[0].mxu0
    %1959 = vmatprep.mubr.f32.mxu0 0.0
    %1960 = vmatmul.mubr.f32.gmra.mrb[0].mxu0 %v1744
    %v1961 = vpop.f32.mrb[0].mxu0
    %v1962 = vadd.f32 %v1729, %v1961
    %v1963 = vpop.f32.mrb[0].mxu0
    %1964 = vmatprep.mubr.f32.mxu0 0.0
    %1965 = vmatmul.mubr.f32.gmra.mrb[0].mxu0 %v1747
    %v1966 = vpop.f32.mrb[0].mxu0
    %v1967 = vadd.f32 %v1729, %v1966
    %v1968 = vpop.f32.mrb[0].mxu0
    %1969 = vmatprep.mubr.f32.mxu0 0.0
    %1970 = vmatmul.mubr.f32.gmra.mrb[0].mxu0 %v1750
    %v1971 = vpop.f32.mrb[0].mxu0
    %v1972 = vadd.f32 %v1729, %v1971
    %v1973 = vpop.f32.mrb[0].mxu0
    %1974 = vmatprep.mubr.f32.mxu0 0.0
    %1975 = vmatmul.mubr.f32.gmra.mrb[0].mxu0 %v1753
    %v1976 = vpop.f32.mrb[0].mxu0
    %v1977 = vadd.f32 %v1729, %v1976
    %v1978 = vpop.f32.mrb[0].mxu0
    %1979 = vmatprep.mubr.f32.mxu0 0.0
    %1980 = vmatmul.mubr.f32.gmra.mrb[0].mxu0 %v1756
    %v1981 = vpop.f32.mrb[0].mxu0
    %v1982 = vadd.f32 %v1729, %v1981
    %v1983 = vpop.f32.mrb[0].mxu0
    %1984 = vmatprep.mubr.f32.mxu0 0.0
    %1985 = vmatmul.mubr.f32.gmra.mrb[0].mxu0 %v1759
    %v1986 = vpop.f32.mrb[0].mxu0
    %v1987 = vadd.f32 %v1729, %v1986
    %v1988 = vpop.f32.mrb[0].mxu0
    %1989 = vmatprep.mubr.f32.mxu0 0.0
    %1990 = vmatmul.mubr.f32.gmra.mrb[0].mxu0 %v1762
    %v1991 = vpop.f32.mrb[0].mxu0
    %v1992 = vadd.f32 %v1729, %v1991
    %v1993 = vpop.f32.mrb[0].mxu0
    %1994 = vmatprep.mubr.f32.mxu0 0.0
    %1995 = vmatmul.mubr.f32.gmra.mrb[0].mxu0 %v1765
    %v1996 = vpop.f32.mrb[0].mxu0
    %v1997 = vadd.f32 %v1729, %v1996
    %v1998 = vpop.f32.mrb[0].mxu0
    %1999 = vmatprep.mubr.f32.mxu0 0.0
    %2000 = vmatmul.mubr.f32.gmra.mrb[0].mxu0 %v1768
    %v2001 = vpop.f32.mrb[0].mxu0
    %v2002 = vadd.f32 %v1729, %v2001
    %v2003 = vpop.f32.mrb[0].mxu0
    %2004 = vmatprep.mubr.f32.mxu0 0.0
    %2005 = vmatmul.mubr.f32.gmra.mrb[0].mxu0 %v1771
    %v2006 = vpop.f32.mrb[0].mxu0
    %v2007 = vadd.f32 %v1729, %v2006
    %v2008 = vpop.f32.mrb[0].mxu0
    %2009 = vmatprep.mubr.f32.mxu0 0.0
    %2010 = vmatmul.mubr.f32.gmra.mrb[0].mxu0 %v1774
    %v2011 = vpop.f32.mrb[0].mxu0
    %v2012 = vadd.f32 %v1729, %v2011
    %v2013 = vpop.f32.mrb[0].mxu0
    %2014 = vmatprep.mubr.f32.mxu0 0.0
    %2015 = vmatmul.mubr.f32.gmra.mrb[0].mxu0 %v1777
    %v2016 = vpop.f32.mrb[0].mxu0
    %v2017 = vadd.f32 %v1729, %v2016
    %v2018 = vpop.f32.mrb[0].mxu0
    %2019 = vmatprep.mubr.f32.mxu0 0.0
    %2020 = vmatmul.mubr.f32.gmra.mrb[0].mxu0 %v1780
    %v2021 = vpop.f32.mrb[0].mxu0
    %v2022 = vadd.f32 %v1729, %v2021
    %v2023 = vpop.f32.mrb[0].mxu0
    %2024 = vmatprep.mubr.f32.mxu0 0.0
    %2025 = vmatmul.mubr.f32.gmra.mrb[0].mxu0 %v1783
    %v2026 = vpop.f32.mrb[0].mxu0
    %v2027 = vadd.f32 %v1729, %v2026
    %v2028 = vpop.f32.mrb[0].mxu0
    %2029 = vmatprep.mubr.f32.mxu0 0.0
    %2030 = vmatmul.mubr.f32.gmra.mrb[0].mxu0 %v1786
    %v2031 = vpop.f32.mrb[0].mxu0
    %v2032 = vadd.f32 %v1729, %v2031
    %v2033 = vpop.f32.mrb[0].mxu0
    %2034 = vmatprep.mubr.f32.mxu0 0.0
    %2035 = vmatmul.mubr.f32.gmra.mrb[0].mxu0 %v1789
    %v2036 = vpop.f32.mrb[0].mxu0
    %v2037 = vadd.f32 %v1729, %v2036
    %v2038 = vpop.f32.mrb[0].mxu0
    %2039 = vmatprep.mubr.f32.mxu0 0.0
    %2040 = vmatmul.mubr.f32.gmra.mrb[0].mxu0 %v1792
    %v2041 = vpop.f32.mrb[0].mxu0
    %v2042 = vadd.f32 %v1729, %v2041
    %v2043 = vpop.f32.mrb[0].mxu0
    %2044 = vmatprep.mubr.f32.mxu0 0.0
    %2045 = vmatmul.mubr.f32.gmra.mrb[0].mxu0 %v1795
    %v2046 = vpop.f32.mrb[0].mxu0
    %v2047 = vadd.f32 %v1729, %v2046
    %v2048 = vpop.f32.mrb[0].mxu0
    %2049 = vmatprep.mubr.f32.mxu0 0.0
    %2050 = vmatmul.mubr.f32.gmra.mrb[0].mxu0 %v1798
    %v2051 = vpop.f32.mrb[0].mxu0
    %v2052 = vadd.f32 %v1729, %v2051
    %v2053 = vpop.f32.mrb[0].mxu0
    %2054 = vmatprep.mubr.f32.mxu0 0.0
    %2055 = vmatmul.mubr.f32.gmra.mrb[0].mxu0 %v1801
    %v2056 = vpop.f32.mrb[0].mxu0
    %v2057 = vadd.f32 %v1729, %v2056
    %v2058 = vpop.f32.mrb[0].mxu0
    %2059 = vmatprep.mubr.f32.mxu0 0.0
    %2060 = vmatmul.mubr.f32.gmra.mrb[0].mxu0 %v1804
    %v2061 = vpop.f32.mrb[0].mxu0
    %v2062 = vadd.f32 %v1729, %v2061
    %v2063 = vpop.f32.mrb[0].mxu0
    %2064 = vmatprep.mubr.f32.mxu0 0.0
    %2065 = vmatmul.mubr.f32.gmra.mrb[0].mxu0 %v1807
    %v2066 = vpop.f32.mrb[0].mxu0
    %v2067 = vadd.f32 %v1729, %v2066
    %v2068 = vpop.f32.mrb[0].mxu0
    %2069 = vmatprep.mubr.f32.mxu0 0.0
    %2070 = vmatmul.mubr.f32.gmra.mrb[0].mxu0 %v1810
    %v2071 = vpop.f32.mrb[0].mxu0
    %v2072 = vadd.f32 %v1729, %v2071
    %v2073 = vpop.f32.mrb[0].mxu0
    %2074 = vmatprep.mubr.f32.mxu0 0.0
    %2075 = vmatmul.mubr.f32.gmra.mrb[0].mxu0 %v1813
    %v2076 = vpop.f32.mrb[0].mxu0
    %v2077 = vadd.f32 %v1729, %v2076
    %v2078 = vpop.f32.mrb[0].mxu0
    %2079 = vmatprep.mubr.f32.mxu0 0.0
    %2080 = vmatmul.mubr.f32.gmra.mrb[0].mxu0 %v1816
    %v2081 = vpop.f32.mrb[0].mxu0
    %v2082 = vadd.f32 %v1729, %v2081
    %v2083 = vpop.f32.mrb[0].mxu0
    %2084 = vmatprep.mubr.f32.mxu0 0.0
    %2085 = vmatmul.mubr.f32.gmra.mrb[0].mxu0 %v1819
    %v2086 = vpop.f32.mrb[0].mxu0
    %v2087 = vadd.f32 %v1729, %v2086
    %v2088 = vpop.f32.mrb[0].mxu0
    %2089 = vmatprep.mubr.f32.mxu0 0.0
    %2090 = vmatmul.mubr.f32.gmra.mrb[0].mxu0 %v1822
    %v2091 = vpop.f32.mrb[0].mxu0
    %v2092 = vadd.f32 %v1729, %v2091
    %v2093 = vpop.f32.mrb[0].mxu0
    %2094 = vmatprep.mubr.f32.mxu0 0.0
    %2095 = vmatmul.mubr.f32.gmra.mrb[0].mxu0 %v1825
    %v2096 = vpop.f32.mrb[0].mxu0
    %v2097 = vadd.f32 %v1729, %v2096
    %v2098 = vpop.f32.mrb[0].mxu0
    %2099 = vmatprep.mubr.f32.mxu0 0.0
    %2100 = vmatmul.mubr.f32.gmra.mrb[0].mxu0 %v1828
    %v2101 = vpop.f32.mrb[0].mxu0
    %v2102 = vadd.f32 %v1729, %v2101
    %v2103 = vpop.f32.mrb[0].mxu0
    %2104 = vmatprep.mubr.f32.mxu0 0.0
    %2105 = vmatmul.mubr.f32.gmra.mrb[0].mxu0 %v1831
    %v2106 = vpop.f32.mrb[0].mxu0
    %v2107 = vadd.f32 %v1729, %v2106
    %v2108 = vpop.f32.mrb[0].mxu0
    %2109 = vmatprep.mubr.f32.mxu0 0.0
    %2110 = vmatmul.mubr.f32.gmra.mrb[0].mxu0 %v1834
    %v2111 = vpop.f32.mrb[0].mxu0
    %v2112 = vadd.f32 %v1729, %v2111
    %v2113 = vpop.f32.mrb[0].mxu0
    %2114 = vmatprep.mubr.f32.mxu0 0.0
    %2115 = vmatmul.mubr.f32.gmra.mrb[0].mxu0 %v1837
    %v2116 = vpop.f32.mrb[0].mxu0
    %v2117 = vadd.f32 %v1729, %v2116
    %v2118 = vpop.f32.mrb[0].mxu0
    %2119 = vmatprep.mubr.f32.mxu0 0.0
    %2120 = vmatmul.mubr.f32.gmra.mrb[0].mxu0 %v1840
    %v2121 = vpop.f32.mrb[0].mxu0
    %v2122 = vadd.f32 %v1729, %v2121
    %v2123 = vpop.f32.mrb[0].mxu0
    %2124 = vmatprep.mubr.f32.mxu0 0.0
    %2125 = vmatmul.mubr.f32.gmra.mrb[0].mxu0 %v1843
    %v2126 = vpop.f32.mrb[0].mxu0
    %v2127 = vadd.f32 %v1729, %v2126
    %v2128 = vpop.f32.mrb[0].mxu0
    %2129 = vmatprep.mubr.f32.mxu0 0.0
    %2130 = vmatmul.mubr.f32.gmra.mrb[0].mxu0 %v1846
    %v2131 = vpop.f32.mrb[0].mxu0
    %v2132 = vadd.f32 %v1729, %v2131
    %v2133 = vpop.f32.mrb[0].mxu0
    %2134 = vmatprep.mubr.f32.mxu0 0.0
    %2135 = vmatmul.mubr.f32.gmra.mrb[0].mxu0 %v1849
    %v2136 = vpop.f32.mrb[0].mxu0
    %v2137 = vadd.f32 %v1729, %v2136
    %v2138 = vpop.f32.mrb[0].mxu0
    %2139 = vmatprep.mubr.f32.mxu0 0.0
    %2140 = vmatmul.mubr.f32.gmra.mrb[0].mxu0 %v1852
    %v2141 = vpop.f32.mrb[0].mxu0
    %v2142 = vadd.f32 %v1729, %v2141
    %v2143 = vpop.f32.mrb[0].mxu0
    %2144 = vmatprep.mubr.f32.mxu0 0.0
    %2145 = vmatmul.mubr.f32.gmra.mrb[0].mxu0 %v1855
    %v2146 = vpop.f32.mrb[0].mxu0
    %v2147 = vadd.f32 %v1729, %v2146
    %v2148 = vpop.f32.mrb[0].mxu0
    %2149 = vmatprep.mubr.f32.mxu0 0.0
    %2150 = vmatmul.mubr.f32.gmra.mrb[0].mxu0 %v1858
    %v2151 = vpop.f32.mrb[0].mxu0
    %v2152 = vadd.f32 %v1729, %v2151
    %v2153 = vpop.f32.mrb[0].mxu0
    %2154 = vmatprep.mubr.f32.mxu0 0.0
    %2155 = vmatmul.mubr.f32.gmra.mrb[0].mxu0 %v1861
    %v2156 = vpop.f32.mrb[0].mxu0
    %v2157 = vadd.f32 %v1729, %v2156
    %v2158 = vpop.f32.mrb[0].mxu0
    %2159 = vmatprep.mubr.f32.mxu0 0.0
    %2160 = vmatmul.mubr.f32.gmra.mrb[0].mxu0 %v1864
    %v2161 = vpop.f32.mrb[0].mxu0
    %v2162 = vadd.f32 %v1729, %v2161
    %v2163 = vpop.f32.mrb[0].mxu0
    %2164 = vmatprep.mubr.f32.mxu0 0.0
    %2165 = vmatmul.mubr.f32.gmra.mrb[0].mxu0 %v1867
    %v2166 = vpop.f32.mrb[0].mxu0
    %v2167 = vadd.f32 %v1729, %v2166
    %v2168 = vpop.f32.mrb[0].mxu0
    %2169 = vmatprep.mubr.f32.mxu0 0.0
    %2170 = vmatmul.mubr.f32.gmra.mrb[0].mxu0 %v1870
    %v2171 = vpop.f32.mrb[0].mxu0
    %v2172 = vadd.f32 %v1729, %v2171
    %v2173 = vpop.f32.mrb[0].mxu0
    %2174 = vmatprep.mubr.f32.mxu0 0.0
    %2175 = vmatmul.mubr.f32.gmra.mrb[0].mxu0 %v1873
    %v2176 = vpop.f32.mrb[0].mxu0
    %v2177 = vadd.f32 %v1729, %v2176
    %v2178 = vpop.f32.mrb[0].mxu0
    %2179 = vdwg.mxu0
    %v2180 = vmax.f32 %v1942, 0.0
    %v2181 = vmax.f32 %v1947, 0.0
    %v2182 = vmax.f32 %v1952, 0.0
    %v2183 = vmax.f32 %v1957, 0.0
    %v2184 = vmax.f32 %v1962, 0.0
    %v2185 = vmax.f32 %v1967, 0.0
    %v2186 = vmax.f32 %v1972, 0.0
    %v2187 = vmax.f32 %v1977, 0.0
    %v2188 = vmax.f32 %v1982, 0.0
    %v2189 = vmax.f32 %v1987, 0.0
    %v2190 = vmax.f32 %v1992, 0.0
    %v2191 = vmax.f32 %v1997, 0.0
    %v2192 = vmax.f32 %v2002, 0.0
    %v2193 = vmax.f32 %v2007, 0.0
    %v2194 = vmax.f32 %v2012, 0.0
    %v2195 = vmax.f32 %v2017, 0.0
    %v2196 = vmax.f32 %v2022, 0.0
    %v2197 = vmax.f32 %v2027, 0.0
    %v2198 = vmax.f32 %v2032, 0.0
    %v2199 = vmax.f32 %v2037, 0.0
    %v2200 = vmax.f32 %v2042, 0.0
    %v2201 = vmax.f32 %v2047, 0.0
    %v2202 = vmax.f32 %v2052, 0.0
    %v2203 = vmax.f32 %v2057, 0.0
    %v2204 = vmax.f32 %v2062, 0.0
    %v2205 = vmax.f32 %v2067, 0.0
    %v2206 = vmax.f32 %v2072, 0.0
    %v2207 = vmax.f32 %v2077, 0.0
    %v2208 = vmax.f32 %v2082, 0.0
    %v2209 = vmax.f32 %v2087, 0.0
    %v2210 = vmax.f32 %v2092, 0.0
    %v2211 = vmax.f32 %v2097, 0.0
    %v2212 = vmax.f32 %v2102, 0.0
    %v2213 = vmax.f32 %v2107, 0.0
    %v2214 = vmax.f32 %v2112, 0.0
    %v2215 = vmax.f32 %v2117, 0.0
    %v2216 = vmax.f32 %v2122, 0.0
    %v2217 = vmax.f32 %v2127, 0.0
    %v2218 = vmax.f32 %v2132, 0.0
    %v2219 = vmax.f32 %v2137, 0.0
    %v2220 = vmax.f32 %v2142, 0.0
    %v2221 = vmax.f32 %v2147, 0.0
    %v2222 = vmax.f32 %v2152, 0.0
    %v2223 = vmax.f32 %v2157, 0.0
    %v2224 = vmax.f32 %v2162, 0.0
    %v2225 = vmax.f32 %v2167, 0.0
    %v2226 = vmax.f32 %v2172, 0.0
    %v2227 = vmax.f32 %v2177, 0.0
    %v2228 = vlaneseq
    %v2229 = vshrl.u32 %v2228, 7
    %v2230 = vsub.s32 1, %v2229
    %v2231 = vrot.slane %v1082, %v2230
    %vm2232 = vcmask 261120
    %v2234 = vsel %vm2232, %v2180, 0
    %v2237 = vsel %vm2232, %v2181, 0
    %v2240 = vsel %vm2232, %v2182, 0
    %v2243 = vsel %vm2232, %v2183, 0
    %v2246 = vsel %vm2232, %v2184, 0
    %v2249 = vsel %vm2232, %v2185, 0
    %v2252 = vsel %vm2232, %v2186, 0
    %v2255 = vsel %vm2232, %v2187, 0
    %v2258 = vsel %vm2232, %v2188, 0
    %v2261 = vsel %vm2232, %v2189, 0
    %v2264 = vsel %vm2232, %v2190, 0
    %v2267 = vsel %vm2232, %v2191, 0
    %v2270 = vsel %vm2232, %v2192, 0
    %v2273 = vsel %vm2232, %v2193, 0
    %v2276 = vsel %vm2232, %v2194, 0
    %v2279 = vsel %vm2232, %v2195, 0
    %v2282 = vsel %vm2232, %v2196, 0
    %v2285 = vsel %vm2232, %v2197, 0
    %v2288 = vsel %vm2232, %v2198, 0
    %v2291 = vsel %vm2232, %v2199, 0
    %v2294 = vsel %vm2232, %v2200, 0
    %v2297 = vsel %vm2232, %v2201, 0
    %v2300 = vsel %vm2232, %v2202, 0
    %v2303 = vsel %vm2232, %v2203, 0
    %v2306 = vsel %vm2232, %v2204, 0
    %v2309 = vsel %vm2232, %v2205, 0
    %v2312 = vsel %vm2232, %v2206, 0
    %v2315 = vsel %vm2232, %v2207, 0
    %v2318 = vsel %vm2232, %v2208, 0
    %v2321 = vsel %vm2232, %v2209, 0
    %v2324 = vsel %vm2232, %v2210, 0
    %v2327 = vsel %vm2232, %v2211, 0
    %v2330 = vsel %vm2232, %v2212, 0
    %v2333 = vsel %vm2232, %v2213, 0
    %v2336 = vsel %vm2232, %v2214, 0
    %v2339 = vsel %vm2232, %v2215, 0
    %v2342 = vsel %vm2232, %v2216, 0
    %v2345 = vsel %vm2232, %v2217, 0
    %v2348 = vsel %vm2232, %v2218, 0
    %v2351 = vsel %vm2232, %v2219, 0
    %v2354 = vsel %vm2232, %v2220, 0
    %v2357 = vsel %vm2232, %v2221, 0
    %v2360 = vsel %vm2232, %v2222, 0
    %v2363 = vsel %vm2232, %v2223, 0
    %v2366 = vsel %vm2232, %v2224, 0
    %v2369 = vsel %vm2232, %v2225, 0
    %v2372 = vsel %vm2232, %v2226, 0
    %v2375 = vsel %vm2232, %v2227, 0
    %2377 = vmatprep.subr.mxu0 0.0
    %2378 = vmatpush1.msra.mxu0 %v1078
    %2379 = vmatprep.subr.mxu0 0.0
    %2380 = vmatpush1.msra.mxu0 %v1079
    %2381 = vmatprep.subr.mxu0 0.0
    %2382 = vmatpush1.msra.mxu0 %v1080
    %2383 = vmatprep.subr.mxu0 0.0
    %2384 = vmatpush1.msra.mxu0 %v1081
    %2385 = vmatprep.subr.mxu0 0.0
    %2386 = vmatpush1.msra.mxu0 0.0
    %2387 = vmatprep.subr.mxu0 0.0
    %2388 = vmatpush1.msra.mxu0 0.0
    %2389 = vmatprep.subr.mxu0 0.0
    %2390 = vmatpush1.msra.mxu0 0.0
    %2391 = vmatprep.subr.mxu0 0.0
    %2392 = vmatpush1.msra.mxu0 0.0
    %2393 = vmatprep.subr.mxu0 0.0
    %2394 = vmatpush1.msra.mxu0 0.0
    %2395 = vmatprep.subr.mxu0 0.0
    %2396 = vmatpush1.msra.mxu0 0.0
    %2397 = vmatprep.subr.mxu0 0.0
    %2398 = vmatpush1.msra.mxu0 0.0
    %2399 = vmatprep.subr.mxu0 0.0
    %2400 = vmatpush1.msra.mxu0 0.0
    %2401 = vmatprep.subr.mxu0 0.0
    %2402 = vmatpush1.msra.mxu0 0.0
    %2403 = vmatprep.subr.mxu0 0.0
    %2404 = vmatpush1.msra.mxu0 0.0
    %2405 = vmatprep.subr.mxu0 0.0
    %2406 = vmatpush1.msra.mxu0 0.0
    %2407 = vmatprep.subr.mxu0 0.0
    %2408 = vmatpush1.msra.mxu0 0.0
    %2409 = vmatprep.subr.mxu0 0.0
    %2410 = vmatpush1.msra.mxu0 0.0
    %2411 = vmatprep.subr.mxu0 0.0
    %2412 = vmatpush1.msra.mxu0 0.0
    %2413 = vmatprep.subr.mxu0 0.0
    %2414 = vmatpush1.msra.mxu0 0.0
    %2415 = vmatprep.subr.mxu0 0.0
    %2416 = vmatpush1.msra.mxu0 0.0
    %2417 = vmatprep.subr.mxu0 0.0
    %2418 = vmatpush1.msra.mxu0 0.0
    %2419 = vmatprep.subr.mxu0 0.0
    %2420 = vmatpush1.msra.mxu0 0.0
    %2421 = vmatprep.subr.mxu0 0.0
    %2422 = vmatpush1.msra.mxu0 0.0
    %2423 = vmatprep.subr.mxu0 0.0
    %2424 = vmatpush1.msra.mxu0 0.0
    %2425 = vmatprep.subr.mxu0 0.0
    %2426 = vmatpush1.msra.mxu0 0.0
    %2427 = vmatprep.subr.mxu0 0.0
    %2428 = vmatpush1.msra.mxu0 0.0
    %2429 = vmatprep.subr.mxu0 0.0
    %2430 = vmatpush1.msra.mxu0 0.0
    %2431 = vmatprep.subr.mxu0 0.0
    %2432 = vmatpush1.msra.mxu0 0.0
    %2433 = vmatprep.subr.mxu0 0.0
    %2434 = vmatpush1.msra.mxu0 0.0
    %2435 = vmatprep.subr.mxu0 0.0
    %2436 = vmatpush1.msra.mxu0 0.0
    %2437 = vmatprep.subr.mxu0 0.0
    %2438 = vmatpush1.msra.mxu0 0.0
    %2439 = vmatprep.subr.mxu0 0.0
    %2440 = vmatpush1.msra.mxu0 0.0
    %2441 = vmatprep.mubr.f32.mxu0 0.0
    %2442 = vmatmul.mubr.f32.gmra.mrb[0].mxu0 %v2234
    %v2443 = vpop.f32.mrb[0].mxu0
    %v2444 = vadd.f32 %v2231, %v2443
    %v2445 = vpop.f32.mrb[0].mxu0
    %2446 = vmatprep.mubr.f32.mxu0 0.0
    %2447 = vmatmul.mubr.f32.gmra.mrb[0].mxu0 %v2237
    %v2448 = vpop.f32.mrb[0].mxu0
    %v2449 = vadd.f32 %v2231, %v2448
    %v2450 = vpop.f32.mrb[0].mxu0
    %2451 = vmatprep.mubr.f32.mxu0 0.0
    %2452 = vmatmul.mubr.f32.gmra.mrb[0].mxu0 %v2240
    %v2453 = vpop.f32.mrb[0].mxu0
    %v2454 = vadd.f32 %v2231, %v2453
    %v2455 = vpop.f32.mrb[0].mxu0
    %2456 = vmatprep.mubr.f32.mxu0 0.0
    %2457 = vmatmul.mubr.f32.gmra.mrb[0].mxu0 %v2243
    %v2458 = vpop.f32.mrb[0].mxu0
    %v2459 = vadd.f32 %v2231, %v2458
    %v2460 = vpop.f32.mrb[0].mxu0
    %2461 = vmatprep.mubr.f32.mxu0 0.0
    %2462 = vmatmul.mubr.f32.gmra.mrb[0].mxu0 %v2246
    %v2463 = vpop.f32.mrb[0].mxu0
    %v2464 = vadd.f32 %v2231, %v2463
    %v2465 = vpop.f32.mrb[0].mxu0
    %2466 = vmatprep.mubr.f32.mxu0 0.0
    %2467 = vmatmul.mubr.f32.gmra.mrb[0].mxu0 %v2249
    %v2468 = vpop.f32.mrb[0].mxu0
    %v2469 = vadd.f32 %v2231, %v2468
    %v2470 = vpop.f32.mrb[0].mxu0
    %2471 = vmatprep.mubr.f32.mxu0 0.0
    %2472 = vmatmul.mubr.f32.gmra.mrb[0].mxu0 %v2252
    %v2473 = vpop.f32.mrb[0].mxu0
    %v2474 = vadd.f32 %v2231, %v2473
    %v2475 = vpop.f32.mrb[0].mxu0
    %2476 = vmatprep.mubr.f32.mxu0 0.0
    %2477 = vmatmul.mubr.f32.gmra.mrb[0].mxu0 %v2255
    %v2478 = vpop.f32.mrb[0].mxu0
    %v2479 = vadd.f32 %v2231, %v2478
    %v2480 = vpop.f32.mrb[0].mxu0
    %2481 = vmatprep.mubr.f32.mxu0 0.0
    %2482 = vmatmul.mubr.f32.gmra.mrb[0].mxu0 %v2258
    %v2483 = vpop.f32.mrb[0].mxu0
    %v2484 = vadd.f32 %v2231, %v2483
    %v2485 = vpop.f32.mrb[0].mxu0
    %2486 = vmatprep.mubr.f32.mxu0 0.0
    %2487 = vmatmul.mubr.f32.gmra.mrb[0].mxu0 %v2261
    %v2488 = vpop.f32.mrb[0].mxu0
    %v2489 = vadd.f32 %v2231, %v2488
    %v2490 = vpop.f32.mrb[0].mxu0
    %2491 = vmatprep.mubr.f32.mxu0 0.0
    %2492 = vmatmul.mubr.f32.gmra.mrb[0].mxu0 %v2264
    %v2493 = vpop.f32.mrb[0].mxu0
    %v2494 = vadd.f32 %v2231, %v2493
    %v2495 = vpop.f32.mrb[0].mxu0
    %2496 = vmatprep.mubr.f32.mxu0 0.0
    %2497 = vmatmul.mubr.f32.gmra.mrb[0].mxu0 %v2267
    %v2498 = vpop.f32.mrb[0].mxu0
    %v2499 = vadd.f32 %v2231, %v2498
    %v2500 = vpop.f32.mrb[0].mxu0
    %2501 = vmatprep.mubr.f32.mxu0 0.0
    %2502 = vmatmul.mubr.f32.gmra.mrb[0].mxu0 %v2270
    %v2503 = vpop.f32.mrb[0].mxu0
    %v2504 = vadd.f32 %v2231, %v2503
    %v2505 = vpop.f32.mrb[0].mxu0
    %2506 = vmatprep.mubr.f32.mxu0 0.0
    %2507 = vmatmul.mubr.f32.gmra.mrb[0].mxu0 %v2273
    %v2508 = vpop.f32.mrb[0].mxu0
    %v2509 = vadd.f32 %v2231, %v2508
    %v2510 = vpop.f32.mrb[0].mxu0
    %2511 = vmatprep.mubr.f32.mxu0 0.0
    %2512 = vmatmul.mubr.f32.gmra.mrb[0].mxu0 %v2276
    %v2513 = vpop.f32.mrb[0].mxu0
    %v2514 = vadd.f32 %v2231, %v2513
    %v2515 = vpop.f32.mrb[0].mxu0
    %2516 = vmatprep.mubr.f32.mxu0 0.0
    %2517 = vmatmul.mubr.f32.gmra.mrb[0].mxu0 %v2279
    %v2518 = vpop.f32.mrb[0].mxu0
    %v2519 = vadd.f32 %v2231, %v2518
    %v2520 = vpop.f32.mrb[0].mxu0
    %2521 = vmatprep.mubr.f32.mxu0 0.0
    %2522 = vmatmul.mubr.f32.gmra.mrb[0].mxu0 %v2282
    %v2523 = vpop.f32.mrb[0].mxu0
    %v2524 = vadd.f32 %v2231, %v2523
    %v2525 = vpop.f32.mrb[0].mxu0
    %2526 = vmatprep.mubr.f32.mxu0 0.0
    %2527 = vmatmul.mubr.f32.gmra.mrb[0].mxu0 %v2285
    %v2528 = vpop.f32.mrb[0].mxu0
    %v2529 = vadd.f32 %v2231, %v2528
    %v2530 = vpop.f32.mrb[0].mxu0
    %2531 = vmatprep.mubr.f32.mxu0 0.0
    %2532 = vmatmul.mubr.f32.gmra.mrb[0].mxu0 %v2288
    %v2533 = vpop.f32.mrb[0].mxu0
    %v2534 = vadd.f32 %v2231, %v2533
    %v2535 = vpop.f32.mrb[0].mxu0
    %2536 = vmatprep.mubr.f32.mxu0 0.0
    %2537 = vmatmul.mubr.f32.gmra.mrb[0].mxu0 %v2291
    %v2538 = vpop.f32.mrb[0].mxu0
    %v2539 = vadd.f32 %v2231, %v2538
    %v2540 = vpop.f32.mrb[0].mxu0
    %2541 = vmatprep.mubr.f32.mxu0 0.0
    %2542 = vmatmul.mubr.f32.gmra.mrb[0].mxu0 %v2294
    %v2543 = vpop.f32.mrb[0].mxu0
    %v2544 = vadd.f32 %v2231, %v2543
    %v2545 = vpop.f32.mrb[0].mxu0
    %2546 = vmatprep.mubr.f32.mxu0 0.0
    %2547 = vmatmul.mubr.f32.gmra.mrb[0].mxu0 %v2297
    %v2548 = vpop.f32.mrb[0].mxu0
    %v2549 = vadd.f32 %v2231, %v2548
    %v2550 = vpop.f32.mrb[0].mxu0
    %2551 = vmatprep.mubr.f32.mxu0 0.0
    %2552 = vmatmul.mubr.f32.gmra.mrb[0].mxu0 %v2300
    %v2553 = vpop.f32.mrb[0].mxu0
    %v2554 = vadd.f32 %v2231, %v2553
    %v2555 = vpop.f32.mrb[0].mxu0
    %2556 = vmatprep.mubr.f32.mxu0 0.0
    %2557 = vmatmul.mubr.f32.gmra.mrb[0].mxu0 %v2303
    %v2558 = vpop.f32.mrb[0].mxu0
    %v2559 = vadd.f32 %v2231, %v2558
    %v2560 = vpop.f32.mrb[0].mxu0
    %2561 = vmatprep.mubr.f32.mxu0 0.0
    %2562 = vmatmul.mubr.f32.gmra.mrb[0].mxu0 %v2306
    %v2563 = vpop.f32.mrb[0].mxu0
    %v2564 = vadd.f32 %v2231, %v2563
    %v2565 = vpop.f32.mrb[0].mxu0
    %2566 = vmatprep.mubr.f32.mxu0 0.0
    %2567 = vmatmul.mubr.f32.gmra.mrb[0].mxu0 %v2309
    %v2568 = vpop.f32.mrb[0].mxu0
    %v2569 = vadd.f32 %v2231, %v2568
    %v2570 = vpop.f32.mrb[0].mxu0
    %2571 = vmatprep.mubr.f32.mxu0 0.0
    %2572 = vmatmul.mubr.f32.gmra.mrb[0].mxu0 %v2312
    %v2573 = vpop.f32.mrb[0].mxu0
    %v2574 = vadd.f32 %v2231, %v2573
    %v2575 = vpop.f32.mrb[0].mxu0
    %2576 = vmatprep.mubr.f32.mxu0 0.0
    %2577 = vmatmul.mubr.f32.gmra.mrb[0].mxu0 %v2315
    %v2578 = vpop.f32.mrb[0].mxu0
    %v2579 = vadd.f32 %v2231, %v2578
    %v2580 = vpop.f32.mrb[0].mxu0
    %2581 = vmatprep.mubr.f32.mxu0 0.0
    %2582 = vmatmul.mubr.f32.gmra.mrb[0].mxu0 %v2318
    %v2583 = vpop.f32.mrb[0].mxu0
    %v2584 = vadd.f32 %v2231, %v2583
    %v2585 = vpop.f32.mrb[0].mxu0
    %2586 = vmatprep.mubr.f32.mxu0 0.0
    %2587 = vmatmul.mubr.f32.gmra.mrb[0].mxu0 %v2321
    %v2588 = vpop.f32.mrb[0].mxu0
    %v2589 = vadd.f32 %v2231, %v2588
    %v2590 = vpop.f32.mrb[0].mxu0
    %2591 = vmatprep.mubr.f32.mxu0 0.0
    %2592 = vmatmul.mubr.f32.gmra.mrb[0].mxu0 %v2324
    %v2593 = vpop.f32.mrb[0].mxu0
    %v2594 = vadd.f32 %v2231, %v2593
    %v2595 = vpop.f32.mrb[0].mxu0
    %2596 = vmatprep.mubr.f32.mxu0 0.0
    %2597 = vmatmul.mubr.f32.gmra.mrb[0].mxu0 %v2327
    %v2598 = vpop.f32.mrb[0].mxu0
    %v2599 = vadd.f32 %v2231, %v2598
    %v2600 = vpop.f32.mrb[0].mxu0
    %2601 = vmatprep.mubr.f32.mxu0 0.0
    %2602 = vmatmul.mubr.f32.gmra.mrb[0].mxu0 %v2330
    %v2603 = vpop.f32.mrb[0].mxu0
    %v2604 = vadd.f32 %v2231, %v2603
    %v2605 = vpop.f32.mrb[0].mxu0
    %2606 = vmatprep.mubr.f32.mxu0 0.0
    %2607 = vmatmul.mubr.f32.gmra.mrb[0].mxu0 %v2333
    %v2608 = vpop.f32.mrb[0].mxu0
    %v2609 = vadd.f32 %v2231, %v2608
    %v2610 = vpop.f32.mrb[0].mxu0
    %2611 = vmatprep.mubr.f32.mxu0 0.0
    %2612 = vmatmul.mubr.f32.gmra.mrb[0].mxu0 %v2336
    %v2613 = vpop.f32.mrb[0].mxu0
    %v2614 = vadd.f32 %v2231, %v2613
    %v2615 = vpop.f32.mrb[0].mxu0
    %2616 = vmatprep.mubr.f32.mxu0 0.0
    %2617 = vmatmul.mubr.f32.gmra.mrb[0].mxu0 %v2339
    %v2618 = vpop.f32.mrb[0].mxu0
    %v2619 = vadd.f32 %v2231, %v2618
    %v2620 = vpop.f32.mrb[0].mxu0
    %2621 = vmatprep.mubr.f32.mxu0 0.0
    %2622 = vmatmul.mubr.f32.gmra.mrb[0].mxu0 %v2342
    %v2623 = vpop.f32.mrb[0].mxu0
    %v2624 = vadd.f32 %v2231, %v2623
    %v2625 = vpop.f32.mrb[0].mxu0
    %2626 = vmatprep.mubr.f32.mxu0 0.0
    %2627 = vmatmul.mubr.f32.gmra.mrb[0].mxu0 %v2345
    %v2628 = vpop.f32.mrb[0].mxu0
    %v2629 = vadd.f32 %v2231, %v2628
    %v2630 = vpop.f32.mrb[0].mxu0
    %2631 = vmatprep.mubr.f32.mxu0 0.0
    %2632 = vmatmul.mubr.f32.gmra.mrb[0].mxu0 %v2348
    %v2633 = vpop.f32.mrb[0].mxu0
    %v2634 = vadd.f32 %v2231, %v2633
    %v2635 = vpop.f32.mrb[0].mxu0
    %2636 = vmatprep.mubr.f32.mxu0 0.0
    %2637 = vmatmul.mubr.f32.gmra.mrb[0].mxu0 %v2351
    %v2638 = vpop.f32.mrb[0].mxu0
    %v2639 = vadd.f32 %v2231, %v2638
    %v2640 = vpop.f32.mrb[0].mxu0
    %2641 = vmatprep.mubr.f32.mxu0 0.0
    %2642 = vmatmul.mubr.f32.gmra.mrb[0].mxu0 %v2354
    %v2643 = vpop.f32.mrb[0].mxu0
    %v2644 = vadd.f32 %v2231, %v2643
    %v2645 = vpop.f32.mrb[0].mxu0
    %2646 = vmatprep.mubr.f32.mxu0 0.0
    %2647 = vmatmul.mubr.f32.gmra.mrb[0].mxu0 %v2357
    %v2648 = vpop.f32.mrb[0].mxu0
    %v2649 = vadd.f32 %v2231, %v2648
    %v2650 = vpop.f32.mrb[0].mxu0
    %2651 = vmatprep.mubr.f32.mxu0 0.0
    %2652 = vmatmul.mubr.f32.gmra.mrb[0].mxu0 %v2360
    %v2653 = vpop.f32.mrb[0].mxu0
    %v2654 = vadd.f32 %v2231, %v2653
    %v2655 = vpop.f32.mrb[0].mxu0
    %2656 = vmatprep.mubr.f32.mxu0 0.0
    %2657 = vmatmul.mubr.f32.gmra.mrb[0].mxu0 %v2363
    %v2658 = vpop.f32.mrb[0].mxu0
    %v2659 = vadd.f32 %v2231, %v2658
    %v2660 = vpop.f32.mrb[0].mxu0
    %2661 = vmatprep.mubr.f32.mxu0 0.0
    %2662 = vmatmul.mubr.f32.gmra.mrb[0].mxu0 %v2366
    %v2663 = vpop.f32.mrb[0].mxu0
    %v2664 = vadd.f32 %v2231, %v2663
    %v2665 = vpop.f32.mrb[0].mxu0
    %2666 = vmatprep.mubr.f32.mxu0 0.0
    %2667 = vmatmul.mubr.f32.gmra.mrb[0].mxu0 %v2369
    %v2668 = vpop.f32.mrb[0].mxu0
    %v2669 = vadd.f32 %v2231, %v2668
    %v2670 = vpop.f32.mrb[0].mxu0
    %2671 = vmatprep.mubr.f32.mxu0 0.0
    %2672 = vmatmul.mubr.f32.gmra.mrb[0].mxu0 %v2372
    %v2673 = vpop.f32.mrb[0].mxu0
    %v2674 = vadd.f32 %v2231, %v2673
    %v2675 = vpop.f32.mrb[0].mxu0
    %2676 = vmatprep.mubr.f32.mxu0 0.0
    %2677 = vmatmul.mubr.f32.gmra.mrb[0].mxu0 %v2375
    %v2678 = vpop.f32.mrb[0].mxu0
    %v2679 = vadd.f32 %v2231, %v2678
    %v2680 = vpop.f32.mrb[0].mxu0
    %2681 = vdwg.mxu0
    %v2682 = vmax.f32 %v2444, 0.0
    %v2683 = vmax.f32 %v2449, 0.0
    %v2684 = vmax.f32 %v2454, 0.0
    %v2685 = vmax.f32 %v2459, 0.0
    %v2686 = vmax.f32 %v2464, 0.0
    %v2687 = vmax.f32 %v2469, 0.0
    %v2688 = vmax.f32 %v2474, 0.0
    %v2689 = vmax.f32 %v2479, 0.0
    %v2690 = vmax.f32 %v2484, 0.0
    %v2691 = vmax.f32 %v2489, 0.0
    %v2692 = vmax.f32 %v2494, 0.0
    %v2693 = vmax.f32 %v2499, 0.0
    %v2694 = vmax.f32 %v2504, 0.0
    %v2695 = vmax.f32 %v2509, 0.0
    %v2696 = vmax.f32 %v2514, 0.0
    %v2697 = vmax.f32 %v2519, 0.0
    %v2698 = vmax.f32 %v2524, 0.0
    %v2699 = vmax.f32 %v2529, 0.0
    %v2700 = vmax.f32 %v2534, 0.0
    %v2701 = vmax.f32 %v2539, 0.0
    %v2702 = vmax.f32 %v2544, 0.0
    %v2703 = vmax.f32 %v2549, 0.0
    %v2704 = vmax.f32 %v2554, 0.0
    %v2705 = vmax.f32 %v2559, 0.0
    %v2706 = vmax.f32 %v2564, 0.0
    %v2707 = vmax.f32 %v2569, 0.0
    %v2708 = vmax.f32 %v2574, 0.0
    %v2709 = vmax.f32 %v2579, 0.0
    %v2710 = vmax.f32 %v2584, 0.0
    %v2711 = vmax.f32 %v2589, 0.0
    %v2712 = vmax.f32 %v2594, 0.0
    %v2713 = vmax.f32 %v2599, 0.0
    %v2714 = vmax.f32 %v2604, 0.0
    %v2715 = vmax.f32 %v2609, 0.0
    %v2716 = vmax.f32 %v2614, 0.0
    %v2717 = vmax.f32 %v2619, 0.0
    %v2718 = vmax.f32 %v2624, 0.0
    %v2719 = vmax.f32 %v2629, 0.0
    %v2720 = vmax.f32 %v2634, 0.0
    %v2721 = vmax.f32 %v2639, 0.0
    %v2722 = vmax.f32 %v2644, 0.0
    %v2723 = vmax.f32 %v2649, 0.0
    %v2724 = vmax.f32 %v2654, 0.0
    %v2725 = vmax.f32 %v2659, 0.0
    %v2726 = vmax.f32 %v2664, 0.0
    %v2727 = vmax.f32 %v2669, 0.0
    %v2728 = vmax.f32 %v2674, 0.0
    %v2729 = vmax.f32 %v2679, 0.0
    %v2730 = vmul.f32 %v2682, %v1029
    %v2731 = vmul.f32 %v2683, %v1030
    %v2732 = vmul.f32 %v2684, %v1031
    %v2733 = vmul.f32 %v2685, %v1032
    %v2734 = vmul.f32 %v2686, %v1033
    %v2735 = vmul.f32 %v2687, %v1034
    %v2736 = vmul.f32 %v2688, %v1035
    %v2737 = vmul.f32 %v2689, %v1036
    %v2738 = vmul.f32 %v2690, %v1037
    %v2739 = vmul.f32 %v2691, %v1038
    %v2740 = vmul.f32 %v2692, %v1039
    %v2741 = vmul.f32 %v2693, %v1040
    %v2742 = vmul.f32 %v2694, %v1041
    %v2743 = vmul.f32 %v2695, %v1042
    %v2744 = vmul.f32 %v2696, %v1043
    %v2745 = vmul.f32 %v2697, %v1044
    %v2746 = vmul.f32 %v2698, %v1045
    %v2747 = vmul.f32 %v2699, %v1046
    %v2748 = vmul.f32 %v2700, %v1047
    %v2749 = vmul.f32 %v2701, %v1048
    %v2750 = vmul.f32 %v2702, %v1049
    %v2751 = vmul.f32 %v2703, %v1050
    %v2752 = vmul.f32 %v2704, %v1051
    %v2753 = vmul.f32 %v2705, %v1052
    %v2754 = vmul.f32 %v2706, %v1053
    %v2755 = vmul.f32 %v2707, %v1054
    %v2756 = vmul.f32 %v2708, %v1055
    %v2757 = vmul.f32 %v2709, %v1056
    %v2758 = vmul.f32 %v2710, %v1057
    %v2759 = vmul.f32 %v2711, %v1058
    %v2760 = vmul.f32 %v2712, %v1059
    %v2761 = vmul.f32 %v2713, %v1060
    %v2762 = vmul.f32 %v2714, %v1061
    %v2763 = vmul.f32 %v2715, %v1062
    %v2764 = vmul.f32 %v2716, %v1063
    %v2765 = vmul.f32 %v2717, %v1064
    %v2766 = vmul.f32 %v2718, %v1065
    %v2767 = vmul.f32 %v2719, %v1066
    %v2768 = vmul.f32 %v2720, %v1067
    %v2769 = vmul.f32 %v2721, %v1068
    %v2770 = vmul.f32 %v2722, %v1069
    %v2771 = vmul.f32 %v2723, %v1070
    %v2772 = vmul.f32 %v2724, %v1071
    %v2773 = vmul.f32 %v2725, %v1072
    %v2774 = vmul.f32 %v2726, %v1073
    %v2775 = vmul.f32 %v2727, %v1074
    %v2776 = vmul.f32 %v2728, %v1075
    %v2777 = vmul.f32 %v2729, %v1076
    %v2778 = vsel %vm2232, %v2730, 0.0
    %v2779 = vsel %vm2232, %v2731, 0.0
    %v2780 = vadd.f32 %v2778, %v2779
    %v2781 = vsel %vm2232, %v2732, 0.0
    %v2782 = vadd.f32 %v2780, %v2781
    %v2783 = vsel %vm2232, %v2733, 0.0
    %v2784 = vadd.f32 %v2782, %v2783
    %v2785 = vsel %vm2232, %v2734, 0.0
    %v2786 = vadd.f32 %v2784, %v2785
    %v2787 = vsel %vm2232, %v2735, 0.0
    %v2788 = vadd.f32 %v2786, %v2787
    %v2789 = vsel %vm2232, %v2736, 0.0
    %v2790 = vadd.f32 %v2788, %v2789
    %v2791 = vsel %vm2232, %v2737, 0.0
    %v2792 = vadd.f32 %v2790, %v2791
    %v2793 = vsel %vm2232, %v2738, 0.0
    %v2794 = vadd.f32 %v2792, %v2793
    %v2795 = vsel %vm2232, %v2739, 0.0
    %v2796 = vadd.f32 %v2794, %v2795
    %v2797 = vsel %vm2232, %v2740, 0.0
    %v2798 = vadd.f32 %v2796, %v2797
    %v2799 = vsel %vm2232, %v2741, 0.0
    %v2800 = vadd.f32 %v2798, %v2799
    %v2801 = vsel %vm2232, %v2742, 0.0
    %v2802 = vadd.f32 %v2800, %v2801
    %v2803 = vsel %vm2232, %v2743, 0.0
    %v2804 = vadd.f32 %v2802, %v2803
    %v2805 = vsel %vm2232, %v2744, 0.0
    %v2806 = vadd.f32 %v2804, %v2805
    %v2807 = vsel %vm2232, %v2745, 0.0
    %v2808 = vadd.f32 %v2806, %v2807
    %v2809 = vsel %vm2232, %v2746, 0.0
    %v2810 = vadd.f32 %v2808, %v2809
    %v2811 = vsel %vm2232, %v2747, 0.0
    %v2812 = vadd.f32 %v2810, %v2811
    %v2813 = vsel %vm2232, %v2748, 0.0
    %v2814 = vadd.f32 %v2812, %v2813
    %v2815 = vsel %vm2232, %v2749, 0.0
    %v2816 = vadd.f32 %v2814, %v2815
    %v2817 = vsel %vm2232, %v2750, 0.0
    %v2818 = vadd.f32 %v2816, %v2817
    %v2819 = vsel %vm2232, %v2751, 0.0
    %v2820 = vadd.f32 %v2818, %v2819
    %v2821 = vsel %vm2232, %v2752, 0.0
    %v2822 = vadd.f32 %v2820, %v2821
    %v2823 = vsel %vm2232, %v2753, 0.0
    %v2824 = vadd.f32 %v2822, %v2823
    %v2825 = vsel %vm2232, %v2754, 0.0
    %v2826 = vadd.f32 %v2824, %v2825
    %v2827 = vsel %vm2232, %v2755, 0.0
    %v2828 = vadd.f32 %v2826, %v2827
    %v2829 = vsel %vm2232, %v2756, 0.0
    %v2830 = vadd.f32 %v2828, %v2829
    %v2831 = vsel %vm2232, %v2757, 0.0
    %v2832 = vadd.f32 %v2830, %v2831
    %v2833 = vsel %vm2232, %v2758, 0.0
    %v2834 = vadd.f32 %v2832, %v2833
    %v2835 = vsel %vm2232, %v2759, 0.0
    %v2836 = vadd.f32 %v2834, %v2835
    %v2837 = vsel %vm2232, %v2760, 0.0
    %v2838 = vadd.f32 %v2836, %v2837
    %v2839 = vsel %vm2232, %v2761, 0.0
    %v2840 = vadd.f32 %v2838, %v2839
    %v2841 = vsel %vm2232, %v2762, 0.0
    %v2842 = vadd.f32 %v2840, %v2841
    %v2843 = vsel %vm2232, %v2763, 0.0
    %v2844 = vadd.f32 %v2842, %v2843
    %v2845 = vsel %vm2232, %v2764, 0.0
    %v2846 = vadd.f32 %v2844, %v2845
    %v2847 = vsel %vm2232, %v2765, 0.0
    %v2848 = vadd.f32 %v2846, %v2847
    %v2849 = vsel %vm2232, %v2766, 0.0
    %v2850 = vadd.f32 %v2848, %v2849
    %v2851 = vsel %vm2232, %v2767, 0.0
    %v2852 = vadd.f32 %v2850, %v2851
    %v2853 = vsel %vm2232, %v2768, 0.0
    %v2854 = vadd.f32 %v2852, %v2853
    %v2855 = vsel %vm2232, %v2769, 0.0
    %v2856 = vadd.f32 %v2854, %v2855
    %v2857 = vsel %vm2232, %v2770, 0.0
    %v2858 = vadd.f32 %v2856, %v2857
    %v2859 = vsel %vm2232, %v2771, 0.0
    %v2860 = vadd.f32 %v2858, %v2859
    %v2861 = vsel %vm2232, %v2772, 0.0
    %v2862 = vadd.f32 %v2860, %v2861
    %v2863 = vsel %vm2232, %v2773, 0.0
    %v2864 = vadd.f32 %v2862, %v2863
    %v2865 = vsel %vm2232, %v2774, 0.0
    %v2866 = vadd.f32 %v2864, %v2865
    %v2867 = vsel %vm2232, %v2775, 0.0
    %v2868 = vadd.f32 %v2866, %v2867
    %v2869 = vsel %vm2232, %v2776, 0.0
    %v2870 = vadd.f32 %v2868, %v2869
    %v2871 = vsel %vm2232, %v2777, 0.0
    %v2872 = vadd.f32 %v2870, %v2871
    %v2873 = vrot.slane %v2872, 4
    %v2874 = vadd.f32 %v2872, %v2873
    %v2875 = vrot.slane %v2874, 2
    %v2876 = vadd.f32 %v2874, %v2875
    %v2877 = vrot.slane %v2876, 1
    %v2878 = vadd.f32 %v2876, %v2877
    %v2879 = vmul.f32 %v2878, 0.0033333334
    %v2880 = vmul.f32 %v2730, %v2730
    %v2881 = vmul.f32 %v2731, %v2731
    %v2882 = vmul.f32 %v2732, %v2732
    %v2883 = vmul.f32 %v2733, %v2733
    %v2884 = vmul.f32 %v2734, %v2734
    %v2885 = vmul.f32 %v2735, %v2735
    %v2886 = vmul.f32 %v2736, %v2736
    %v2887 = vmul.f32 %v2737, %v2737
    %v2888 = vmul.f32 %v2738, %v2738
    %v2889 = vmul.f32 %v2739, %v2739
    %v2890 = vmul.f32 %v2740, %v2740
    %v2891 = vmul.f32 %v2741, %v2741
    %v2892 = vmul.f32 %v2742, %v2742
    %v2893 = vmul.f32 %v2743, %v2743
    %v2894 = vmul.f32 %v2744, %v2744
    %v2895 = vmul.f32 %v2745, %v2745
    %v2896 = vmul.f32 %v2746, %v2746
    %v2897 = vmul.f32 %v2747, %v2747
    %v2898 = vmul.f32 %v2748, %v2748
    %v2899 = vmul.f32 %v2749, %v2749
    %v2900 = vmul.f32 %v2750, %v2750
    %v2901 = vmul.f32 %v2751, %v2751
    %v2902 = vmul.f32 %v2752, %v2752
    %v2903 = vmul.f32 %v2753, %v2753
    %v2904 = vmul.f32 %v2754, %v2754
    %v2905 = vmul.f32 %v2755, %v2755
    %v2906 = vmul.f32 %v2756, %v2756
    %v2907 = vmul.f32 %v2757, %v2757
    %v2908 = vmul.f32 %v2758, %v2758
    %v2909 = vmul.f32 %v2759, %v2759
    %v2910 = vmul.f32 %v2760, %v2760
    %v2911 = vmul.f32 %v2761, %v2761
    %v2912 = vmul.f32 %v2762, %v2762
    %v2913 = vmul.f32 %v2763, %v2763
    %v2914 = vmul.f32 %v2764, %v2764
    %v2915 = vmul.f32 %v2765, %v2765
    %v2916 = vmul.f32 %v2766, %v2766
    %v2917 = vmul.f32 %v2767, %v2767
    %v2918 = vmul.f32 %v2768, %v2768
    %v2919 = vmul.f32 %v2769, %v2769
    %v2920 = vmul.f32 %v2770, %v2770
    %v2921 = vmul.f32 %v2771, %v2771
    %v2922 = vmul.f32 %v2772, %v2772
    %v2923 = vmul.f32 %v2773, %v2773
    %v2924 = vmul.f32 %v2774, %v2774
    %v2925 = vmul.f32 %v2775, %v2775
    %v2926 = vmul.f32 %v2776, %v2776
    %v2927 = vmul.f32 %v2777, %v2777
    %v2928 = vsel %vm2232, %v2880, 0.0
    %v2929 = vsel %vm2232, %v2881, 0.0
    %v2930 = vadd.f32 %v2928, %v2929
    %v2931 = vsel %vm2232, %v2882, 0.0
    %v2932 = vadd.f32 %v2930, %v2931
    %v2933 = vsel %vm2232, %v2883, 0.0
    %v2934 = vadd.f32 %v2932, %v2933
    %v2935 = vsel %vm2232, %v2884, 0.0
    %v2936 = vadd.f32 %v2934, %v2935
    %v2937 = vsel %vm2232, %v2885, 0.0
    %v2938 = vadd.f32 %v2936, %v2937
    %v2939 = vsel %vm2232, %v2886, 0.0
    %v2940 = vadd.f32 %v2938, %v2939
    %v2941 = vsel %vm2232, %v2887, 0.0
    %v2942 = vadd.f32 %v2940, %v2941
    %v2943 = vsel %vm2232, %v2888, 0.0
    %v2944 = vadd.f32 %v2942, %v2943
    %v2945 = vsel %vm2232, %v2889, 0.0
    %v2946 = vadd.f32 %v2944, %v2945
    %v2947 = vsel %vm2232, %v2890, 0.0
    %v2948 = vadd.f32 %v2946, %v2947
    %v2949 = vsel %vm2232, %v2891, 0.0
    %v2950 = vadd.f32 %v2948, %v2949
    %v2951 = vsel %vm2232, %v2892, 0.0
    %v2952 = vadd.f32 %v2950, %v2951
    %v2953 = vsel %vm2232, %v2893, 0.0
    %v2954 = vadd.f32 %v2952, %v2953
    %v2955 = vsel %vm2232, %v2894, 0.0
    %v2956 = vadd.f32 %v2954, %v2955
    %v2957 = vsel %vm2232, %v2895, 0.0
    %v2958 = vadd.f32 %v2956, %v2957
    %v2959 = vsel %vm2232, %v2896, 0.0
    %v2960 = vadd.f32 %v2958, %v2959
    %v2961 = vsel %vm2232, %v2897, 0.0
    %v2962 = vadd.f32 %v2960, %v2961
    %v2963 = vsel %vm2232, %v2898, 0.0
    %v2964 = vadd.f32 %v2962, %v2963
    %v2965 = vsel %vm2232, %v2899, 0.0
    %v2966 = vadd.f32 %v2964, %v2965
    %v2967 = vsel %vm2232, %v2900, 0.0
    %v2968 = vadd.f32 %v2966, %v2967
    %v2969 = vsel %vm2232, %v2901, 0.0
    %v2970 = vadd.f32 %v2968, %v2969
    %v2971 = vsel %vm2232, %v2902, 0.0
    %v2972 = vadd.f32 %v2970, %v2971
    %v2973 = vsel %vm2232, %v2903, 0.0
    %v2974 = vadd.f32 %v2972, %v2973
    %v2975 = vsel %vm2232, %v2904, 0.0
    %v2976 = vadd.f32 %v2974, %v2975
    %v2977 = vsel %vm2232, %v2905, 0.0
    %v2978 = vadd.f32 %v2976, %v2977
    %v2979 = vsel %vm2232, %v2906, 0.0
    %v2980 = vadd.f32 %v2978, %v2979
    %v2981 = vsel %vm2232, %v2907, 0.0
    %v2982 = vadd.f32 %v2980, %v2981
    %v2983 = vsel %vm2232, %v2908, 0.0
    %v2984 = vadd.f32 %v2982, %v2983
    %v2985 = vsel %vm2232, %v2909, 0.0
    %v2986 = vadd.f32 %v2984, %v2985
    %v2987 = vsel %vm2232, %v2910, 0.0
    %v2988 = vadd.f32 %v2986, %v2987
    %v2989 = vsel %vm2232, %v2911, 0.0
    %v2990 = vadd.f32 %v2988, %v2989
    %v2991 = vsel %vm2232, %v2912, 0.0
    %v2992 = vadd.f32 %v2990, %v2991
    %v2993 = vsel %vm2232, %v2913, 0.0
    %v2994 = vadd.f32 %v2992, %v2993
    %v2995 = vsel %vm2232, %v2914, 0.0
    %v2996 = vadd.f32 %v2994, %v2995
    %v2997 = vsel %vm2232, %v2915, 0.0
    %v2998 = vadd.f32 %v2996, %v2997
    %v2999 = vsel %vm2232, %v2916, 0.0
    %v3000 = vadd.f32 %v2998, %v2999
    %v3001 = vsel %vm2232, %v2917, 0.0
    %v3002 = vadd.f32 %v3000, %v3001
    %v3003 = vsel %vm2232, %v2918, 0.0
    %v3004 = vadd.f32 %v3002, %v3003
    %v3005 = vsel %vm2232, %v2919, 0.0
    %v3006 = vadd.f32 %v3004, %v3005
    %v3007 = vsel %vm2232, %v2920, 0.0
    %v3008 = vadd.f32 %v3006, %v3007
    %v3009 = vsel %vm2232, %v2921, 0.0
    %v3010 = vadd.f32 %v3008, %v3009
    %v3011 = vsel %vm2232, %v2922, 0.0
    %v3012 = vadd.f32 %v3010, %v3011
    %v3013 = vsel %vm2232, %v2923, 0.0
    %v3014 = vadd.f32 %v3012, %v3013
    %v3015 = vsel %vm2232, %v2924, 0.0
    %v3016 = vadd.f32 %v3014, %v3015
    %v3017 = vsel %vm2232, %v2925, 0.0
    %v3018 = vadd.f32 %v3016, %v3017
    %v3019 = vsel %vm2232, %v2926, 0.0
    %v3020 = vadd.f32 %v3018, %v3019
    %v3021 = vsel %vm2232, %v2927, 0.0
    %v3022 = vadd.f32 %v3020, %v3021
    %v3023 = vrot.slane %v3022, 4
    %v3024 = vadd.f32 %v3022, %v3023
    %v3025 = vrot.slane %v3024, 2
    %v3026 = vadd.f32 %v3024, %v3025
    %v3027 = vrot.slane %v3026, 1
    %v3028 = vadd.f32 %v3026, %v3027
    %v3029 = vmul.f32 %v3028, 0.0033333334
    %v3030 = vmul.f32 %v2879, %v2879
    %v3031 = vsub.f32 %v3029, %v3030
    %v3032 = vmax.f32 %v3031, 0.0
    %v3033 = vadd.f32 %v3032, 1e-05
    %v3034 = vrsqrt.pop %v3033
    %v3035 = vmul.f32 %v1083, %v3034
    %v3036 = vmul.f32 %v2879, %v3035
    %v3038 = vrot.slane %v3036, 7
    %v3040 = vsub.f32 %v1083, %v3038
    %3041 = vmatprep.subr.mxu0 0.0
    %3042 = vmatpush1.msra.mxu0 %v2730
    %3043 = vmatprep.subr.mxu0 0.0
    %3044 = vmatpush1.msra.mxu0 %v2731
    %3045 = vmatprep.subr.mxu0 0.0
    %3046 = vmatpush1.msra.mxu0 %v2732
    %3047 = vmatprep.subr.mxu0 0.0
    %3048 = vmatpush1.msra.mxu0 %v2733
    %3049 = vmatprep.subr.mxu0 0.0
    %3050 = vmatpush1.msra.mxu0 %v2734
    %3051 = vmatprep.subr.mxu0 0.0
    %3052 = vmatpush1.msra.mxu0 %v2735
    %3053 = vmatprep.subr.mxu0 0.0
    %3054 = vmatpush1.msra.mxu0 %v2736
    %3055 = vmatprep.subr.mxu0 0.0
    %3056 = vmatpush1.msra.mxu0 %v2737
    %3057 = vmatprep.subr.mxu0 0.0
    %3058 = vmatpush1.msra.mxu0 %v2738
    %3059 = vmatprep.subr.mxu0 0.0
    %3060 = vmatpush1.msra.mxu0 %v2739
    %3061 = vmatprep.subr.mxu0 0.0
    %3062 = vmatpush1.msra.mxu0 %v2740
    %3063 = vmatprep.subr.mxu0 0.0
    %3064 = vmatpush1.msra.mxu0 %v2741
    %3065 = vmatprep.subr.mxu0 0.0
    %3066 = vmatpush1.msra.mxu0 %v2742
    %3067 = vmatprep.subr.mxu0 0.0
    %3068 = vmatpush1.msra.mxu0 %v2743
    %3069 = vmatprep.subr.mxu0 0.0
    %3070 = vmatpush1.msra.mxu0 %v2744
    %3071 = vmatprep.subr.mxu0 0.0
    %3072 = vmatpush1.msra.mxu0 %v2745
    %3073 = vmatprep.subr.mxu0 0.0
    %3074 = vmatpush1.msra.mxu0 %v2746
    %3075 = vmatprep.subr.mxu0 0.0
    %3076 = vmatpush1.msra.mxu0 %v2747
    %3077 = vmatprep.subr.mxu0 0.0
    %3078 = vmatpush1.msra.mxu0 %v2748
    %3079 = vmatprep.subr.mxu0 0.0
    %3080 = vmatpush1.msra.mxu0 %v2749
    %3081 = vmatprep.subr.mxu0 0.0
    %3082 = vmatpush1.msra.mxu0 %v2750
    %3083 = vmatprep.subr.mxu0 0.0
    %3084 = vmatpush1.msra.mxu0 %v2751
    %3085 = vmatprep.subr.mxu0 0.0
    %3086 = vmatpush1.msra.mxu0 %v2752
    %3087 = vmatprep.subr.mxu0 0.0
    %3088 = vmatpush1.msra.mxu0 %v2753
    %3089 = vmatprep.subr.mxu0 0.0
    %3090 = vmatpush1.msra.mxu0 %v2754
    %3091 = vmatprep.subr.mxu0 0.0
    %3092 = vmatpush1.msra.mxu0 %v2755
    %3093 = vmatprep.subr.mxu0 0.0
    %3094 = vmatpush1.msra.mxu0 %v2756
    %3095 = vmatprep.subr.mxu0 0.0
    %3096 = vmatpush1.msra.mxu0 %v2757
    %3097 = vmatprep.subr.mxu0 0.0
    %3098 = vmatpush1.msra.mxu0 %v2758
    %3099 = vmatprep.subr.mxu0 0.0
    %3100 = vmatpush1.msra.mxu0 %v2759
    %3101 = vmatprep.subr.mxu0 0.0
    %3102 = vmatpush1.msra.mxu0 %v2760
    %3103 = vmatprep.subr.mxu0 0.0
    %3104 = vmatpush1.msra.mxu0 %v2761
    %3105 = vmatprep.mubr.f32.mxu0 %v830
    %3106 = vmatmul.mubr.f32.gmra.mrb[0].mxu0 %v829
    %v3107 = vpop.f32.mrb[0].mxu0
    %v3108 = vadd.f32 0.0, %v3107
    %v3109 = vpop.f32.mrb[0].mxu0
    %3110 = vdwg.mxu0
    %3111 = vmatprep.subr.mxu0 0.0
    %3112 = vmatpush1.msra.mxu0 %v2762
    %3113 = vmatprep.subr.mxu0 0.0
    %3114 = vmatpush1.msra.mxu0 %v2763
    %3115 = vmatprep.subr.mxu0 0.0
    %3116 = vmatpush1.msra.mxu0 %v2764
    %3117 = vmatprep.subr.mxu0 0.0
    %3118 = vmatpush1.msra.mxu0 %v2765
    %3119 = vmatprep.subr.mxu0 0.0
    %3120 = vmatpush1.msra.mxu0 %v2766
    %3121 = vmatprep.subr.mxu0 0.0
    %3122 = vmatpush1.msra.mxu0 %v2767
    %3123 = vmatprep.subr.mxu0 0.0
    %3124 = vmatpush1.msra.mxu0 %v2768
    %3125 = vmatprep.subr.mxu0 0.0
    %3126 = vmatpush1.msra.mxu0 %v2769
    %3127 = vmatprep.subr.mxu0 0.0
    %3128 = vmatpush1.msra.mxu0 %v2770
    %3129 = vmatprep.subr.mxu0 0.0
    %3130 = vmatpush1.msra.mxu0 %v2771
    %3131 = vmatprep.subr.mxu0 0.0
    %3132 = vmatpush1.msra.mxu0 %v2772
    %3133 = vmatprep.subr.mxu0 0.0
    %3134 = vmatpush1.msra.mxu0 %v2773
    %3135 = vmatprep.subr.mxu0 0.0
    %3136 = vmatpush1.msra.mxu0 %v2774
    %3137 = vmatprep.subr.mxu0 0.0
    %3138 = vmatpush1.msra.mxu0 %v2775
    %3139 = vmatprep.subr.mxu0 0.0
    %3140 = vmatpush1.msra.mxu0 %v2776
    %3141 = vmatprep.subr.mxu0 0.0
    %3142 = vmatpush1.msra.mxu0 %v2777
    %3143 = vmatprep.subr.mxu0 0.0
    %3144 = vmatpush1.msra.mxu0 0.0
    %3145 = vmatprep.subr.mxu0 0.0
    %3146 = vmatpush1.msra.mxu0 0.0
    %3147 = vmatprep.subr.mxu0 0.0
    %3148 = vmatpush1.msra.mxu0 0.0
    %3149 = vmatprep.subr.mxu0 0.0
    %3150 = vmatpush1.msra.mxu0 0.0
    %3151 = vmatprep.subr.mxu0 0.0
    %3152 = vmatpush1.msra.mxu0 0.0
    %3153 = vmatprep.subr.mxu0 0.0
    %3154 = vmatpush1.msra.mxu0 0.0
    %3155 = vmatprep.subr.mxu0 0.0
    %3156 = vmatpush1.msra.mxu0 0.0
    %3157 = vmatprep.subr.mxu0 0.0
    %3158 = vmatpush1.msra.mxu0 0.0
    %3159 = vmatprep.subr.mxu0 0.0
    %3160 = vmatpush1.msra.mxu0 0.0
    %3161 = vmatprep.subr.mxu0 0.0
    %3162 = vmatpush1.msra.mxu0 0.0
    %3163 = vmatprep.subr.mxu0 0.0
    %3164 = vmatpush1.msra.mxu0 0.0
    %3165 = vmatprep.subr.mxu0 0.0
    %3166 = vmatpush1.msra.mxu0 0.0
    %3167 = vmatprep.subr.mxu0 0.0
    %3168 = vmatpush1.msra.mxu0 0.0
    %3169 = vmatprep.subr.mxu0 0.0
    %3170 = vmatpush1.msra.mxu0 0.0
    %3171 = vmatprep.subr.mxu0 0.0
    %3172 = vmatpush1.msra.mxu0 0.0
    %3173 = vmatprep.subr.mxu0 0.0
    %3174 = vmatpush1.msra.mxu0 0.0
    %3175 = vmatprep.mubr.f32.mxu0 0.0
    %3176 = vmatmul.mubr.f32.gmra.mrb[0].mxu0 %v831
    %v3177 = vpop.f32.mrb[0].mxu0
    %v3178 = vadd.f32 %v3108, %v3177
    %v3179 = vpop.f32.mrb[0].mxu0
    %3180 = vdwg.mxu0
    %v3181 = vlaneseq
    %v3182 = vshrl.u32 %v3181, 7
    %v3183 = vsub.s32 0, %v3182
    %v3184 = vrot.slane %v3035, %v3183
    %v3185 = vmul.f32 %v3178, %v3184
    %v3186 = vlaneseq
    %v3187 = vshrl.u32 %v3186, 7
    %v3188 = vsub.s32 1, %v3187
    %v3189 = vrot.slane %v3040, %v3188
    %v3190 = vmul.f32 %v835, %v3189
    %v3191 = vadd.f32 %v3185, %v3190
    %v3192 = vpack.c.bf16 %v2731, %v2730
    %v3193 = vpack.c.bf16 %v2733, %v2732
    %v3194 = vpack.c.bf16 %v2735, %v2734
    %v3195 = vpack.c.bf16 %v2737, %v2736
    %v3196 = vpack.c.bf16 %v2739, %v2738
    %v3197 = vpack.c.bf16 %v2741, %v2740
    %v3198 = vpack.c.bf16 %v2743, %v2742
    %v3199 = vpack.c.bf16 %v2745, %v2744
    %v3200 = vpack.c.bf16 %v2747, %v2746
    %v3201 = vpack.c.bf16 %v2749, %v2748
    %v3202 = vpack.c.bf16 %v2751, %v2750
    %v3203 = vpack.c.bf16 %v2753, %v2752
    %v3204 = vpack.c.bf16 %v2755, %v2754
    %v3205 = vpack.c.bf16 %v2757, %v2756
    %v3206 = vpack.c.bf16 %v2759, %v2758
    %v3207 = vpack.c.bf16 %v2761, %v2760
    %v3208 = vpack.c.bf16 %v2763, %v2762
    %v3209 = vpack.c.bf16 %v2765, %v2764
    %v3210 = vpack.c.bf16 %v2767, %v2766
    %v3211 = vpack.c.bf16 %v2769, %v2768
    %v3212 = vpack.c.bf16 %v2771, %v2770
    %v3213 = vpack.c.bf16 %v2773, %v2772
    %v3214 = vpack.c.bf16 %v2775, %v2774
    %v3215 = vpack.c.bf16 %v2777, %v2776
    %v3216 = vld [vmem:[#allocation13] sm:$0xff]
    %v3217 = vld [vmem:[#allocation13 + $0x8] sm:$0xff]
    %v3218 = vld [vmem:[#allocation13 + $0x10] sm:$0xff]
    %v3219 = vld [vmem:[#allocation13 + $0x18] sm:$0xff]
    %v3220 = vld [vmem:[#allocation14] sm:$0xff]
    %v3221 = vld [vmem:[#allocation14 + $0x8] sm:$0xff]
    %v3222 = vld [vmem:[#allocation14 + $0x10] sm:$0xff]
    %v3223 = vld [vmem:[#allocation14 + $0x18] sm:$0xff]
    %v3224 = vld [vmem:[#allocation16] sm:$0x3]
    %v3225 = vld [vmem:[#allocation17] sm:$0x3]
    %3226 = vmatprep.subr.bf16.mxu0 0
    %3227 = vmatpush1.bf16.msra.mxu0 %v3192
    %3228 = vmatprep.subr.bf16.mxu0 0
    %3229 = vmatpush1.bf16.msra.mxu0 %v3193
    %3230 = vmatprep.subr.bf16.mxu0 0
    %3231 = vmatpush1.bf16.msra.mxu0 %v3194
    %3232 = vmatprep.subr.bf16.mxu0 0
    %3233 = vmatpush1.bf16.msra.mxu0 %v3195
    %3234 = vmatprep.subr.bf16.mxu0 0
    %3235 = vmatpush1.bf16.msra.mxu0 %v3196
    %3236 = vmatprep.subr.bf16.mxu0 0
    %3237 = vmatpush1.bf16.msra.mxu0 %v3197
    %3238 = vmatprep.subr.bf16.mxu0 0
    %3239 = vmatpush1.bf16.msra.mxu0 %v3198
    %3240 = vmatprep.subr.bf16.mxu0 0
    %3241 = vmatpush1.bf16.msra.mxu0 %v3199
    %3242 = vmatprep.subr.bf16.mxu0 0
    %3243 = vmatpush1.bf16.msra.mxu0 %v3200
    %3244 = vmatprep.subr.bf16.mxu0 0
    %3245 = vmatpush1.bf16.msra.mxu0 %v3201
    %3246 = vmatprep.subr.bf16.mxu0 0
    %3247 = vmatpush1.bf16.msra.mxu0 %v3202
    %3248 = vmatprep.subr.bf16.mxu0 0
    %3249 = vmatpush1.bf16.msra.mxu0 %v3203
    %3250 = vmatprep.subr.bf16.mxu0 0
    %3251 = vmatpush1.bf16.msra.mxu0 %v3204
    %3252 = vmatprep.subr.bf16.mxu0 0
    %3253 = vmatpush1.bf16.msra.mxu0 %v3205
    %3254 = vmatprep.subr.bf16.mxu0 0
    %3255 = vmatpush1.bf16.msra.mxu0 %v3206
    %3256 = vmatprep.subr.bf16.mxu0 0
    %3257 = vmatpush1.bf16.msra.mxu0 %v3207
    %3258 = vmatprep.mubr.bf16.mxu0 %v566
    %3259 = vmatmul.mubr.bf16.gmra.mrb[0].mxu0 %v565
    %v3260 = vpop.f32.mrb[0].mxu0
    %v3261 = vadd.f32 0.0, %v3260
    %v3262 = vpop.f32.mrb[0].mxu0
    %v3263 = vpop.f32.mrb[0].mxu0
    %v3264 = vadd.f32 0.0, %v3263
    %v3265 = vpop.f32.mrb[0].mxu0
    %3266 = vmatprep.mubr.bf16.mxu0 %v569
    %3267 = vmatmul.mubr.bf16.gmra.mrb[0].mxu0 %v568
    %v3268 = vpop.f32.mrb[0].mxu0
    %v3269 = vadd.f32 0.0, %v3268
    %v3270 = vpop.f32.mrb[0].mxu0
    %v3271 = vpop.f32.mrb[0].mxu0
    %v3272 = vadd.f32 0.0, %v3271
    %v3273 = vpop.f32.mrb[0].mxu0
    %3274 = vmatprep.mubr.bf16.mxu0 %v572
    %3275 = vmatmul.mubr.bf16.gmra.mrb[0].mxu0 %v571
    %v3276 = vpop.f32.mrb[0].mxu0
    %v3277 = vadd.f32 0.0, %v3276
    %v3278 = vpop.f32.mrb[0].mxu0
    %v3279 = vpop.f32.mrb[0].mxu0
    %v3280 = vadd.f32 0.0, %v3279
    %v3281 = vpop.f32.mrb[0].mxu0
    %3282 = vmatprep.mubr.bf16.mxu0 %v575
    %3283 = vmatmul.mubr.bf16.gmra.mrb[0].mxu0 %v574
    %v3284 = vpop.f32.mrb[0].mxu0
    %v3285 = vadd.f32 0.0, %v3284
    %v3286 = vpop.f32.mrb[0].mxu0
    %v3287 = vpop.f32.mrb[0].mxu0
    %v3288 = vadd.f32 0.0, %v3287
    %v3289 = vpop.f32.mrb[0].mxu0
    %3290 = vmatprep.mubr.bf16.mxu0 %v578
    %3291 = vmatmul.mubr.bf16.gmra.mrb[0].mxu0 %v577
    %v3292 = vpop.f32.mrb[0].mxu0
    %v3293 = vadd.f32 0.0, %v3292
    %v3294 = vpop.f32.mrb[0].mxu0
    %v3295 = vpop.f32.mrb[0].mxu0
    %v3296 = vadd.f32 0.0, %v3295
    %v3297 = vpop.f32.mrb[0].mxu0
    %3298 = vmatprep.mubr.bf16.mxu0 %v581
    %3299 = vmatmul.mubr.bf16.gmra.mrb[0].mxu0 %v580
    %v3300 = vpop.f32.mrb[0].mxu0
    %v3301 = vadd.f32 0.0, %v3300
    %v3302 = vpop.f32.mrb[0].mxu0
    %v3303 = vpop.f32.mrb[0].mxu0
    %v3304 = vadd.f32 0.0, %v3303
    %v3305 = vpop.f32.mrb[0].mxu0
    %3306 = vmatprep.mubr.bf16.mxu0 %v584
    %3307 = vmatmul.mubr.bf16.gmra.mrb[0].mxu0 %v583
    %v3308 = vpop.f32.mrb[0].mxu0
    %v3309 = vadd.f32 0.0, %v3308
    %v3310 = vpop.f32.mrb[0].mxu0
    %v3311 = vpop.f32.mrb[0].mxu0
    %v3312 = vadd.f32 0.0, %v3311
    %v3313 = vpop.f32.mrb[0].mxu0
    %3314 = vmatprep.mubr.bf16.mxu0 %v587
    %3315 = vmatmul.mubr.bf16.gmra.mrb[0].mxu0 %v586
    %v3316 = vpop.f32.mrb[0].mxu0
    %v3317 = vadd.f32 0.0, %v3316
    %v3318 = vpop.f32.mrb[0].mxu0
    %v3319 = vpop.f32.mrb[0].mxu0
    %v3320 = vadd.f32 0.0, %v3319
    %v3321 = vpop.f32.mrb[0].mxu0
    %3322 = vmatprep.mubr.bf16.mxu0 %v590
    %3323 = vmatmul.mubr.bf16.gmra.mrb[0].mxu0 %v589
    %v3324 = vpop.f32.mrb[0].mxu0
    %v3325 = vadd.f32 0.0, %v3324
    %v3326 = vpop.f32.mrb[0].mxu0
    %v3327 = vpop.f32.mrb[0].mxu0
    %v3328 = vadd.f32 0.0, %v3327
    %v3329 = vpop.f32.mrb[0].mxu0
    %3330 = vmatprep.mubr.bf16.mxu0 %v593
    %3331 = vmatmul.mubr.bf16.gmra.mrb[0].mxu0 %v592
    %v3332 = vpop.f32.mrb[0].mxu0
    %v3333 = vadd.f32 0.0, %v3332
    %v3334 = vpop.f32.mrb[0].mxu0
    %v3335 = vpop.f32.mrb[0].mxu0
    %v3336 = vadd.f32 0.0, %v3335
    %v3337 = vpop.f32.mrb[0].mxu0
    %3338 = vmatprep.mubr.bf16.mxu0 %v596
    %3339 = vmatmul.mubr.bf16.gmra.mrb[0].mxu0 %v595
    %v3340 = vpop.f32.mrb[0].mxu0
    %v3341 = vadd.f32 0.0, %v3340
    %v3342 = vpop.f32.mrb[0].mxu0
    %v3343 = vpop.f32.mrb[0].mxu0
    %v3344 = vadd.f32 0.0, %v3343
    %v3345 = vpop.f32.mrb[0].mxu0
    %3346 = vmatprep.mubr.bf16.mxu0 %v599
    %3347 = vmatmul.mubr.bf16.gmra.mrb[0].mxu0 %v598
    %v3348 = vpop.f32.mrb[0].mxu0
    %v3349 = vadd.f32 0.0, %v3348
    %v3350 = vpop.f32.mrb[0].mxu0
    %v3351 = vpop.f32.mrb[0].mxu0
    %v3352 = vadd.f32 0.0, %v3351
    %v3353 = vpop.f32.mrb[0].mxu0
    %3354 = vmatprep.mubr.bf16.mxu0 %v602
    %3355 = vmatmul.mubr.bf16.gmra.mrb[0].mxu0 %v601
    %v3356 = vpop.f32.mrb[0].mxu0
    %v3357 = vadd.f32 0.0, %v3356
    %v3358 = vpop.f32.mrb[0].mxu0
    %v3359 = vpop.f32.mrb[0].mxu0
    %v3360 = vadd.f32 0.0, %v3359
    %v3361 = vpop.f32.mrb[0].mxu0
    %3362 = vmatprep.mubr.bf16.mxu0 %v605
    %3363 = vmatmul.mubr.bf16.gmra.mrb[0].mxu0 %v604
    %v3364 = vpop.f32.mrb[0].mxu0
    %v3365 = vadd.f32 0.0, %v3364
    %v3366 = vpop.f32.mrb[0].mxu0
    %v3367 = vpop.f32.mrb[0].mxu0
    %v3368 = vadd.f32 0.0, %v3367
    %v3369 = vpop.f32.mrb[0].mxu0
    %3370 = vmatprep.mubr.bf16.mxu0 %v608
    %3371 = vmatmul.mubr.bf16.gmra.mrb[0].mxu0 %v607
    %v3372 = vpop.f32.mrb[0].mxu0
    %v3373 = vadd.f32 0.0, %v3372
    %v3374 = vpop.f32.mrb[0].mxu0
    %v3375 = vpop.f32.mrb[0].mxu0
    %v3376 = vadd.f32 0.0, %v3375
    %v3377 = vpop.f32.mrb[0].mxu0
    %3378 = vmatprep.mubr.bf16.mxu0 %v611
    %3379 = vmatmul.mubr.bf16.gmra.mrb[0].mxu0 %v610
    %v3380 = vpop.f32.mrb[0].mxu0
    %v3381 = vadd.f32 0.0, %v3380
    %v3382 = vpop.f32.mrb[0].mxu0
    %v3383 = vpop.f32.mrb[0].mxu0
    %v3384 = vadd.f32 0.0, %v3383
    %v3385 = vpop.f32.mrb[0].mxu0
    %3386 = vmatprep.mubr.bf16.mxu0 %v614
    %3387 = vmatmul.mubr.bf16.gmra.mrb[0].mxu0 %v613
    %v3388 = vpop.f32.mrb[0].mxu0
    %v3389 = vadd.f32 0.0, %v3388
    %v3390 = vpop.f32.mrb[0].mxu0
    %v3391 = vpop.f32.mrb[0].mxu0
    %v3392 = vadd.f32 0.0, %v3391
    %v3393 = vpop.f32.mrb[0].mxu0
    %3394 = vmatprep.mubr.bf16.mxu0 %v617
    %3395 = vmatmul.mubr.bf16.gmra.mrb[0].mxu0 %v616
    %v3396 = vpop.f32.mrb[0].mxu0
    %v3397 = vadd.f32 0.0, %v3396
    %v3398 = vpop.f32.mrb[0].mxu0
    %v3399 = vpop.f32.mrb[0].mxu0
    %v3400 = vadd.f32 0.0, %v3399
    %v3401 = vpop.f32.mrb[0].mxu0
    %3402 = vmatprep.mubr.bf16.mxu0 %v620
    %3403 = vmatmul.mubr.bf16.gmra.mrb[0].mxu0 %v619
    %v3404 = vpop.f32.mrb[0].mxu0
    %v3405 = vadd.f32 0.0, %v3404
    %v3406 = vpop.f32.mrb[0].mxu0
    %v3407 = vpop.f32.mrb[0].mxu0
    %v3408 = vadd.f32 0.0, %v3407
    %v3409 = vpop.f32.mrb[0].mxu0
    %3410 = vmatprep.mubr.bf16.mxu0 %v623
    %3411 = vmatmul.mubr.bf16.gmra.mrb[0].mxu0 %v622
    %v3412 = vpop.f32.mrb[0].mxu0
    %v3413 = vadd.f32 0.0, %v3412
    %v3414 = vpop.f32.mrb[0].mxu0
    %v3415 = vpop.f32.mrb[0].mxu0
    %v3416 = vadd.f32 0.0, %v3415
    %v3417 = vpop.f32.mrb[0].mxu0
    %3418 = vmatprep.mubr.bf16.mxu0 %v626
    %3419 = vmatmul.mubr.bf16.gmra.mrb[0].mxu0 %v625
    %v3420 = vpop.f32.mrb[0].mxu0
    %v3421 = vadd.f32 0.0, %v3420
    %v3422 = vpop.f32.mrb[0].mxu0
    %v3423 = vpop.f32.mrb[0].mxu0
    %v3424 = vadd.f32 0.0, %v3423
    %v3425 = vpop.f32.mrb[0].mxu0
    %3426 = vmatprep.mubr.bf16.mxu0 %v629
    %3427 = vmatmul.mubr.bf16.gmra.mrb[0].mxu0 %v628
    %v3428 = vpop.f32.mrb[0].mxu0
    %v3429 = vadd.f32 0.0, %v3428
    %v3430 = vpop.f32.mrb[0].mxu0
    %v3431 = vpop.f32.mrb[0].mxu0
    %v3432 = vadd.f32 0.0, %v3431
    %v3433 = vpop.f32.mrb[0].mxu0
    %3434 = vmatprep.mubr.bf16.mxu0 %v632
    %3435 = vmatmul.mubr.bf16.gmra.mrb[0].mxu0 %v631
    %v3436 = vpop.f32.mrb[0].mxu0
    %v3437 = vadd.f32 0.0, %v3436
    %v3438 = vpop.f32.mrb[0].mxu0
    %v3439 = vpop.f32.mrb[0].mxu0
    %v3440 = vadd.f32 0.0, %v3439
    %v3441 = vpop.f32.mrb[0].mxu0
    %3442 = vmatprep.mubr.bf16.mxu0 %v635
    %3443 = vmatmul.mubr.bf16.gmra.mrb[0].mxu0 %v634
    %v3444 = vpop.f32.mrb[0].mxu0
    %v3445 = vadd.f32 0.0, %v3444
    %v3446 = vpop.f32.mrb[0].mxu0
    %v3447 = vpop.f32.mrb[0].mxu0
    %v3448 = vadd.f32 0.0, %v3447
    %v3449 = vpop.f32.mrb[0].mxu0
    %3450 = vdwg.mxu0
    %3451 = vmatprep.subr.bf16.mxu0 0
    %3452 = vmatpush1.bf16.msra.mxu0 %v3208
    %3453 = vmatprep.subr.bf16.mxu0 0
    %3454 = vmatpush1.bf16.msra.mxu0 %v3209
    %3455 = vmatprep.subr.bf16.mxu0 0
    %3456 = vmatpush1.bf16.msra.mxu0 %v3210
    %3457 = vmatprep.subr.bf16.mxu0 0
    %3458 = vmatpush1.bf16.msra.mxu0 %v3211
    %3459 = vmatprep.subr.bf16.mxu0 0
    %3460 = vmatpush1.bf16.msra.mxu0 %v3212
    %3461 = vmatprep.subr.bf16.mxu0 0
    %3462 = vmatpush1.bf16.msra.mxu0 %v3213
    %3463 = vmatprep.subr.bf16.mxu0 0
    %3464 = vmatpush1.bf16.msra.mxu0 %v3214
    %3465 = vmatprep.subr.bf16.mxu0 0
    %3466 = vmatpush1.bf16.msra.mxu0 %v3215
    %3467 = vmatprep.subr.bf16.mxu0 0
    %3468 = vmatpush1.bf16.msra.mxu0 0
    %3469 = vmatprep.subr.bf16.mxu0 0
    %3470 = vmatpush1.bf16.msra.mxu0 0
    %3471 = vmatprep.subr.bf16.mxu0 0
    %3472 = vmatpush1.bf16.msra.mxu0 0
    %3473 = vmatprep.subr.bf16.mxu0 0
    %3474 = vmatpush1.bf16.msra.mxu0 0
    %3475 = vmatprep.subr.bf16.mxu0 0
    %3476 = vmatpush1.bf16.msra.mxu0 0
    %3477 = vmatprep.subr.bf16.mxu0 0
    %3478 = vmatpush1.bf16.msra.mxu0 0
    %3479 = vmatprep.subr.bf16.mxu0 0
    %3480 = vmatpush1.bf16.msra.mxu0 0
    %3481 = vmatprep.subr.bf16.mxu0 0
    %3482 = vmatpush1.bf16.msra.mxu0 0
    %3483 = vmatprep.mubr.bf16.mxu0 0
    %3484 = vmatmul.mubr.bf16.gmra.mrb[0].mxu0 %v567
    %v3485 = vpop.f32.mrb[0].mxu0
    %v3486 = vadd.f32 %v3261, %v3485
    %v3487 = vpop.f32.mrb[0].mxu0
    %v3488 = vpop.f32.mrb[0].mxu0
    %v3489 = vadd.f32 %v3264, %v3488
    %v3490 = vpop.f32.mrb[0].mxu0
    %3491 = vmatprep.mubr.bf16.mxu0 0
    %3492 = vmatmul.mubr.bf16.gmra.mrb[0].mxu0 %v570
    %v3493 = vpop.f32.mrb[0].mxu0
    %v3494 = vadd.f32 %v3269, %v3493
    %v3495 = vpop.f32.mrb[0].mxu0
    %v3496 = vpop.f32.mrb[0].mxu0
    %v3497 = vadd.f32 %v3272, %v3496
    %v3498 = vpop.f32.mrb[0].mxu0
    %3499 = vmatprep.mubr.bf16.mxu0 0
    %3500 = vmatmul.mubr.bf16.gmra.mrb[0].mxu0 %v573
    %v3501 = vpop.f32.mrb[0].mxu0
    %v3502 = vadd.f32 %v3277, %v3501
    %v3503 = vpop.f32.mrb[0].mxu0
    %v3504 = vpop.f32.mrb[0].mxu0
    %v3505 = vadd.f32 %v3280, %v3504
    %v3506 = vpop.f32.mrb[0].mxu0
    %3507 = vmatprep.mubr.bf16.mxu0 0
    %3508 = vmatmul.mubr.bf16.gmra.mrb[0].mxu0 %v576
    %v3509 = vpop.f32.mrb[0].mxu0
    %v3510 = vadd.f32 %v3285, %v3509
    %v3511 = vpop.f32.mrb[0].mxu0
    %v3512 = vpop.f32.mrb[0].mxu0
    %v3513 = vadd.f32 %v3288, %v3512
    %v3514 = vpop.f32.mrb[0].mxu0
    %3515 = vmatprep.mubr.bf16.mxu0 0
    %3516 = vmatmul.mubr.bf16.gmra.mrb[0].mxu0 %v579
    %v3517 = vpop.f32.mrb[0].mxu0
    %v3518 = vadd.f32 %v3293, %v3517
    %v3519 = vpop.f32.mrb[0].mxu0
    %v3520 = vpop.f32.mrb[0].mxu0
    %v3521 = vadd.f32 %v3296, %v3520
    %v3522 = vpop.f32.mrb[0].mxu0
    %3523 = vmatprep.mubr.bf16.mxu0 0
    %3524 = vmatmul.mubr.bf16.gmra.mrb[0].mxu0 %v582
    %v3525 = vpop.f32.mrb[0].mxu0
    %v3526 = vadd.f32 %v3301, %v3525
    %v3527 = vpop.f32.mrb[0].mxu0
    %v3528 = vpop.f32.mrb[0].mxu0
    %v3529 = vadd.f32 %v3304, %v3528
    %v3530 = vpop.f32.mrb[0].mxu0
    %3531 = vmatprep.mubr.bf16.mxu0 0
    %3532 = vmatmul.mubr.bf16.gmra.mrb[0].mxu0 %v585
    %v3533 = vpop.f32.mrb[0].mxu0
    %v3534 = vadd.f32 %v3309, %v3533
    %v3535 = vpop.f32.mrb[0].mxu0
    %v3536 = vpop.f32.mrb[0].mxu0
    %v3537 = vadd.f32 %v3312, %v3536
    %v3538 = vpop.f32.mrb[0].mxu0
    %3539 = vmatprep.mubr.bf16.mxu0 0
    %3540 = vmatmul.mubr.bf16.gmra.mrb[0].mxu0 %v588
    %v3541 = vpop.f32.mrb[0].mxu0
    %v3542 = vadd.f32 %v3317, %v3541
    %v3543 = vpop.f32.mrb[0].mxu0
    %v3544 = vpop.f32.mrb[0].mxu0
    %v3545 = vadd.f32 %v3320, %v3544
    %v3546 = vpop.f32.mrb[0].mxu0
    %3547 = vmatprep.mubr.bf16.mxu0 0
    %3548 = vmatmul.mubr.bf16.gmra.mrb[0].mxu0 %v591
    %v3549 = vpop.f32.mrb[0].mxu0
    %v3550 = vadd.f32 %v3325, %v3549
    %v3551 = vpop.f32.mrb[0].mxu0
    %v3552 = vpop.f32.mrb[0].mxu0
    %v3553 = vadd.f32 %v3328, %v3552
    %v3554 = vpop.f32.mrb[0].mxu0
    %3555 = vmatprep.mubr.bf16.mxu0 0
    %3556 = vmatmul.mubr.bf16.gmra.mrb[0].mxu0 %v594
    %v3557 = vpop.f32.mrb[0].mxu0
    %v3558 = vadd.f32 %v3333, %v3557
    %v3559 = vpop.f32.mrb[0].mxu0
    %v3560 = vpop.f32.mrb[0].mxu0
    %v3561 = vadd.f32 %v3336, %v3560
    %v3562 = vpop.f32.mrb[0].mxu0
    %3563 = vmatprep.mubr.bf16.mxu0 0
    %3564 = vmatmul.mubr.bf16.gmra.mrb[0].mxu0 %v597
    %v3565 = vpop.f32.mrb[0].mxu0
    %v3566 = vadd.f32 %v3341, %v3565
    %v3567 = vpop.f32.mrb[0].mxu0
    %v3568 = vpop.f32.mrb[0].mxu0
    %v3569 = vadd.f32 %v3344, %v3568
    %v3570 = vpop.f32.mrb[0].mxu0
    %3571 = vmatprep.mubr.bf16.mxu0 0
    %3572 = vmatmul.mubr.bf16.gmra.mrb[0].mxu0 %v600
    %v3573 = vpop.f32.mrb[0].mxu0
    %v3574 = vadd.f32 %v3349, %v3573
    %v3575 = vpop.f32.mrb[0].mxu0
    %v3576 = vpop.f32.mrb[0].mxu0
    %v3577 = vadd.f32 %v3352, %v3576
    %v3578 = vpop.f32.mrb[0].mxu0
    %3579 = vmatprep.mubr.bf16.mxu0 0
    %3580 = vmatmul.mubr.bf16.gmra.mrb[0].mxu0 %v603
    %v3581 = vpop.f32.mrb[0].mxu0
    %v3582 = vadd.f32 %v3357, %v3581
    %v3583 = vpop.f32.mrb[0].mxu0
    %v3584 = vpop.f32.mrb[0].mxu0
    %v3585 = vadd.f32 %v3360, %v3584
    %v3586 = vpop.f32.mrb[0].mxu0
    %3587 = vmatprep.mubr.bf16.mxu0 0
    %3588 = vmatmul.mubr.bf16.gmra.mrb[0].mxu0 %v606
    %v3589 = vpop.f32.mrb[0].mxu0
    %v3590 = vadd.f32 %v3365, %v3589
    %v3591 = vpop.f32.mrb[0].mxu0
    %v3592 = vpop.f32.mrb[0].mxu0
    %v3593 = vadd.f32 %v3368, %v3592
    %v3594 = vpop.f32.mrb[0].mxu0
    %3595 = vmatprep.mubr.bf16.mxu0 0
    %3596 = vmatmul.mubr.bf16.gmra.mrb[0].mxu0 %v609
    %v3597 = vpop.f32.mrb[0].mxu0
    %v3598 = vadd.f32 %v3373, %v3597
    %v3599 = vpop.f32.mrb[0].mxu0
    %v3600 = vpop.f32.mrb[0].mxu0
    %v3601 = vadd.f32 %v3376, %v3600
    %v3602 = vpop.f32.mrb[0].mxu0
    %3603 = vmatprep.mubr.bf16.mxu0 0
    %3604 = vmatmul.mubr.bf16.gmra.mrb[0].mxu0 %v612
    %v3605 = vpop.f32.mrb[0].mxu0
    %v3606 = vadd.f32 %v3381, %v3605
    %v3607 = vpop.f32.mrb[0].mxu0
    %v3608 = vpop.f32.mrb[0].mxu0
    %v3609 = vadd.f32 %v3384, %v3608
    %v3610 = vpop.f32.mrb[0].mxu0
    %3611 = vmatprep.mubr.bf16.mxu0 0
    %3612 = vmatmul.mubr.bf16.gmra.mrb[0].mxu0 %v615
    %v3613 = vpop.f32.mrb[0].mxu0
    %v3614 = vadd.f32 %v3389, %v3613
    %v3615 = vpop.f32.mrb[0].mxu0
    %v3616 = vpop.f32.mrb[0].mxu0
    %v3617 = vadd.f32 %v3392, %v3616
    %v3618 = vpop.f32.mrb[0].mxu0
    %3619 = vmatprep.mubr.bf16.mxu0 0
    %3620 = vmatmul.mubr.bf16.gmra.mrb[0].mxu0 %v618
    %v3621 = vpop.f32.mrb[0].mxu0
    %v3622 = vadd.f32 %v3397, %v3621
    %v3623 = vpop.f32.mrb[0].mxu0
    %v3624 = vpop.f32.mrb[0].mxu0
    %v3625 = vadd.f32 %v3400, %v3624
    %v3626 = vpop.f32.mrb[0].mxu0
    %3627 = vmatprep.mubr.bf16.mxu0 0
    %3628 = vmatmul.mubr.bf16.gmra.mrb[0].mxu0 %v621
    %v3629 = vpop.f32.mrb[0].mxu0
    %v3630 = vadd.f32 %v3405, %v3629
    %v3631 = vpop.f32.mrb[0].mxu0
    %v3632 = vpop.f32.mrb[0].mxu0
    %v3633 = vadd.f32 %v3408, %v3632
    %v3634 = vpop.f32.mrb[0].mxu0
    %3635 = vmatprep.mubr.bf16.mxu0 0
    %3636 = vmatmul.mubr.bf16.gmra.mrb[0].mxu0 %v624
    %v3637 = vpop.f32.mrb[0].mxu0
    %v3638 = vadd.f32 %v3413, %v3637
    %v3639 = vpop.f32.mrb[0].mxu0
    %v3640 = vpop.f32.mrb[0].mxu0
    %v3641 = vadd.f32 %v3416, %v3640
    %v3642 = vpop.f32.mrb[0].mxu0
    %3643 = vmatprep.mubr.bf16.mxu0 0
    %3644 = vmatmul.mubr.bf16.gmra.mrb[0].mxu0 %v627
    %v3645 = vpop.f32.mrb[0].mxu0
    %v3646 = vadd.f32 %v3421, %v3645
    %v3647 = vpop.f32.mrb[0].mxu0
    %v3648 = vpop.f32.mrb[0].mxu0
    %v3649 = vadd.f32 %v3424, %v3648
    %v3650 = vpop.f32.mrb[0].mxu0
    %3651 = vmatprep.mubr.bf16.mxu0 0
    %3652 = vmatmul.mubr.bf16.gmra.mrb[0].mxu0 %v630
    %v3653 = vpop.f32.mrb[0].mxu0
    %v3654 = vadd.f32 %v3429, %v3653
    %v3655 = vpop.f32.mrb[0].mxu0
    %v3656 = vpop.f32.mrb[0].mxu0
    %v3657 = vadd.f32 %v3432, %v3656
    %v3658 = vpop.f32.mrb[0].mxu0
    %3659 = vmatprep.mubr.bf16.mxu0 0
    %3660 = vmatmul.mubr.bf16.gmra.mrb[0].mxu0 %v633
    %v3661 = vpop.f32.mrb[0].mxu0
    %v3662 = vadd.f32 %v3437, %v3661
    %v3663 = vpop.f32.mrb[0].mxu0
    %v3664 = vpop.f32.mrb[0].mxu0
    %v3665 = vadd.f32 %v3440, %v3664
    %v3666 = vpop.f32.mrb[0].mxu0
    %3667 = vmatprep.mubr.bf16.mxu0 0
    %3668 = vmatmul.mubr.bf16.gmra.mrb[0].mxu0 %v636
    %v3669 = vpop.f32.mrb[0].mxu0
    %v3670 = vadd.f32 %v3445, %v3669
    %v3671 = vpop.f32.mrb[0].mxu0
    %v3672 = vpop.f32.mrb[0].mxu0
    %v3673 = vadd.f32 %v3448, %v3672
    %v3674 = vpop.f32.mrb[0].mxu0
    %3675 = vdwg.mxu0
    %v3676 = vmul.f32 %v3486, %v3184
    %v3677 = vmul.f32 %v3489, %v3184
    %v3678 = vmul.f32 %v3494, %v3184
    %v3679 = vmul.f32 %v3497, %v3184
    %v3680 = vmul.f32 %v3502, %v3184
    %v3681 = vmul.f32 %v3505, %v3184
    %v3682 = vmul.f32 %v3510, %v3184
    %v3683 = vmul.f32 %v3513, %v3184
    %v3684 = vmul.f32 %v3518, %v3184
    %v3685 = vmul.f32 %v3521, %v3184
    %v3686 = vmul.f32 %v3526, %v3184
    %v3687 = vmul.f32 %v3529, %v3184
    %v3688 = vmul.f32 %v3534, %v3184
    %v3689 = vmul.f32 %v3537, %v3184
    %v3690 = vmul.f32 %v3542, %v3184
    %v3691 = vmul.f32 %v3545, %v3184
    %v3692 = vmul.f32 %v3550, %v3184
    %v3693 = vmul.f32 %v3553, %v3184
    %v3694 = vmul.f32 %v3558, %v3184
    %v3695 = vmul.f32 %v3561, %v3184
    %v3696 = vmul.f32 %v3566, %v3184
    %v3697 = vmul.f32 %v3569, %v3184
    %v3698 = vmul.f32 %v3574, %v3184
    %v3699 = vmul.f32 %v3577, %v3184
    %v3700 = vmul.f32 %v3582, %v3184
    %v3701 = vmul.f32 %v3585, %v3184
    %v3702 = vmul.f32 %v3590, %v3184
    %v3703 = vmul.f32 %v3593, %v3184
    %v3704 = vmul.f32 %v3598, %v3184
    %v3705 = vmul.f32 %v3601, %v3184
    %v3706 = vmul.f32 %v3606, %v3184
    %v3707 = vmul.f32 %v3609, %v3184
    %v3708 = vmul.f32 %v3614, %v3184
    %v3709 = vmul.f32 %v3617, %v3184
    %v3710 = vmul.f32 %v3622, %v3184
    %v3711 = vmul.f32 %v3625, %v3184
    %v3712 = vmul.f32 %v3630, %v3184
    %v3713 = vmul.f32 %v3633, %v3184
    %v3714 = vmul.f32 %v3638, %v3184
    %v3715 = vmul.f32 %v3641, %v3184
    %v3716 = vmul.f32 %v3646, %v3184
    %v3717 = vmul.f32 %v3649, %v3184
    %v3718 = vmul.f32 %v3654, %v3184
    %v3719 = vmul.f32 %v3657, %v3184
    %v3720 = vmul.f32 %v3662, %v3184
    %v3721 = vmul.f32 %v3665, %v3184
    %v3722 = vmul.f32 %v3670, %v3184
    %v3723 = vmul.f32 %v3673, %v3184
    %v3724 = vmul.f32 %v640, %v3189
    %v3725 = vmul.f32 %v644, %v3189
    %v3726 = vmul.f32 %v648, %v3189
    %v3727 = vmul.f32 %v652, %v3189
    %v3728 = vmul.f32 %v656, %v3189
    %v3729 = vmul.f32 %v660, %v3189
    %v3730 = vmul.f32 %v664, %v3189
    %v3731 = vmul.f32 %v668, %v3189
    %v3732 = vmul.f32 %v672, %v3189
    %v3733 = vmul.f32 %v676, %v3189
    %v3734 = vmul.f32 %v680, %v3189
    %v3735 = vmul.f32 %v684, %v3189
    %v3736 = vmul.f32 %v688, %v3189
    %v3737 = vmul.f32 %v692, %v3189
    %v3738 = vmul.f32 %v696, %v3189
    %v3739 = vmul.f32 %v700, %v3189
    %v3740 = vmul.f32 %v704, %v3189
    %v3741 = vmul.f32 %v708, %v3189
    %v3742 = vmul.f32 %v712, %v3189
    %v3743 = vmul.f32 %v716, %v3189
    %v3744 = vmul.f32 %v720, %v3189
    %v3745 = vmul.f32 %v724, %v3189
    %v3746 = vmul.f32 %v728, %v3189
    %v3747 = vmul.f32 %v732, %v3189
    %v3748 = vmul.f32 %v736, %v3189
    %v3749 = vmul.f32 %v740, %v3189
    %v3750 = vmul.f32 %v744, %v3189
    %v3751 = vmul.f32 %v748, %v3189
    %v3752 = vmul.f32 %v752, %v3189
    %v3753 = vmul.f32 %v756, %v3189
    %v3754 = vmul.f32 %v760, %v3189
    %v3755 = vmul.f32 %v764, %v3189
    %v3756 = vmul.f32 %v768, %v3189
    %v3757 = vmul.f32 %v772, %v3189
    %v3758 = vmul.f32 %v776, %v3189
    %v3759 = vmul.f32 %v780, %v3189
    %v3760 = vmul.f32 %v784, %v3189
    %v3761 = vmul.f32 %v788, %v3189
    %v3762 = vmul.f32 %v792, %v3189
    %v3763 = vmul.f32 %v796, %v3189
    %v3764 = vmul.f32 %v800, %v3189
    %v3765 = vmul.f32 %v804, %v3189
    %v3766 = vmul.f32 %v808, %v3189
    %v3767 = vmul.f32 %v812, %v3189
    %v3768 = vmul.f32 %v816, %v3189
    %v3769 = vmul.f32 %v820, %v3189
    %v3770 = vmul.f32 %v824, %v3189
    %v3771 = vmul.f32 %v828, %v3189
    %v3772 = vadd.f32 %v3676, %v3724
    %v3773 = vadd.f32 %v3677, %v3725
    %v3774 = vadd.f32 %v3678, %v3726
    %v3775 = vadd.f32 %v3679, %v3727
    %v3776 = vadd.f32 %v3680, %v3728
    %v3777 = vadd.f32 %v3681, %v3729
    %v3778 = vadd.f32 %v3682, %v3730
    %v3779 = vadd.f32 %v3683, %v3731
    %v3780 = vadd.f32 %v3684, %v3732
    %v3781 = vadd.f32 %v3685, %v3733
    %v3782 = vadd.f32 %v3686, %v3734
    %v3783 = vadd.f32 %v3687, %v3735
    %v3784 = vadd.f32 %v3688, %v3736
    %v3785 = vadd.f32 %v3689, %v3737
    %v3786 = vadd.f32 %v3690, %v3738
    %v3787 = vadd.f32 %v3691, %v3739
    %v3788 = vadd.f32 %v3692, %v3740
    %v3789 = vadd.f32 %v3693, %v3741
    %v3790 = vadd.f32 %v3694, %v3742
    %v3791 = vadd.f32 %v3695, %v3743
    %v3792 = vadd.f32 %v3696, %v3744
    %v3793 = vadd.f32 %v3697, %v3745
    %v3794 = vadd.f32 %v3698, %v3746
    %v3795 = vadd.f32 %v3699, %v3747
    %v3796 = vadd.f32 %v3700, %v3748
    %v3797 = vadd.f32 %v3701, %v3749
    %v3798 = vadd.f32 %v3702, %v3750
    %v3799 = vadd.f32 %v3703, %v3751
    %v3800 = vadd.f32 %v3704, %v3752
    %v3801 = vadd.f32 %v3705, %v3753
    %v3802 = vadd.f32 %v3706, %v3754
    %v3803 = vadd.f32 %v3707, %v3755
    %v3804 = vadd.f32 %v3708, %v3756
    %v3805 = vadd.f32 %v3709, %v3757
    %v3806 = vadd.f32 %v3710, %v3758
    %v3807 = vadd.f32 %v3711, %v3759
    %v3808 = vadd.f32 %v3712, %v3760
    %v3809 = vadd.f32 %v3713, %v3761
    %v3810 = vadd.f32 %v3714, %v3762
    %v3811 = vadd.f32 %v3715, %v3763
    %v3812 = vadd.f32 %v3716, %v3764
    %v3813 = vadd.f32 %v3717, %v3765
    %v3814 = vadd.f32 %v3718, %v3766
    %v3815 = vadd.f32 %v3719, %v3767
    %v3816 = vadd.f32 %v3720, %v3768
    %v3817 = vadd.f32 %v3721, %v3769
    %v3818 = vadd.f32 %v3722, %v3770
    %v3819 = vadd.f32 %v3723, %v3771
    %v3820 = vlaneseq
    %v3821 = vshrl.u32 %v3820, 7
    %v3822 = vsub.s32 0, %v3821
    %v3823 = vrot.slane %v3224, %v3822
    %v3825 = vsel %vm2232, %v3772, 0
    %v3828 = vsel %vm2232, %v3773, 0
    %v3831 = vsel %vm2232, %v3774, 0
    %v3834 = vsel %vm2232, %v3775, 0
    %v3837 = vsel %vm2232, %v3776, 0
    %v3840 = vsel %vm2232, %v3777, 0
    %v3843 = vsel %vm2232, %v3778, 0
    %v3846 = vsel %vm2232, %v3779, 0
    %v3849 = vsel %vm2232, %v3780, 0
    %v3852 = vsel %vm2232, %v3781, 0
    %v3855 = vsel %vm2232, %v3782, 0
    %v3858 = vsel %vm2232, %v3783, 0
    %v3861 = vsel %vm2232, %v3784, 0
    %v3864 = vsel %vm2232, %v3785, 0
    %v3867 = vsel %vm2232, %v3786, 0
    %v3870 = vsel %vm2232, %v3787, 0
    %v3873 = vsel %vm2232, %v3788, 0
    %v3876 = vsel %vm2232, %v3789, 0
    %v3879 = vsel %vm2232, %v3790, 0
    %v3882 = vsel %vm2232, %v3791, 0
    %v3885 = vsel %vm2232, %v3792, 0
    %v3888 = vsel %vm2232, %v3793, 0
    %v3891 = vsel %vm2232, %v3794, 0
    %v3894 = vsel %vm2232, %v3795, 0
    %v3897 = vsel %vm2232, %v3796, 0
    %v3900 = vsel %vm2232, %v3797, 0
    %v3903 = vsel %vm2232, %v3798, 0
    %v3906 = vsel %vm2232, %v3799, 0
    %v3909 = vsel %vm2232, %v3800, 0
    %v3912 = vsel %vm2232, %v3801, 0
    %v3915 = vsel %vm2232, %v3802, 0
    %v3918 = vsel %vm2232, %v3803, 0
    %v3921 = vsel %vm2232, %v3804, 0
    %v3924 = vsel %vm2232, %v3805, 0
    %v3927 = vsel %vm2232, %v3806, 0
    %v3930 = vsel %vm2232, %v3807, 0
    %v3933 = vsel %vm2232, %v3808, 0
    %v3936 = vsel %vm2232, %v3809, 0
    %v3939 = vsel %vm2232, %v3810, 0
    %v3942 = vsel %vm2232, %v3811, 0
    %v3945 = vsel %vm2232, %v3812, 0
    %v3948 = vsel %vm2232, %v3813, 0
    %v3951 = vsel %vm2232, %v3814, 0
    %v3954 = vsel %vm2232, %v3815, 0
    %v3957 = vsel %vm2232, %v3816, 0
    %v3960 = vsel %vm2232, %v3817, 0
    %v3963 = vsel %vm2232, %v3818, 0
    %v3966 = vsel %vm2232, %v3819, 0
    %3968 = vmatprep.subr.mxu0 0.0
    %3969 = vmatpush1.msra.mxu0 %v3216
    %3970 = vmatprep.subr.mxu0 0.0
    %3971 = vmatpush1.msra.mxu0 %v3217
    %3972 = vmatprep.subr.mxu0 0.0
    %3973 = vmatpush1.msra.mxu0 %v3218
    %3974 = vmatprep.subr.mxu0 0.0
    %3975 = vmatpush1.msra.mxu0 %v3219
    %3976 = vmatprep.subr.mxu0 0.0
    %3977 = vmatpush1.msra.mxu0 0.0
    %3978 = vmatprep.subr.mxu0 0.0
    %3979 = vmatpush1.msra.mxu0 0.0
    %3980 = vmatprep.subr.mxu0 0.0
    %3981 = vmatpush1.msra.mxu0 0.0
    %3982 = vmatprep.subr.mxu0 0.0
    %3983 = vmatpush1.msra.mxu0 0.0
    %3984 = vmatprep.subr.mxu0 0.0
    %3985 = vmatpush1.msra.mxu0 0.0
    %3986 = vmatprep.subr.mxu0 0.0
    %3987 = vmatpush1.msra.mxu0 0.0
    %3988 = vmatprep.subr.mxu0 0.0
    %3989 = vmatpush1.msra.mxu0 0.0
    %3990 = vmatprep.subr.mxu0 0.0
    %3991 = vmatpush1.msra.mxu0 0.0
    %3992 = vmatprep.subr.mxu0 0.0
    %3993 = vmatpush1.msra.mxu0 0.0
    %3994 = vmatprep.subr.mxu0 0.0
    %3995 = vmatpush1.msra.mxu0 0.0
    %3996 = vmatprep.subr.mxu0 0.0
    %3997 = vmatpush1.msra.mxu0 0.0
    %3998 = vmatprep.subr.mxu0 0.0
    %3999 = vmatpush1.msra.mxu0 0.0
    %4000 = vmatprep.subr.mxu0 0.0
    %4001 = vmatpush1.msra.mxu0 0.0
    %4002 = vmatprep.subr.mxu0 0.0
    %4003 = vmatpush1.msra.mxu0 0.0
    %4004 = vmatprep.subr.mxu0 0.0
    %4005 = vmatpush1.msra.mxu0 0.0
    %4006 = vmatprep.subr.mxu0 0.0
    %4007 = vmatpush1.msra.mxu0 0.0
    %4008 = vmatprep.subr.mxu0 0.0
    %4009 = vmatpush1.msra.mxu0 0.0
    %4010 = vmatprep.subr.mxu0 0.0
    %4011 = vmatpush1.msra.mxu0 0.0
    %4012 = vmatprep.subr.mxu0 0.0
    %4013 = vmatpush1.msra.mxu0 0.0
    %4014 = vmatprep.subr.mxu0 0.0
    %4015 = vmatpush1.msra.mxu0 0.0
    %4016 = vmatprep.subr.mxu0 0.0
    %4017 = vmatpush1.msra.mxu0 0.0
    %4018 = vmatprep.subr.mxu0 0.0
    %4019 = vmatpush1.msra.mxu0 0.0
    %4020 = vmatprep.subr.mxu0 0.0
    %4021 = vmatpush1.msra.mxu0 0.0
    %4022 = vmatprep.subr.mxu0 0.0
    %4023 = vmatpush1.msra.mxu0 0.0
    %4024 = vmatprep.subr.mxu0 0.0
    %4025 = vmatpush1.msra.mxu0 0.0
    %4026 = vmatprep.subr.mxu0 0.0
    %4027 = vmatpush1.msra.mxu0 0.0
    %4028 = vmatprep.subr.mxu0 0.0
    %4029 = vmatpush1.msra.mxu0 0.0
    %4030 = vmatprep.subr.mxu0 0.0
    %4031 = vmatpush1.msra.mxu0 0.0
    %4032 = vmatprep.mubr.f32.mxu0 0.0
    %4033 = vmatmul.mubr.f32.gmra.mrb[0].mxu0 %v3825
    %v4034 = vpop.f32.mrb[0].mxu0
    %v4035 = vadd.f32 %v3823, %v4034
    %v4036 = vpop.f32.mrb[0].mxu0
    %4037 = vmatprep.mubr.f32.mxu0 0.0
    %4038 = vmatmul.mubr.f32.gmra.mrb[0].mxu0 %v3828
    %v4039 = vpop.f32.mrb[0].mxu0
    %v4040 = vadd.f32 %v3823, %v4039
    %v4041 = vpop.f32.mrb[0].mxu0
    %4042 = vmatprep.mubr.f32.mxu0 0.0
    %4043 = vmatmul.mubr.f32.gmra.mrb[0].mxu0 %v3831
    %v4044 = vpop.f32.mrb[0].mxu0
    %v4045 = vadd.f32 %v3823, %v4044
    %v4046 = vpop.f32.mrb[0].mxu0
    %4047 = vmatprep.mubr.f32.mxu0 0.0
    %4048 = vmatmul.mubr.f32.gmra.mrb[0].mxu0 %v3834
    %v4049 = vpop.f32.mrb[0].mxu0
    %v4050 = vadd.f32 %v3823, %v4049
    %v4051 = vpop.f32.mrb[0].mxu0
    %4052 = vmatprep.mubr.f32.mxu0 0.0
    %4053 = vmatmul.mubr.f32.gmra.mrb[0].mxu0 %v3837
    %v4054 = vpop.f32.mrb[0].mxu0
    %v4055 = vadd.f32 %v3823, %v4054
    %v4056 = vpop.f32.mrb[0].mxu0
    %4057 = vmatprep.mubr.f32.mxu0 0.0
    %4058 = vmatmul.mubr.f32.gmra.mrb[0].mxu0 %v3840
    %v4059 = vpop.f32.mrb[0].mxu0
    %v4060 = vadd.f32 %v3823, %v4059
    %v4061 = vpop.f32.mrb[0].mxu0
    %4062 = vmatprep.mubr.f32.mxu0 0.0
    %4063 = vmatmul.mubr.f32.gmra.mrb[0].mxu0 %v3843
    %v4064 = vpop.f32.mrb[0].mxu0
    %v4065 = vadd.f32 %v3823, %v4064
    %v4066 = vpop.f32.mrb[0].mxu0
    %4067 = vmatprep.mubr.f32.mxu0 0.0
    %4068 = vmatmul.mubr.f32.gmra.mrb[0].mxu0 %v3846
    %v4069 = vpop.f32.mrb[0].mxu0
    %v4070 = vadd.f32 %v3823, %v4069
    %v4071 = vpop.f32.mrb[0].mxu0
    %4072 = vmatprep.mubr.f32.mxu0 0.0
    %4073 = vmatmul.mubr.f32.gmra.mrb[0].mxu0 %v3849
    %v4074 = vpop.f32.mrb[0].mxu0
    %v4075 = vadd.f32 %v3823, %v4074
    %v4076 = vpop.f32.mrb[0].mxu0
    %4077 = vmatprep.mubr.f32.mxu0 0.0
    %4078 = vmatmul.mubr.f32.gmra.mrb[0].mxu0 %v3852
    %v4079 = vpop.f32.mrb[0].mxu0
    %v4080 = vadd.f32 %v3823, %v4079
    %v4081 = vpop.f32.mrb[0].mxu0
    %4082 = vmatprep.mubr.f32.mxu0 0.0
    %4083 = vmatmul.mubr.f32.gmra.mrb[0].mxu0 %v3855
    %v4084 = vpop.f32.mrb[0].mxu0
    %v4085 = vadd.f32 %v3823, %v4084
    %v4086 = vpop.f32.mrb[0].mxu0
    %4087 = vmatprep.mubr.f32.mxu0 0.0
    %4088 = vmatmul.mubr.f32.gmra.mrb[0].mxu0 %v3858
    %v4089 = vpop.f32.mrb[0].mxu0
    %v4090 = vadd.f32 %v3823, %v4089
    %v4091 = vpop.f32.mrb[0].mxu0
    %4092 = vmatprep.mubr.f32.mxu0 0.0
    %4093 = vmatmul.mubr.f32.gmra.mrb[0].mxu0 %v3861
    %v4094 = vpop.f32.mrb[0].mxu0
    %v4095 = vadd.f32 %v3823, %v4094
    %v4096 = vpop.f32.mrb[0].mxu0
    %4097 = vmatprep.mubr.f32.mxu0 0.0
    %4098 = vmatmul.mubr.f32.gmra.mrb[0].mxu0 %v3864
    %v4099 = vpop.f32.mrb[0].mxu0
    %v4100 = vadd.f32 %v3823, %v4099
    %v4101 = vpop.f32.mrb[0].mxu0
    %4102 = vmatprep.mubr.f32.mxu0 0.0
    %4103 = vmatmul.mubr.f32.gmra.mrb[0].mxu0 %v3867
    %v4104 = vpop.f32.mrb[0].mxu0
    %v4105 = vadd.f32 %v3823, %v4104
    %v4106 = vpop.f32.mrb[0].mxu0
    %4107 = vmatprep.mubr.f32.mxu0 0.0
    %4108 = vmatmul.mubr.f32.gmra.mrb[0].mxu0 %v3870
    %v4109 = vpop.f32.mrb[0].mxu0
    %v4110 = vadd.f32 %v3823, %v4109
    %v4111 = vpop.f32.mrb[0].mxu0
    %4112 = vmatprep.mubr.f32.mxu0 0.0
    %4113 = vmatmul.mubr.f32.gmra.mrb[0].mxu0 %v3873
    %v4114 = vpop.f32.mrb[0].mxu0
    %v4115 = vadd.f32 %v3823, %v4114
    %v4116 = vpop.f32.mrb[0].mxu0
    %4117 = vmatprep.mubr.f32.mxu0 0.0
    %4118 = vmatmul.mubr.f32.gmra.mrb[0].mxu0 %v3876
    %v4119 = vpop.f32.mrb[0].mxu0
    %v4120 = vadd.f32 %v3823, %v4119
    %v4121 = vpop.f32.mrb[0].mxu0
    %4122 = vmatprep.mubr.f32.mxu0 0.0
    %4123 = vmatmul.mubr.f32.gmra.mrb[0].mxu0 %v3879
    %v4124 = vpop.f32.mrb[0].mxu0
    %v4125 = vadd.f32 %v3823, %v4124
    %v4126 = vpop.f32.mrb[0].mxu0
    %4127 = vmatprep.mubr.f32.mxu0 0.0
    %4128 = vmatmul.mubr.f32.gmra.mrb[0].mxu0 %v3882
    %v4129 = vpop.f32.mrb[0].mxu0
    %v4130 = vadd.f32 %v3823, %v4129
    %v4131 = vpop.f32.mrb[0].mxu0
    %4132 = vmatprep.mubr.f32.mxu0 0.0
    %4133 = vmatmul.mubr.f32.gmra.mrb[0].mxu0 %v3885
    %v4134 = vpop.f32.mrb[0].mxu0
    %v4135 = vadd.f32 %v3823, %v4134
    %v4136 = vpop.f32.mrb[0].mxu0
    %4137 = vmatprep.mubr.f32.mxu0 0.0
    %4138 = vmatmul.mubr.f32.gmra.mrb[0].mxu0 %v3888
    %v4139 = vpop.f32.mrb[0].mxu0
    %v4140 = vadd.f32 %v3823, %v4139
    %v4141 = vpop.f32.mrb[0].mxu0
    %4142 = vmatprep.mubr.f32.mxu0 0.0
    %4143 = vmatmul.mubr.f32.gmra.mrb[0].mxu0 %v3891
    %v4144 = vpop.f32.mrb[0].mxu0
    %v4145 = vadd.f32 %v3823, %v4144
    %v4146 = vpop.f32.mrb[0].mxu0
    %4147 = vmatprep.mubr.f32.mxu0 0.0
    %4148 = vmatmul.mubr.f32.gmra.mrb[0].mxu0 %v3894
    %v4149 = vpop.f32.mrb[0].mxu0
    %v4150 = vadd.f32 %v3823, %v4149
    %v4151 = vpop.f32.mrb[0].mxu0
    %4152 = vmatprep.mubr.f32.mxu0 0.0
    %4153 = vmatmul.mubr.f32.gmra.mrb[0].mxu0 %v3897
    %v4154 = vpop.f32.mrb[0].mxu0
    %v4155 = vadd.f32 %v3823, %v4154
    %v4156 = vpop.f32.mrb[0].mxu0
    %4157 = vmatprep.mubr.f32.mxu0 0.0
    %4158 = vmatmul.mubr.f32.gmra.mrb[0].mxu0 %v3900
    %v4159 = vpop.f32.mrb[0].mxu0
    %v4160 = vadd.f32 %v3823, %v4159
    %v4161 = vpop.f32.mrb[0].mxu0
    %4162 = vmatprep.mubr.f32.mxu0 0.0
    %4163 = vmatmul.mubr.f32.gmra.mrb[0].mxu0 %v3903
    %v4164 = vpop.f32.mrb[0].mxu0
    %v4165 = vadd.f32 %v3823, %v4164
    %v4166 = vpop.f32.mrb[0].mxu0
    %4167 = vmatprep.mubr.f32.mxu0 0.0
    %4168 = vmatmul.mubr.f32.gmra.mrb[0].mxu0 %v3906
    %v4169 = vpop.f32.mrb[0].mxu0
    %v4170 = vadd.f32 %v3823, %v4169
    %v4171 = vpop.f32.mrb[0].mxu0
    %4172 = vmatprep.mubr.f32.mxu0 0.0
    %4173 = vmatmul.mubr.f32.gmra.mrb[0].mxu0 %v3909
    %v4174 = vpop.f32.mrb[0].mxu0
    %v4175 = vadd.f32 %v3823, %v4174
    %v4176 = vpop.f32.mrb[0].mxu0
    %4177 = vmatprep.mubr.f32.mxu0 0.0
    %4178 = vmatmul.mubr.f32.gmra.mrb[0].mxu0 %v3912
    %v4179 = vpop.f32.mrb[0].mxu0
    %v4180 = vadd.f32 %v3823, %v4179
    %v4181 = vpop.f32.mrb[0].mxu0
    %4182 = vmatprep.mubr.f32.mxu0 0.0
    %4183 = vmatmul.mubr.f32.gmra.mrb[0].mxu0 %v3915
    %v4184 = vpop.f32.mrb[0].mxu0
    %v4185 = vadd.f32 %v3823, %v4184
    %v4186 = vpop.f32.mrb[0].mxu0
    %4187 = vmatprep.mubr.f32.mxu0 0.0
    %4188 = vmatmul.mubr.f32.gmra.mrb[0].mxu0 %v3918
    %v4189 = vpop.f32.mrb[0].mxu0
    %v4190 = vadd.f32 %v3823, %v4189
    %v4191 = vpop.f32.mrb[0].mxu0
    %4192 = vmatprep.mubr.f32.mxu0 0.0
    %4193 = vmatmul.mubr.f32.gmra.mrb[0].mxu0 %v3921
    %v4194 = vpop.f32.mrb[0].mxu0
    %v4195 = vadd.f32 %v3823, %v4194
    %v4196 = vpop.f32.mrb[0].mxu0
    %4197 = vmatprep.mubr.f32.mxu0 0.0
    %4198 = vmatmul.mubr.f32.gmra.mrb[0].mxu0 %v3924
    %v4199 = vpop.f32.mrb[0].mxu0
    %v4200 = vadd.f32 %v3823, %v4199
    %v4201 = vpop.f32.mrb[0].mxu0
    %4202 = vmatprep.mubr.f32.mxu0 0.0
    %4203 = vmatmul.mubr.f32.gmra.mrb[0].mxu0 %v3927
    %v4204 = vpop.f32.mrb[0].mxu0
    %v4205 = vadd.f32 %v3823, %v4204
    %v4206 = vpop.f32.mrb[0].mxu0
    %4207 = vmatprep.mubr.f32.mxu0 0.0
    %4208 = vmatmul.mubr.f32.gmra.mrb[0].mxu0 %v3930
    %v4209 = vpop.f32.mrb[0].mxu0
    %v4210 = vadd.f32 %v3823, %v4209
    %v4211 = vpop.f32.mrb[0].mxu0
    %4212 = vmatprep.mubr.f32.mxu0 0.0
    %4213 = vmatmul.mubr.f32.gmra.mrb[0].mxu0 %v3933
    %v4214 = vpop.f32.mrb[0].mxu0
    %v4215 = vadd.f32 %v3823, %v4214
    %v4216 = vpop.f32.mrb[0].mxu0
    %4217 = vmatprep.mubr.f32.mxu0 0.0
    %4218 = vmatmul.mubr.f32.gmra.mrb[0].mxu0 %v3936
    %v4219 = vpop.f32.mrb[0].mxu0
    %v4220 = vadd.f32 %v3823, %v4219
    %v4221 = vpop.f32.mrb[0].mxu0
    %4222 = vmatprep.mubr.f32.mxu0 0.0
    %4223 = vmatmul.mubr.f32.gmra.mrb[0].mxu0 %v3939
    %v4224 = vpop.f32.mrb[0].mxu0
    %v4225 = vadd.f32 %v3823, %v4224
    %v4226 = vpop.f32.mrb[0].mxu0
    %4227 = vmatprep.mubr.f32.mxu0 0.0
    %4228 = vmatmul.mubr.f32.gmra.mrb[0].mxu0 %v3942
    %v4229 = vpop.f32.mrb[0].mxu0
    %v4230 = vadd.f32 %v3823, %v4229
    %v4231 = vpop.f32.mrb[0].mxu0
    %4232 = vmatprep.mubr.f32.mxu0 0.0
    %4233 = vmatmul.mubr.f32.gmra.mrb[0].mxu0 %v3945
    %v4234 = vpop.f32.mrb[0].mxu0
    %v4235 = vadd.f32 %v3823, %v4234
    %v4236 = vpop.f32.mrb[0].mxu0
    %4237 = vmatprep.mubr.f32.mxu0 0.0
    %4238 = vmatmul.mubr.f32.gmra.mrb[0].mxu0 %v3948
    %v4239 = vpop.f32.mrb[0].mxu0
    %v4240 = vadd.f32 %v3823, %v4239
    %v4241 = vpop.f32.mrb[0].mxu0
    %4242 = vmatprep.mubr.f32.mxu0 0.0
    %4243 = vmatmul.mubr.f32.gmra.mrb[0].mxu0 %v3951
    %v4244 = vpop.f32.mrb[0].mxu0
    %v4245 = vadd.f32 %v3823, %v4244
    %v4246 = vpop.f32.mrb[0].mxu0
    %4247 = vmatprep.mubr.f32.mxu0 0.0
    %4248 = vmatmul.mubr.f32.gmra.mrb[0].mxu0 %v3954
    %v4249 = vpop.f32.mrb[0].mxu0
    %v4250 = vadd.f32 %v3823, %v4249
    %v4251 = vpop.f32.mrb[0].mxu0
    %4252 = vmatprep.mubr.f32.mxu0 0.0
    %4253 = vmatmul.mubr.f32.gmra.mrb[0].mxu0 %v3957
    %v4254 = vpop.f32.mrb[0].mxu0
    %v4255 = vadd.f32 %v3823, %v4254
    %v4256 = vpop.f32.mrb[0].mxu0
    %4257 = vmatprep.mubr.f32.mxu0 0.0
    %4258 = vmatmul.mubr.f32.gmra.mrb[0].mxu0 %v3960
    %v4259 = vpop.f32.mrb[0].mxu0
    %v4260 = vadd.f32 %v3823, %v4259
    %v4261 = vpop.f32.mrb[0].mxu0
    %4262 = vmatprep.mubr.f32.mxu0 0.0
    %4263 = vmatmul.mubr.f32.gmra.mrb[0].mxu0 %v3963
    %v4264 = vpop.f32.mrb[0].mxu0
    %v4265 = vadd.f32 %v3823, %v4264
    %v4266 = vpop.f32.mrb[0].mxu0
    %4267 = vmatprep.mubr.f32.mxu0 0.0
    %4268 = vmatmul.mubr.f32.gmra.mrb[0].mxu0 %v3966
    %v4269 = vpop.f32.mrb[0].mxu0
    %v4270 = vadd.f32 %v3823, %v4269
    %v4271 = vpop.f32.mrb[0].mxu0
    %4272 = vdwg.mxu0
    %v4273 = vmax.f32 %v4035, 0.0
    %v4274 = vmax.f32 %v4040, 0.0
    %v4275 = vmax.f32 %v4045, 0.0
    %v4276 = vmax.f32 %v4050, 0.0
    %v4277 = vmax.f32 %v4055, 0.0
    %v4278 = vmax.f32 %v4060, 0.0
    %v4279 = vmax.f32 %v4065, 0.0
    %v4280 = vmax.f32 %v4070, 0.0
    %v4281 = vmax.f32 %v4075, 0.0
    %v4282 = vmax.f32 %v4080, 0.0
    %v4283 = vmax.f32 %v4085, 0.0
    %v4284 = vmax.f32 %v4090, 0.0
    %v4285 = vmax.f32 %v4095, 0.0
    %v4286 = vmax.f32 %v4100, 0.0
    %v4287 = vmax.f32 %v4105, 0.0
    %v4288 = vmax.f32 %v4110, 0.0
    %v4289 = vmax.f32 %v4115, 0.0
    %v4290 = vmax.f32 %v4120, 0.0
    %v4291 = vmax.f32 %v4125, 0.0
    %v4292 = vmax.f32 %v4130, 0.0
    %v4293 = vmax.f32 %v4135, 0.0
    %v4294 = vmax.f32 %v4140, 0.0
    %v4295 = vmax.f32 %v4145, 0.0
    %v4296 = vmax.f32 %v4150, 0.0
    %v4297 = vmax.f32 %v4155, 0.0
    %v4298 = vmax.f32 %v4160, 0.0
    %v4299 = vmax.f32 %v4165, 0.0
    %v4300 = vmax.f32 %v4170, 0.0
    %v4301 = vmax.f32 %v4175, 0.0
    %v4302 = vmax.f32 %v4180, 0.0
    %v4303 = vmax.f32 %v4185, 0.0
    %v4304 = vmax.f32 %v4190, 0.0
    %v4305 = vmax.f32 %v4195, 0.0
    %v4306 = vmax.f32 %v4200, 0.0
    %v4307 = vmax.f32 %v4205, 0.0
    %v4308 = vmax.f32 %v4210, 0.0
    %v4309 = vmax.f32 %v4215, 0.0
    %v4310 = vmax.f32 %v4220, 0.0
    %v4311 = vmax.f32 %v4225, 0.0
    %v4312 = vmax.f32 %v4230, 0.0
    %v4313 = vmax.f32 %v4235, 0.0
    %v4314 = vmax.f32 %v4240, 0.0
    %v4315 = vmax.f32 %v4245, 0.0
    %v4316 = vmax.f32 %v4250, 0.0
    %v4317 = vmax.f32 %v4255, 0.0
    %v4318 = vmax.f32 %v4260, 0.0
    %v4319 = vmax.f32 %v4265, 0.0
    %v4320 = vmax.f32 %v4270, 0.0
    %v4321 = vlaneseq
    %v4322 = vshrl.u32 %v4321, 7
    %v4323 = vsub.s32 1, %v4322
    %v4324 = vrot.slane %v3224, %v4323
    %v4326 = vsel %vm2232, %v4273, 0
    %v4329 = vsel %vm2232, %v4274, 0
    %v4332 = vsel %vm2232, %v4275, 0
    %v4335 = vsel %vm2232, %v4276, 0
    %v4338 = vsel %vm2232, %v4277, 0
    %v4341 = vsel %vm2232, %v4278, 0
    %v4344 = vsel %vm2232, %v4279, 0
    %v4347 = vsel %vm2232, %v4280, 0
    %v4350 = vsel %vm2232, %v4281, 0
    %v4353 = vsel %vm2232, %v4282, 0
    %v4356 = vsel %vm2232, %v4283, 0
    %v4359 = vsel %vm2232, %v4284, 0
    %v4362 = vsel %vm2232, %v4285, 0
    %v4365 = vsel %vm2232, %v4286, 0
    %v4368 = vsel %vm2232, %v4287, 0
    %v4371 = vsel %vm2232, %v4288, 0
    %v4374 = vsel %vm2232, %v4289, 0
    %v4377 = vsel %vm2232, %v4290, 0
    %v4380 = vsel %vm2232, %v4291, 0
    %v4383 = vsel %vm2232, %v4292, 0
    %v4386 = vsel %vm2232, %v4293, 0
    %v4389 = vsel %vm2232, %v4294, 0
    %v4392 = vsel %vm2232, %v4295, 0
    %v4395 = vsel %vm2232, %v4296, 0
    %v4398 = vsel %vm2232, %v4297, 0
    %v4401 = vsel %vm2232, %v4298, 0
    %v4404 = vsel %vm2232, %v4299, 0
    %v4407 = vsel %vm2232, %v4300, 0
    %v4410 = vsel %vm2232, %v4301, 0
    %v4413 = vsel %vm2232, %v4302, 0
    %v4416 = vsel %vm2232, %v4303, 0
    %v4419 = vsel %vm2232, %v4304, 0
    %v4422 = vsel %vm2232, %v4305, 0
    %v4425 = vsel %vm2232, %v4306, 0
    %v4428 = vsel %vm2232, %v4307, 0
    %v4431 = vsel %vm2232, %v4308, 0
    %v4434 = vsel %vm2232, %v4309, 0
    %v4437 = vsel %vm2232, %v4310, 0
    %v4440 = vsel %vm2232, %v4311, 0
    %v4443 = vsel %vm2232, %v4312, 0
    %v4446 = vsel %vm2232, %v4313, 0
    %v4449 = vsel %vm2232, %v4314, 0
    %v4452 = vsel %vm2232, %v4315, 0
    %v4455 = vsel %vm2232, %v4316, 0
    %v4458 = vsel %vm2232, %v4317, 0
    %v4461 = vsel %vm2232, %v4318, 0
    %v4464 = vsel %vm2232, %v4319, 0
    %v4467 = vsel %vm2232, %v4320, 0
    %4469 = vmatprep.subr.mxu0 0.0
    %4470 = vmatpush1.msra.mxu0 %v3220
    %4471 = vmatprep.subr.mxu0 0.0
    %4472 = vmatpush1.msra.mxu0 %v3221
    %4473 = vmatprep.subr.mxu0 0.0
    %4474 = vmatpush1.msra.mxu0 %v3222
    %4475 = vmatprep.subr.mxu0 0.0
    %4476 = vmatpush1.msra.mxu0 %v3223
    %4477 = vmatprep.subr.mxu0 0.0
    %4478 = vmatpush1.msra.mxu0 0.0
    %4479 = vmatprep.subr.mxu0 0.0
    %4480 = vmatpush1.msra.mxu0 0.0
    %4481 = vmatprep.subr.mxu0 0.0
    %4482 = vmatpush1.msra.mxu0 0.0
    %4483 = vmatprep.subr.mxu0 0.0
    %4484 = vmatpush1.msra.mxu0 0.0
    %4485 = vmatprep.subr.mxu0 0.0
    %4486 = vmatpush1.msra.mxu0 0.0
    %4487 = vmatprep.subr.mxu0 0.0
    %4488 = vmatpush1.msra.mxu0 0.0
    %4489 = vmatprep.subr.mxu0 0.0
    %4490 = vmatpush1.msra.mxu0 0.0
    %4491 = vmatprep.subr.mxu0 0.0
    %4492 = vmatpush1.msra.mxu0 0.0
    %4493 = vmatprep.subr.mxu0 0.0
    %4494 = vmatpush1.msra.mxu0 0.0
    %4495 = vmatprep.subr.mxu0 0.0
    %4496 = vmatpush1.msra.mxu0 0.0
    %4497 = vmatprep.subr.mxu0 0.0
    %4498 = vmatpush1.msra.mxu0 0.0
    %4499 = vmatprep.subr.mxu0 0.0
    %4500 = vmatpush1.msra.mxu0 0.0
    %4501 = vmatprep.subr.mxu0 0.0
    %4502 = vmatpush1.msra.mxu0 0.0
    %4503 = vmatprep.subr.mxu0 0.0
    %4504 = vmatpush1.msra.mxu0 0.0
    %4505 = vmatprep.subr.mxu0 0.0
    %4506 = vmatpush1.msra.mxu0 0.0
    %4507 = vmatprep.subr.mxu0 0.0
    %4508 = vmatpush1.msra.mxu0 0.0
    %4509 = vmatprep.subr.mxu0 0.0
    %4510 = vmatpush1.msra.mxu0 0.0
    %4511 = vmatprep.subr.mxu0 0.0
    %4512 = vmatpush1.msra.mxu0 0.0
    %4513 = vmatprep.subr.mxu0 0.0
    %4514 = vmatpush1.msra.mxu0 0.0
    %4515 = vmatprep.subr.mxu0 0.0
    %4516 = vmatpush1.msra.mxu0 0.0
    %4517 = vmatprep.subr.mxu0 0.0
    %4518 = vmatpush1.msra.mxu0 0.0
    %4519 = vmatprep.subr.mxu0 0.0
    %4520 = vmatpush1.msra.mxu0 0.0
    %4521 = vmatprep.subr.mxu0 0.0
    %4522 = vmatpush1.msra.mxu0 0.0
    %4523 = vmatprep.subr.mxu0 0.0
    %4524 = vmatpush1.msra.mxu0 0.0
    %4525 = vmatprep.subr.mxu0 0.0
    %4526 = vmatpush1.msra.mxu0 0.0
    %4527 = vmatprep.subr.mxu0 0.0
    %4528 = vmatpush1.msra.mxu0 0.0
    %4529 = vmatprep.subr.mxu0 0.0
    %4530 = vmatpush1.msra.mxu0 0.0
    %4531 = vmatprep.subr.mxu0 0.0
    %4532 = vmatpush1.msra.mxu0 0.0
    %4533 = vmatprep.mubr.f32.mxu0 0.0
    %4534 = vmatmul.mubr.f32.gmra.mrb[0].mxu0 %v4326
    %v4535 = vpop.f32.mrb[0].mxu0
    %v4536 = vadd.f32 %v4324, %v4535
    %v4537 = vpop.f32.mrb[0].mxu0
    %4538 = vmatprep.mubr.f32.mxu0 0.0
    %4539 = vmatmul.mubr.f32.gmra.mrb[0].mxu0 %v4329
    %v4540 = vpop.f32.mrb[0].mxu0
    %v4541 = vadd.f32 %v4324, %v4540
    %v4542 = vpop.f32.mrb[0].mxu0
    %4543 = vmatprep.mubr.f32.mxu0 0.0
    %4544 = vmatmul.mubr.f32.gmra.mrb[0].mxu0 %v4332
    %v4545 = vpop.f32.mrb[0].mxu0
    %v4546 = vadd.f32 %v4324, %v4545
    %v4547 = vpop.f32.mrb[0].mxu0
    %4548 = vmatprep.mubr.f32.mxu0 0.0
    %4549 = vmatmul.mubr.f32.gmra.mrb[0].mxu0 %v4335
    %v4550 = vpop.f32.mrb[0].mxu0
    %v4551 = vadd.f32 %v4324, %v4550
    %v4552 = vpop.f32.mrb[0].mxu0
    %4553 = vmatprep.mubr.f32.mxu0 0.0
    %4554 = vmatmul.mubr.f32.gmra.mrb[0].mxu0 %v4338
    %v4555 = vpop.f32.mrb[0].mxu0
    %v4556 = vadd.f32 %v4324, %v4555
    %v4557 = vpop.f32.mrb[0].mxu0
    %4558 = vmatprep.mubr.f32.mxu0 0.0
    %4559 = vmatmul.mubr.f32.gmra.mrb[0].mxu0 %v4341
    %v4560 = vpop.f32.mrb[0].mxu0
    %v4561 = vadd.f32 %v4324, %v4560
    %v4562 = vpop.f32.mrb[0].mxu0
    %4563 = vmatprep.mubr.f32.mxu0 0.0
    %4564 = vmatmul.mubr.f32.gmra.mrb[0].mxu0 %v4344
    %v4565 = vpop.f32.mrb[0].mxu0
    %v4566 = vadd.f32 %v4324, %v4565
    %v4567 = vpop.f32.mrb[0].mxu0
    %4568 = vmatprep.mubr.f32.mxu0 0.0
    %4569 = vmatmul.mubr.f32.gmra.mrb[0].mxu0 %v4347
    %v4570 = vpop.f32.mrb[0].mxu0
    %v4571 = vadd.f32 %v4324, %v4570
    %v4572 = vpop.f32.mrb[0].mxu0
    %4573 = vmatprep.mubr.f32.mxu0 0.0
    %4574 = vmatmul.mubr.f32.gmra.mrb[0].mxu0 %v4350
    %v4575 = vpop.f32.mrb[0].mxu0
    %v4576 = vadd.f32 %v4324, %v4575
    %v4577 = vpop.f32.mrb[0].mxu0
    %4578 = vmatprep.mubr.f32.mxu0 0.0
    %4579 = vmatmul.mubr.f32.gmra.mrb[0].mxu0 %v4353
    %v4580 = vpop.f32.mrb[0].mxu0
    %v4581 = vadd.f32 %v4324, %v4580
    %v4582 = vpop.f32.mrb[0].mxu0
    %4583 = vmatprep.mubr.f32.mxu0 0.0
    %4584 = vmatmul.mubr.f32.gmra.mrb[0].mxu0 %v4356
    %v4585 = vpop.f32.mrb[0].mxu0
    %v4586 = vadd.f32 %v4324, %v4585
    %v4587 = vpop.f32.mrb[0].mxu0
    %4588 = vmatprep.mubr.f32.mxu0 0.0
    %4589 = vmatmul.mubr.f32.gmra.mrb[0].mxu0 %v4359
    %v4590 = vpop.f32.mrb[0].mxu0
    %v4591 = vadd.f32 %v4324, %v4590
    %v4592 = vpop.f32.mrb[0].mxu0
    %4593 = vmatprep.mubr.f32.mxu0 0.0
    %4594 = vmatmul.mubr.f32.gmra.mrb[0].mxu0 %v4362
    %v4595 = vpop.f32.mrb[0].mxu0
    %v4596 = vadd.f32 %v4324, %v4595
    %v4597 = vpop.f32.mrb[0].mxu0
    %4598 = vmatprep.mubr.f32.mxu0 0.0
    %4599 = vmatmul.mubr.f32.gmra.mrb[0].mxu0 %v4365
    %v4600 = vpop.f32.mrb[0].mxu0
    %v4601 = vadd.f32 %v4324, %v4600
    %v4602 = vpop.f32.mrb[0].mxu0
    %4603 = vmatprep.mubr.f32.mxu0 0.0
    %4604 = vmatmul.mubr.f32.gmra.mrb[0].mxu0 %v4368
    %v4605 = vpop.f32.mrb[0].mxu0
    %v4606 = vadd.f32 %v4324, %v4605
    %v4607 = vpop.f32.mrb[0].mxu0
    %4608 = vmatprep.mubr.f32.mxu0 0.0
    %4609 = vmatmul.mubr.f32.gmra.mrb[0].mxu0 %v4371
    %v4610 = vpop.f32.mrb[0].mxu0
    %v4611 = vadd.f32 %v4324, %v4610
    %v4612 = vpop.f32.mrb[0].mxu0
    %4613 = vmatprep.mubr.f32.mxu0 0.0
    %4614 = vmatmul.mubr.f32.gmra.mrb[0].mxu0 %v4374
    %v4615 = vpop.f32.mrb[0].mxu0
    %v4616 = vadd.f32 %v4324, %v4615
    %v4617 = vpop.f32.mrb[0].mxu0
    %4618 = vmatprep.mubr.f32.mxu0 0.0
    %4619 = vmatmul.mubr.f32.gmra.mrb[0].mxu0 %v4377
    %v4620 = vpop.f32.mrb[0].mxu0
    %v4621 = vadd.f32 %v4324, %v4620
    %v4622 = vpop.f32.mrb[0].mxu0
    %4623 = vmatprep.mubr.f32.mxu0 0.0
    %4624 = vmatmul.mubr.f32.gmra.mrb[0].mxu0 %v4380
    %v4625 = vpop.f32.mrb[0].mxu0
    %v4626 = vadd.f32 %v4324, %v4625
    %v4627 = vpop.f32.mrb[0].mxu0
    %4628 = vmatprep.mubr.f32.mxu0 0.0
    %4629 = vmatmul.mubr.f32.gmra.mrb[0].mxu0 %v4383
    %v4630 = vpop.f32.mrb[0].mxu0
    %v4631 = vadd.f32 %v4324, %v4630
    %v4632 = vpop.f32.mrb[0].mxu0
    %4633 = vmatprep.mubr.f32.mxu0 0.0
    %4634 = vmatmul.mubr.f32.gmra.mrb[0].mxu0 %v4386
    %v4635 = vpop.f32.mrb[0].mxu0
    %v4636 = vadd.f32 %v4324, %v4635
    %v4637 = vpop.f32.mrb[0].mxu0
    %4638 = vmatprep.mubr.f32.mxu0 0.0
    %4639 = vmatmul.mubr.f32.gmra.mrb[0].mxu0 %v4389
    %v4640 = vpop.f32.mrb[0].mxu0
    %v4641 = vadd.f32 %v4324, %v4640
    %v4642 = vpop.f32.mrb[0].mxu0
    %4643 = vmatprep.mubr.f32.mxu0 0.0
    %4644 = vmatmul.mubr.f32.gmra.mrb[0].mxu0 %v4392
    %v4645 = vpop.f32.mrb[0].mxu0
    %v4646 = vadd.f32 %v4324, %v4645
    %v4647 = vpop.f32.mrb[0].mxu0
    %4648 = vmatprep.mubr.f32.mxu0 0.0
    %4649 = vmatmul.mubr.f32.gmra.mrb[0].mxu0 %v4395
    %v4650 = vpop.f32.mrb[0].mxu0
    %v4651 = vadd.f32 %v4324, %v4650
    %v4652 = vpop.f32.mrb[0].mxu0
    %4653 = vmatprep.mubr.f32.mxu0 0.0
    %4654 = vmatmul.mubr.f32.gmra.mrb[0].mxu0 %v4398
    %v4655 = vpop.f32.mrb[0].mxu0
    %v4656 = vadd.f32 %v4324, %v4655
    %v4657 = vpop.f32.mrb[0].mxu0
    %4658 = vmatprep.mubr.f32.mxu0 0.0
    %4659 = vmatmul.mubr.f32.gmra.mrb[0].mxu0 %v4401
    %v4660 = vpop.f32.mrb[0].mxu0
    %v4661 = vadd.f32 %v4324, %v4660
    %v4662 = vpop.f32.mrb[0].mxu0
    %4663 = vmatprep.mubr.f32.mxu0 0.0
    %4664 = vmatmul.mubr.f32.gmra.mrb[0].mxu0 %v4404
    %v4665 = vpop.f32.mrb[0].mxu0
    %v4666 = vadd.f32 %v4324, %v4665
    %v4667 = vpop.f32.mrb[0].mxu0
    %4668 = vmatprep.mubr.f32.mxu0 0.0
    %4669 = vmatmul.mubr.f32.gmra.mrb[0].mxu0 %v4407
    %v4670 = vpop.f32.mrb[0].mxu0
    %v4671 = vadd.f32 %v4324, %v4670
    %v4672 = vpop.f32.mrb[0].mxu0
    %4673 = vmatprep.mubr.f32.mxu0 0.0
    %4674 = vmatmul.mubr.f32.gmra.mrb[0].mxu0 %v4410
    %v4675 = vpop.f32.mrb[0].mxu0
    %v4676 = vadd.f32 %v4324, %v4675
    %v4677 = vpop.f32.mrb[0].mxu0
    %4678 = vmatprep.mubr.f32.mxu0 0.0
    %4679 = vmatmul.mubr.f32.gmra.mrb[0].mxu0 %v4413
    %v4680 = vpop.f32.mrb[0].mxu0
    %v4681 = vadd.f32 %v4324, %v4680
    %v4682 = vpop.f32.mrb[0].mxu0
    %4683 = vmatprep.mubr.f32.mxu0 0.0
    %4684 = vmatmul.mubr.f32.gmra.mrb[0].mxu0 %v4416
    %v4685 = vpop.f32.mrb[0].mxu0
    %v4686 = vadd.f32 %v4324, %v4685
    %v4687 = vpop.f32.mrb[0].mxu0
    %4688 = vmatprep.mubr.f32.mxu0 0.0
    %4689 = vmatmul.mubr.f32.gmra.mrb[0].mxu0 %v4419
    %v4690 = vpop.f32.mrb[0].mxu0
    %v4691 = vadd.f32 %v4324, %v4690
    %v4692 = vpop.f32.mrb[0].mxu0
    %4693 = vmatprep.mubr.f32.mxu0 0.0
    %4694 = vmatmul.mubr.f32.gmra.mrb[0].mxu0 %v4422
    %v4695 = vpop.f32.mrb[0].mxu0
    %v4696 = vadd.f32 %v4324, %v4695
    %v4697 = vpop.f32.mrb[0].mxu0
    %4698 = vmatprep.mubr.f32.mxu0 0.0
    %4699 = vmatmul.mubr.f32.gmra.mrb[0].mxu0 %v4425
    %v4700 = vpop.f32.mrb[0].mxu0
    %v4701 = vadd.f32 %v4324, %v4700
    %v4702 = vpop.f32.mrb[0].mxu0
    %4703 = vmatprep.mubr.f32.mxu0 0.0
    %4704 = vmatmul.mubr.f32.gmra.mrb[0].mxu0 %v4428
    %v4705 = vpop.f32.mrb[0].mxu0
    %v4706 = vadd.f32 %v4324, %v4705
    %v4707 = vpop.f32.mrb[0].mxu0
    %4708 = vmatprep.mubr.f32.mxu0 0.0
    %4709 = vmatmul.mubr.f32.gmra.mrb[0].mxu0 %v4431
    %v4710 = vpop.f32.mrb[0].mxu0
    %v4711 = vadd.f32 %v4324, %v4710
    %v4712 = vpop.f32.mrb[0].mxu0
    %4713 = vmatprep.mubr.f32.mxu0 0.0
    %4714 = vmatmul.mubr.f32.gmra.mrb[0].mxu0 %v4434
    %v4715 = vpop.f32.mrb[0].mxu0
    %v4716 = vadd.f32 %v4324, %v4715
    %v4717 = vpop.f32.mrb[0].mxu0
    %4718 = vmatprep.mubr.f32.mxu0 0.0
    %4719 = vmatmul.mubr.f32.gmra.mrb[0].mxu0 %v4437
    %v4720 = vpop.f32.mrb[0].mxu0
    %v4721 = vadd.f32 %v4324, %v4720
    %v4722 = vpop.f32.mrb[0].mxu0
    %4723 = vmatprep.mubr.f32.mxu0 0.0
    %4724 = vmatmul.mubr.f32.gmra.mrb[0].mxu0 %v4440
    %v4725 = vpop.f32.mrb[0].mxu0
    %v4726 = vadd.f32 %v4324, %v4725
    %v4727 = vpop.f32.mrb[0].mxu0
    %4728 = vmatprep.mubr.f32.mxu0 0.0
    %4729 = vmatmul.mubr.f32.gmra.mrb[0].mxu0 %v4443
    %v4730 = vpop.f32.mrb[0].mxu0
    %v4731 = vadd.f32 %v4324, %v4730
    %v4732 = vpop.f32.mrb[0].mxu0
    %4733 = vmatprep.mubr.f32.mxu0 0.0
    %4734 = vmatmul.mubr.f32.gmra.mrb[0].mxu0 %v4446
    %v4735 = vpop.f32.mrb[0].mxu0
    %v4736 = vadd.f32 %v4324, %v4735
    %v4737 = vpop.f32.mrb[0].mxu0
    %4738 = vmatprep.mubr.f32.mxu0 0.0
    %4739 = vmatmul.mubr.f32.gmra.mrb[0].mxu0 %v4449
    %v4740 = vpop.f32.mrb[0].mxu0
    %v4741 = vadd.f32 %v4324, %v4740
    %v4742 = vpop.f32.mrb[0].mxu0
    %4743 = vmatprep.mubr.f32.mxu0 0.0
    %4744 = vmatmul.mubr.f32.gmra.mrb[0].mxu0 %v4452
    %v4745 = vpop.f32.mrb[0].mxu0
    %v4746 = vadd.f32 %v4324, %v4745
    %v4747 = vpop.f32.mrb[0].mxu0
    %4748 = vmatprep.mubr.f32.mxu0 0.0
    %4749 = vmatmul.mubr.f32.gmra.mrb[0].mxu0 %v4455
    %v4750 = vpop.f32.mrb[0].mxu0
    %v4751 = vadd.f32 %v4324, %v4750
    %v4752 = vpop.f32.mrb[0].mxu0
    %4753 = vmatprep.mubr.f32.mxu0 0.0
    %4754 = vmatmul.mubr.f32.gmra.mrb[0].mxu0 %v4458
    %v4755 = vpop.f32.mrb[0].mxu0
    %v4756 = vadd.f32 %v4324, %v4755
    %v4757 = vpop.f32.mrb[0].mxu0
    %4758 = vmatprep.mubr.f32.mxu0 0.0
    %4759 = vmatmul.mubr.f32.gmra.mrb[0].mxu0 %v4461
    %v4760 = vpop.f32.mrb[0].mxu0
    %v4761 = vadd.f32 %v4324, %v4760
    %v4762 = vpop.f32.mrb[0].mxu0
    %4763 = vmatprep.mubr.f32.mxu0 0.0
    %4764 = vmatmul.mubr.f32.gmra.mrb[0].mxu0 %v4464
    %v4765 = vpop.f32.mrb[0].mxu0
    %v4766 = vadd.f32 %v4324, %v4765
    %v4767 = vpop.f32.mrb[0].mxu0
    %4768 = vmatprep.mubr.f32.mxu0 0.0
    %4769 = vmatmul.mubr.f32.gmra.mrb[0].mxu0 %v4467
    %v4770 = vpop.f32.mrb[0].mxu0
    %v4771 = vadd.f32 %v4324, %v4770
    %v4772 = vpop.f32.mrb[0].mxu0
    %4773 = vdwg.mxu0
    %v4774 = vmax.f32 %v4536, 0.0
    %v4775 = vmax.f32 %v4541, 0.0
    %v4776 = vmax.f32 %v4546, 0.0
    %v4777 = vmax.f32 %v4551, 0.0
    %v4778 = vmax.f32 %v4556, 0.0
    %v4779 = vmax.f32 %v4561, 0.0
    %v4780 = vmax.f32 %v4566, 0.0
    %v4781 = vmax.f32 %v4571, 0.0
    %v4782 = vmax.f32 %v4576, 0.0
    %v4783 = vmax.f32 %v4581, 0.0
    %v4784 = vmax.f32 %v4586, 0.0
    %v4785 = vmax.f32 %v4591, 0.0
    %v4786 = vmax.f32 %v4596, 0.0
    %v4787 = vmax.f32 %v4601, 0.0
    %v4788 = vmax.f32 %v4606, 0.0
    %v4789 = vmax.f32 %v4611, 0.0
    %v4790 = vmax.f32 %v4616, 0.0
    %v4791 = vmax.f32 %v4621, 0.0
    %v4792 = vmax.f32 %v4626, 0.0
    %v4793 = vmax.f32 %v4631, 0.0
    %v4794 = vmax.f32 %v4636, 0.0
    %v4795 = vmax.f32 %v4641, 0.0
    %v4796 = vmax.f32 %v4646, 0.0
    %v4797 = vmax.f32 %v4651, 0.0
    %v4798 = vmax.f32 %v4656, 0.0
    %v4799 = vmax.f32 %v4661, 0.0
    %v4800 = vmax.f32 %v4666, 0.0
    %v4801 = vmax.f32 %v4671, 0.0
    %v4802 = vmax.f32 %v4676, 0.0
    %v4803 = vmax.f32 %v4681, 0.0
    %v4804 = vmax.f32 %v4686, 0.0
    %v4805 = vmax.f32 %v4691, 0.0
    %v4806 = vmax.f32 %v4696, 0.0
    %v4807 = vmax.f32 %v4701, 0.0
    %v4808 = vmax.f32 %v4706, 0.0
    %v4809 = vmax.f32 %v4711, 0.0
    %v4810 = vmax.f32 %v4716, 0.0
    %v4811 = vmax.f32 %v4721, 0.0
    %v4812 = vmax.f32 %v4726, 0.0
    %v4813 = vmax.f32 %v4731, 0.0
    %v4814 = vmax.f32 %v4736, 0.0
    %v4815 = vmax.f32 %v4741, 0.0
    %v4816 = vmax.f32 %v4746, 0.0
    %v4817 = vmax.f32 %v4751, 0.0
    %v4818 = vmax.f32 %v4756, 0.0
    %v4819 = vmax.f32 %v4761, 0.0
    %v4820 = vmax.f32 %v4766, 0.0
    %v4821 = vmax.f32 %v4771, 0.0
    %v4822 = vmul.f32 %v4774, %v1029
    %v4823 = vmul.f32 %v4775, %v1030
    %v4824 = vmul.f32 %v4776, %v1031
    %v4825 = vmul.f32 %v4777, %v1032
    %v4826 = vmul.f32 %v4778, %v1033
    %v4827 = vmul.f32 %v4779, %v1034
    %v4828 = vmul.f32 %v4780, %v1035
    %v4829 = vmul.f32 %v4781, %v1036
    %v4830 = vmul.f32 %v4782, %v1037
    %v4831 = vmul.f32 %v4783, %v1038
    %v4832 = vmul.f32 %v4784, %v1039
    %v4833 = vmul.f32 %v4785, %v1040
    %v4834 = vmul.f32 %v4786, %v1041
    %v4835 = vmul.f32 %v4787, %v1042
    %v4836 = vmul.f32 %v4788, %v1043
    %v4837 = vmul.f32 %v4789, %v1044
    %v4838 = vmul.f32 %v4790, %v1045
    %v4839 = vmul.f32 %v4791, %v1046
    %v4840 = vmul.f32 %v4792, %v1047
    %v4841 = vmul.f32 %v4793, %v1048
    %v4842 = vmul.f32 %v4794, %v1049
    %v4843 = vmul.f32 %v4795, %v1050
    %v4844 = vmul.f32 %v4796, %v1051
    %v4845 = vmul.f32 %v4797, %v1052
    %v4846 = vmul.f32 %v4798, %v1053
    %v4847 = vmul.f32 %v4799, %v1054
    %v4848 = vmul.f32 %v4800, %v1055
    %v4849 = vmul.f32 %v4801, %v1056
    %v4850 = vmul.f32 %v4802, %v1057
    %v4851 = vmul.f32 %v4803, %v1058
    %v4852 = vmul.f32 %v4804, %v1059
    %v4853 = vmul.f32 %v4805, %v1060
    %v4854 = vmul.f32 %v4806, %v1061
    %v4855 = vmul.f32 %v4807, %v1062
    %v4856 = vmul.f32 %v4808, %v1063
    %v4857 = vmul.f32 %v4809, %v1064
    %v4858 = vmul.f32 %v4810, %v1065
    %v4859 = vmul.f32 %v4811, %v1066
    %v4860 = vmul.f32 %v4812, %v1067
    %v4861 = vmul.f32 %v4813, %v1068
    %v4862 = vmul.f32 %v4814, %v1069
    %v4863 = vmul.f32 %v4815, %v1070
    %v4864 = vmul.f32 %v4816, %v1071
    %v4865 = vmul.f32 %v4817, %v1072
    %v4866 = vmul.f32 %v4818, %v1073
    %v4867 = vmul.f32 %v4819, %v1074
    %v4868 = vmul.f32 %v4820, %v1075
    %v4869 = vmul.f32 %v4821, %v1076
    %v4870 = vsel %vm2232, %v4822, 0.0
    %v4871 = vsel %vm2232, %v4823, 0.0
    %v4872 = vadd.f32 %v4870, %v4871
    %v4873 = vsel %vm2232, %v4824, 0.0
    %v4874 = vadd.f32 %v4872, %v4873
    %v4875 = vsel %vm2232, %v4825, 0.0
    %v4876 = vadd.f32 %v4874, %v4875
    %v4877 = vsel %vm2232, %v4826, 0.0
    %v4878 = vadd.f32 %v4876, %v4877
    %v4879 = vsel %vm2232, %v4827, 0.0
    %v4880 = vadd.f32 %v4878, %v4879
    %v4881 = vsel %vm2232, %v4828, 0.0
    %v4882 = vadd.f32 %v4880, %v4881
    %v4883 = vsel %vm2232, %v4829, 0.0
    %v4884 = vadd.f32 %v4882, %v4883
    %v4885 = vsel %vm2232, %v4830, 0.0
    %v4886 = vadd.f32 %v4884, %v4885
    %v4887 = vsel %vm2232, %v4831, 0.0
    %v4888 = vadd.f32 %v4886, %v4887
    %v4889 = vsel %vm2232, %v4832, 0.0
    %v4890 = vadd.f32 %v4888, %v4889
    %v4891 = vsel %vm2232, %v4833, 0.0
    %v4892 = vadd.f32 %v4890, %v4891
    %v4893 = vsel %vm2232, %v4834, 0.0
    %v4894 = vadd.f32 %v4892, %v4893
    %v4895 = vsel %vm2232, %v4835, 0.0
    %v4896 = vadd.f32 %v4894, %v4895
    %v4897 = vsel %vm2232, %v4836, 0.0
    %v4898 = vadd.f32 %v4896, %v4897
    %v4899 = vsel %vm2232, %v4837, 0.0
    %v4900 = vadd.f32 %v4898, %v4899
    %v4901 = vsel %vm2232, %v4838, 0.0
    %v4902 = vadd.f32 %v4900, %v4901
    %v4903 = vsel %vm2232, %v4839, 0.0
    %v4904 = vadd.f32 %v4902, %v4903
    %v4905 = vsel %vm2232, %v4840, 0.0
    %v4906 = vadd.f32 %v4904, %v4905
    %v4907 = vsel %vm2232, %v4841, 0.0
    %v4908 = vadd.f32 %v4906, %v4907
    %v4909 = vsel %vm2232, %v4842, 0.0
    %v4910 = vadd.f32 %v4908, %v4909
    %v4911 = vsel %vm2232, %v4843, 0.0
    %v4912 = vadd.f32 %v4910, %v4911
    %v4913 = vsel %vm2232, %v4844, 0.0
    %v4914 = vadd.f32 %v4912, %v4913
    %v4915 = vsel %vm2232, %v4845, 0.0
    %v4916 = vadd.f32 %v4914, %v4915
    %v4917 = vsel %vm2232, %v4846, 0.0
    %v4918 = vadd.f32 %v4916, %v4917
    %v4919 = vsel %vm2232, %v4847, 0.0
    %v4920 = vadd.f32 %v4918, %v4919
    %v4921 = vsel %vm2232, %v4848, 0.0
    %v4922 = vadd.f32 %v4920, %v4921
    %v4923 = vsel %vm2232, %v4849, 0.0
    %v4924 = vadd.f32 %v4922, %v4923
    %v4925 = vsel %vm2232, %v4850, 0.0
    %v4926 = vadd.f32 %v4924, %v4925
    %v4927 = vsel %vm2232, %v4851, 0.0
    %v4928 = vadd.f32 %v4926, %v4927
    %v4929 = vsel %vm2232, %v4852, 0.0
    %v4930 = vadd.f32 %v4928, %v4929
    %v4931 = vsel %vm2232, %v4853, 0.0
    %v4932 = vadd.f32 %v4930, %v4931
    %v4933 = vsel %vm2232, %v4854, 0.0
    %v4934 = vadd.f32 %v4932, %v4933
    %v4935 = vsel %vm2232, %v4855, 0.0
    %v4936 = vadd.f32 %v4934, %v4935
    %v4937 = vsel %vm2232, %v4856, 0.0
    %v4938 = vadd.f32 %v4936, %v4937
    %v4939 = vsel %vm2232, %v4857, 0.0
    %v4940 = vadd.f32 %v4938, %v4939
    %v4941 = vsel %vm2232, %v4858, 0.0
    %v4942 = vadd.f32 %v4940, %v4941
    %v4943 = vsel %vm2232, %v4859, 0.0
    %v4944 = vadd.f32 %v4942, %v4943
    %v4945 = vsel %vm2232, %v4860, 0.0
    %v4946 = vadd.f32 %v4944, %v4945
    %v4947 = vsel %vm2232, %v4861, 0.0
    %v4948 = vadd.f32 %v4946, %v4947
    %v4949 = vsel %vm2232, %v4862, 0.0
    %v4950 = vadd.f32 %v4948, %v4949
    %v4951 = vsel %vm2232, %v4863, 0.0
    %v4952 = vadd.f32 %v4950, %v4951
    %v4953 = vsel %vm2232, %v4864, 0.0
    %v4954 = vadd.f32 %v4952, %v4953
    %v4955 = vsel %vm2232, %v4865, 0.0
    %v4956 = vadd.f32 %v4954, %v4955
    %v4957 = vsel %vm2232, %v4866, 0.0
    %v4958 = vadd.f32 %v4956, %v4957
    %v4959 = vsel %vm2232, %v4867, 0.0
    %v4960 = vadd.f32 %v4958, %v4959
    %v4961 = vsel %vm2232, %v4868, 0.0
    %v4962 = vadd.f32 %v4960, %v4961
    %v4963 = vsel %vm2232, %v4869, 0.0
    %v4964 = vadd.f32 %v4962, %v4963
    %v4965 = vrot.slane %v4964, 4
    %v4966 = vadd.f32 %v4964, %v4965
    %v4967 = vrot.slane %v4966, 2
    %v4968 = vadd.f32 %v4966, %v4967
    %v4969 = vrot.slane %v4968, 1
    %v4970 = vadd.f32 %v4968, %v4969
    %v4971 = vmul.f32 %v4970, 0.0033333334
    %v4972 = vmul.f32 %v4822, %v4822
    %v4973 = vmul.f32 %v4823, %v4823
    %v4974 = vmul.f32 %v4824, %v4824
    %v4975 = vmul.f32 %v4825, %v4825
    %v4976 = vmul.f32 %v4826, %v4826
    %v4977 = vmul.f32 %v4827, %v4827
    %v4978 = vmul.f32 %v4828, %v4828
    %v4979 = vmul.f32 %v4829, %v4829
    %v4980 = vmul.f32 %v4830, %v4830
    %v4981 = vmul.f32 %v4831, %v4831
    %v4982 = vmul.f32 %v4832, %v4832
    %v4983 = vmul.f32 %v4833, %v4833
    %v4984 = vmul.f32 %v4834, %v4834
    %v4985 = vmul.f32 %v4835, %v4835
    %v4986 = vmul.f32 %v4836, %v4836
    %v4987 = vmul.f32 %v4837, %v4837
    %v4988 = vmul.f32 %v4838, %v4838
    %v4989 = vmul.f32 %v4839, %v4839
    %v4990 = vmul.f32 %v4840, %v4840
    %v4991 = vmul.f32 %v4841, %v4841
    %v4992 = vmul.f32 %v4842, %v4842
    %v4993 = vmul.f32 %v4843, %v4843
    %v4994 = vmul.f32 %v4844, %v4844
    %v4995 = vmul.f32 %v4845, %v4845
    %v4996 = vmul.f32 %v4846, %v4846
    %v4997 = vmul.f32 %v4847, %v4847
    %v4998 = vmul.f32 %v4848, %v4848
    %v4999 = vmul.f32 %v4849, %v4849
    %v5000 = vmul.f32 %v4850, %v4850
    %v5001 = vmul.f32 %v4851, %v4851
    %v5002 = vmul.f32 %v4852, %v4852
    %v5003 = vmul.f32 %v4853, %v4853
    %v5004 = vmul.f32 %v4854, %v4854
    %v5005 = vmul.f32 %v4855, %v4855
    %v5006 = vmul.f32 %v4856, %v4856
    %v5007 = vmul.f32 %v4857, %v4857
    %v5008 = vmul.f32 %v4858, %v4858
    %v5009 = vmul.f32 %v4859, %v4859
    %v5010 = vmul.f32 %v4860, %v4860
    %v5011 = vmul.f32 %v4861, %v4861
    %v5012 = vmul.f32 %v4862, %v4862
    %v5013 = vmul.f32 %v4863, %v4863
    %v5014 = vmul.f32 %v4864, %v4864
    %v5015 = vmul.f32 %v4865, %v4865
    %v5016 = vmul.f32 %v4866, %v4866
    %v5017 = vmul.f32 %v4867, %v4867
    %v5018 = vmul.f32 %v4868, %v4868
    %v5019 = vmul.f32 %v4869, %v4869
    %v5020 = vsel %vm2232, %v4972, 0.0
    %v5021 = vsel %vm2232, %v4973, 0.0
    %v5022 = vadd.f32 %v5020, %v5021
    %v5023 = vsel %vm2232, %v4974, 0.0
    %v5024 = vadd.f32 %v5022, %v5023
    %v5025 = vsel %vm2232, %v4975, 0.0
    %v5026 = vadd.f32 %v5024, %v5025
    %v5027 = vsel %vm2232, %v4976, 0.0
    %v5028 = vadd.f32 %v5026, %v5027
    %v5029 = vsel %vm2232, %v4977, 0.0
    %v5030 = vadd.f32 %v5028, %v5029
    %v5031 = vsel %vm2232, %v4978, 0.0
    %v5032 = vadd.f32 %v5030, %v5031
    %v5033 = vsel %vm2232, %v4979, 0.0
    %v5034 = vadd.f32 %v5032, %v5033
    %v5035 = vsel %vm2232, %v4980, 0.0
    %v5036 = vadd.f32 %v5034, %v5035
    %v5037 = vsel %vm2232, %v4981, 0.0
    %v5038 = vadd.f32 %v5036, %v5037
    %v5039 = vsel %vm2232, %v4982, 0.0
    %v5040 = vadd.f32 %v5038, %v5039
    %v5041 = vsel %vm2232, %v4983, 0.0
    %v5042 = vadd.f32 %v5040, %v5041
    %v5043 = vsel %vm2232, %v4984, 0.0
    %v5044 = vadd.f32 %v5042, %v5043
    %v5045 = vsel %vm2232, %v4985, 0.0
    %v5046 = vadd.f32 %v5044, %v5045
    %v5047 = vsel %vm2232, %v4986, 0.0
    %v5048 = vadd.f32 %v5046, %v5047
    %v5049 = vsel %vm2232, %v4987, 0.0
    %v5050 = vadd.f32 %v5048, %v5049
    %v5051 = vsel %vm2232, %v4988, 0.0
    %v5052 = vadd.f32 %v5050, %v5051
    %v5053 = vsel %vm2232, %v4989, 0.0
    %v5054 = vadd.f32 %v5052, %v5053
    %v5055 = vsel %vm2232, %v4990, 0.0
    %v5056 = vadd.f32 %v5054, %v5055
    %v5057 = vsel %vm2232, %v4991, 0.0
    %v5058 = vadd.f32 %v5056, %v5057
    %v5059 = vsel %vm2232, %v4992, 0.0
    %v5060 = vadd.f32 %v5058, %v5059
    %v5061 = vsel %vm2232, %v4993, 0.0
    %v5062 = vadd.f32 %v5060, %v5061
    %v5063 = vsel %vm2232, %v4994, 0.0
    %v5064 = vadd.f32 %v5062, %v5063
    %v5065 = vsel %vm2232, %v4995, 0.0
    %v5066 = vadd.f32 %v5064, %v5065
    %v5067 = vsel %vm2232, %v4996, 0.0
    %v5068 = vadd.f32 %v5066, %v5067
    %v5069 = vsel %vm2232, %v4997, 0.0
    %v5070 = vadd.f32 %v5068, %v5069
    %v5071 = vsel %vm2232, %v4998, 0.0
    %v5072 = vadd.f32 %v5070, %v5071
    %v5073 = vsel %vm2232, %v4999, 0.0
    %v5074 = vadd.f32 %v5072, %v5073
    %v5075 = vsel %vm2232, %v5000, 0.0
    %v5076 = vadd.f32 %v5074, %v5075
    %v5077 = vsel %vm2232, %v5001, 0.0
    %v5078 = vadd.f32 %v5076, %v5077
    %v5079 = vsel %vm2232, %v5002, 0.0
    %v5080 = vadd.f32 %v5078, %v5079
    %v5081 = vsel %vm2232, %v5003, 0.0
    %v5082 = vadd.f32 %v5080, %v5081
    %v5083 = vsel %vm2232, %v5004, 0.0
    %v5084 = vadd.f32 %v5082, %v5083
    %v5085 = vsel %vm2232, %v5005, 0.0
    %v5086 = vadd.f32 %v5084, %v5085
    %v5087 = vsel %vm2232, %v5006, 0.0
    %v5088 = vadd.f32 %v5086, %v5087
    %v5089 = vsel %vm2232, %v5007, 0.0
    %v5090 = vadd.f32 %v5088, %v5089
    %v5091 = vsel %vm2232, %v5008, 0.0
    %v5092 = vadd.f32 %v5090, %v5091
    %v5093 = vsel %vm2232, %v5009, 0.0
    %v5094 = vadd.f32 %v5092, %v5093
    %v5095 = vsel %vm2232, %v5010, 0.0
    %v5096 = vadd.f32 %v5094, %v5095
    %v5097 = vsel %vm2232, %v5011, 0.0
    %v5098 = vadd.f32 %v5096, %v5097
    %v5099 = vsel %vm2232, %v5012, 0.0
    %v5100 = vadd.f32 %v5098, %v5099
    %v5101 = vsel %vm2232, %v5013, 0.0
    %v5102 = vadd.f32 %v5100, %v5101
    %v5103 = vsel %vm2232, %v5014, 0.0
    %v5104 = vadd.f32 %v5102, %v5103
    %v5105 = vsel %vm2232, %v5015, 0.0
    %v5106 = vadd.f32 %v5104, %v5105
    %v5107 = vsel %vm2232, %v5016, 0.0
    %v5108 = vadd.f32 %v5106, %v5107
    %v5109 = vsel %vm2232, %v5017, 0.0
    %v5110 = vadd.f32 %v5108, %v5109
    %v5111 = vsel %vm2232, %v5018, 0.0
    %v5112 = vadd.f32 %v5110, %v5111
    %v5113 = vsel %vm2232, %v5019, 0.0
    %v5114 = vadd.f32 %v5112, %v5113
    %v5115 = vrot.slane %v5114, 4
    %v5116 = vadd.f32 %v5114, %v5115
    %v5117 = vrot.slane %v5116, 2
    %v5118 = vadd.f32 %v5116, %v5117
    %v5119 = vrot.slane %v5118, 1
    %v5120 = vadd.f32 %v5118, %v5119
    %v5121 = vmul.f32 %v5120, 0.0033333334
    %v5122 = vmul.f32 %v4971, %v4971
    %v5123 = vsub.f32 %v5121, %v5122
    %v5124 = vmax.f32 %v5123, 0.0
    %v5125 = vadd.f32 %v5124, 1e-05
    %v5126 = vrsqrt.pop %v5125
    %v5127 = vmul.f32 %v3225, %v5126
    %v5128 = vmul.f32 %v4971, %v5127
    %v5130 = vrot.slane %v5128, 7
    %v5132 = vsub.f32 %v3225, %v5130
    %5133 = vmatprep.subr.mxu0 0.0
    %5134 = vmatpush1.msra.mxu0 %v4822
    %5135 = vmatprep.subr.mxu0 0.0
    %5136 = vmatpush1.msra.mxu0 %v4823
    %5137 = vmatprep.subr.mxu0 0.0
    %5138 = vmatpush1.msra.mxu0 %v4824
    %5139 = vmatprep.subr.mxu0 0.0
    %5140 = vmatpush1.msra.mxu0 %v4825
    %5141 = vmatprep.subr.mxu0 0.0
    %5142 = vmatpush1.msra.mxu0 %v4826
    %5143 = vmatprep.subr.mxu0 0.0
    %5144 = vmatpush1.msra.mxu0 %v4827
    %5145 = vmatprep.subr.mxu0 0.0
    %5146 = vmatpush1.msra.mxu0 %v4828
    %5147 = vmatprep.subr.mxu0 0.0
    %5148 = vmatpush1.msra.mxu0 %v4829
    %5149 = vmatprep.subr.mxu0 0.0
    %5150 = vmatpush1.msra.mxu0 %v4830
    %5151 = vmatprep.subr.mxu0 0.0
    %5152 = vmatpush1.msra.mxu0 %v4831
    %5153 = vmatprep.subr.mxu0 0.0
    %5154 = vmatpush1.msra.mxu0 %v4832
    %5155 = vmatprep.subr.mxu0 0.0
    %5156 = vmatpush1.msra.mxu0 %v4833
    %5157 = vmatprep.subr.mxu0 0.0
    %5158 = vmatpush1.msra.mxu0 %v4834
    %5159 = vmatprep.subr.mxu0 0.0
    %5160 = vmatpush1.msra.mxu0 %v4835
    %5161 = vmatprep.subr.mxu0 0.0
    %5162 = vmatpush1.msra.mxu0 %v4836
    %5163 = vmatprep.subr.mxu0 0.0
    %5164 = vmatpush1.msra.mxu0 %v4837
    %5165 = vmatprep.subr.mxu0 0.0
    %5166 = vmatpush1.msra.mxu0 %v4838
    %5167 = vmatprep.subr.mxu0 0.0
    %5168 = vmatpush1.msra.mxu0 %v4839
    %5169 = vmatprep.subr.mxu0 0.0
    %5170 = vmatpush1.msra.mxu0 %v4840
    %5171 = vmatprep.subr.mxu0 0.0
    %5172 = vmatpush1.msra.mxu0 %v4841
    %5173 = vmatprep.subr.mxu0 0.0
    %5174 = vmatpush1.msra.mxu0 %v4842
    %5175 = vmatprep.subr.mxu0 0.0
    %5176 = vmatpush1.msra.mxu0 %v4843
    %5177 = vmatprep.subr.mxu0 0.0
    %5178 = vmatpush1.msra.mxu0 %v4844
    %5179 = vmatprep.subr.mxu0 0.0
    %5180 = vmatpush1.msra.mxu0 %v4845
    %5181 = vmatprep.subr.mxu0 0.0
    %5182 = vmatpush1.msra.mxu0 %v4846
    %5183 = vmatprep.subr.mxu0 0.0
    %5184 = vmatpush1.msra.mxu0 %v4847
    %5185 = vmatprep.subr.mxu0 0.0
    %5186 = vmatpush1.msra.mxu0 %v4848
    %5187 = vmatprep.subr.mxu0 0.0
    %5188 = vmatpush1.msra.mxu0 %v4849
    %5189 = vmatprep.subr.mxu0 0.0
    %5190 = vmatpush1.msra.mxu0 %v4850
    %5191 = vmatprep.subr.mxu0 0.0
    %5192 = vmatpush1.msra.mxu0 %v4851
    %5193 = vmatprep.subr.mxu0 0.0
    %5194 = vmatpush1.msra.mxu0 %v4852
    %5195 = vmatprep.subr.mxu0 0.0
    %5196 = vmatpush1.msra.mxu0 %v4853
    %5197 = vmatprep.mubr.f32.mxu0 %v830
    %5198 = vmatmul.mubr.f32.gmra.mrb[0].mxu0 %v829
    %v5199 = vpop.f32.mrb[0].mxu0
    %v5200 = vadd.f32 0.0, %v5199
    %v5201 = vpop.f32.mrb[0].mxu0
    %5202 = vdwg.mxu0
    %5203 = vmatprep.subr.mxu0 0.0
    %5204 = vmatpush1.msra.mxu0 %v4854
    %5205 = vmatprep.subr.mxu0 0.0
    %5206 = vmatpush1.msra.mxu0 %v4855
    %5207 = vmatprep.subr.mxu0 0.0
    %5208 = vmatpush1.msra.mxu0 %v4856
    %5209 = vmatprep.subr.mxu0 0.0
    %5210 = vmatpush1.msra.mxu0 %v4857
    %5211 = vmatprep.subr.mxu0 0.0
    %5212 = vmatpush1.msra.mxu0 %v4858
    %5213 = vmatprep.subr.mxu0 0.0
    %5214 = vmatpush1.msra.mxu0 %v4859
    %5215 = vmatprep.subr.mxu0 0.0
    %5216 = vmatpush1.msra.mxu0 %v4860
    %5217 = vmatprep.subr.mxu0 0.0
    %5218 = vmatpush1.msra.mxu0 %v4861
    %5219 = vmatprep.subr.mxu0 0.0
    %5220 = vmatpush1.msra.mxu0 %v4862
    %5221 = vmatprep.subr.mxu0 0.0
    %5222 = vmatpush1.msra.mxu0 %v4863
    %5223 = vmatprep.subr.mxu0 0.0
    %5224 = vmatpush1.msra.mxu0 %v4864
    %5225 = vmatprep.subr.mxu0 0.0
    %5226 = vmatpush1.msra.mxu0 %v4865
    %5227 = vmatprep.subr.mxu0 0.0
    %5228 = vmatpush1.msra.mxu0 %v4866
    %5229 = vmatprep.subr.mxu0 0.0
    %5230 = vmatpush1.msra.mxu0 %v4867
    %5231 = vmatprep.subr.mxu0 0.0
    %5232 = vmatpush1.msra.mxu0 %v4868
    %5233 = vmatprep.subr.mxu0 0.0
    %5234 = vmatpush1.msra.mxu0 %v4869
    %5235 = vmatprep.subr.mxu0 0.0
    %5236 = vmatpush1.msra.mxu0 0.0
    %5237 = vmatprep.subr.mxu0 0.0
    %5238 = vmatpush1.msra.mxu0 0.0
    %5239 = vmatprep.subr.mxu0 0.0
    %5240 = vmatpush1.msra.mxu0 0.0
    %5241 = vmatprep.subr.mxu0 0.0
    %5242 = vmatpush1.msra.mxu0 0.0
    %5243 = vmatprep.subr.mxu0 0.0
    %5244 = vmatpush1.msra.mxu0 0.0
    %5245 = vmatprep.subr.mxu0 0.0
    %5246 = vmatpush1.msra.mxu0 0.0
    %5247 = vmatprep.subr.mxu0 0.0
    %5248 = vmatpush1.msra.mxu0 0.0
    %5249 = vmatprep.subr.mxu0 0.0
    %5250 = vmatpush1.msra.mxu0 0.0
    %5251 = vmatprep.subr.mxu0 0.0
    %5252 = vmatpush1.msra.mxu0 0.0
    %5253 = vmatprep.subr.mxu0 0.0
    %5254 = vmatpush1.msra.mxu0 0.0
    %5255 = vmatprep.subr.mxu0 0.0
    %5256 = vmatpush1.msra.mxu0 0.0
    %5257 = vmatprep.subr.mxu0 0.0
    %5258 = vmatpush1.msra.mxu0 0.0
    %5259 = vmatprep.subr.mxu0 0.0
    %5260 = vmatpush1.msra.mxu0 0.0
    %5261 = vmatprep.subr.mxu0 0.0
    %5262 = vmatpush1.msra.mxu0 0.0
    %5263 = vmatprep.subr.mxu0 0.0
    %5264 = vmatpush1.msra.mxu0 0.0
    %5265 = vmatprep.subr.mxu0 0.0
    %5266 = vmatpush1.msra.mxu0 0.0
    %5267 = vmatprep.mubr.f32.mxu0 0.0
    %5268 = vmatmul.mubr.f32.gmra.mrb[0].mxu0 %v831
    %v5269 = vpop.f32.mrb[0].mxu0
    %v5270 = vadd.f32 %v5200, %v5269
    %v5271 = vpop.f32.mrb[0].mxu0
    %5272 = vdwg.mxu0
    %v5273 = vlaneseq
    %v5274 = vshrl.u32 %v5273, 7
    %v5275 = vsub.s32 0, %v5274
    %v5276 = vrot.slane %v5127, %v5275
    %v5277 = vmul.f32 %v5270, %v5276
    %v5278 = vlaneseq
    %v5279 = vshrl.u32 %v5278, 7
    %v5280 = vsub.s32 1, %v5279
    %v5281 = vrot.slane %v5132, %v5280
    %v5282 = vmul.f32 %v835, %v5281
    %v5283 = vadd.f32 %v5277, %v5282
    %v5284 = vpack.c.bf16 %v4823, %v4822
    %v5285 = vpack.c.bf16 %v4825, %v4824
    %v5286 = vpack.c.bf16 %v4827, %v4826
    %v5287 = vpack.c.bf16 %v4829, %v4828
    %v5288 = vpack.c.bf16 %v4831, %v4830
    %v5289 = vpack.c.bf16 %v4833, %v4832
    %v5290 = vpack.c.bf16 %v4835, %v4834
    %v5291 = vpack.c.bf16 %v4837, %v4836
    %v5292 = vpack.c.bf16 %v4839, %v4838
    %v5293 = vpack.c.bf16 %v4841, %v4840
    %v5294 = vpack.c.bf16 %v4843, %v4842
    %v5295 = vpack.c.bf16 %v4845, %v4844
    %v5296 = vpack.c.bf16 %v4847, %v4846
    %v5297 = vpack.c.bf16 %v4849, %v4848
    %v5298 = vpack.c.bf16 %v4851, %v4850
    %v5299 = vpack.c.bf16 %v4853, %v4852
    %v5300 = vpack.c.bf16 %v4855, %v4854
    %v5301 = vpack.c.bf16 %v4857, %v4856
    %v5302 = vpack.c.bf16 %v4859, %v4858
    %v5303 = vpack.c.bf16 %v4861, %v4860
    %v5304 = vpack.c.bf16 %v4863, %v4862
    %v5305 = vpack.c.bf16 %v4865, %v4864
    %v5306 = vpack.c.bf16 %v4867, %v4866
    %v5307 = vpack.c.bf16 %v4869, %v4868
    %v5308 = vld [vmem:[#allocation19] sm:$0xff]
    %v5309 = vld [vmem:[#allocation19 + $0x8] sm:$0xff]
    %v5310 = vld [vmem:[#allocation19 + $0x10] sm:$0xff]
    %v5311 = vld [vmem:[#allocation19 + $0x18] sm:$0xff]
    %v5312 = vld [vmem:[#allocation20] sm:$0xff]
    %v5313 = vld [vmem:[#allocation20 + $0x8] sm:$0xff]
    %v5314 = vld [vmem:[#allocation20 + $0x10] sm:$0xff]
    %v5315 = vld [vmem:[#allocation20 + $0x18] sm:$0xff]
    %v5316 = vld [vmem:[#allocation22] sm:$0x3]
    %v5317 = vld [vmem:[#allocation23] sm:$0x3]
    %5318 = vmatprep.subr.bf16.mxu0 0
    %5319 = vmatpush1.bf16.msra.mxu0 %v5284
    %5320 = vmatprep.subr.bf16.mxu0 0
    %5321 = vmatpush1.bf16.msra.mxu0 %v5285
    %5322 = vmatprep.subr.bf16.mxu0 0
    %5323 = vmatpush1.bf16.msra.mxu0 %v5286
    %5324 = vmatprep.subr.bf16.mxu0 0
    %5325 = vmatpush1.bf16.msra.mxu0 %v5287
    %5326 = vmatprep.subr.bf16.mxu0 0
    %5327 = vmatpush1.bf16.msra.mxu0 %v5288
    %5328 = vmatprep.subr.bf16.mxu0 0
    %5329 = vmatpush1.bf16.msra.mxu0 %v5289
    %5330 = vmatprep.subr.bf16.mxu0 0
    %5331 = vmatpush1.bf16.msra.mxu0 %v5290
    %5332 = vmatprep.subr.bf16.mxu0 0
    %5333 = vmatpush1.bf16.msra.mxu0 %v5291
    %5334 = vmatprep.subr.bf16.mxu0 0
    %5335 = vmatpush1.bf16.msra.mxu0 %v5292
    %5336 = vmatprep.subr.bf16.mxu0 0
    %5337 = vmatpush1.bf16.msra.mxu0 %v5293
    %5338 = vmatprep.subr.bf16.mxu0 0
    %5339 = vmatpush1.bf16.msra.mxu0 %v5294
    %5340 = vmatprep.subr.bf16.mxu0 0
    %5341 = vmatpush1.bf16.msra.mxu0 %v5295
    %5342 = vmatprep.subr.bf16.mxu0 0
    %5343 = vmatpush1.bf16.msra.mxu0 %v5296
    %5344 = vmatprep.subr.bf16.mxu0 0
    %5345 = vmatpush1.bf16.msra.mxu0 %v5297
    %5346 = vmatprep.subr.bf16.mxu0 0
    %5347 = vmatpush1.bf16.msra.mxu0 %v5298
    %5348 = vmatprep.subr.bf16.mxu0 0
    %5349 = vmatpush1.bf16.msra.mxu0 %v5299
    %5350 = vmatprep.mubr.bf16.mxu0 %v566
    %5351 = vmatmul.mubr.bf16.gmra.mrb[0].mxu0 %v565
    %v5352 = vpop.f32.mrb[0].mxu0
    %v5353 = vadd.f32 0.0, %v5352
    %v5354 = vpop.f32.mrb[0].mxu0
    %v5355 = vpop.f32.mrb[0].mxu0
    %v5356 = vadd.f32 0.0, %v5355
    %v5357 = vpop.f32.mrb[0].mxu0
    %5358 = vmatprep.mubr.bf16.mxu0 %v569
    %5359 = vmatmul.mubr.bf16.gmra.mrb[0].mxu0 %v568
    %v5360 = vpop.f32.mrb[0].mxu0
    %v5361 = vadd.f32 0.0, %v5360
    %v5362 = vpop.f32.mrb[0].mxu0
    %v5363 = vpop.f32.mrb[0].mxu0
    %v5364 = vadd.f32 0.0, %v5363
    %v5365 = vpop.f32.mrb[0].mxu0
    %5366 = vmatprep.mubr.bf16.mxu0 %v572
    %5367 = vmatmul.mubr.bf16.gmra.mrb[0].mxu0 %v571
    %v5368 = vpop.f32.mrb[0].mxu0
    %v5369 = vadd.f32 0.0, %v5368
    %v5370 = vpop.f32.mrb[0].mxu0
    %v5371 = vpop.f32.mrb[0].mxu0
    %v5372 = vadd.f32 0.0, %v5371
    %v5373 = vpop.f32.mrb[0].mxu0
    %5374 = vmatprep.mubr.bf16.mxu0 %v575
    %5375 = vmatmul.mubr.bf16.gmra.mrb[0].mxu0 %v574
    %v5376 = vpop.f32.mrb[0].mxu0
    %v5377 = vadd.f32 0.0, %v5376
    %v5378 = vpop.f32.mrb[0].mxu0
    %v5379 = vpop.f32.mrb[0].mxu0
    %v5380 = vadd.f32 0.0, %v5379
    %v5381 = vpop.f32.mrb[0].mxu0
    %5382 = vmatprep.mubr.bf16.mxu0 %v578
    %5383 = vmatmul.mubr.bf16.gmra.mrb[0].mxu0 %v577
    %v5384 = vpop.f32.mrb[0].mxu0
    %v5385 = vadd.f32 0.0, %v5384
    %v5386 = vpop.f32.mrb[0].mxu0
    %v5387 = vpop.f32.mrb[0].mxu0
    %v5388 = vadd.f32 0.0, %v5387
    %v5389 = vpop.f32.mrb[0].mxu0
    %5390 = vmatprep.mubr.bf16.mxu0 %v581
    %5391 = vmatmul.mubr.bf16.gmra.mrb[0].mxu0 %v580
    %v5392 = vpop.f32.mrb[0].mxu0
    %v5393 = vadd.f32 0.0, %v5392
    %v5394 = vpop.f32.mrb[0].mxu0
    %v5395 = vpop.f32.mrb[0].mxu0
    %v5396 = vadd.f32 0.0, %v5395
    %v5397 = vpop.f32.mrb[0].mxu0
    %5398 = vmatprep.mubr.bf16.mxu0 %v584
    %5399 = vmatmul.mubr.bf16.gmra.mrb[0].mxu0 %v583
    %v5400 = vpop.f32.mrb[0].mxu0
    %v5401 = vadd.f32 0.0, %v5400
    %v5402 = vpop.f32.mrb[0].mxu0
    %v5403 = vpop.f32.mrb[0].mxu0
    %v5404 = vadd.f32 0.0, %v5403
    %v5405 = vpop.f32.mrb[0].mxu0
    %5406 = vmatprep.mubr.bf16.mxu0 %v587
    %5407 = vmatmul.mubr.bf16.gmra.mrb[0].mxu0 %v586
    %v5408 = vpop.f32.mrb[0].mxu0
    %v5409 = vadd.f32 0.0, %v5408
    %v5410 = vpop.f32.mrb[0].mxu0
    %v5411 = vpop.f32.mrb[0].mxu0
    %v5412 = vadd.f32 0.0, %v5411
    %v5413 = vpop.f32.mrb[0].mxu0
    %5414 = vmatprep.mubr.bf16.mxu0 %v590
    %5415 = vmatmul.mubr.bf16.gmra.mrb[0].mxu0 %v589
    %v5416 = vpop.f32.mrb[0].mxu0
    %v5417 = vadd.f32 0.0, %v5416
    %v5418 = vpop.f32.mrb[0].mxu0
    %v5419 = vpop.f32.mrb[0].mxu0
    %v5420 = vadd.f32 0.0, %v5419
    %v5421 = vpop.f32.mrb[0].mxu0
    %5422 = vmatprep.mubr.bf16.mxu0 %v593
    %5423 = vmatmul.mubr.bf16.gmra.mrb[0].mxu0 %v592
    %v5424 = vpop.f32.mrb[0].mxu0
    %v5425 = vadd.f32 0.0, %v5424
    %v5426 = vpop.f32.mrb[0].mxu0
    %v5427 = vpop.f32.mrb[0].mxu0
    %v5428 = vadd.f32 0.0, %v5427
    %v5429 = vpop.f32.mrb[0].mxu0
    %5430 = vmatprep.mubr.bf16.mxu0 %v596
    %5431 = vmatmul.mubr.bf16.gmra.mrb[0].mxu0 %v595
    %v5432 = vpop.f32.mrb[0].mxu0
    %v5433 = vadd.f32 0.0, %v5432
    %v5434 = vpop.f32.mrb[0].mxu0
    %v5435 = vpop.f32.mrb[0].mxu0
    %v5436 = vadd.f32 0.0, %v5435
    %v5437 = vpop.f32.mrb[0].mxu0
    %5438 = vmatprep.mubr.bf16.mxu0 %v599
    %5439 = vmatmul.mubr.bf16.gmra.mrb[0].mxu0 %v598
    %v5440 = vpop.f32.mrb[0].mxu0
    %v5441 = vadd.f32 0.0, %v5440
    %v5442 = vpop.f32.mrb[0].mxu0
    %v5443 = vpop.f32.mrb[0].mxu0
    %v5444 = vadd.f32 0.0, %v5443
    %v5445 = vpop.f32.mrb[0].mxu0
    %5446 = vmatprep.mubr.bf16.mxu0 %v602
    %5447 = vmatmul.mubr.bf16.gmra.mrb[0].mxu0 %v601
    %v5448 = vpop.f32.mrb[0].mxu0
    %v5449 = vadd.f32 0.0, %v5448
    %v5450 = vpop.f32.mrb[0].mxu0
    %v5451 = vpop.f32.mrb[0].mxu0
    %v5452 = vadd.f32 0.0, %v5451
    %v5453 = vpop.f32.mrb[0].mxu0
    %5454 = vmatprep.mubr.bf16.mxu0 %v605
    %5455 = vmatmul.mubr.bf16.gmra.mrb[0].mxu0 %v604
    %v5456 = vpop.f32.mrb[0].mxu0
    %v5457 = vadd.f32 0.0, %v5456
    %v5458 = vpop.f32.mrb[0].mxu0
    %v5459 = vpop.f32.mrb[0].mxu0
    %v5460 = vadd.f32 0.0, %v5459
    %v5461 = vpop.f32.mrb[0].mxu0
    %5462 = vmatprep.mubr.bf16.mxu0 %v608
    %5463 = vmatmul.mubr.bf16.gmra.mrb[0].mxu0 %v607
    %v5464 = vpop.f32.mrb[0].mxu0
    %v5465 = vadd.f32 0.0, %v5464
    %v5466 = vpop.f32.mrb[0].mxu0
    %v5467 = vpop.f32.mrb[0].mxu0
    %v5468 = vadd.f32 0.0, %v5467
    %v5469 = vpop.f32.mrb[0].mxu0
    %5470 = vmatprep.mubr.bf16.mxu0 %v611
    %5471 = vmatmul.mubr.bf16.gmra.mrb[0].mxu0 %v610
    %v5472 = vpop.f32.mrb[0].mxu0
    %v5473 = vadd.f32 0.0, %v5472
    %v5474 = vpop.f32.mrb[0].mxu0
    %v5475 = vpop.f32.mrb[0].mxu0
    %v5476 = vadd.f32 0.0, %v5475
    %v5477 = vpop.f32.mrb[0].mxu0
    %5478 = vmatprep.mubr.bf16.mxu0 %v614
    %5479 = vmatmul.mubr.bf16.gmra.mrb[0].mxu0 %v613
    %v5480 = vpop.f32.mrb[0].mxu0
    %v5481 = vadd.f32 0.0, %v5480
    %v5482 = vpop.f32.mrb[0].mxu0
    %v5483 = vpop.f32.mrb[0].mxu0
    %v5484 = vadd.f32 0.0, %v5483
    %v5485 = vpop.f32.mrb[0].mxu0
    %5486 = vmatprep.mubr.bf16.mxu0 %v617
    %5487 = vmatmul.mubr.bf16.gmra.mrb[0].mxu0 %v616
    %v5488 = vpop.f32.mrb[0].mxu0
    %v5489 = vadd.f32 0.0, %v5488
    %v5490 = vpop.f32.mrb[0].mxu0
    %v5491 = vpop.f32.mrb[0].mxu0
    %v5492 = vadd.f32 0.0, %v5491
    %v5493 = vpop.f32.mrb[0].mxu0
    %5494 = vmatprep.mubr.bf16.mxu0 %v620
    %5495 = vmatmul.mubr.bf16.gmra.mrb[0].mxu0 %v619
    %v5496 = vpop.f32.mrb[0].mxu0
    %v5497 = vadd.f32 0.0, %v5496
    %v5498 = vpop.f32.mrb[0].mxu0
    %v5499 = vpop.f32.mrb[0].mxu0
    %v5500 = vadd.f32 0.0, %v5499
    %v5501 = vpop.f32.mrb[0].mxu0
    %5502 = vmatprep.mubr.bf16.mxu0 %v623
    %5503 = vmatmul.mubr.bf16.gmra.mrb[0].mxu0 %v622
    %v5504 = vpop.f32.mrb[0].mxu0
    %v5505 = vadd.f32 0.0, %v5504
    %v5506 = vpop.f32.mrb[0].mxu0
    %v5507 = vpop.f32.mrb[0].mxu0
    %v5508 = vadd.f32 0.0, %v5507
    %v5509 = vpop.f32.mrb[0].mxu0
    %5510 = vmatprep.mubr.bf16.mxu0 %v626
    %5511 = vmatmul.mubr.bf16.gmra.mrb[0].mxu0 %v625
    %v5512 = vpop.f32.mrb[0].mxu0
    %v5513 = vadd.f32 0.0, %v5512
    %v5514 = vpop.f32.mrb[0].mxu0
    %v5515 = vpop.f32.mrb[0].mxu0
    %v5516 = vadd.f32 0.0, %v5515
    %v5517 = vpop.f32.mrb[0].mxu0
    %5518 = vmatprep.mubr.bf16.mxu0 %v629
    %5519 = vmatmul.mubr.bf16.gmra.mrb[0].mxu0 %v628
    %v5520 = vpop.f32.mrb[0].mxu0
    %v5521 = vadd.f32 0.0, %v5520
    %v5522 = vpop.f32.mrb[0].mxu0
    %v5523 = vpop.f32.mrb[0].mxu0
    %v5524 = vadd.f32 0.0, %v5523
    %v5525 = vpop.f32.mrb[0].mxu0
    %5526 = vmatprep.mubr.bf16.mxu0 %v632
    %5527 = vmatmul.mubr.bf16.gmra.mrb[0].mxu0 %v631
    %v5528 = vpop.f32.mrb[0].mxu0
    %v5529 = vadd.f32 0.0, %v5528
    %v5530 = vpop.f32.mrb[0].mxu0
    %v5531 = vpop.f32.mrb[0].mxu0
    %v5532 = vadd.f32 0.0, %v5531
    %v5533 = vpop.f32.mrb[0].mxu0
    %5534 = vmatprep.mubr.bf16.mxu0 %v635
    %5535 = vmatmul.mubr.bf16.gmra.mrb[0].mxu0 %v634
    %v5536 = vpop.f32.mrb[0].mxu0
    %v5537 = vadd.f32 0.0, %v5536
    %v5538 = vpop.f32.mrb[0].mxu0
    %v5539 = vpop.f32.mrb[0].mxu0
    %v5540 = vadd.f32 0.0, %v5539
    %v5541 = vpop.f32.mrb[0].mxu0
    %5542 = vdwg.mxu0
    %5543 = vmatprep.subr.bf16.mxu0 0
    %5544 = vmatpush1.bf16.msra.mxu0 %v5300
    %5545 = vmatprep.subr.bf16.mxu0 0
    %5546 = vmatpush1.bf16.msra.mxu0 %v5301
    %5547 = vmatprep.subr.bf16.mxu0 0
    %5548 = vmatpush1.bf16.msra.mxu0 %v5302
    %5549 = vmatprep.subr.bf16.mxu0 0
    %5550 = vmatpush1.bf16.msra.mxu0 %v5303
    %5551 = vmatprep.subr.bf16.mxu0 0
    %5552 = vmatpush1.bf16.msra.mxu0 %v5304
    %5553 = vmatprep.subr.bf16.mxu0 0
    %5554 = vmatpush1.bf16.msra.mxu0 %v5305
    %5555 = vmatprep.subr.bf16.mxu0 0
    %5556 = vmatpush1.bf16.msra.mxu0 %v5306
    %5557 = vmatprep.subr.bf16.mxu0 0
    %5558 = vmatpush1.bf16.msra.mxu0 %v5307
    %5559 = vmatprep.subr.bf16.mxu0 0
    %5560 = vmatpush1.bf16.msra.mxu0 0
    %5561 = vmatprep.subr.bf16.mxu0 0
    %5562 = vmatpush1.bf16.msra.mxu0 0
    %5563 = vmatprep.subr.bf16.mxu0 0
    %5564 = vmatpush1.bf16.msra.mxu0 0
    %5565 = vmatprep.subr.bf16.mxu0 0
    %5566 = vmatpush1.bf16.msra.mxu0 0
    %5567 = vmatprep.subr.bf16.mxu0 0
    %5568 = vmatpush1.bf16.msra.mxu0 0
    %5569 = vmatprep.subr.bf16.mxu0 0
    %5570 = vmatpush1.bf16.msra.mxu0 0
    %5571 = vmatprep.subr.bf16.mxu0 0
    %5572 = vmatpush1.bf16.msra.mxu0 0
    %5573 = vmatprep.subr.bf16.mxu0 0
    %5574 = vmatpush1.bf16.msra.mxu0 0
    %5575 = vmatprep.mubr.bf16.mxu0 0
    %5576 = vmatmul.mubr.bf16.gmra.mrb[0].mxu0 %v567
    %v5577 = vpop.f32.mrb[0].mxu0
    %v5578 = vadd.f32 %v5353, %v5577
    %v5579 = vpop.f32.mrb[0].mxu0
    %v5580 = vpop.f32.mrb[0].mxu0
    %v5581 = vadd.f32 %v5356, %v5580
    %v5582 = vpop.f32.mrb[0].mxu0
    %5583 = vmatprep.mubr.bf16.mxu0 0
    %5584 = vmatmul.mubr.bf16.gmra.mrb[0].mxu0 %v570
    %v5585 = vpop.f32.mrb[0].mxu0
    %v5586 = vadd.f32 %v5361, %v5585
    %v5587 = vpop.f32.mrb[0].mxu0
    %v5588 = vpop.f32.mrb[0].mxu0
    %v5589 = vadd.f32 %v5364, %v5588
    %v5590 = vpop.f32.mrb[0].mxu0
    %5591 = vmatprep.mubr.bf16.mxu0 0
    %5592 = vmatmul.mubr.bf16.gmra.mrb[0].mxu0 %v573
    %v5593 = vpop.f32.mrb[0].mxu0
    %v5594 = vadd.f32 %v5369, %v5593
    %v5595 = vpop.f32.mrb[0].mxu0
    %v5596 = vpop.f32.mrb[0].mxu0
    %v5597 = vadd.f32 %v5372, %v5596
    %v5598 = vpop.f32.mrb[0].mxu0
    %5599 = vmatprep.mubr.bf16.mxu0 0
    %5600 = vmatmul.mubr.bf16.gmra.mrb[0].mxu0 %v576
    %v5601 = vpop.f32.mrb[0].mxu0
    %v5602 = vadd.f32 %v5377, %v5601
    %v5603 = vpop.f32.mrb[0].mxu0
    %v5604 = vpop.f32.mrb[0].mxu0
    %v5605 = vadd.f32 %v5380, %v5604
    %v5606 = vpop.f32.mrb[0].mxu0
    %5607 = vmatprep.mubr.bf16.mxu0 0
    %5608 = vmatmul.mubr.bf16.gmra.mrb[0].mxu0 %v579
    %v5609 = vpop.f32.mrb[0].mxu0
    %v5610 = vadd.f32 %v5385, %v5609
    %v5611 = vpop.f32.mrb[0].mxu0
    %v5612 = vpop.f32.mrb[0].mxu0
    %v5613 = vadd.f32 %v5388, %v5612
    %v5614 = vpop.f32.mrb[0].mxu0
    %5615 = vmatprep.mubr.bf16.mxu0 0
    %5616 = vmatmul.mubr.bf16.gmra.mrb[0].mxu0 %v582
    %v5617 = vpop.f32.mrb[0].mxu0
    %v5618 = vadd.f32 %v5393, %v5617
    %v5619 = vpop.f32.mrb[0].mxu0
    %v5620 = vpop.f32.mrb[0].mxu0
    %v5621 = vadd.f32 %v5396, %v5620
    %v5622 = vpop.f32.mrb[0].mxu0
    %5623 = vmatprep.mubr.bf16.mxu0 0
    %5624 = vmatmul.mubr.bf16.gmra.mrb[0].mxu0 %v585
    %v5625 = vpop.f32.mrb[0].mxu0
    %v5626 = vadd.f32 %v5401, %v5625
    %v5627 = vpop.f32.mrb[0].mxu0
    %v5628 = vpop.f32.mrb[0].mxu0
    %v5629 = vadd.f32 %v5404, %v5628
    %v5630 = vpop.f32.mrb[0].mxu0
    %5631 = vmatprep.mubr.bf16.mxu0 0
    %5632 = vmatmul.mubr.bf16.gmra.mrb[0].mxu0 %v588
    %v5633 = vpop.f32.mrb[0].mxu0
    %v5634 = vadd.f32 %v5409, %v5633
    %v5635 = vpop.f32.mrb[0].mxu0
    %v5636 = vpop.f32.mrb[0].mxu0
    %v5637 = vadd.f32 %v5412, %v5636
    %v5638 = vpop.f32.mrb[0].mxu0
    %5639 = vmatprep.mubr.bf16.mxu0 0
    %5640 = vmatmul.mubr.bf16.gmra.mrb[0].mxu0 %v591
    %v5641 = vpop.f32.mrb[0].mxu0
    %v5642 = vadd.f32 %v5417, %v5641
    %v5643 = vpop.f32.mrb[0].mxu0
    %v5644 = vpop.f32.mrb[0].mxu0
    %v5645 = vadd.f32 %v5420, %v5644
    %v5646 = vpop.f32.mrb[0].mxu0
    %5647 = vmatprep.mubr.bf16.mxu0 0
    %5648 = vmatmul.mubr.bf16.gmra.mrb[0].mxu0 %v594
    %v5649 = vpop.f32.mrb[0].mxu0
    %v5650 = vadd.f32 %v5425, %v5649
    %v5651 = vpop.f32.mrb[0].mxu0
    %v5652 = vpop.f32.mrb[0].mxu0
    %v5653 = vadd.f32 %v5428, %v5652
    %v5654 = vpop.f32.mrb[0].mxu0
    %5655 = vmatprep.mubr.bf16.mxu0 0
    %5656 = vmatmul.mubr.bf16.gmra.mrb[0].mxu0 %v597
    %v5657 = vpop.f32.mrb[0].mxu0
    %v5658 = vadd.f32 %v5433, %v5657
    %v5659 = vpop.f32.mrb[0].mxu0
    %v5660 = vpop.f32.mrb[0].mxu0
    %v5661 = vadd.f32 %v5436, %v5660
    %v5662 = vpop.f32.mrb[0].mxu0
    %5663 = vmatprep.mubr.bf16.mxu0 0
    %5664 = vmatmul.mubr.bf16.gmra.mrb[0].mxu0 %v600
    %v5665 = vpop.f32.mrb[0].mxu0
    %v5666 = vadd.f32 %v5441, %v5665
    %v5667 = vpop.f32.mrb[0].mxu0
    %v5668 = vpop.f32.mrb[0].mxu0
    %v5669 = vadd.f32 %v5444, %v5668
    %v5670 = vpop.f32.mrb[0].mxu0
    %5671 = vmatprep.mubr.bf16.mxu0 0
    %5672 = vmatmul.mubr.bf16.gmra.mrb[0].mxu0 %v603
    %v5673 = vpop.f32.mrb[0].mxu0
    %v5674 = vadd.f32 %v5449, %v5673
    %v5675 = vpop.f32.mrb[0].mxu0
    %v5676 = vpop.f32.mrb[0].mxu0
    %v5677 = vadd.f32 %v5452, %v5676
    %v5678 = vpop.f32.mrb[0].mxu0
    %5679 = vmatprep.mubr.bf16.mxu0 0
    %5680 = vmatmul.mubr.bf16.gmra.mrb[0].mxu0 %v606
    %v5681 = vpop.f32.mrb[0].mxu0
    %v5682 = vadd.f32 %v5457, %v5681
    %v5683 = vpop.f32.mrb[0].mxu0
    %v5684 = vpop.f32.mrb[0].mxu0
    %v5685 = vadd.f32 %v5460, %v5684
    %v5686 = vpop.f32.mrb[0].mxu0
    %5687 = vmatprep.mubr.bf16.mxu0 0
    %5688 = vmatmul.mubr.bf16.gmra.mrb[0].mxu0 %v609
    %v5689 = vpop.f32.mrb[0].mxu0
    %v5690 = vadd.f32 %v5465, %v5689
    %v5691 = vpop.f32.mrb[0].mxu0
    %v5692 = vpop.f32.mrb[0].mxu0
    %v5693 = vadd.f32 %v5468, %v5692
    %v5694 = vpop.f32.mrb[0].mxu0
    %5695 = vmatprep.mubr.bf16.mxu0 0
    %5696 = vmatmul.mubr.bf16.gmra.mrb[0].mxu0 %v612
    %v5697 = vpop.f32.mrb[0].mxu0
    %v5698 = vadd.f32 %v5473, %v5697
    %v5699 = vpop.f32.mrb[0].mxu0
    %v5700 = vpop.f32.mrb[0].mxu0
    %v5701 = vadd.f32 %v5476, %v5700
    %v5702 = vpop.f32.mrb[0].mxu0
    %5703 = vmatprep.mubr.bf16.mxu0 0
    %5704 = vmatmul.mubr.bf16.gmra.mrb[0].mxu0 %v615
    %v5705 = vpop.f32.mrb[0].mxu0
    %v5706 = vadd.f32 %v5481, %v5705
    %v5707 = vpop.f32.mrb[0].mxu0
    %v5708 = vpop.f32.mrb[0].mxu0
    %v5709 = vadd.f32 %v5484, %v5708
    %v5710 = vpop.f32.mrb[0].mxu0
    %5711 = vmatprep.mubr.bf16.mxu0 0
    %5712 = vmatmul.mubr.bf16.gmra.mrb[0].mxu0 %v618
    %v5713 = vpop.f32.mrb[0].mxu0
    %v5714 = vadd.f32 %v5489, %v5713
    %v5715 = vpop.f32.mrb[0].mxu0
    %v5716 = vpop.f32.mrb[0].mxu0
    %v5717 = vadd.f32 %v5492, %v5716
    %v5718 = vpop.f32.mrb[0].mxu0
    %5719 = vmatprep.mubr.bf16.mxu0 0
    %5720 = vmatmul.mubr.bf16.gmra.mrb[0].mxu0 %v621
    %v5721 = vpop.f32.mrb[0].mxu0
    %v5722 = vadd.f32 %v5497, %v5721
    %v5723 = vpop.f32.mrb[0].mxu0
    %v5724 = vpop.f32.mrb[0].mxu0
    %v5725 = vadd.f32 %v5500, %v5724
    %v5726 = vpop.f32.mrb[0].mxu0
    %5727 = vmatprep.mubr.bf16.mxu0 0
    %5728 = vmatmul.mubr.bf16.gmra.mrb[0].mxu0 %v624
    %v5729 = vpop.f32.mrb[0].mxu0
    %v5730 = vadd.f32 %v5505, %v5729
    %v5731 = vpop.f32.mrb[0].mxu0
    %v5732 = vpop.f32.mrb[0].mxu0
    %v5733 = vadd.f32 %v5508, %v5732
    %v5734 = vpop.f32.mrb[0].mxu0
    %5735 = vmatprep.mubr.bf16.mxu0 0
    %5736 = vmatmul.mubr.bf16.gmra.mrb[0].mxu0 %v627
    %v5737 = vpop.f32.mrb[0].mxu0
    %v5738 = vadd.f32 %v5513, %v5737
    %v5739 = vpop.f32.mrb[0].mxu0
    %v5740 = vpop.f32.mrb[0].mxu0
    %v5741 = vadd.f32 %v5516, %v5740
    %v5742 = vpop.f32.mrb[0].mxu0
    %5743 = vmatprep.mubr.bf16.mxu0 0
    %5744 = vmatmul.mubr.bf16.gmra.mrb[0].mxu0 %v630
    %v5745 = vpop.f32.mrb[0].mxu0
    %v5746 = vadd.f32 %v5521, %v5745
    %v5747 = vpop.f32.mrb[0].mxu0
    %v5748 = vpop.f32.mrb[0].mxu0
    %v5749 = vadd.f32 %v5524, %v5748
    %v5750 = vpop.f32.mrb[0].mxu0
    %5751 = vmatprep.mubr.bf16.mxu0 0
    %5752 = vmatmul.mubr.bf16.gmra.mrb[0].mxu0 %v633
    %v5753 = vpop.f32.mrb[0].mxu0
    %v5754 = vadd.f32 %v5529, %v5753
    %v5755 = vpop.f32.mrb[0].mxu0
    %v5756 = vpop.f32.mrb[0].mxu0
    %v5757 = vadd.f32 %v5532, %v5756
    %v5758 = vpop.f32.mrb[0].mxu0
    %5759 = vmatprep.mubr.bf16.mxu0 0
    %5760 = vmatmul.mubr.bf16.gmra.mrb[0].mxu0 %v636
    %v5761 = vpop.f32.mrb[0].mxu0
    %v5762 = vadd.f32 %v5537, %v5761
    %v5763 = vpop.f32.mrb[0].mxu0
    %v5764 = vpop.f32.mrb[0].mxu0
    %v5765 = vadd.f32 %v5540, %v5764
    %v5766 = vpop.f32.mrb[0].mxu0
    %5767 = vdwg.mxu0
    %v5768 = vmul.f32 %v5578, %v5276
    %v5769 = vmul.f32 %v5581, %v5276
    %v5770 = vmul.f32 %v5586, %v5276
    %v5771 = vmul.f32 %v5589, %v5276
    %v5772 = vmul.f32 %v5594, %v5276
    %v5773 = vmul.f32 %v5597, %v5276
    %v5774 = vmul.f32 %v5602, %v5276
    %v5775 = vmul.f32 %v5605, %v5276
    %v5776 = vmul.f32 %v5610, %v5276
    %v5777 = vmul.f32 %v5613, %v5276
    %v5778 = vmul.f32 %v5618, %v5276
    %v5779 = vmul.f32 %v5621, %v5276
    %v5780 = vmul.f32 %v5626, %v5276
    %v5781 = vmul.f32 %v5629, %v5276
    %v5782 = vmul.f32 %v5634, %v5276
    %v5783 = vmul.f32 %v5637, %v5276
    %v5784 = vmul.f32 %v5642, %v5276
    %v5785 = vmul.f32 %v5645, %v5276
    %v5786 = vmul.f32 %v5650, %v5276
    %v5787 = vmul.f32 %v5653, %v5276
    %v5788 = vmul.f32 %v5658, %v5276
    %v5789 = vmul.f32 %v5661, %v5276
    %v5790 = vmul.f32 %v5666, %v5276
    %v5791 = vmul.f32 %v5669, %v5276
    %v5792 = vmul.f32 %v5674, %v5276
    %v5793 = vmul.f32 %v5677, %v5276
    %v5794 = vmul.f32 %v5682, %v5276
    %v5795 = vmul.f32 %v5685, %v5276
    %v5796 = vmul.f32 %v5690, %v5276
    %v5797 = vmul.f32 %v5693, %v5276
    %v5798 = vmul.f32 %v5698, %v5276
    %v5799 = vmul.f32 %v5701, %v5276
    %v5800 = vmul.f32 %v5706, %v5276
    %v5801 = vmul.f32 %v5709, %v5276
    %v5802 = vmul.f32 %v5714, %v5276
    %v5803 = vmul.f32 %v5717, %v5276
    %v5804 = vmul.f32 %v5722, %v5276
    %v5805 = vmul.f32 %v5725, %v5276
    %v5806 = vmul.f32 %v5730, %v5276
    %v5807 = vmul.f32 %v5733, %v5276
    %v5808 = vmul.f32 %v5738, %v5276
    %v5809 = vmul.f32 %v5741, %v5276
    %v5810 = vmul.f32 %v5746, %v5276
    %v5811 = vmul.f32 %v5749, %v5276
    %v5812 = vmul.f32 %v5754, %v5276
    %v5813 = vmul.f32 %v5757, %v5276
    %v5814 = vmul.f32 %v5762, %v5276
    %v5815 = vmul.f32 %v5765, %v5276
    %v5816 = vmul.f32 %v640, %v5281
    %v5817 = vmul.f32 %v644, %v5281
    %v5818 = vmul.f32 %v648, %v5281
    %v5819 = vmul.f32 %v652, %v5281
    %v5820 = vmul.f32 %v656, %v5281
    %v5821 = vmul.f32 %v660, %v5281
    %v5822 = vmul.f32 %v664, %v5281
    %v5823 = vmul.f32 %v668, %v5281
    %v5824 = vmul.f32 %v672, %v5281
    %v5825 = vmul.f32 %v676, %v5281
    %v5826 = vmul.f32 %v680, %v5281
    %v5827 = vmul.f32 %v684, %v5281
    %v5828 = vmul.f32 %v688, %v5281
    %v5829 = vmul.f32 %v692, %v5281
    %v5830 = vmul.f32 %v696, %v5281
    %v5831 = vmul.f32 %v700, %v5281
    %v5832 = vmul.f32 %v704, %v5281
    %v5833 = vmul.f32 %v708, %v5281
    %v5834 = vmul.f32 %v712, %v5281
    %v5835 = vmul.f32 %v716, %v5281
    %v5836 = vmul.f32 %v720, %v5281
    %v5837 = vmul.f32 %v724, %v5281
    %v5838 = vmul.f32 %v728, %v5281
    %v5839 = vmul.f32 %v732, %v5281
    %v5840 = vmul.f32 %v736, %v5281
    %v5841 = vmul.f32 %v740, %v5281
    %v5842 = vmul.f32 %v744, %v5281
    %v5843 = vmul.f32 %v748, %v5281
    %v5844 = vmul.f32 %v752, %v5281
    %v5845 = vmul.f32 %v756, %v5281
    %v5846 = vmul.f32 %v760, %v5281
    %v5847 = vmul.f32 %v764, %v5281
    %v5848 = vmul.f32 %v768, %v5281
    %v5849 = vmul.f32 %v772, %v5281
    %v5850 = vmul.f32 %v776, %v5281
    %v5851 = vmul.f32 %v780, %v5281
    %v5852 = vmul.f32 %v784, %v5281
    %v5853 = vmul.f32 %v788, %v5281
    %v5854 = vmul.f32 %v792, %v5281
    %v5855 = vmul.f32 %v796, %v5281
    %v5856 = vmul.f32 %v800, %v5281
    %v5857 = vmul.f32 %v804, %v5281
    %v5858 = vmul.f32 %v808, %v5281
    %v5859 = vmul.f32 %v812, %v5281
    %v5860 = vmul.f32 %v816, %v5281
    %v5861 = vmul.f32 %v820, %v5281
    %v5862 = vmul.f32 %v824, %v5281
    %v5863 = vmul.f32 %v828, %v5281
    %v5864 = vadd.f32 %v5768, %v5816
    %v5865 = vadd.f32 %v5769, %v5817
    %v5866 = vadd.f32 %v5770, %v5818
    %v5867 = vadd.f32 %v5771, %v5819
    %v5868 = vadd.f32 %v5772, %v5820
    %v5869 = vadd.f32 %v5773, %v5821
    %v5870 = vadd.f32 %v5774, %v5822
    %v5871 = vadd.f32 %v5775, %v5823
    %v5872 = vadd.f32 %v5776, %v5824
    %v5873 = vadd.f32 %v5777, %v5825
    %v5874 = vadd.f32 %v5778, %v5826
    %v5875 = vadd.f32 %v5779, %v5827
    %v5876 = vadd.f32 %v5780, %v5828
    %v5877 = vadd.f32 %v5781, %v5829
    %v5878 = vadd.f32 %v5782, %v5830
    %v5879 = vadd.f32 %v5783, %v5831
    %v5880 = vadd.f32 %v5784, %v5832
    %v5881 = vadd.f32 %v5785, %v5833
    %v5882 = vadd.f32 %v5786, %v5834
    %v5883 = vadd.f32 %v5787, %v5835
    %v5884 = vadd.f32 %v5788, %v5836
    %v5885 = vadd.f32 %v5789, %v5837
    %v5886 = vadd.f32 %v5790, %v5838
    %v5887 = vadd.f32 %v5791, %v5839
    %v5888 = vadd.f32 %v5792, %v5840
    %v5889 = vadd.f32 %v5793, %v5841
    %v5890 = vadd.f32 %v5794, %v5842
    %v5891 = vadd.f32 %v5795, %v5843
    %v5892 = vadd.f32 %v5796, %v5844
    %v5893 = vadd.f32 %v5797, %v5845
    %v5894 = vadd.f32 %v5798, %v5846
    %v5895 = vadd.f32 %v5799, %v5847
    %v5896 = vadd.f32 %v5800, %v5848
    %v5897 = vadd.f32 %v5801, %v5849
    %v5898 = vadd.f32 %v5802, %v5850
    %v5899 = vadd.f32 %v5803, %v5851
    %v5900 = vadd.f32 %v5804, %v5852
    %v5901 = vadd.f32 %v5805, %v5853
    %v5902 = vadd.f32 %v5806, %v5854
    %v5903 = vadd.f32 %v5807, %v5855
    %v5904 = vadd.f32 %v5808, %v5856
    %v5905 = vadd.f32 %v5809, %v5857
    %v5906 = vadd.f32 %v5810, %v5858
    %v5907 = vadd.f32 %v5811, %v5859
    %v5908 = vadd.f32 %v5812, %v5860
    %v5909 = vadd.f32 %v5813, %v5861
    %v5910 = vadd.f32 %v5814, %v5862
    %v5911 = vadd.f32 %v5815, %v5863
    %v5912 = vlaneseq
    %v5913 = vshrl.u32 %v5912, 7
    %v5914 = vsub.s32 0, %v5913
    %v5915 = vrot.slane %v5316, %v5914
    %v5917 = vsel %vm2232, %v5864, 0
    %v5920 = vsel %vm2232, %v5865, 0
    %v5923 = vsel %vm2232, %v5866, 0
    %v5926 = vsel %vm2232, %v5867, 0
    %v5929 = vsel %vm2232, %v5868, 0
    %v5932 = vsel %vm2232, %v5869, 0
    %v5935 = vsel %vm2232, %v5870, 0
    %v5938 = vsel %vm2232, %v5871, 0
    %v5941 = vsel %vm2232, %v5872, 0
    %v5944 = vsel %vm2232, %v5873, 0
    %v5947 = vsel %vm2232, %v5874, 0
    %v5950 = vsel %vm2232, %v5875, 0
    %v5953 = vsel %vm2232, %v5876, 0
    %v5956 = vsel %vm2232, %v5877, 0
    %v5959 = vsel %vm2232, %v5878, 0
    %v5962 = vsel %vm2232, %v5879, 0
    %v5965 = vsel %vm2232, %v5880, 0
    %v5968 = vsel %vm2232, %v5881, 0
    %v5971 = vsel %vm2232, %v5882, 0
    %v5974 = vsel %vm2232, %v5883, 0
    %v5977 = vsel %vm2232, %v5884, 0
    %v5980 = vsel %vm2232, %v5885, 0
    %v5983 = vsel %vm2232, %v5886, 0
    %v5986 = vsel %vm2232, %v5887, 0
    %v5989 = vsel %vm2232, %v5888, 0
    %v5992 = vsel %vm2232, %v5889, 0
    %v5995 = vsel %vm2232, %v5890, 0
    %v5998 = vsel %vm2232, %v5891, 0
    %v6001 = vsel %vm2232, %v5892, 0
    %v6004 = vsel %vm2232, %v5893, 0
    %v6007 = vsel %vm2232, %v5894, 0
    %v6010 = vsel %vm2232, %v5895, 0
    %v6013 = vsel %vm2232, %v5896, 0
    %v6016 = vsel %vm2232, %v5897, 0
    %v6019 = vsel %vm2232, %v5898, 0
    %v6022 = vsel %vm2232, %v5899, 0
    %v6025 = vsel %vm2232, %v5900, 0
    %v6028 = vsel %vm2232, %v5901, 0
    %v6031 = vsel %vm2232, %v5902, 0
    %v6034 = vsel %vm2232, %v5903, 0
    %v6037 = vsel %vm2232, %v5904, 0
    %v6040 = vsel %vm2232, %v5905, 0
    %v6043 = vsel %vm2232, %v5906, 0
    %v6046 = vsel %vm2232, %v5907, 0
    %v6049 = vsel %vm2232, %v5908, 0
    %v6052 = vsel %vm2232, %v5909, 0
    %v6055 = vsel %vm2232, %v5910, 0
    %v6058 = vsel %vm2232, %v5911, 0
    %6060 = vmatprep.subr.mxu0 0.0
    %6061 = vmatpush1.msra.mxu0 %v5308
    %6062 = vmatprep.subr.mxu0 0.0
    %6063 = vmatpush1.msra.mxu0 %v5309
    %6064 = vmatprep.subr.mxu0 0.0
    %6065 = vmatpush1.msra.mxu0 %v5310
    %6066 = vmatprep.subr.mxu0 0.0
    %6067 = vmatpush1.msra.mxu0 %v5311
    %6068 = vmatprep.subr.mxu0 0.0
    %6069 = vmatpush1.msra.mxu0 0.0
    %6070 = vmatprep.subr.mxu0 0.0
    %6071 = vmatpush1.msra.mxu0 0.0
    %6072 = vmatprep.subr.mxu0 0.0
    %6073 = vmatpush1.msra.mxu0 0.0
    %6074 = vmatprep.subr.mxu0 0.0
    %6075 = vmatpush1.msra.mxu0 0.0
    %6076 = vmatprep.subr.mxu0 0.0
    %6077 = vmatpush1.msra.mxu0 0.0
    %6078 = vmatprep.subr.mxu0 0.0
    %6079 = vmatpush1.msra.mxu0 0.0
    %6080 = vmatprep.subr.mxu0 0.0
    %6081 = vmatpush1.msra.mxu0 0.0
    %6082 = vmatprep.subr.mxu0 0.0
    %6083 = vmatpush1.msra.mxu0 0.0
    %6084 = vmatprep.subr.mxu0 0.0
    %6085 = vmatpush1.msra.mxu0 0.0
    %6086 = vmatprep.subr.mxu0 0.0
    %6087 = vmatpush1.msra.mxu0 0.0
    %6088 = vmatprep.subr.mxu0 0.0
    %6089 = vmatpush1.msra.mxu0 0.0
    %6090 = vmatprep.subr.mxu0 0.0
    %6091 = vmatpush1.msra.mxu0 0.0
    %6092 = vmatprep.subr.mxu0 0.0
    %6093 = vmatpush1.msra.mxu0 0.0
    %6094 = vmatprep.subr.mxu0 0.0
    %6095 = vmatpush1.msra.mxu0 0.0
    %6096 = vmatprep.subr.mxu0 0.0
    %6097 = vmatpush1.msra.mxu0 0.0
    %6098 = vmatprep.subr.mxu0 0.0
    %6099 = vmatpush1.msra.mxu0 0.0
    %6100 = vmatprep.subr.mxu0 0.0
    %6101 = vmatpush1.msra.mxu0 0.0
    %6102 = vmatprep.subr.mxu0 0.0
    %6103 = vmatpush1.msra.mxu0 0.0
    %6104 = vmatprep.subr.mxu0 0.0
    %6105 = vmatpush1.msra.mxu0 0.0
    %6106 = vmatprep.subr.mxu0 0.0
    %6107 = vmatpush1.msra.mxu0 0.0
    %6108 = vmatprep.subr.mxu0 0.0
    %6109 = vmatpush1.msra.mxu0 0.0
    %6110 = vmatprep.subr.mxu0 0.0
    %6111 = vmatpush1.msra.mxu0 0.0
    %6112 = vmatprep.subr.mxu0 0.0
    %6113 = vmatpush1.msra.mxu0 0.0
    %6114 = vmatprep.subr.mxu0 0.0
    %6115 = vmatpush1.msra.mxu0 0.0
    %6116 = vmatprep.subr.mxu0 0.0
    %6117 = vmatpush1.msra.mxu0 0.0
    %6118 = vmatprep.subr.mxu0 0.0
    %6119 = vmatpush1.msra.mxu0 0.0
    %6120 = vmatprep.subr.mxu0 0.0
    %6121 = vmatpush1.msra.mxu0 0.0
    %6122 = vmatprep.subr.mxu0 0.0
    %6123 = vmatpush1.msra.mxu0 0.0
    %6124 = vmatprep.mubr.f32.mxu0 0.0
    %6125 = vmatmul.mubr.f32.gmra.mrb[0].mxu0 %v5917
    %v6126 = vpop.f32.mrb[0].mxu0
    %v6127 = vadd.f32 %v5915, %v6126
    %v6128 = vpop.f32.mrb[0].mxu0
    %6129 = vmatprep.mubr.f32.mxu0 0.0
    %6130 = vmatmul.mubr.f32.gmra.mrb[0].mxu0 %v5920
    %v6131 = vpop.f32.mrb[0].mxu0
    %v6132 = vadd.f32 %v5915, %v6131
    %v6133 = vpop.f32.mrb[0].mxu0
    %6134 = vmatprep.mubr.f32.mxu0 0.0
    %6135 = vmatmul.mubr.f32.gmra.mrb[0].mxu0 %v5923
    %v6136 = vpop.f32.mrb[0].mxu0
    %v6137 = vadd.f32 %v5915, %v6136
    %v6138 = vpop.f32.mrb[0].mxu0
    %6139 = vmatprep.mubr.f32.mxu0 0.0
    %6140 = vmatmul.mubr.f32.gmra.mrb[0].mxu0 %v5926
    %v6141 = vpop.f32.mrb[0].mxu0
    %v6142 = vadd.f32 %v5915, %v6141
    %v6143 = vpop.f32.mrb[0].mxu0
    %6144 = vmatprep.mubr.f32.mxu0 0.0
    %6145 = vmatmul.mubr.f32.gmra.mrb[0].mxu0 %v5929
    %v6146 = vpop.f32.mrb[0].mxu0
    %v6147 = vadd.f32 %v5915, %v6146
    %v6148 = vpop.f32.mrb[0].mxu0
    %6149 = vmatprep.mubr.f32.mxu0 0.0
    %6150 = vmatmul.mubr.f32.gmra.mrb[0].mxu0 %v5932
    %v6151 = vpop.f32.mrb[0].mxu0
    %v6152 = vadd.f32 %v5915, %v6151
    %v6153 = vpop.f32.mrb[0].mxu0
    %6154 = vmatprep.mubr.f32.mxu0 0.0
    %6155 = vmatmul.mubr.f32.gmra.mrb[0].mxu0 %v5935
    %v6156 = vpop.f32.mrb[0].mxu0
    %v6157 = vadd.f32 %v5915, %v6156
    %v6158 = vpop.f32.mrb[0].mxu0
    %6159 = vmatprep.mubr.f32.mxu0 0.0
    %6160 = vmatmul.mubr.f32.gmra.mrb[0].mxu0 %v5938
    %v6161 = vpop.f32.mrb[0].mxu0
    %v6162 = vadd.f32 %v5915, %v6161
    %v6163 = vpop.f32.mrb[0].mxu0
    %6164 = vmatprep.mubr.f32.mxu0 0.0
    %6165 = vmatmul.mubr.f32.gmra.mrb[0].mxu0 %v5941
    %v6166 = vpop.f32.mrb[0].mxu0
    %v6167 = vadd.f32 %v5915, %v6166
    %v6168 = vpop.f32.mrb[0].mxu0
    %6169 = vmatprep.mubr.f32.mxu0 0.0
    %6170 = vmatmul.mubr.f32.gmra.mrb[0].mxu0 %v5944
    %v6171 = vpop.f32.mrb[0].mxu0
    %v6172 = vadd.f32 %v5915, %v6171
    %v6173 = vpop.f32.mrb[0].mxu0
    %6174 = vmatprep.mubr.f32.mxu0 0.0
    %6175 = vmatmul.mubr.f32.gmra.mrb[0].mxu0 %v5947
    %v6176 = vpop.f32.mrb[0].mxu0
    %v6177 = vadd.f32 %v5915, %v6176
    %v6178 = vpop.f32.mrb[0].mxu0
    %6179 = vmatprep.mubr.f32.mxu0 0.0
    %6180 = vmatmul.mubr.f32.gmra.mrb[0].mxu0 %v5950
    %v6181 = vpop.f32.mrb[0].mxu0
    %v6182 = vadd.f32 %v5915, %v6181
    %v6183 = vpop.f32.mrb[0].mxu0
    %6184 = vmatprep.mubr.f32.mxu0 0.0
    %6185 = vmatmul.mubr.f32.gmra.mrb[0].mxu0 %v5953
    %v6186 = vpop.f32.mrb[0].mxu0
    %v6187 = vadd.f32 %v5915, %v6186
    %v6188 = vpop.f32.mrb[0].mxu0
    %6189 = vmatprep.mubr.f32.mxu0 0.0
    %6190 = vmatmul.mubr.f32.gmra.mrb[0].mxu0 %v5956
    %v6191 = vpop.f32.mrb[0].mxu0
    %v6192 = vadd.f32 %v5915, %v6191
    %v6193 = vpop.f32.mrb[0].mxu0
    %6194 = vmatprep.mubr.f32.mxu0 0.0
    %6195 = vmatmul.mubr.f32.gmra.mrb[0].mxu0 %v5959
    %v6196 = vpop.f32.mrb[0].mxu0
    %v6197 = vadd.f32 %v5915, %v6196
    %v6198 = vpop.f32.mrb[0].mxu0
    %6199 = vmatprep.mubr.f32.mxu0 0.0
    %6200 = vmatmul.mubr.f32.gmra.mrb[0].mxu0 %v5962
    %v6201 = vpop.f32.mrb[0].mxu0
    %v6202 = vadd.f32 %v5915, %v6201
    %v6203 = vpop.f32.mrb[0].mxu0
    %6204 = vmatprep.mubr.f32.mxu0 0.0
    %6205 = vmatmul.mubr.f32.gmra.mrb[0].mxu0 %v5965
    %v6206 = vpop.f32.mrb[0].mxu0
    %v6207 = vadd.f32 %v5915, %v6206
    %v6208 = vpop.f32.mrb[0].mxu0
    %6209 = vmatprep.mubr.f32.mxu0 0.0
    %6210 = vmatmul.mubr.f32.gmra.mrb[0].mxu0 %v5968
    %v6211 = vpop.f32.mrb[0].mxu0
    %v6212 = vadd.f32 %v5915, %v6211
    %v6213 = vpop.f32.mrb[0].mxu0
    %6214 = vmatprep.mubr.f32.mxu0 0.0
    %6215 = vmatmul.mubr.f32.gmra.mrb[0].mxu0 %v5971
    %v6216 = vpop.f32.mrb[0].mxu0
    %v6217 = vadd.f32 %v5915, %v6216
    %v6218 = vpop.f32.mrb[0].mxu0
    %6219 = vmatprep.mubr.f32.mxu0 0.0
    %6220 = vmatmul.mubr.f32.gmra.mrb[0].mxu0 %v5974
    %v6221 = vpop.f32.mrb[0].mxu0
    %v6222 = vadd.f32 %v5915, %v6221
    %v6223 = vpop.f32.mrb[0].mxu0
    %6224 = vmatprep.mubr.f32.mxu0 0.0
    %6225 = vmatmul.mubr.f32.gmra.mrb[0].mxu0 %v5977
    %v6226 = vpop.f32.mrb[0].mxu0
    %v6227 = vadd.f32 %v5915, %v6226
    %v6228 = vpop.f32.mrb[0].mxu0
    %6229 = vmatprep.mubr.f32.mxu0 0.0
    %6230 = vmatmul.mubr.f32.gmra.mrb[0].mxu0 %v5980
    %v6231 = vpop.f32.mrb[0].mxu0
    %v6232 = vadd.f32 %v5915, %v6231
    %v6233 = vpop.f32.mrb[0].mxu0
    %6234 = vmatprep.mubr.f32.mxu0 0.0
    %6235 = vmatmul.mubr.f32.gmra.mrb[0].mxu0 %v5983
    %v6236 = vpop.f32.mrb[0].mxu0
    %v6237 = vadd.f32 %v5915, %v6236
    %v6238 = vpop.f32.mrb[0].mxu0
    %6239 = vmatprep.mubr.f32.mxu0 0.0
    %6240 = vmatmul.mubr.f32.gmra.mrb[0].mxu0 %v5986
    %v6241 = vpop.f32.mrb[0].mxu0
    %v6242 = vadd.f32 %v5915, %v6241
    %v6243 = vpop.f32.mrb[0].mxu0
    %6244 = vmatprep.mubr.f32.mxu0 0.0
    %6245 = vmatmul.mubr.f32.gmra.mrb[0].mxu0 %v5989
    %v6246 = vpop.f32.mrb[0].mxu0
    %v6247 = vadd.f32 %v5915, %v6246
    %v6248 = vpop.f32.mrb[0].mxu0
    %6249 = vmatprep.mubr.f32.mxu0 0.0
    %6250 = vmatmul.mubr.f32.gmra.mrb[0].mxu0 %v5992
    %v6251 = vpop.f32.mrb[0].mxu0
    %v6252 = vadd.f32 %v5915, %v6251
    %v6253 = vpop.f32.mrb[0].mxu0
    %6254 = vmatprep.mubr.f32.mxu0 0.0
    %6255 = vmatmul.mubr.f32.gmra.mrb[0].mxu0 %v5995
    %v6256 = vpop.f32.mrb[0].mxu0
    %v6257 = vadd.f32 %v5915, %v6256
    %v6258 = vpop.f32.mrb[0].mxu0
    %6259 = vmatprep.mubr.f32.mxu0 0.0
    %6260 = vmatmul.mubr.f32.gmra.mrb[0].mxu0 %v5998
    %v6261 = vpop.f32.mrb[0].mxu0
    %v6262 = vadd.f32 %v5915, %v6261
    %v6263 = vpop.f32.mrb[0].mxu0
    %6264 = vmatprep.mubr.f32.mxu0 0.0
    %6265 = vmatmul.mubr.f32.gmra.mrb[0].mxu0 %v6001
    %v6266 = vpop.f32.mrb[0].mxu0
    %v6267 = vadd.f32 %v5915, %v6266
    %v6268 = vpop.f32.mrb[0].mxu0
    %6269 = vmatprep.mubr.f32.mxu0 0.0
    %6270 = vmatmul.mubr.f32.gmra.mrb[0].mxu0 %v6004
    %v6271 = vpop.f32.mrb[0].mxu0
    %v6272 = vadd.f32 %v5915, %v6271
    %v6273 = vpop.f32.mrb[0].mxu0
    %6274 = vmatprep.mubr.f32.mxu0 0.0
    %6275 = vmatmul.mubr.f32.gmra.mrb[0].mxu0 %v6007
    %v6276 = vpop.f32.mrb[0].mxu0
    %v6277 = vadd.f32 %v5915, %v6276
    %v6278 = vpop.f32.mrb[0].mxu0
    %6279 = vmatprep.mubr.f32.mxu0 0.0
    %6280 = vmatmul.mubr.f32.gmra.mrb[0].mxu0 %v6010
    %v6281 = vpop.f32.mrb[0].mxu0
    %v6282 = vadd.f32 %v5915, %v6281
    %v6283 = vpop.f32.mrb[0].mxu0
    %6284 = vmatprep.mubr.f32.mxu0 0.0
    %6285 = vmatmul.mubr.f32.gmra.mrb[0].mxu0 %v6013
    %v6286 = vpop.f32.mrb[0].mxu0
    %v6287 = vadd.f32 %v5915, %v6286
    %v6288 = vpop.f32.mrb[0].mxu0
    %6289 = vmatprep.mubr.f32.mxu0 0.0
    %6290 = vmatmul.mubr.f32.gmra.mrb[0].mxu0 %v6016
    %v6291 = vpop.f32.mrb[0].mxu0
    %v6292 = vadd.f32 %v5915, %v6291
    %v6293 = vpop.f32.mrb[0].mxu0
    %6294 = vmatprep.mubr.f32.mxu0 0.0
    %6295 = vmatmul.mubr.f32.gmra.mrb[0].mxu0 %v6019
    %v6296 = vpop.f32.mrb[0].mxu0
    %v6297 = vadd.f32 %v5915, %v6296
    %v6298 = vpop.f32.mrb[0].mxu0
    %6299 = vmatprep.mubr.f32.mxu0 0.0
    %6300 = vmatmul.mubr.f32.gmra.mrb[0].mxu0 %v6022
    %v6301 = vpop.f32.mrb[0].mxu0
    %v6302 = vadd.f32 %v5915, %v6301
    %v6303 = vpop.f32.mrb[0].mxu0
    %6304 = vmatprep.mubr.f32.mxu0 0.0
    %6305 = vmatmul.mubr.f32.gmra.mrb[0].mxu0 %v6025
    %v6306 = vpop.f32.mrb[0].mxu0
    %v6307 = vadd.f32 %v5915, %v6306
    %v6308 = vpop.f32.mrb[0].mxu0
    %6309 = vmatprep.mubr.f32.mxu0 0.0
    %6310 = vmatmul.mubr.f32.gmra.mrb[0].mxu0 %v6028
    %v6311 = vpop.f32.mrb[0].mxu0
    %v6312 = vadd.f32 %v5915, %v6311
    %v6313 = vpop.f32.mrb[0].mxu0
    %6314 = vmatprep.mubr.f32.mxu0 0.0
    %6315 = vmatmul.mubr.f32.gmra.mrb[0].mxu0 %v6031
    %v6316 = vpop.f32.mrb[0].mxu0
    %v6317 = vadd.f32 %v5915, %v6316
    %v6318 = vpop.f32.mrb[0].mxu0
    %6319 = vmatprep.mubr.f32.mxu0 0.0
    %6320 = vmatmul.mubr.f32.gmra.mrb[0].mxu0 %v6034
    %v6321 = vpop.f32.mrb[0].mxu0
    %v6322 = vadd.f32 %v5915, %v6321
    %v6323 = vpop.f32.mrb[0].mxu0
    %6324 = vmatprep.mubr.f32.mxu0 0.0
    %6325 = vmatmul.mubr.f32.gmra.mrb[0].mxu0 %v6037
    %v6326 = vpop.f32.mrb[0].mxu0
    %v6327 = vadd.f32 %v5915, %v6326
    %v6328 = vpop.f32.mrb[0].mxu0
    %6329 = vmatprep.mubr.f32.mxu0 0.0
    %6330 = vmatmul.mubr.f32.gmra.mrb[0].mxu0 %v6040
    %v6331 = vpop.f32.mrb[0].mxu0
    %v6332 = vadd.f32 %v5915, %v6331
    %v6333 = vpop.f32.mrb[0].mxu0
    %6334 = vmatprep.mubr.f32.mxu0 0.0
    %6335 = vmatmul.mubr.f32.gmra.mrb[0].mxu0 %v6043
    %v6336 = vpop.f32.mrb[0].mxu0
    %v6337 = vadd.f32 %v5915, %v6336
    %v6338 = vpop.f32.mrb[0].mxu0
    %6339 = vmatprep.mubr.f32.mxu0 0.0
    %6340 = vmatmul.mubr.f32.gmra.mrb[0].mxu0 %v6046
    %v6341 = vpop.f32.mrb[0].mxu0
    %v6342 = vadd.f32 %v5915, %v6341
    %v6343 = vpop.f32.mrb[0].mxu0
    %6344 = vmatprep.mubr.f32.mxu0 0.0
    %6345 = vmatmul.mubr.f32.gmra.mrb[0].mxu0 %v6049
    %v6346 = vpop.f32.mrb[0].mxu0
    %v6347 = vadd.f32 %v5915, %v6346
    %v6348 = vpop.f32.mrb[0].mxu0
    %6349 = vmatprep.mubr.f32.mxu0 0.0
    %6350 = vmatmul.mubr.f32.gmra.mrb[0].mxu0 %v6052
    %v6351 = vpop.f32.mrb[0].mxu0
    %v6352 = vadd.f32 %v5915, %v6351
    %v6353 = vpop.f32.mrb[0].mxu0
    %6354 = vmatprep.mubr.f32.mxu0 0.0
    %6355 = vmatmul.mubr.f32.gmra.mrb[0].mxu0 %v6055
    %v6356 = vpop.f32.mrb[0].mxu0
    %v6357 = vadd.f32 %v5915, %v6356
    %v6358 = vpop.f32.mrb[0].mxu0
    %6359 = vmatprep.mubr.f32.mxu0 0.0
    %6360 = vmatmul.mubr.f32.gmra.mrb[0].mxu0 %v6058
    %v6361 = vpop.f32.mrb[0].mxu0
    %v6362 = vadd.f32 %v5915, %v6361
    %v6363 = vpop.f32.mrb[0].mxu0
    %6364 = vdwg.mxu0
    %v6365 = vmax.f32 %v6127, 0.0
    %v6366 = vmax.f32 %v6132, 0.0
    %v6367 = vmax.f32 %v6137, 0.0
    %v6368 = vmax.f32 %v6142, 0.0
    %v6369 = vmax.f32 %v6147, 0.0
    %v6370 = vmax.f32 %v6152, 0.0
    %v6371 = vmax.f32 %v6157, 0.0
    %v6372 = vmax.f32 %v6162, 0.0
    %v6373 = vmax.f32 %v6167, 0.0
    %v6374 = vmax.f32 %v6172, 0.0
    %v6375 = vmax.f32 %v6177, 0.0
    %v6376 = vmax.f32 %v6182, 0.0
    %v6377 = vmax.f32 %v6187, 0.0
    %v6378 = vmax.f32 %v6192, 0.0
    %v6379 = vmax.f32 %v6197, 0.0
    %v6380 = vmax.f32 %v6202, 0.0
    %v6381 = vmax.f32 %v6207, 0.0
    %v6382 = vmax.f32 %v6212, 0.0
    %v6383 = vmax.f32 %v6217, 0.0
    %v6384 = vmax.f32 %v6222, 0.0
    %v6385 = vmax.f32 %v6227, 0.0
    %v6386 = vmax.f32 %v6232, 0.0
    %v6387 = vmax.f32 %v6237, 0.0
    %v6388 = vmax.f32 %v6242, 0.0
    %v6389 = vmax.f32 %v6247, 0.0
    %v6390 = vmax.f32 %v6252, 0.0
    %v6391 = vmax.f32 %v6257, 0.0
    %v6392 = vmax.f32 %v6262, 0.0
    %v6393 = vmax.f32 %v6267, 0.0
    %v6394 = vmax.f32 %v6272, 0.0
    %v6395 = vmax.f32 %v6277, 0.0
    %v6396 = vmax.f32 %v6282, 0.0
    %v6397 = vmax.f32 %v6287, 0.0
    %v6398 = vmax.f32 %v6292, 0.0
    %v6399 = vmax.f32 %v6297, 0.0
    %v6400 = vmax.f32 %v6302, 0.0
    %v6401 = vmax.f32 %v6307, 0.0
    %v6402 = vmax.f32 %v6312, 0.0
    %v6403 = vmax.f32 %v6317, 0.0
    %v6404 = vmax.f32 %v6322, 0.0
    %v6405 = vmax.f32 %v6327, 0.0
    %v6406 = vmax.f32 %v6332, 0.0
    %v6407 = vmax.f32 %v6337, 0.0
    %v6408 = vmax.f32 %v6342, 0.0
    %v6409 = vmax.f32 %v6347, 0.0
    %v6410 = vmax.f32 %v6352, 0.0
    %v6411 = vmax.f32 %v6357, 0.0
    %v6412 = vmax.f32 %v6362, 0.0
    %v6413 = vlaneseq
    %v6414 = vshrl.u32 %v6413, 7
    %v6415 = vsub.s32 1, %v6414
    %v6416 = vrot.slane %v5316, %v6415
    %v6418 = vsel %vm2232, %v6365, 0
    %v6421 = vsel %vm2232, %v6366, 0
    %v6424 = vsel %vm2232, %v6367, 0
    %v6427 = vsel %vm2232, %v6368, 0
    %v6430 = vsel %vm2232, %v6369, 0
    %v6433 = vsel %vm2232, %v6370, 0
    %v6436 = vsel %vm2232, %v6371, 0
    %v6439 = vsel %vm2232, %v6372, 0
    %v6442 = vsel %vm2232, %v6373, 0
    %v6445 = vsel %vm2232, %v6374, 0
    %v6448 = vsel %vm2232, %v6375, 0
    %v6451 = vsel %vm2232, %v6376, 0
    %v6454 = vsel %vm2232, %v6377, 0
    %v6457 = vsel %vm2232, %v6378, 0
    %v6460 = vsel %vm2232, %v6379, 0
    %v6463 = vsel %vm2232, %v6380, 0
    %v6466 = vsel %vm2232, %v6381, 0
    %v6469 = vsel %vm2232, %v6382, 0
    %v6472 = vsel %vm2232, %v6383, 0
    %v6475 = vsel %vm2232, %v6384, 0
    %v6478 = vsel %vm2232, %v6385, 0
    %v6481 = vsel %vm2232, %v6386, 0
    %v6484 = vsel %vm2232, %v6387, 0
    %v6487 = vsel %vm2232, %v6388, 0
    %v6490 = vsel %vm2232, %v6389, 0
    %v6493 = vsel %vm2232, %v6390, 0
    %v6496 = vsel %vm2232, %v6391, 0
    %v6499 = vsel %vm2232, %v6392, 0
    %v6502 = vsel %vm2232, %v6393, 0
    %v6505 = vsel %vm2232, %v6394, 0
    %v6508 = vsel %vm2232, %v6395, 0
    %v6511 = vsel %vm2232, %v6396, 0
    %v6514 = vsel %vm2232, %v6397, 0
    %v6517 = vsel %vm2232, %v6398, 0
    %v6520 = vsel %vm2232, %v6399, 0
    %v6523 = vsel %vm2232, %v6400, 0
    %v6526 = vsel %vm2232, %v6401, 0
    %v6529 = vsel %vm2232, %v6402, 0
    %v6532 = vsel %vm2232, %v6403, 0
    %v6535 = vsel %vm2232, %v6404, 0
    %v6538 = vsel %vm2232, %v6405, 0
    %v6541 = vsel %vm2232, %v6406, 0
    %v6544 = vsel %vm2232, %v6407, 0
    %v6547 = vsel %vm2232, %v6408, 0
    %v6550 = vsel %vm2232, %v6409, 0
    %v6553 = vsel %vm2232, %v6410, 0
    %v6556 = vsel %vm2232, %v6411, 0
    %v6559 = vsel %vm2232, %v6412, 0
    %6561 = vmatprep.subr.mxu0 0.0
    %6562 = vmatpush1.msra.mxu0 %v5312
    %6563 = vmatprep.subr.mxu0 0.0
    %6564 = vmatpush1.msra.mxu0 %v5313
    %6565 = vmatprep.subr.mxu0 0.0
    %6566 = vmatpush1.msra.mxu0 %v5314
    %6567 = vmatprep.subr.mxu0 0.0
    %6568 = vmatpush1.msra.mxu0 %v5315
    %6569 = vmatprep.subr.mxu0 0.0
    %6570 = vmatpush1.msra.mxu0 0.0
    %6571 = vmatprep.subr.mxu0 0.0
    %6572 = vmatpush1.msra.mxu0 0.0
    %6573 = vmatprep.subr.mxu0 0.0
    %6574 = vmatpush1.msra.mxu0 0.0
    %6575 = vmatprep.subr.mxu0 0.0
    %6576 = vmatpush1.msra.mxu0 0.0
    %6577 = vmatprep.subr.mxu0 0.0
    %6578 = vmatpush1.msra.mxu0 0.0
    %6579 = vmatprep.subr.mxu0 0.0
    %6580 = vmatpush1.msra.mxu0 0.0
    %6581 = vmatprep.subr.mxu0 0.0
    %6582 = vmatpush1.msra.mxu0 0.0
    %6583 = vmatprep.subr.mxu0 0.0
    %6584 = vmatpush1.msra.mxu0 0.0
    %6585 = vmatprep.subr.mxu0 0.0
    %6586 = vmatpush1.msra.mxu0 0.0
    %6587 = vmatprep.subr.mxu0 0.0
    %6588 = vmatpush1.msra.mxu0 0.0
    %6589 = vmatprep.subr.mxu0 0.0
    %6590 = vmatpush1.msra.mxu0 0.0
    %6591 = vmatprep.subr.mxu0 0.0
    %6592 = vmatpush1.msra.mxu0 0.0
    %6593 = vmatprep.subr.mxu0 0.0
    %6594 = vmatpush1.msra.mxu0 0.0
    %6595 = vmatprep.subr.mxu0 0.0
    %6596 = vmatpush1.msra.mxu0 0.0
    %6597 = vmatprep.subr.mxu0 0.0
    %6598 = vmatpush1.msra.mxu0 0.0
    %6599 = vmatprep.subr.mxu0 0.0
    %6600 = vmatpush1.msra.mxu0 0.0
    %6601 = vmatprep.subr.mxu0 0.0
    %6602 = vmatpush1.msra.mxu0 0.0
    %6603 = vmatprep.subr.mxu0 0.0
    %6604 = vmatpush1.msra.mxu0 0.0
    %6605 = vmatprep.subr.mxu0 0.0
    %6606 = vmatpush1.msra.mxu0 0.0
    %6607 = vmatprep.subr.mxu0 0.0
    %6608 = vmatpush1.msra.mxu0 0.0
    %6609 = vmatprep.subr.mxu0 0.0
    %6610 = vmatpush1.msra.mxu0 0.0
    %6611 = vmatprep.subr.mxu0 0.0
    %6612 = vmatpush1.msra.mxu0 0.0
    %6613 = vmatprep.subr.mxu0 0.0
    %6614 = vmatpush1.msra.mxu0 0.0
    %6615 = vmatprep.subr.mxu0 0.0
    %6616 = vmatpush1.msra.mxu0 0.0
    %6617 = vmatprep.subr.mxu0 0.0
    %6618 = vmatpush1.msra.mxu0 0.0
    %6619 = vmatprep.subr.mxu0 0.0
    %6620 = vmatpush1.msra.mxu0 0.0
    %6621 = vmatprep.subr.mxu0 0.0
    %6622 = vmatpush1.msra.mxu0 0.0
    %6623 = vmatprep.subr.mxu0 0.0
    %6624 = vmatpush1.msra.mxu0 0.0
    %6625 = vmatprep.mubr.f32.mxu0 0.0
    %6626 = vmatmul.mubr.f32.gmra.mrb[0].mxu0 %v6418
    %v6627 = vpop.f32.mrb[0].mxu0
    %v6628 = vadd.f32 %v6416, %v6627
    %v6629 = vpop.f32.mrb[0].mxu0
    %6630 = vmatprep.mubr.f32.mxu0 0.0
    %6631 = vmatmul.mubr.f32.gmra.mrb[0].mxu0 %v6421
    %v6632 = vpop.f32.mrb[0].mxu0
    %v6633 = vadd.f32 %v6416, %v6632
    %v6634 = vpop.f32.mrb[0].mxu0
    %6635 = vmatprep.mubr.f32.mxu0 0.0
    %6636 = vmatmul.mubr.f32.gmra.mrb[0].mxu0 %v6424
    %v6637 = vpop.f32.mrb[0].mxu0
    %v6638 = vadd.f32 %v6416, %v6637
    %v6639 = vpop.f32.mrb[0].mxu0
    %6640 = vmatprep.mubr.f32.mxu0 0.0
    %6641 = vmatmul.mubr.f32.gmra.mrb[0].mxu0 %v6427
    %v6642 = vpop.f32.mrb[0].mxu0
    %v6643 = vadd.f32 %v6416, %v6642
    %v6644 = vpop.f32.mrb[0].mxu0
    %6645 = vmatprep.mubr.f32.mxu0 0.0
    %6646 = vmatmul.mubr.f32.gmra.mrb[0].mxu0 %v6430
    %v6647 = vpop.f32.mrb[0].mxu0
    %v6648 = vadd.f32 %v6416, %v6647
    %v6649 = vpop.f32.mrb[0].mxu0
    %6650 = vmatprep.mubr.f32.mxu0 0.0
    %6651 = vmatmul.mubr.f32.gmra.mrb[0].mxu0 %v6433
    %v6652 = vpop.f32.mrb[0].mxu0
    %v6653 = vadd.f32 %v6416, %v6652
    %v6654 = vpop.f32.mrb[0].mxu0
    %6655 = vmatprep.mubr.f32.mxu0 0.0
    %6656 = vmatmul.mubr.f32.gmra.mrb[0].mxu0 %v6436
    %v6657 = vpop.f32.mrb[0].mxu0
    %v6658 = vadd.f32 %v6416, %v6657
    %v6659 = vpop.f32.mrb[0].mxu0
    %6660 = vmatprep.mubr.f32.mxu0 0.0
    %6661 = vmatmul.mubr.f32.gmra.mrb[0].mxu0 %v6439
    %v6662 = vpop.f32.mrb[0].mxu0
    %v6663 = vadd.f32 %v6416, %v6662
    %v6664 = vpop.f32.mrb[0].mxu0
    %6665 = vmatprep.mubr.f32.mxu0 0.0
    %6666 = vmatmul.mubr.f32.gmra.mrb[0].mxu0 %v6442
    %v6667 = vpop.f32.mrb[0].mxu0
    %v6668 = vadd.f32 %v6416, %v6667
    %v6669 = vpop.f32.mrb[0].mxu0
    %6670 = vmatprep.mubr.f32.mxu0 0.0
    %6671 = vmatmul.mubr.f32.gmra.mrb[0].mxu0 %v6445
    %v6672 = vpop.f32.mrb[0].mxu0
    %v6673 = vadd.f32 %v6416, %v6672
    %v6674 = vpop.f32.mrb[0].mxu0
    %6675 = vmatprep.mubr.f32.mxu0 0.0
    %6676 = vmatmul.mubr.f32.gmra.mrb[0].mxu0 %v6448
    %v6677 = vpop.f32.mrb[0].mxu0
    %v6678 = vadd.f32 %v6416, %v6677
    %v6679 = vpop.f32.mrb[0].mxu0
    %6680 = vmatprep.mubr.f32.mxu0 0.0
    %6681 = vmatmul.mubr.f32.gmra.mrb[0].mxu0 %v6451
    %v6682 = vpop.f32.mrb[0].mxu0
    %v6683 = vadd.f32 %v6416, %v6682
    %v6684 = vpop.f32.mrb[0].mxu0
    %6685 = vmatprep.mubr.f32.mxu0 0.0
    %6686 = vmatmul.mubr.f32.gmra.mrb[0].mxu0 %v6454
    %v6687 = vpop.f32.mrb[0].mxu0
    %v6688 = vadd.f32 %v6416, %v6687
    %v6689 = vpop.f32.mrb[0].mxu0
    %6690 = vmatprep.mubr.f32.mxu0 0.0
    %6691 = vmatmul.mubr.f32.gmra.mrb[0].mxu0 %v6457
    %v6692 = vpop.f32.mrb[0].mxu0
    %v6693 = vadd.f32 %v6416, %v6692
    %v6694 = vpop.f32.mrb[0].mxu0
    %6695 = vmatprep.mubr.f32.mxu0 0.0
    %6696 = vmatmul.mubr.f32.gmra.mrb[0].mxu0 %v6460
    %v6697 = vpop.f32.mrb[0].mxu0
    %v6698 = vadd.f32 %v6416, %v6697
    %v6699 = vpop.f32.mrb[0].mxu0
    %6700 = vmatprep.mubr.f32.mxu0 0.0
    %6701 = vmatmul.mubr.f32.gmra.mrb[0].mxu0 %v6463
    %v6702 = vpop.f32.mrb[0].mxu0
    %v6703 = vadd.f32 %v6416, %v6702
    %v6704 = vpop.f32.mrb[0].mxu0
    %6705 = vmatprep.mubr.f32.mxu0 0.0
    %6706 = vmatmul.mubr.f32.gmra.mrb[0].mxu0 %v6466
    %v6707 = vpop.f32.mrb[0].mxu0
    %v6708 = vadd.f32 %v6416, %v6707
    %v6709 = vpop.f32.mrb[0].mxu0
    %6710 = vmatprep.mubr.f32.mxu0 0.0
    %6711 = vmatmul.mubr.f32.gmra.mrb[0].mxu0 %v6469
    %v6712 = vpop.f32.mrb[0].mxu0
    %v6713 = vadd.f32 %v6416, %v6712
    %v6714 = vpop.f32.mrb[0].mxu0
    %6715 = vmatprep.mubr.f32.mxu0 0.0
    %6716 = vmatmul.mubr.f32.gmra.mrb[0].mxu0 %v6472
    %v6717 = vpop.f32.mrb[0].mxu0
    %v6718 = vadd.f32 %v6416, %v6717
    %v6719 = vpop.f32.mrb[0].mxu0
    %6720 = vmatprep.mubr.f32.mxu0 0.0
    %6721 = vmatmul.mubr.f32.gmra.mrb[0].mxu0 %v6475
    %v6722 = vpop.f32.mrb[0].mxu0
    %v6723 = vadd.f32 %v6416, %v6722
    %v6724 = vpop.f32.mrb[0].mxu0
    %6725 = vmatprep.mubr.f32.mxu0 0.0
    %6726 = vmatmul.mubr.f32.gmra.mrb[0].mxu0 %v6478
    %v6727 = vpop.f32.mrb[0].mxu0
    %v6728 = vadd.f32 %v6416, %v6727
    %v6729 = vpop.f32.mrb[0].mxu0
    %6730 = vmatprep.mubr.f32.mxu0 0.0
    %6731 = vmatmul.mubr.f32.gmra.mrb[0].mxu0 %v6481
    %v6732 = vpop.f32.mrb[0].mxu0
    %v6733 = vadd.f32 %v6416, %v6732
    %v6734 = vpop.f32.mrb[0].mxu0
    %6735 = vmatprep.mubr.f32.mxu0 0.0
    %6736 = vmatmul.mubr.f32.gmra.mrb[0].mxu0 %v6484
    %v6737 = vpop.f32.mrb[0].mxu0
    %v6738 = vadd.f32 %v6416, %v6737
    %v6739 = vpop.f32.mrb[0].mxu0
    %6740 = vmatprep.mubr.f32.mxu0 0.0
    %6741 = vmatmul.mubr.f32.gmra.mrb[0].mxu0 %v6487
    %v6742 = vpop.f32.mrb[0].mxu0
    %v6743 = vadd.f32 %v6416, %v6742
    %v6744 = vpop.f32.mrb[0].mxu0
    %6745 = vmatprep.mubr.f32.mxu0 0.0
    %6746 = vmatmul.mubr.f32.gmra.mrb[0].mxu0 %v6490
    %v6747 = vpop.f32.mrb[0].mxu0
    %v6748 = vadd.f32 %v6416, %v6747
    %v6749 = vpop.f32.mrb[0].mxu0
    %6750 = vmatprep.mubr.f32.mxu0 0.0
    %6751 = vmatmul.mubr.f32.gmra.mrb[0].mxu0 %v6493
    %v6752 = vpop.f32.mrb[0].mxu0
    %v6753 = vadd.f32 %v6416, %v6752
    %v6754 = vpop.f32.mrb[0].mxu0
    %6755 = vmatprep.mubr.f32.mxu0 0.0
    %6756 = vmatmul.mubr.f32.gmra.mrb[0].mxu0 %v6496
    %v6757 = vpop.f32.mrb[0].mxu0
    %v6758 = vadd.f32 %v6416, %v6757
    %v6759 = vpop.f32.mrb[0].mxu0
    %6760 = vmatprep.mubr.f32.mxu0 0.0
    %6761 = vmatmul.mubr.f32.gmra.mrb[0].mxu0 %v6499
    %v6762 = vpop.f32.mrb[0].mxu0
    %v6763 = vadd.f32 %v6416, %v6762
    %v6764 = vpop.f32.mrb[0].mxu0
    %6765 = vmatprep.mubr.f32.mxu0 0.0
    %6766 = vmatmul.mubr.f32.gmra.mrb[0].mxu0 %v6502
    %v6767 = vpop.f32.mrb[0].mxu0
    %v6768 = vadd.f32 %v6416, %v6767
    %v6769 = vpop.f32.mrb[0].mxu0
    %6770 = vmatprep.mubr.f32.mxu0 0.0
    %6771 = vmatmul.mubr.f32.gmra.mrb[0].mxu0 %v6505
    %v6772 = vpop.f32.mrb[0].mxu0
    %v6773 = vadd.f32 %v6416, %v6772
    %v6774 = vpop.f32.mrb[0].mxu0
    %6775 = vmatprep.mubr.f32.mxu0 0.0
    %6776 = vmatmul.mubr.f32.gmra.mrb[0].mxu0 %v6508
    %v6777 = vpop.f32.mrb[0].mxu0
    %v6778 = vadd.f32 %v6416, %v6777
    %v6779 = vpop.f32.mrb[0].mxu0
    %6780 = vmatprep.mubr.f32.mxu0 0.0
    %6781 = vmatmul.mubr.f32.gmra.mrb[0].mxu0 %v6511
    %v6782 = vpop.f32.mrb[0].mxu0
    %v6783 = vadd.f32 %v6416, %v6782
    %v6784 = vpop.f32.mrb[0].mxu0
    %6785 = vmatprep.mubr.f32.mxu0 0.0
    %6786 = vmatmul.mubr.f32.gmra.mrb[0].mxu0 %v6514
    %v6787 = vpop.f32.mrb[0].mxu0
    %v6788 = vadd.f32 %v6416, %v6787
    %v6789 = vpop.f32.mrb[0].mxu0
    %6790 = vmatprep.mubr.f32.mxu0 0.0
    %6791 = vmatmul.mubr.f32.gmra.mrb[0].mxu0 %v6517
    %v6792 = vpop.f32.mrb[0].mxu0
    %v6793 = vadd.f32 %v6416, %v6792
    %v6794 = vpop.f32.mrb[0].mxu0
    %6795 = vmatprep.mubr.f32.mxu0 0.0
    %6796 = vmatmul.mubr.f32.gmra.mrb[0].mxu0 %v6520
    %v6797 = vpop.f32.mrb[0].mxu0
    %v6798 = vadd.f32 %v6416, %v6797
    %v6799 = vpop.f32.mrb[0].mxu0
    %6800 = vmatprep.mubr.f32.mxu0 0.0
    %6801 = vmatmul.mubr.f32.gmra.mrb[0].mxu0 %v6523
    %v6802 = vpop.f32.mrb[0].mxu0
    %v6803 = vadd.f32 %v6416, %v6802
    %v6804 = vpop.f32.mrb[0].mxu0
    %6805 = vmatprep.mubr.f32.mxu0 0.0
    %6806 = vmatmul.mubr.f32.gmra.mrb[0].mxu0 %v6526
    %v6807 = vpop.f32.mrb[0].mxu0
    %v6808 = vadd.f32 %v6416, %v6807
    %v6809 = vpop.f32.mrb[0].mxu0
    %6810 = vmatprep.mubr.f32.mxu0 0.0
    %6811 = vmatmul.mubr.f32.gmra.mrb[0].mxu0 %v6529
    %v6812 = vpop.f32.mrb[0].mxu0
    %v6813 = vadd.f32 %v6416, %v6812
    %v6814 = vpop.f32.mrb[0].mxu0
    %6815 = vmatprep.mubr.f32.mxu0 0.0
    %6816 = vmatmul.mubr.f32.gmra.mrb[0].mxu0 %v6532
    %v6817 = vpop.f32.mrb[0].mxu0
    %v6818 = vadd.f32 %v6416, %v6817
    %v6819 = vpop.f32.mrb[0].mxu0
    %6820 = vmatprep.mubr.f32.mxu0 0.0
    %6821 = vmatmul.mubr.f32.gmra.mrb[0].mxu0 %v6535
    %v6822 = vpop.f32.mrb[0].mxu0
    %v6823 = vadd.f32 %v6416, %v6822
    %v6824 = vpop.f32.mrb[0].mxu0
    %6825 = vmatprep.mubr.f32.mxu0 0.0
    %6826 = vmatmul.mubr.f32.gmra.mrb[0].mxu0 %v6538
    %v6827 = vpop.f32.mrb[0].mxu0
    %v6828 = vadd.f32 %v6416, %v6827
    %v6829 = vpop.f32.mrb[0].mxu0
    %6830 = vmatprep.mubr.f32.mxu0 0.0
    %6831 = vmatmul.mubr.f32.gmra.mrb[0].mxu0 %v6541
    %v6832 = vpop.f32.mrb[0].mxu0
    %v6833 = vadd.f32 %v6416, %v6832
    %v6834 = vpop.f32.mrb[0].mxu0
    %6835 = vmatprep.mubr.f32.mxu0 0.0
    %6836 = vmatmul.mubr.f32.gmra.mrb[0].mxu0 %v6544
    %v6837 = vpop.f32.mrb[0].mxu0
    %v6838 = vadd.f32 %v6416, %v6837
    %v6839 = vpop.f32.mrb[0].mxu0
    %6840 = vmatprep.mubr.f32.mxu0 0.0
    %6841 = vmatmul.mubr.f32.gmra.mrb[0].mxu0 %v6547
    %v6842 = vpop.f32.mrb[0].mxu0
    %v6843 = vadd.f32 %v6416, %v6842
    %v6844 = vpop.f32.mrb[0].mxu0
    %6845 = vmatprep.mubr.f32.mxu0 0.0
    %6846 = vmatmul.mubr.f32.gmra.mrb[0].mxu0 %v6550
    %v6847 = vpop.f32.mrb[0].mxu0
    %v6848 = vadd.f32 %v6416, %v6847
    %v6849 = vpop.f32.mrb[0].mxu0
    %6850 = vmatprep.mubr.f32.mxu0 0.0
    %6851 = vmatmul.mubr.f32.gmra.mrb[0].mxu0 %v6553
    %v6852 = vpop.f32.mrb[0].mxu0
    %v6853 = vadd.f32 %v6416, %v6852
    %v6854 = vpop.f32.mrb[0].mxu0
    %6855 = vmatprep.mubr.f32.mxu0 0.0
    %6856 = vmatmul.mubr.f32.gmra.mrb[0].mxu0 %v6556
    %v6857 = vpop.f32.mrb[0].mxu0
    %v6858 = vadd.f32 %v6416, %v6857
    %v6859 = vpop.f32.mrb[0].mxu0
    %6860 = vmatprep.mubr.f32.mxu0 0.0
    %6861 = vmatmul.mubr.f32.gmra.mrb[0].mxu0 %v6559
    %v6862 = vpop.f32.mrb[0].mxu0
    %v6863 = vadd.f32 %v6416, %v6862
    %v6864 = vpop.f32.mrb[0].mxu0
    %6865 = vdwg.mxu0
    %v6866 = vmax.f32 %v6628, 0.0
    %v6867 = vmax.f32 %v6633, 0.0
    %v6868 = vmax.f32 %v6638, 0.0
    %v6869 = vmax.f32 %v6643, 0.0
    %v6870 = vmax.f32 %v6648, 0.0
    %v6871 = vmax.f32 %v6653, 0.0
    %v6872 = vmax.f32 %v6658, 0.0
    %v6873 = vmax.f32 %v6663, 0.0
    %v6874 = vmax.f32 %v6668, 0.0
    %v6875 = vmax.f32 %v6673, 0.0
    %v6876 = vmax.f32 %v6678, 0.0
    %v6877 = vmax.f32 %v6683, 0.0
    %v6878 = vmax.f32 %v6688, 0.0
    %v6879 = vmax.f32 %v6693, 0.0
    %v6880 = vmax.f32 %v6698, 0.0
    %v6881 = vmax.f32 %v6703, 0.0
    %v6882 = vmax.f32 %v6708, 0.0
    %v6883 = vmax.f32 %v6713, 0.0
    %v6884 = vmax.f32 %v6718, 0.0
    %v6885 = vmax.f32 %v6723, 0.0
    %v6886 = vmax.f32 %v6728, 0.0
    %v6887 = vmax.f32 %v6733, 0.0
    %v6888 = vmax.f32 %v6738, 0.0
    %v6889 = vmax.f32 %v6743, 0.0
    %v6890 = vmax.f32 %v6748, 0.0
    %v6891 = vmax.f32 %v6753, 0.0
    %v6892 = vmax.f32 %v6758, 0.0
    %v6893 = vmax.f32 %v6763, 0.0
    %v6894 = vmax.f32 %v6768, 0.0
    %v6895 = vmax.f32 %v6773, 0.0
    %v6896 = vmax.f32 %v6778, 0.0
    %v6897 = vmax.f32 %v6783, 0.0
    %v6898 = vmax.f32 %v6788, 0.0
    %v6899 = vmax.f32 %v6793, 0.0
    %v6900 = vmax.f32 %v6798, 0.0
    %v6901 = vmax.f32 %v6803, 0.0
    %v6902 = vmax.f32 %v6808, 0.0
    %v6903 = vmax.f32 %v6813, 0.0
    %v6904 = vmax.f32 %v6818, 0.0
    %v6905 = vmax.f32 %v6823, 0.0
    %v6906 = vmax.f32 %v6828, 0.0
    %v6907 = vmax.f32 %v6833, 0.0
    %v6908 = vmax.f32 %v6838, 0.0
    %v6909 = vmax.f32 %v6843, 0.0
    %v6910 = vmax.f32 %v6848, 0.0
    %v6911 = vmax.f32 %v6853, 0.0
    %v6912 = vmax.f32 %v6858, 0.0
    %v6913 = vmax.f32 %v6863, 0.0
    %v6914 = vmul.f32 %v6866, %v1029
    %v6915 = vmul.f32 %v6867, %v1030
    %v6916 = vmul.f32 %v6868, %v1031
    %v6917 = vmul.f32 %v6869, %v1032
    %v6918 = vmul.f32 %v6870, %v1033
    %v6919 = vmul.f32 %v6871, %v1034
    %v6920 = vmul.f32 %v6872, %v1035
    %v6921 = vmul.f32 %v6873, %v1036
    %v6922 = vmul.f32 %v6874, %v1037
    %v6923 = vmul.f32 %v6875, %v1038
    %v6924 = vmul.f32 %v6876, %v1039
    %v6925 = vmul.f32 %v6877, %v1040
    %v6926 = vmul.f32 %v6878, %v1041
    %v6927 = vmul.f32 %v6879, %v1042
    %v6928 = vmul.f32 %v6880, %v1043
    %v6929 = vmul.f32 %v6881, %v1044
    %v6930 = vmul.f32 %v6882, %v1045
    %v6931 = vmul.f32 %v6883, %v1046
    %v6932 = vmul.f32 %v6884, %v1047
    %v6933 = vmul.f32 %v6885, %v1048
    %v6934 = vmul.f32 %v6886, %v1049
    %v6935 = vmul.f32 %v6887, %v1050
    %v6936 = vmul.f32 %v6888, %v1051
    %v6937 = vmul.f32 %v6889, %v1052
    %v6938 = vmul.f32 %v6890, %v1053
    %v6939 = vmul.f32 %v6891, %v1054
    %v6940 = vmul.f32 %v6892, %v1055
    %v6941 = vmul.f32 %v6893, %v1056
    %v6942 = vmul.f32 %v6894, %v1057
    %v6943 = vmul.f32 %v6895, %v1058
    %v6944 = vmul.f32 %v6896, %v1059
    %v6945 = vmul.f32 %v6897, %v1060
    %v6946 = vmul.f32 %v6898, %v1061
    %v6947 = vmul.f32 %v6899, %v1062
    %v6948 = vmul.f32 %v6900, %v1063
    %v6949 = vmul.f32 %v6901, %v1064
    %v6950 = vmul.f32 %v6902, %v1065
    %v6951 = vmul.f32 %v6903, %v1066
    %v6952 = vmul.f32 %v6904, %v1067
    %v6953 = vmul.f32 %v6905, %v1068
    %v6954 = vmul.f32 %v6906, %v1069
    %v6955 = vmul.f32 %v6907, %v1070
    %v6956 = vmul.f32 %v6908, %v1071
    %v6957 = vmul.f32 %v6909, %v1072
    %v6958 = vmul.f32 %v6910, %v1073
    %v6959 = vmul.f32 %v6911, %v1074
    %v6960 = vmul.f32 %v6912, %v1075
    %v6961 = vmul.f32 %v6913, %v1076
    %v6962 = vsel %vm2232, %v6914, 0.0
    %v6963 = vsel %vm2232, %v6915, 0.0
    %v6964 = vadd.f32 %v6962, %v6963
    %v6965 = vsel %vm2232, %v6916, 0.0
    %v6966 = vadd.f32 %v6964, %v6965
    %v6967 = vsel %vm2232, %v6917, 0.0
    %v6968 = vadd.f32 %v6966, %v6967
    %v6969 = vsel %vm2232, %v6918, 0.0
    %v6970 = vadd.f32 %v6968, %v6969
    %v6971 = vsel %vm2232, %v6919, 0.0
    %v6972 = vadd.f32 %v6970, %v6971
    %v6973 = vsel %vm2232, %v6920, 0.0
    %v6974 = vadd.f32 %v6972, %v6973
    %v6975 = vsel %vm2232, %v6921, 0.0
    %v6976 = vadd.f32 %v6974, %v6975
    %v6977 = vsel %vm2232, %v6922, 0.0
    %v6978 = vadd.f32 %v6976, %v6977
    %v6979 = vsel %vm2232, %v6923, 0.0
    %v6980 = vadd.f32 %v6978, %v6979
    %v6981 = vsel %vm2232, %v6924, 0.0
    %v6982 = vadd.f32 %v6980, %v6981
    %v6983 = vsel %vm2232, %v6925, 0.0
    %v6984 = vadd.f32 %v6982, %v6983
    %v6985 = vsel %vm2232, %v6926, 0.0
    %v6986 = vadd.f32 %v6984, %v6985
    %v6987 = vsel %vm2232, %v6927, 0.0
    %v6988 = vadd.f32 %v6986, %v6987
    %v6989 = vsel %vm2232, %v6928, 0.0
    %v6990 = vadd.f32 %v6988, %v6989
    %v6991 = vsel %vm2232, %v6929, 0.0
    %v6992 = vadd.f32 %v6990, %v6991
    %v6993 = vsel %vm2232, %v6930, 0.0
    %v6994 = vadd.f32 %v6992, %v6993
    %v6995 = vsel %vm2232, %v6931, 0.0
    %v6996 = vadd.f32 %v6994, %v6995
    %v6997 = vsel %vm2232, %v6932, 0.0
    %v6998 = vadd.f32 %v6996, %v6997
    %v6999 = vsel %vm2232, %v6933, 0.0
    %v7000 = vadd.f32 %v6998, %v6999
    %v7001 = vsel %vm2232, %v6934, 0.0
    %v7002 = vadd.f32 %v7000, %v7001
    %v7003 = vsel %vm2232, %v6935, 0.0
    %v7004 = vadd.f32 %v7002, %v7003
    %v7005 = vsel %vm2232, %v6936, 0.0
    %v7006 = vadd.f32 %v7004, %v7005
    %v7007 = vsel %vm2232, %v6937, 0.0
    %v7008 = vadd.f32 %v7006, %v7007
    %v7009 = vsel %vm2232, %v6938, 0.0
    %v7010 = vadd.f32 %v7008, %v7009
    %v7011 = vsel %vm2232, %v6939, 0.0
    %v7012 = vadd.f32 %v7010, %v7011
    %v7013 = vsel %vm2232, %v6940, 0.0
    %v7014 = vadd.f32 %v7012, %v7013
    %v7015 = vsel %vm2232, %v6941, 0.0
    %v7016 = vadd.f32 %v7014, %v7015
    %v7017 = vsel %vm2232, %v6942, 0.0
    %v7018 = vadd.f32 %v7016, %v7017
    %v7019 = vsel %vm2232, %v6943, 0.0
    %v7020 = vadd.f32 %v7018, %v7019
    %v7021 = vsel %vm2232, %v6944, 0.0
    %v7022 = vadd.f32 %v7020, %v7021
    %v7023 = vsel %vm2232, %v6945, 0.0
    %v7024 = vadd.f32 %v7022, %v7023
    %v7025 = vsel %vm2232, %v6946, 0.0
    %v7026 = vadd.f32 %v7024, %v7025
    %v7027 = vsel %vm2232, %v6947, 0.0
    %v7028 = vadd.f32 %v7026, %v7027
    %v7029 = vsel %vm2232, %v6948, 0.0
    %v7030 = vadd.f32 %v7028, %v7029
    %v7031 = vsel %vm2232, %v6949, 0.0
    %v7032 = vadd.f32 %v7030, %v7031
    %v7033 = vsel %vm2232, %v6950, 0.0
    %v7034 = vadd.f32 %v7032, %v7033
    %v7035 = vsel %vm2232, %v6951, 0.0
    %v7036 = vadd.f32 %v7034, %v7035
    %v7037 = vsel %vm2232, %v6952, 0.0
    %v7038 = vadd.f32 %v7036, %v7037
    %v7039 = vsel %vm2232, %v6953, 0.0
    %v7040 = vadd.f32 %v7038, %v7039
    %v7041 = vsel %vm2232, %v6954, 0.0
    %v7042 = vadd.f32 %v7040, %v7041
    %v7043 = vsel %vm2232, %v6955, 0.0
    %v7044 = vadd.f32 %v7042, %v7043
    %v7045 = vsel %vm2232, %v6956, 0.0
    %v7046 = vadd.f32 %v7044, %v7045
    %v7047 = vsel %vm2232, %v6957, 0.0
    %v7048 = vadd.f32 %v7046, %v7047
    %v7049 = vsel %vm2232, %v6958, 0.0
    %v7050 = vadd.f32 %v7048, %v7049
    %v7051 = vsel %vm2232, %v6959, 0.0
    %v7052 = vadd.f32 %v7050, %v7051
    %v7053 = vsel %vm2232, %v6960, 0.0
    %v7054 = vadd.f32 %v7052, %v7053
    %v7055 = vsel %vm2232, %v6961, 0.0
    %v7056 = vadd.f32 %v7054, %v7055
    %v7057 = vrot.slane %v7056, 4
    %v7058 = vadd.f32 %v7056, %v7057
    %v7059 = vrot.slane %v7058, 2
    %v7060 = vadd.f32 %v7058, %v7059
    %v7061 = vrot.slane %v7060, 1
    %v7062 = vadd.f32 %v7060, %v7061
    %v7063 = vmul.f32 %v7062, 0.0033333334
    %v7064 = vmul.f32 %v6914, %v6914
    %v7065 = vmul.f32 %v6915, %v6915
    %v7066 = vmul.f32 %v6916, %v6916
    %v7067 = vmul.f32 %v6917, %v6917
    %v7068 = vmul.f32 %v6918, %v6918
    %v7069 = vmul.f32 %v6919, %v6919
    %v7070 = vmul.f32 %v6920, %v6920
    %v7071 = vmul.f32 %v6921, %v6921
    %v7072 = vmul.f32 %v6922, %v6922
    %v7073 = vmul.f32 %v6923, %v6923
    %v7074 = vmul.f32 %v6924, %v6924
    %v7075 = vmul.f32 %v6925, %v6925
    %v7076 = vmul.f32 %v6926, %v6926
    %v7077 = vmul.f32 %v6927, %v6927
    %v7078 = vmul.f32 %v6928, %v6928
    %v7079 = vmul.f32 %v6929, %v6929
    %v7080 = vmul.f32 %v6930, %v6930
    %v7081 = vmul.f32 %v6931, %v6931
    %v7082 = vmul.f32 %v6932, %v6932
    %v7083 = vmul.f32 %v6933, %v6933
    %v7084 = vmul.f32 %v6934, %v6934
    %v7085 = vmul.f32 %v6935, %v6935
    %v7086 = vmul.f32 %v6936, %v6936
    %v7087 = vmul.f32 %v6937, %v6937
    %v7088 = vmul.f32 %v6938, %v6938
    %v7089 = vmul.f32 %v6939, %v6939
    %v7090 = vmul.f32 %v6940, %v6940
    %v7091 = vmul.f32 %v6941, %v6941
    %v7092 = vmul.f32 %v6942, %v6942
    %v7093 = vmul.f32 %v6943, %v6943
    %v7094 = vmul.f32 %v6944, %v6944
    %v7095 = vmul.f32 %v6945, %v6945
    %v7096 = vmul.f32 %v6946, %v6946
    %v7097 = vmul.f32 %v6947, %v6947
    %v7098 = vmul.f32 %v6948, %v6948
    %v7099 = vmul.f32 %v6949, %v6949
    %v7100 = vmul.f32 %v6950, %v6950
    %v7101 = vmul.f32 %v6951, %v6951
    %v7102 = vmul.f32 %v6952, %v6952
    %v7103 = vmul.f32 %v6953, %v6953
    %v7104 = vmul.f32 %v6954, %v6954
    %v7105 = vmul.f32 %v6955, %v6955
    %v7106 = vmul.f32 %v6956, %v6956
    %v7107 = vmul.f32 %v6957, %v6957
    %v7108 = vmul.f32 %v6958, %v6958
    %v7109 = vmul.f32 %v6959, %v6959
    %v7110 = vmul.f32 %v6960, %v6960
    %v7111 = vmul.f32 %v6961, %v6961
    %v7112 = vsel %vm2232, %v7064, 0.0
    %v7113 = vsel %vm2232, %v7065, 0.0
    %v7114 = vadd.f32 %v7112, %v7113
    %v7115 = vsel %vm2232, %v7066, 0.0
    %v7116 = vadd.f32 %v7114, %v7115
    %v7117 = vsel %vm2232, %v7067, 0.0
    %v7118 = vadd.f32 %v7116, %v7117
    %v7119 = vsel %vm2232, %v7068, 0.0
    %v7120 = vadd.f32 %v7118, %v7119
    %v7121 = vsel %vm2232, %v7069, 0.0
    %v7122 = vadd.f32 %v7120, %v7121
    %v7123 = vsel %vm2232, %v7070, 0.0
    %v7124 = vadd.f32 %v7122, %v7123
    %v7125 = vsel %vm2232, %v7071, 0.0
    %v7126 = vadd.f32 %v7124, %v7125
    %v7127 = vsel %vm2232, %v7072, 0.0
    %v7128 = vadd.f32 %v7126, %v7127
    %v7129 = vsel %vm2232, %v7073, 0.0
    %v7130 = vadd.f32 %v7128, %v7129
    %v7131 = vsel %vm2232, %v7074, 0.0
    %v7132 = vadd.f32 %v7130, %v7131
    %v7133 = vsel %vm2232, %v7075, 0.0
    %v7134 = vadd.f32 %v7132, %v7133
    %v7135 = vsel %vm2232, %v7076, 0.0
    %v7136 = vadd.f32 %v7134, %v7135
    %v7137 = vsel %vm2232, %v7077, 0.0
    %v7138 = vadd.f32 %v7136, %v7137
    %v7139 = vsel %vm2232, %v7078, 0.0
    %v7140 = vadd.f32 %v7138, %v7139
    %v7141 = vsel %vm2232, %v7079, 0.0
    %v7142 = vadd.f32 %v7140, %v7141
    %v7143 = vsel %vm2232, %v7080, 0.0
    %v7144 = vadd.f32 %v7142, %v7143
    %v7145 = vsel %vm2232, %v7081, 0.0
    %v7146 = vadd.f32 %v7144, %v7145
    %v7147 = vsel %vm2232, %v7082, 0.0
    %v7148 = vadd.f32 %v7146, %v7147
    %v7149 = vsel %vm2232, %v7083, 0.0
    %v7150 = vadd.f32 %v7148, %v7149
    %v7151 = vsel %vm2232, %v7084, 0.0
    %v7152 = vadd.f32 %v7150, %v7151
    %v7153 = vsel %vm2232, %v7085, 0.0
    %v7154 = vadd.f32 %v7152, %v7153
    %v7155 = vsel %vm2232, %v7086, 0.0
    %v7156 = vadd.f32 %v7154, %v7155
    %v7157 = vsel %vm2232, %v7087, 0.0
    %v7158 = vadd.f32 %v7156, %v7157
    %v7159 = vsel %vm2232, %v7088, 0.0
    %v7160 = vadd.f32 %v7158, %v7159
    %v7161 = vsel %vm2232, %v7089, 0.0
    %v7162 = vadd.f32 %v7160, %v7161
    %v7163 = vsel %vm2232, %v7090, 0.0
    %v7164 = vadd.f32 %v7162, %v7163
    %v7165 = vsel %vm2232, %v7091, 0.0
    %v7166 = vadd.f32 %v7164, %v7165
    %v7167 = vsel %vm2232, %v7092, 0.0
    %v7168 = vadd.f32 %v7166, %v7167
    %v7169 = vsel %vm2232, %v7093, 0.0
    %v7170 = vadd.f32 %v7168, %v7169
    %v7171 = vsel %vm2232, %v7094, 0.0
    %v7172 = vadd.f32 %v7170, %v7171
    %v7173 = vsel %vm2232, %v7095, 0.0
    %v7174 = vadd.f32 %v7172, %v7173
    %v7175 = vsel %vm2232, %v7096, 0.0
    %v7176 = vadd.f32 %v7174, %v7175
    %v7177 = vsel %vm2232, %v7097, 0.0
    %v7178 = vadd.f32 %v7176, %v7177
    %v7179 = vsel %vm2232, %v7098, 0.0
    %v7180 = vadd.f32 %v7178, %v7179
    %v7181 = vsel %vm2232, %v7099, 0.0
    %v7182 = vadd.f32 %v7180, %v7181
    %v7183 = vsel %vm2232, %v7100, 0.0
    %v7184 = vadd.f32 %v7182, %v7183
    %v7185 = vsel %vm2232, %v7101, 0.0
    %v7186 = vadd.f32 %v7184, %v7185
    %v7187 = vsel %vm2232, %v7102, 0.0
    %v7188 = vadd.f32 %v7186, %v7187
    %v7189 = vsel %vm2232, %v7103, 0.0
    %v7190 = vadd.f32 %v7188, %v7189
    %v7191 = vsel %vm2232, %v7104, 0.0
    %v7192 = vadd.f32 %v7190, %v7191
    %v7193 = vsel %vm2232, %v7105, 0.0
    %v7194 = vadd.f32 %v7192, %v7193
    %v7195 = vsel %vm2232, %v7106, 0.0
    %v7196 = vadd.f32 %v7194, %v7195
    %v7197 = vsel %vm2232, %v7107, 0.0
    %v7198 = vadd.f32 %v7196, %v7197
    %v7199 = vsel %vm2232, %v7108, 0.0
    %v7200 = vadd.f32 %v7198, %v7199
    %v7201 = vsel %vm2232, %v7109, 0.0
    %v7202 = vadd.f32 %v7200, %v7201
    %v7203 = vsel %vm2232, %v7110, 0.0
    %v7204 = vadd.f32 %v7202, %v7203
    %v7205 = vsel %vm2232, %v7111, 0.0
    %v7206 = vadd.f32 %v7204, %v7205
    %v7207 = vrot.slane %v7206, 4
    %v7208 = vadd.f32 %v7206, %v7207
    %v7209 = vrot.slane %v7208, 2
    %v7210 = vadd.f32 %v7208, %v7209
    %v7211 = vrot.slane %v7210, 1
    %v7212 = vadd.f32 %v7210, %v7211
    %v7213 = vmul.f32 %v7212, 0.0033333334
    %v7214 = vmul.f32 %v7063, %v7063
    %v7215 = vsub.f32 %v7213, %v7214
    %v7216 = vmax.f32 %v7215, 0.0
    %v7217 = vadd.f32 %v7216, 1e-05
    %v7218 = vrsqrt.pop %v7217
    %v7219 = vmul.f32 %v5317, %v7218
    %v7220 = vmul.f32 %v7063, %v7219
    %v7222 = vrot.slane %v7220, 7
    %v7224 = vsub.f32 %v5317, %v7222
    %7225 = vmatprep.subr.mxu0 0.0
    %7226 = vmatpush1.msra.mxu0 %v6914
    %7227 = vmatprep.subr.mxu0 0.0
    %7228 = vmatpush1.msra.mxu0 %v6915
    %7229 = vmatprep.subr.mxu0 0.0
    %7230 = vmatpush1.msra.mxu0 %v6916
    %7231 = vmatprep.subr.mxu0 0.0
    %7232 = vmatpush1.msra.mxu0 %v6917
    %7233 = vmatprep.subr.mxu0 0.0
    %7234 = vmatpush1.msra.mxu0 %v6918
    %7235 = vmatprep.subr.mxu0 0.0
    %7236 = vmatpush1.msra.mxu0 %v6919
    %7237 = vmatprep.subr.mxu0 0.0
    %7238 = vmatpush1.msra.mxu0 %v6920
    %7239 = vmatprep.subr.mxu0 0.0
    %7240 = vmatpush1.msra.mxu0 %v6921
    %7241 = vmatprep.subr.mxu0 0.0
    %7242 = vmatpush1.msra.mxu0 %v6922
    %7243 = vmatprep.subr.mxu0 0.0
    %7244 = vmatpush1.msra.mxu0 %v6923
    %7245 = vmatprep.subr.mxu0 0.0
    %7246 = vmatpush1.msra.mxu0 %v6924
    %7247 = vmatprep.subr.mxu0 0.0
    %7248 = vmatpush1.msra.mxu0 %v6925
    %7249 = vmatprep.subr.mxu0 0.0
    %7250 = vmatpush1.msra.mxu0 %v6926
    %7251 = vmatprep.subr.mxu0 0.0
    %7252 = vmatpush1.msra.mxu0 %v6927
    %7253 = vmatprep.subr.mxu0 0.0
    %7254 = vmatpush1.msra.mxu0 %v6928
    %7255 = vmatprep.subr.mxu0 0.0
    %7256 = vmatpush1.msra.mxu0 %v6929
    %7257 = vmatprep.subr.mxu0 0.0
    %7258 = vmatpush1.msra.mxu0 %v6930
    %7259 = vmatprep.subr.mxu0 0.0
    %7260 = vmatpush1.msra.mxu0 %v6931
    %7261 = vmatprep.subr.mxu0 0.0
    %7262 = vmatpush1.msra.mxu0 %v6932
    %7263 = vmatprep.subr.mxu0 0.0
    %7264 = vmatpush1.msra.mxu0 %v6933
    %7265 = vmatprep.subr.mxu0 0.0
    %7266 = vmatpush1.msra.mxu0 %v6934
    %7267 = vmatprep.subr.mxu0 0.0
    %7268 = vmatpush1.msra.mxu0 %v6935
    %7269 = vmatprep.subr.mxu0 0.0
    %7270 = vmatpush1.msra.mxu0 %v6936
    %7271 = vmatprep.subr.mxu0 0.0
    %7272 = vmatpush1.msra.mxu0 %v6937
    %7273 = vmatprep.subr.mxu0 0.0
    %7274 = vmatpush1.msra.mxu0 %v6938
    %7275 = vmatprep.subr.mxu0 0.0
    %7276 = vmatpush1.msra.mxu0 %v6939
    %7277 = vmatprep.subr.mxu0 0.0
    %7278 = vmatpush1.msra.mxu0 %v6940
    %7279 = vmatprep.subr.mxu0 0.0
    %7280 = vmatpush1.msra.mxu0 %v6941
    %7281 = vmatprep.subr.mxu0 0.0
    %7282 = vmatpush1.msra.mxu0 %v6942
    %7283 = vmatprep.subr.mxu0 0.0
    %7284 = vmatpush1.msra.mxu0 %v6943
    %7285 = vmatprep.subr.mxu0 0.0
    %7286 = vmatpush1.msra.mxu0 %v6944
    %7287 = vmatprep.subr.mxu0 0.0
    %7288 = vmatpush1.msra.mxu0 %v6945
    %7289 = vmatprep.mubr.f32.mxu0 %v830
    %7290 = vmatmul.mubr.f32.gmra.mrb[0].mxu0 %v829
    %v7291 = vpop.f32.mrb[0].mxu0
    %v7292 = vadd.f32 0.0, %v7291
    %v7293 = vpop.f32.mrb[0].mxu0
    %7294 = vdwg.mxu0
    %7295 = vmatprep.subr.mxu0 0.0
    %7296 = vmatpush1.msra.mxu0 %v6946
    %7297 = vmatprep.subr.mxu0 0.0
    %7298 = vmatpush1.msra.mxu0 %v6947
    %7299 = vmatprep.subr.mxu0 0.0
    %7300 = vmatpush1.msra.mxu0 %v6948
    %7301 = vmatprep.subr.mxu0 0.0
    %7302 = vmatpush1.msra.mxu0 %v6949
    %7303 = vmatprep.subr.mxu0 0.0
    %7304 = vmatpush1.msra.mxu0 %v6950
    %7305 = vmatprep.subr.mxu0 0.0
    %7306 = vmatpush1.msra.mxu0 %v6951
    %7307 = vmatprep.subr.mxu0 0.0
    %7308 = vmatpush1.msra.mxu0 %v6952
    %7309 = vmatprep.subr.mxu0 0.0
    %7310 = vmatpush1.msra.mxu0 %v6953
    %7311 = vmatprep.subr.mxu0 0.0
    %7312 = vmatpush1.msra.mxu0 %v6954
    %7313 = vmatprep.subr.mxu0 0.0
    %7314 = vmatpush1.msra.mxu0 %v6955
    %7315 = vmatprep.subr.mxu0 0.0
    %7316 = vmatpush1.msra.mxu0 %v6956
    %7317 = vmatprep.subr.mxu0 0.0
    %7318 = vmatpush1.msra.mxu0 %v6957
    %7319 = vmatprep.subr.mxu0 0.0
    %7320 = vmatpush1.msra.mxu0 %v6958
    %7321 = vmatprep.subr.mxu0 0.0
    %7322 = vmatpush1.msra.mxu0 %v6959
    %7323 = vmatprep.subr.mxu0 0.0
    %7324 = vmatpush1.msra.mxu0 %v6960
    %7325 = vmatprep.subr.mxu0 0.0
    %7326 = vmatpush1.msra.mxu0 %v6961
    %7327 = vmatprep.subr.mxu0 0.0
    %7328 = vmatpush1.msra.mxu0 0.0
    %7329 = vmatprep.subr.mxu0 0.0
    %7330 = vmatpush1.msra.mxu0 0.0
    %7331 = vmatprep.subr.mxu0 0.0
    %7332 = vmatpush1.msra.mxu0 0.0
    %7333 = vmatprep.subr.mxu0 0.0
    %7334 = vmatpush1.msra.mxu0 0.0
    %7335 = vmatprep.subr.mxu0 0.0
    %7336 = vmatpush1.msra.mxu0 0.0
    %7337 = vmatprep.subr.mxu0 0.0
    %7338 = vmatpush1.msra.mxu0 0.0
    %7339 = vmatprep.subr.mxu0 0.0
    %7340 = vmatpush1.msra.mxu0 0.0
    %7341 = vmatprep.subr.mxu0 0.0
    %7342 = vmatpush1.msra.mxu0 0.0
    %7343 = vmatprep.subr.mxu0 0.0
    %7344 = vmatpush1.msra.mxu0 0.0
    %7345 = vmatprep.subr.mxu0 0.0
    %7346 = vmatpush1.msra.mxu0 0.0
    %7347 = vmatprep.subr.mxu0 0.0
    %7348 = vmatpush1.msra.mxu0 0.0
    %7349 = vmatprep.subr.mxu0 0.0
    %7350 = vmatpush1.msra.mxu0 0.0
    %7351 = vmatprep.subr.mxu0 0.0
    %7352 = vmatpush1.msra.mxu0 0.0
    %7353 = vmatprep.subr.mxu0 0.0
    %7354 = vmatpush1.msra.mxu0 0.0
    %7355 = vmatprep.subr.mxu0 0.0
    %7356 = vmatpush1.msra.mxu0 0.0
    %7357 = vmatprep.subr.mxu0 0.0
    %7358 = vmatpush1.msra.mxu0 0.0
    %7359 = vmatprep.mubr.f32.mxu0 0.0
    %7360 = vmatmul.mubr.f32.gmra.mrb[0].mxu0 %v831
    %v7361 = vpop.f32.mrb[0].mxu0
    %v7362 = vadd.f32 %v7292, %v7361
    %v7363 = vpop.f32.mrb[0].mxu0
    %7364 = vdwg.mxu0
    %v7365 = vlaneseq
    %v7366 = vshrl.u32 %v7365, 7
    %v7367 = vsub.s32 0, %v7366
    %v7368 = vrot.slane %v7219, %v7367
    %v7369 = vmul.f32 %v7362, %v7368
    %v7370 = vlaneseq
    %v7371 = vshrl.u32 %v7370, 7
    %v7372 = vsub.s32 1, %v7371
    %v7373 = vrot.slane %v7224, %v7372
    %v7374 = vmul.f32 %v835, %v7373
    %v7375 = vadd.f32 %v7369, %v7374
    %7377 = vrot.lane.b32.xlu0 %v5283, 32
    %v7378 = vpop.permute.xlu0 %7377
    %7381 = vrot.lane.b32.xlu0 %v7375, 64
    %v7382 = vpop.permute.xlu0 %7381
    %v7384 = vsel %vm2232, %v3191, %v7378
    %vm7385 = vcmask 523264
    %v7386 = vsel %vm7385, %v7384, %v7382
    %vm7387 = vcmask 785408
    %v7388 = vsel %vm7387, %v7386, 0.0
    %v7389 = vld [vmem:[%s15] sm:$0xff]
    %v7390 = vld [vmem:[%s15 + $0x8] sm:$0xff]
    %v7391 = vld [vmem:[%s15 + $0x10] sm:$0xff]
    %v7392 = vld [vmem:[%s15 + $0x18] sm:$0xff]
    %v7393 = vld [vmem:[%s15 + $0x20] sm:$0xff]
    %v7394 = vld [vmem:[%s15 + $0x28] sm:$0xff]
    %v7395 = vld [vmem:[%s15 + $0x30] sm:$0xff]
    %v7396 = vld [vmem:[%s15 + $0x38] sm:$0xff]
    %v7397 = vld [vmem:[%s15 + $0x40] sm:$0xff]
    %v7398 = vld [vmem:[%s15 + $0x48] sm:$0xff]
    %v7399 = vld [vmem:[%s15 + $0x50] sm:$0xff]
    %v7400 = vld [vmem:[%s15 + $0x58] sm:$0xff]
    %v7401 = vld [vmem:[%s15 + $0x60] sm:$0xff]
    %v7402 = vld [vmem:[%s15 + $0x68] sm:$0xff]
    %v7403 = vld [vmem:[%s15 + $0x70] sm:$0xff]
    %v7404 = vld [vmem:[%s15 + $0x78] sm:$0xff]
    %v7405 = vld [vmem:[%s16] sm:$0x1]
    %v7407 = vlaneseq
    %v7408 = vshrl.u32 %v7407, 7
    %v7409 = vsub.s32 0, %v7408
    %v7410 = vrot.slane %v7405, %v7409
    %7412 = vmatprep.subr.mxu0 0.0
    %7413 = vmatpush1.msra.mxu0 %v7389
    %7414 = vmatprep.subr.mxu0 0.0
    %7415 = vmatpush1.msra.mxu0 %v7390
    %7416 = vmatprep.subr.mxu0 0.0
    %7417 = vmatpush1.msra.mxu0 %v7391
    %7418 = vmatprep.subr.mxu0 0.0
    %7419 = vmatpush1.msra.mxu0 %v7392
    %7420 = vmatprep.subr.mxu0 0.0
    %7421 = vmatpush1.msra.mxu0 %v7393
    %7422 = vmatprep.subr.mxu0 0.0
    %7423 = vmatpush1.msra.mxu0 %v7394
    %7424 = vmatprep.subr.mxu0 0.0
    %7425 = vmatpush1.msra.mxu0 %v7395
    %7426 = vmatprep.subr.mxu0 0.0
    %7427 = vmatpush1.msra.mxu0 %v7396
    %7428 = vmatprep.subr.mxu0 0.0
    %7429 = vmatpush1.msra.mxu0 %v7397
    %7430 = vmatprep.subr.mxu0 0.0
    %7431 = vmatpush1.msra.mxu0 %v7398
    %7432 = vmatprep.subr.mxu0 0.0
    %7433 = vmatpush1.msra.mxu0 %v7399
    %7434 = vmatprep.subr.mxu0 0.0
    %7435 = vmatpush1.msra.mxu0 %v7400
    %7436 = vmatprep.subr.mxu0 0.0
    %7437 = vmatpush1.msra.mxu0 %v7401
    %7438 = vmatprep.subr.mxu0 0.0
    %7439 = vmatpush1.msra.mxu0 %v7402
    %7440 = vmatprep.subr.mxu0 0.0
    %7441 = vmatpush1.msra.mxu0 %v7403
    %7442 = vmatprep.subr.mxu0 0.0
    %7443 = vmatpush1.msra.mxu0 %v7404
    %7444 = vmatprep.subr.mxu0 0.0
    %7445 = vmatpush1.msra.mxu0 0.0
    %7446 = vmatprep.subr.mxu0 0.0
    %7447 = vmatpush1.msra.mxu0 0.0
    %7448 = vmatprep.subr.mxu0 0.0
    %7449 = vmatpush1.msra.mxu0 0.0
    %7450 = vmatprep.subr.mxu0 0.0
    %7451 = vmatpush1.msra.mxu0 0.0
    %7452 = vmatprep.subr.mxu0 0.0
    %7453 = vmatpush1.msra.mxu0 0.0
    %7454 = vmatprep.subr.mxu0 0.0
    %7455 = vmatpush1.msra.mxu0 0.0
    %7456 = vmatprep.subr.mxu0 0.0
    %7457 = vmatpush1.msra.mxu0 0.0
    %7458 = vmatprep.subr.mxu0 0.0
    %7459 = vmatpush1.msra.mxu0 0.0
    %7460 = vmatprep.subr.mxu0 0.0
    %7461 = vmatpush1.msra.mxu0 0.0
    %7462 = vmatprep.subr.mxu0 0.0
    %7463 = vmatpush1.msra.mxu0 0.0
    %7464 = vmatprep.subr.mxu0 0.0
    %7465 = vmatpush1.msra.mxu0 0.0
    %7466 = vmatprep.subr.mxu0 0.0
    %7467 = vmatpush1.msra.mxu0 0.0
    %7468 = vmatprep.subr.mxu0 0.0
    %7469 = vmatpush1.msra.mxu0 0.0
    %7470 = vmatprep.subr.mxu0 0.0
    %7471 = vmatpush1.msra.mxu0 0.0
    %7472 = vmatprep.subr.mxu0 0.0
    %7473 = vmatpush1.msra.mxu0 0.0
    %7474 = vmatprep.subr.mxu0 0.0
    %7475 = vmatpush1.msra.mxu0 0.0
    %7476 = vmatprep.mubr.f32.mxu0 0.0
    %7477 = vmatmul.mubr.f32.gmra.mrb[0].mxu0 %v7388
    %v7478 = vpop.f32.mrb[0].mxu0
    %v7479 = vadd.f32 %v7410, %v7478
    %v7480 = vpop.f32.mrb[0].mxu0
    %7481 = vdwg.mxu0
    %v7482 = vmax.f32 %v7479, 0.0
    %v7483 = vld [vmem:[%s17] sm:$0xff]
    %v7484 = vld [vmem:[%s17 + $0x8] sm:$0xff]
    %v7485 = vld [vmem:[%s17 + $0x10] sm:$0xff]
    %v7486 = vld [vmem:[%s17 + $0x18] sm:$0xff]
    %v7487 = vld [vmem:[%s17 + $0x20] sm:$0xff]
    %v7488 = vld [vmem:[%s17 + $0x28] sm:$0xff]
    %v7489 = vld [vmem:[%s17 + $0x30] sm:$0xff]
    %v7490 = vld [vmem:[%s17 + $0x38] sm:$0xff]
    %v7491 = vld [vmem:[%s17 + $0x40] sm:$0xff]
    %v7492 = vld [vmem:[%s17 + $0x48] sm:$0xff]
    %v7493 = vld [vmem:[%s17 + $0x50] sm:$0xff]
    %v7494 = vld [vmem:[%s17 + $0x58] sm:$0xff]
    %v7495 = vld [vmem:[%s17 + $0x60] sm:$0xff]
    %v7496 = vld [vmem:[%s17 + $0x68] sm:$0xff]
    %v7497 = vld [vmem:[%s17 + $0x70] sm:$0xff]
    %v7498 = vld [vmem:[%s17 + $0x78] sm:$0xff]
    %v7499 = vld [vmem:[%s18] sm:$0x1]
    %v7501 = vlaneseq
    %v7502 = vshrl.u32 %v7501, 7
    %v7503 = vsub.s32 0, %v7502
    %v7504 = vrot.slane %v7499, %v7503
    %7506 = vmatprep.subr.mxu0 0.0
    %7507 = vmatpush1.msra.mxu0 %v7483
    %7508 = vmatprep.subr.mxu0 0.0
    %7509 = vmatpush1.msra.mxu0 %v7484
    %7510 = vmatprep.subr.mxu0 0.0
    %7511 = vmatpush1.msra.mxu0 %v7485
    %7512 = vmatprep.subr.mxu0 0.0
    %7513 = vmatpush1.msra.mxu0 %v7486
    %7514 = vmatprep.subr.mxu0 0.0
    %7515 = vmatpush1.msra.mxu0 %v7487
    %7516 = vmatprep.subr.mxu0 0.0
    %7517 = vmatpush1.msra.mxu0 %v7488
    %7518 = vmatprep.subr.mxu0 0.0
    %7519 = vmatpush1.msra.mxu0 %v7489
    %7520 = vmatprep.subr.mxu0 0.0
    %7521 = vmatpush1.msra.mxu0 %v7490
    %7522 = vmatprep.subr.mxu0 0.0
    %7523 = vmatpush1.msra.mxu0 %v7491
    %7524 = vmatprep.subr.mxu0 0.0
    %7525 = vmatpush1.msra.mxu0 %v7492
    %7526 = vmatprep.subr.mxu0 0.0
    %7527 = vmatpush1.msra.mxu0 %v7493
    %7528 = vmatprep.subr.mxu0 0.0
    %7529 = vmatpush1.msra.mxu0 %v7494
    %7530 = vmatprep.subr.mxu0 0.0
    %7531 = vmatpush1.msra.mxu0 %v7495
    %7532 = vmatprep.subr.mxu0 0.0
    %7533 = vmatpush1.msra.mxu0 %v7496
    %7534 = vmatprep.subr.mxu0 0.0
    %7535 = vmatpush1.msra.mxu0 %v7497
    %7536 = vmatprep.subr.mxu0 0.0
    %7537 = vmatpush1.msra.mxu0 %v7498
    %7538 = vmatprep.subr.mxu0 0.0
    %7539 = vmatpush1.msra.mxu0 0.0
    %7540 = vmatprep.subr.mxu0 0.0
    %7541 = vmatpush1.msra.mxu0 0.0
    %7542 = vmatprep.subr.mxu0 0.0
    %7543 = vmatpush1.msra.mxu0 0.0
    %7544 = vmatprep.subr.mxu0 0.0
    %7545 = vmatpush1.msra.mxu0 0.0
    %7546 = vmatprep.subr.mxu0 0.0
    %7547 = vmatpush1.msra.mxu0 0.0
    %7548 = vmatprep.subr.mxu0 0.0
    %7549 = vmatpush1.msra.mxu0 0.0
    %7550 = vmatprep.subr.mxu0 0.0
    %7551 = vmatpush1.msra.mxu0 0.0
    %7552 = vmatprep.subr.mxu0 0.0
    %7553 = vmatpush1.msra.mxu0 0.0
    %7554 = vmatprep.subr.mxu0 0.0
    %7555 = vmatpush1.msra.mxu0 0.0
    %7556 = vmatprep.subr.mxu0 0.0
    %7557 = vmatpush1.msra.mxu0 0.0
    %7558 = vmatprep.subr.mxu0 0.0
    %7559 = vmatpush1.msra.mxu0 0.0
    %7560 = vmatprep.subr.mxu0 0.0
    %7561 = vmatpush1.msra.mxu0 0.0
    %7562 = vmatprep.subr.mxu0 0.0
    %7563 = vmatpush1.msra.mxu0 0.0
    %7564 = vmatprep.subr.mxu0 0.0
    %7565 = vmatpush1.msra.mxu0 0.0
    %7566 = vmatprep.subr.mxu0 0.0
    %7567 = vmatpush1.msra.mxu0 0.0
    %7568 = vmatprep.subr.mxu0 0.0
    %7569 = vmatpush1.msra.mxu0 0.0
    %7570 = vmatprep.mubr.f32.mxu0 0.0
    %7571 = vmatmul.mubr.f32.gmra.mrb[0].mxu0 %v7482
    %v7572 = vpop.f32.mrb[0].mxu0
    %v7573 = vadd.f32 %v7504, %v7572
    %v7574 = vpop.f32.mrb[0].mxu0
    %7575 = vdwg.mxu0
    %v7576 = vmul.f32 %v7388, %v7388
    %7577 = vadd.xlane.f32.xlu0 %v7576
    %v7578 = vpop.xlane.xlu0 %7577
    %v7579 = vmax.f32 %v7578, 1e-24
    %v7580 = vrsqrt.pop %v7579
    %v7581 = vmul.f32 %v7388, %v7580
    %7582 = vst [vmem:[#allocation26] sm:$0xff] %v7581
    %v7583 = vmul.f32 %v7573, %v7573
    %7584 = vadd.xlane.f32.xlu0 %v7583
    %v7585 = vpop.xlane.xlu0 %7584
    %v7586 = vmax.f32 %v7585, 1e-24
    %v7587 = vrsqrt.pop %v7586
    %v7588 = vmul.f32 %v7573, %v7587
    %7589 = vst [vmem:[#allocation25] sm:$0xff] %v7588
    // Predicated region
    $region134: #{tpu_custom_call.1} parent=1 // pred_check
      _
    $region135: #{tpu_custom_call.1} parent=1 // pred_check_branch
      %7591 = sbr.rel (0) target = $region137
    $region136: #{tpu_custom_call.1} parent=1 // pred_region
      %s7593 = ssub.s32 128, 128
      %7594 = vsyncadd [#allocation4], %s7593
      %s7596 = sshll.u32 [#allocation25], 4
      %s7597 = int_to_ptr.vmem [resolvable:$true] %s7596
      %7599 = dma.vmem_to_hbm [thread:$0]  %s7597, 128, %s19, [#allocation4]
    $region137: #{tpu_custom_call.1} parent=1 // pred_fallthru
      _
    // Predicated region
    $region138: #{tpu_custom_call.1} parent=1 // pred_check
      _
    $region139: #{tpu_custom_call.1} parent=1 // pred_check_branch
      %7601 = sbr.rel (0) target = $region141
    $region140: #{tpu_custom_call.1} parent=1 // pred_region
      %s7603 = ssub.s32 128, 128
      %7604 = vsyncadd [#allocation27], %s7603
      %s7606 = sshll.u32 [#allocation26], 4
      %s7607 = int_to_ptr.vmem [resolvable:$true] %s7606
      %7609 = dma.vmem_to_hbm [thread:$0]  %s7607, 128, %s20, [#allocation27]
    $region141: #{tpu_custom_call.1} parent=1 // pred_fallthru
      _
    // Predicated region
    $region142: #{tpu_custom_call.1} parent=1 // pred_check
      _
    $region143: #{tpu_custom_call.1} parent=1 // pred_check_branch
      %7611 = sbr.rel (0) target = $region145
    $region144: #{tpu_custom_call.1} parent=1 // pred_region
      %7612 = dma.done [#allocation4], 128
    $region145: #{tpu_custom_call.1} parent=1 // pred_fallthru
      _
    // Predicated region
    $region146: #{tpu_custom_call.1} parent=1 // pred_check
      _
    $region147: #{tpu_custom_call.1} parent=1 // pred_check_branch
      %7614 = sbr.rel (0) target = $region149
    $region148: #{tpu_custom_call.1} parent=1 // pred_region
      %7615 = dma.done [#allocation27], 128
    $region149: #{tpu_custom_call.1} parent=1 // pred_fallthru
      _
    %7616 = vsyncpa [#allocation3], 1
    %7617 = vsyncpa [#allocation6], 1
    %7618 = vsyncpa [#allocation9], 1
    %7619 = vsyncpa [#allocation12], 1
    %7620 = vsyncpa [#allocation15], 1
    %7621 = vsyncpa [#allocation18], 1
    %7622 = vsyncpa [#allocation21], 1
    %7623 = vsyncpa [#allocation24], 1
    %7624 = vsyncpa [#allocation4], 1
    %7625 = vsyncpa [#allocation27], 1

</llo_original>
